<compile_context>
chip_gen: v6e
topology: v6e:2x2x1
jax: 0.10.0
libtpu: 0.0.40
codegen_flags: <defaults>
</compile_context>

<pallas_src>
import functools

import jax
import jax.numpy as jnp
from jax.experimental import pallas as pl
from jax.experimental.pallas import tpu as pltpu


RGB_MEAN = (0.4488, 0.4371, 0.404)


# ---------------------------------------------------------------------------
# Weight packing (done ONCE at init, hoisted out of the forward pass):
#   KxK conv OIHW -> (KH*KW, Cout, Cin) bf16   (tap t = kh*KW + kw)
#   1x1 conv OIHW -> (Cout, Cin)        bf16
# so the kernel computes  out(Cout, HW) += W_tap @ shifted_activation(Cin, HW).
# ---------------------------------------------------------------------------
def _pack_taps(w_oihw):
    cout, cin, kh, kw = w_oihw.shape
    return (jnp.transpose(w_oihw, (2, 3, 0, 1))
            .reshape(kh * kw, cout, cin).astype(jnp.bfloat16))


def _pack_1x1(w_oihw):
    cout, cin, _, _ = w_oihw.shape
    return w_oihw.reshape(cout, cin).astype(jnp.bfloat16)


def _unpack_taps(w_packed):
    kk, cout, cin = w_packed.shape
    k = int(round(kk ** 0.5))
    return jnp.transpose(w_packed.astype(jnp.float32).reshape(k, k, cout, cin),
                         (2, 3, 0, 1))                       # -> OIHW f32


def _unpack_1x1(w_packed):
    cout, cin = w_packed.shape
    return w_packed.astype(jnp.float32).reshape(cout, cin, 1, 1)


# ---------------------------------------------------------------------------
# Fused whole-network kernel (one grid step == one image's full forward pass).
# ---------------------------------------------------------------------------
def _make_wdsr_kernel(H, W, n_blocks):
    HW = H * W

    def kernel(*refs):
        it = iter(refs)
        x_ref = next(it)          # (Cin, HW)  f32   image (NCHW flattened)
        xi_ref = next(it)         # (1, HW)    i32   pixel x coordinate
        yi_ref = next(it)         # (1, HW)    i32   pixel y coordinate
        mean_in_ref = next(it)    # (Cin, 1)   f32   rgb_mean
        head_w_ref = next(it)     # (9, ngf, Cin)        bf16
        blocks = [(next(it), next(it), next(it)) for _ in range(n_blocks)]
        tail_w_ref = next(it)     # (9, nco*r*r, ngf)    bf16
        tail_b_ref = next(it)     # (nco*r*r, 1)         f32
        skip_w_ref = next(it)     # (25, nco*r*r, Cin)   bf16
        skip_b_ref = next(it)     # (nco*r*r, 1)         f32
        mean_out_ref = next(it)   # (nco*r*r, 1)         f32 (pre-shuffle order)
        alphas_ref = next(it)     # SMEM (n_blocks,)     f32 PReLU alphas
        o_ref = next(it)          # (nco*r*r, HW)        pre-shuffle output

        xi = xi_ref[...]
        yi = yi_ref[...]
        x_first = xi == 0
        x_last = xi == W - 1
        y_first = yi == 0
        y_last = yi == H - 1

        def shift_flat(a, off):
            """shifted[p] = a[(p + off) % HW] -- lane-axis rotation (XLU slot)."""
            shift = (-off) % HW
            if shift == 0:
                return a
            return pltpu.roll(a, shift, 1)

        def tap_dot(w_ref, t, s):
            """(Cout, Cin) @ (Cin, HW) on the MXU, bf16 operands, f32 accum."""
            return jnp.dot(w_ref[t], s.astype(jnp.bfloat16),
                           preferred_element_type=jnp.float32)

        def conv3x3_reflect(a, w_ref):
            """'same' 3x3 conv with ReflectionPad(1). a: (Cin, HW) f32."""
            aL = shift_flat(a, -1)                      # a[y, x-1] (interior)
            aR = shift_flat(a, +1)                      # a[y, x+1] (interior)
            hs = {-1: jnp.where(x_first, aR, aL),       # reflect at x == 0
                  0: a,
                  1: jnp.where(x_last, aL, aR)}         # reflect at x == W-1
            acc = None
            for ox in (-1, 0, 1):
                s = hs[ox]
                sU = shift_flat(s, -W)                  # s[y-1, x] (interior)
                sD = shift_flat(s, +W)                  # s[y+1, x] (interior)
                vs = {-1: jnp.where(y_first, sD, sU),   # reflect at y == 0
                      0: s,
                      1: jnp.where(y_last, sU, sD)}     # reflect at y == H-1
                for oy in (-1, 0, 1):
                    c = tap_dot(w_ref, (oy + 1) * 3 + (ox + 1), vs[oy])
                    acc = c if acc is None else acc + c
            return acc

        def conv_zero(a, w_ref, k, bias_ref):
            """'same' KxK conv, zero padding k//2, + bias. a: (Cin, HW) f32."""
            p = k // 2
            acc = None
            for oy in range(-p, p + 1):
                for ox in range(-p, p + 1):
                    if oy == 0 and ox == 0:
                        s = a
                    else:
                        s = shift_flat(a, oy * W + ox)
                        cond = None
                        if ox > 0:
                            cond = xi < W - ox
                        elif ox < 0:
                            cond = xi >= -ox
                        if oy > 0:
                            c2 = yi < H - oy
                            cond = c2 if cond is None else cond & c2
                        elif oy < 0:
                            c2 = yi >= -oy
                            cond = c2 if cond is None else cond & c2
                        s = jnp.where(cond, s, 0.0)     # zero border (no pad copy)
                    c = tap_dot(w_ref, (oy + p) * k + (ox + p), s)
                    acc = c if acc is None else acc + c
            return acc + bias_ref[...]

        # ---------------- forward ----------------
        x = x_ref[...] - mean_in_ref[...]                     # x - rgb_mean

        # head: ReflectionPad(1) -> conv3x3, no bias
        h = conv3x3_reflect(x, head_w_ref)

        # body: ResidualBlock_B x n_blocks (res_scale == 1)
        # TODO(synk): for deeper bodies stack per-block weights + lax.fori_loop
        # to bound live ranges; n_blocks=2 is fine fully unrolled.
        for bi, (w1_ref, w21_ref, w22_ref) in enumerate(blocks):
            alpha = alphas_ref[bi]
            t = jnp.dot(w1_ref[...], h.astype(jnp.bfloat16),
                        preferred_element_type=jnp.float32)          # 1x1 expand
            t = jnp.where(t >= 0.0, t, alpha * t)                    # PReLU (f32)
            t = jnp.dot(w21_ref[...], t.astype(jnp.bfloat16),
                        preferred_element_type=jnp.float32)          # 1x1 linear
            h = h + conv3x3_reflect(t, w22_ref)                      # 3x3 + residual

        # tail: conv3x3, zero pad 1, bias (PixelShuffle happens outside)
        t = conv_zero(h, tail_w_ref, 3, tail_b_ref)

        # skip: conv5x5, zero pad 2, bias (computed last: shorter live range than t+s)
        s = conv_zero(x, skip_w_ref, 5, skip_b_ref)

        # learn_residual (+s), + rgb_mean, sigmoid -- fused, pre-shuffle layout,
        # lane-dense (HW last) so the output store / DMA is full-width.
        o_ref[...] = jax.nn.sigmoid(t + s + mean_out_ref[...]).astype(o_ref.dtype)

    return kernel


# ---------------------------------------------------------------------------
# Forward pass (input/output NCHW like PyTorch).
# ---------------------------------------------------------------------------
def wdsr_forward(params, x_nchw, *, scale=2):
    N, cin, H, W = x_nchw.shape
    HW = H * W
    r = scale
    nco4 = params["tail_w"].shape[1]
    nco = nco4 // (r * r)
    n_blocks = len(params["blocks"])
    assert cin == 3 and nco == 3, "rgb_mean requires 3 input/output channels"

    # (C, HW) lane-dense layout is literally a reshape of NCHW: no transpose.
    x_flat = x_nchw.astype(jnp.float32).reshape(N, cin, HW)

    mean_in = jnp.asarray(RGB_MEAN, jnp.float32).reshape(cin, 1)
    # pre-shuffle channel k = c*r*r + i*r + j  ->  mean[k] = rgb_mean[k // (r*r)]
    mean_out = jnp.repeat(jnp.asarray(RGB_MEAN, jnp.float32), r * r).reshape(nco4, 1)

    # Pixel coordinate rows used for the in-kernel reflect/zero border selects.
    idx = jnp.arange(HW, dtype=jnp.int32)
    xi = (idx % W).reshape(1, HW)
    yi = (idx // W).reshape(1, HW)

    def const_spec(arr):
        shape = tuple(arr.shape)
        return pl.BlockSpec(shape, lambda *_: (0,) * len(shape))

    inputs = [x_flat, xi, yi, mean_in, params["head_w"]]
    in_specs = [pl.BlockSpec((None, cin, HW), lambda n: (n, 0, 0)),
                const_spec(xi), const_spec(yi),
                const_spec(mean_in), const_spec(params["head_w"])]
    for blk in params["blocks"]:
        for name in ("w1", "w21", "w22"):
            inputs.append(blk[name])
            in_specs.append(const_spec(blk[name]))
    for name in ("tail_w", "tail_b", "skip_w", "skip_b"):
        inputs.append(params[name])
        in_specs.append(const_spec(params[name]))
    inputs.append(mean_out)
    in_specs.append(const_spec(mean_out))
    inputs.append(params["alphas"])
    in_specs.append(pl.BlockSpec(memory_space=pltpu.MemorySpace.SMEM))

    o = pl.pallas_call(
        _make_wdsr_kernel(H, W, n_blocks),
        out_shape=jax.ShapeDtypeStruct((N, nco4, HW), jnp.float32),
        grid=(N,),
        in_specs=in_specs,
        out_specs=pl.BlockSpec((None, nco4, HW), lambda n: (n, 0, 0)),
        compiler_params=pltpu.CompilerParams(dimension_semantics=("parallel",)),
    )(*inputs)

    # PixelShuffle (torch channel order k = c*r*r + i*r + j) as a free HBM
    # reshape/transpose outside the kernel, directly to NCHW.
    o = o.reshape(N, nco, r, r, H, W)            # (n, c, i, j, y, x)
    o = jnp.transpose(o, (0, 1, 4, 2, 5, 3))     # (n, c, y, i, x, j)
    return o.reshape(N, nco, H * r, W * r)


# ---------------------------------------------------------------------------
# Deterministic synthetic parameters (shapes follow the PyTorch __init__),
# pre-packed to per-tap bf16 matrices so the forward pass does no weight work.
# ---------------------------------------------------------------------------
def init_params(key, input_nc=3, output_nc=3, ngf=16, n_blocks=2,
                scale=2, expand=3, linear=0.8):
    def conv_w(k, cout, cin, kh, kw):
        fan_in = cin * kh * kw
        return jax.random.normal(k, (cout, cin, kh, kw), jnp.float32) * (fan_in ** -0.5)

    keys = jax.random.split(key, 5 + 3 * n_blocks)
    ki = iter(range(len(keys)))
    lin = int(ngf * linear)                      # matches int(num_filters * linear)
    nco4 = output_nc * scale * scale

    params = {
        # head: ReflectionPad(1) + conv3x3, no bias (use_bias=False for 'weight')
        "head_w": _pack_taps(conv_w(keys[next(ki)], ngf, input_nc, 3, 3)),
        # tail (PSBlock): conv3x3 ngf -> output_nc*r^2, bias, zero pad 1
        "tail_w": _pack_taps(conv_w(keys[next(ki)], nco4, ngf, 3, 3)),
        "tail_b": (jax.random.normal(keys[next(ki)], (nco4,), jnp.float32) * 0.01
                   ).reshape(nco4, 1),
        # skip (PSBlock): conv5x5 input_nc -> output_nc*r^2, bias, zero pad 2
        "skip_w": _pack_taps(conv_w(keys[next(ki)], nco4, input_nc, 5, 5)),
        "skip_b": (jax.random.normal(keys[next(ki)], (nco4,), jnp.float32) * 0.01
                   ).reshape(nco4, 1),
        "alphas": jnp.full((n_blocks,), 0.25, jnp.float32),   # PReLU default init
        "blocks": [],
    }
    for _ in range(n_blocks):
        k1, k2, k3 = (keys[next(ki)] for _ in range(3))
        params["blocks"].append({
            "w1": _pack_1x1(conv_w(k1, ngf * expand, ngf, 1, 1)),   # 1x1, no bias
            "w21": _pack_1x1(conv_w(k2, lin, ngf * expand, 1, 1)),  # 1x1, no bias
            "w22": _pack_taps(conv_w(k3, ngf, lin, 3, 3)),          # 3x3 reflect
        })
    return params


# ---------------------------------------------------------------------------
# Pure-XLA reference (lax.conv) of the same module, for correctness checking.
# Uses the SAME (bf16-rounded) weight values, so only the kernel's bf16
# activation rounding / accumulation order differs.
# ---------------------------------------------------------------------------
def _conv_ref(x, w_oihw, b=None, padding=0, pad_mode="zero"):
    if padding > 0:
        mode = "reflect" if pad_mode == "reflect" else "constant"
        x = jnp.pad(x, ((0, 0), (0, 0), (padding, padding), (padding, padding)),
                    mode=mode)
    y = jax.lax.conv_general_dilated(
        x, w_oihw, (1, 1), "VALID",
        dimension_numbers=("NCHW", "OIHW", "NCHW"),
        precision=jax.lax.Precision.HIGHEST)
    if b is not None:
        y = y + b.reshape(1, -1, 1, 1)
    return y


def _pixel_shuffle_ref(y, r):
    n, crr, h, w = y.shape
    c = crr // (r * r)
    y = y.reshape(n, c, r, r, h, w)
    return jnp.transpose(y, (0, 1, 4, 2, 5, 3)).reshape(n, c, h * r, w * r)


def wdsr_reference(params, x, *, scale=2):
    rgb = jnp.asarray(RGB_MEAN, jnp.float32).reshape(1, 3, 1, 1)
    x = x - rgb
    s = _conv_ref(x, _unpack_taps(params["skip_w"]),
                  params["skip_b"].reshape(-1), padding=2, pad_mode="zero")
    s = _pixel_shuffle_ref(s, scale)
    h = _conv_ref(x, _unpack_taps(params["head_w"]),
                  None, padding=1, pad_mode="reflect")
    for bi, blk in enumerate(params["blocks"]):
        t = _conv_ref(h, _unpack_1x1(blk["w1"]))
        a = params["alphas"][bi]
        t = jnp.where(t >= 0.0, t, a * t)
        t = _conv_ref(t, _unpack_1x1(blk["w21"]))
        h = h + _conv_ref(t, _unpack_taps(blk["w22"]),
                          None, padding=1, pad_mode="reflect")
    t = _conv_ref(h, _unpack_taps(params["tail_w"]),
                  params["tail_b"].reshape(-1), padding=1, pad_mode="zero")
    t = _pixel_shuffle_ref(t, scale)
    return jax.nn.sigmoid(t + s + rgb)


if __name__ == "__main__":
    N, C, H, W = 2, 3, 16, 16          # input_nc=output_nc=3 (rgb_mean broadcast)
    NGF, NBLOCKS, SCALE = 16, 2, 2

    x = jax.random.uniform(jax.random.PRNGKey(0), (N, C, H, W), jnp.float32)
    params = init_params(jax.random.PRNGKey(1234), input_nc=C, output_nc=C,
                         ngf=NGF, n_blocks=NBLOCKS, scale=SCALE)

    fwd = jax.jit(functools.partial(wdsr_forward, scale=SCALE))
    y = fwd(params, x)
    jax.block_until_ready(y)

    assert y.shape == (N, C, H * SCALE, W * SCALE), y.shape
    assert bool(jnp.all(jnp.isfinite(y)))
    assert bool(jnp.all((y >= 0.0) & (y <= 1.0)))          # sigmoid output range

    # Cross-check against the pure-XLA reference. Tolerance loosened vs the
    # all-f32 version because the kernel now uses bf16 MXU operands (f32 accum);
    # structural/layout/padding bugs would be orders of magnitude larger.
    y_ref = jax.jit(functools.partial(wdsr_reference, scale=SCALE))(params, x)
    err = float(jnp.max(jnp.abs(y - y_ref)))
    assert err < 5e-2, f"mismatch vs reference: max abs err {err}"

    print("KERNEL_OK")
</pallas_src>

<mosaic_0001>
module attributes {stable_mosaic.version = 11 : i64} {
  func.func @kernel(%arg0: i32, %arg1: memref<1x3x256xf32, #tpu.memory_space<vmem>>, %arg2: memref<1x256xi32, #tpu.memory_space<vmem>>, %arg3: memref<1x256xi32, #tpu.memory_space<vmem>>, %arg4: memref<3x1xf32, #tpu.memory_space<vmem>>, %arg5: memref<9x16x3xbf16, #tpu.memory_space<vmem>>, %arg6: memref<48x16xbf16, #tpu.memory_space<vmem>>, %arg7: memref<12x48xbf16, #tpu.memory_space<vmem>>, %arg8: memref<9x16x12xbf16, #tpu.memory_space<vmem>>, %arg9: memref<48x16xbf16, #tpu.memory_space<vmem>>, %arg10: memref<12x48xbf16, #tpu.memory_space<vmem>>, %arg11: memref<9x16x12xbf16, #tpu.memory_space<vmem>>, %arg12: memref<9x12x16xbf16, #tpu.memory_space<vmem>>, %arg13: memref<12x1xf32, #tpu.memory_space<vmem>>, %arg14: memref<25x12x3xbf16, #tpu.memory_space<vmem>>, %arg15: memref<12x1xf32, #tpu.memory_space<vmem>>, %arg16: memref<12x1xf32, #tpu.memory_space<vmem>>, %arg17: memref<2xf32, #tpu.memory_space<smem>>, %arg18: memref<1x12x256xf32, #tpu.memory_space<vmem>>) attributes {dimension_semantics = [#tpu.dimension_semantics<parallel>], iteration_bounds = array<i64: 2>, scalar_prefetch = 0 : i64, scratch_operands = 0 : i64, tpu.core_type = #tpu.core_type<tc>, window_params = [{transform_indices = @transform_0, window_bounds = array<i64: 1, 3, 256>}, {pipeline_mode = #tpu.pipeline_mode<synchronous>, transform_indices = @transform_1, window_bounds = array<i64: 1, 256>}, {pipeline_mode = #tpu.pipeline_mode<synchronous>, transform_indices = @transform_2, window_bounds = array<i64: 1, 256>}, {pipeline_mode = #tpu.pipeline_mode<synchronous>, transform_indices = @transform_3, window_bounds = array<i64: 3, 1>}, {pipeline_mode = #tpu.pipeline_mode<synchronous>, transform_indices = @transform_4, window_bounds = array<i64: 9, 16, 3>}, {pipeline_mode = #tpu.pipeline_mode<synchronous>, transform_indices = @transform_5, window_bounds = array<i64: 48, 16>}, {pipeline_mode = #tpu.pipeline_mode<synchronous>, transform_indices = @transform_6, window_bounds = array<i64: 12, 48>}, {pipeline_mode = #tpu.pipeline_mode<synchronous>, transform_indices = @transform_7, window_bounds = array<i64: 9, 16, 12>}, {pipeline_mode = #tpu.pipeline_mode<synchronous>, transform_indices = @transform_8, window_bounds = array<i64: 48, 16>}, {pipeline_mode = #tpu.pipeline_mode<synchronous>, transform_indices = @transform_9, window_bounds = array<i64: 12, 48>}, {pipeline_mode = #tpu.pipeline_mode<synchronous>, transform_indices = @transform_10, window_bounds = array<i64: 9, 16, 12>}, {pipeline_mode = #tpu.pipeline_mode<synchronous>, transform_indices = @transform_11, window_bounds = array<i64: 9, 12, 16>}, {pipeline_mode = #tpu.pipeline_mode<synchronous>, transform_indices = @transform_12, window_bounds = array<i64: 12, 1>}, {pipeline_mode = #tpu.pipeline_mode<synchronous>, transform_indices = @transform_13, window_bounds = array<i64: 25, 12, 3>}, {pipeline_mode = #tpu.pipeline_mode<synchronous>, transform_indices = @transform_14, window_bounds = array<i64: 12, 1>}, {pipeline_mode = #tpu.pipeline_mode<synchronous>, transform_indices = @transform_15, window_bounds = array<i64: 12, 1>}, {transform_indices = @transform_16, window_bounds = array<i64: 2>}, {transform_indices = @transform_17, window_bounds = array<i64: 1, 12, 256>}]} {
    %c0 = arith.constant 0 : index
    %c0_0 = arith.constant 0 : index
    %0 = vector.load %arg2[%c0, %c0_0] : memref<1x256xi32, #tpu.memory_space<vmem>>, vector<1x256xi32>
    %c0_1 = arith.constant 0 : index
    %c0_2 = arith.constant 0 : index
    %1 = vector.load %arg3[%c0_1, %c0_2] : memref<1x256xi32, #tpu.memory_space<vmem>>, vector<1x256xi32>
    %c0_i32 = arith.constant 0 : i32
    %2 = vector.broadcast %c0_i32 : i32 to vector<1x256xi32>
    %3 = arith.cmpi eq, %0, %2 : vector<1x256xi32>
    %c15_i32 = arith.constant 15 : i32
    %4 = vector.broadcast %c15_i32 : i32 to vector<1x256xi32>
    %5 = arith.cmpi eq, %0, %4 : vector<1x256xi32>
    %c0_i32_3 = arith.constant 0 : i32
    %6 = vector.broadcast %c0_i32_3 : i32 to vector<1x256xi32>
    %7 = arith.cmpi eq, %1, %6 : vector<1x256xi32>
    %c15_i32_4 = arith.constant 15 : i32
    %8 = vector.broadcast %c15_i32_4 : i32 to vector<1x256xi32>
    %9 = arith.cmpi eq, %1, %8 : vector<1x256xi32>
    %c0_5 = arith.constant 0 : index
    %c0_6 = arith.constant 0 : index
    %c0_7 = arith.constant 0 : index
    %10 = vector.load %arg1[%c0_5, %c0_6, %c0_7] : memref<1x3x256xf32, #tpu.memory_space<vmem>>, vector<1x3x256xf32>
    %11 = vector.shape_cast %10 : vector<1x3x256xf32> to vector<3x256xf32>
    %c0_8 = arith.constant 0 : index
    %c0_9 = arith.constant 0 : index
    %12 = vector.load %arg4[%c0_8, %c0_9] : memref<3x1xf32, #tpu.memory_space<vmem>>, vector<3x1xf32>
    %13 = vector.broadcast %12 : vector<3x1xf32> to vector<3x256xf32>
    %14 = arith.subf %11, %13 : vector<3x256xf32>
    %c1_i32 = arith.constant 1 : i32
    %15 = tpu.dynamic_rotate %14 by %c1_i32 dim 1 : vector<3x256xf32>, i32 -> vector<3x256xf32>
    %c255_i32 = arith.constant 255 : i32
    %16 = tpu.dynamic_rotate %14 by %c255_i32 dim 1 : vector<3x256xf32>, i32 -> vector<3x256xf32>
    %17 = vector.shape_cast %3 : vector<1x256xi1> to vector<1x256xi1>
    %18 = vector.broadcast %17 : vector<1x256xi1> to vector<3x256xi1>
    %19 = arith.select %18, %16, %15 : vector<3x256xi1>, vector<3x256xf32>
    %20 = vector.shape_cast %5 : vector<1x256xi1> to vector<1x256xi1>
    %21 = vector.broadcast %20 : vector<1x256xi1> to vector<3x256xi1>
    %22 = arith.select %21, %15, %16 : vector<3x256xi1>, vector<3x256xf32>
    %c16_i32 = arith.constant 16 : i32
    %23 = tpu.dynamic_rotate %19 by %c16_i32 dim 1 : vector<3x256xf32>, i32 -> vector<3x256xf32>
    %c240_i32 = arith.constant 240 : i32
    %24 = tpu.dynamic_rotate %19 by %c240_i32 dim 1 : vector<3x256xf32>, i32 -> vector<3x256xf32>
    %25 = vector.shape_cast %7 : vector<1x256xi1> to vector<1x256xi1>
    %26 = vector.broadcast %25 : vector<1x256xi1> to vector<3x256xi1>
    %27 = arith.select %26, %24, %23 : vector<3x256xi1>, vector<3x256xf32>
    %28 = vector.shape_cast %9 : vector<1x256xi1> to vector<1x256xi1>
    %29 = vector.broadcast %28 : vector<1x256xi1> to vector<3x256xi1>
    %30 = arith.select %29, %23, %24 : vector<3x256xi1>, vector<3x256xf32>
    %c0_10 = arith.constant 0 : index
    %c0_11 = arith.constant 0 : index
    %c0_12 = arith.constant 0 : index
    %31 = vector.load %arg5[%c0_10, %c0_11, %c0_12] : memref<9x16x3xbf16, #tpu.memory_space<vmem>>, vector<1x16x3xbf16>
    %32 = vector.shape_cast %31 : vector<1x16x3xbf16> to vector<16x3xbf16>
    %33 = arith.truncf %27 : vector<3x256xf32> to vector<3x256xbf16>
    %cst = arith.constant dense<0.000000e+00> : vector<16x256xf32>
    %34 = tpu.matmul %32, %33, %cst {dimension_numbers = #tpu.dot_dimension_numbers<[1], [0], [0], [1], [0, 0, 1, 1], [], []>} : vector<16x3xbf16>, vector<3x256xbf16>, vector<16x256xf32> -> vector<16x256xf32>
    %c3 = arith.constant 3 : index
    %c0_13 = arith.constant 0 : index
    %c0_14 = arith.constant 0 : index
    %35 = vector.load %arg5[%c3, %c0_13, %c0_14] : memref<9x16x3xbf16, #tpu.memory_space<vmem>>, vector<1x16x3xbf16>
    %36 = vector.shape_cast %35 : vector<1x16x3xbf16> to vector<16x3xbf16>
    %37 = arith.truncf %19 : vector<3x256xf32> to vector<3x256xbf16>
    %cst_15 = arith.constant dense<0.000000e+00> : vector<16x256xf32>
    %38 = tpu.matmul %36, %37, %cst_15 {dimension_numbers = #tpu.dot_dimension_numbers<[1], [0], [0], [1], [0, 0, 1, 1], [], []>} : vector<16x3xbf16>, vector<3x256xbf16>, vector<16x256xf32> -> vector<16x256xf32>
    %39 = arith.addf %34, %38 : vector<16x256xf32>
    %c6 = arith.constant 6 : index
    %c0_16 = arith.constant 0 : index
    %c0_17 = arith.constant 0 : index
    %40 = vector.load %arg5[%c6, %c0_16, %c0_17] : memref<9x16x3xbf16, #tpu.memory_space<vmem>>, vector<1x16x3xbf16>
    %41 = vector.shape_cast %40 : vector<1x16x3xbf16> to vector<16x3xbf16>
    %42 = arith.truncf %30 : vector<3x256xf32> to vector<3x256xbf16>
    %cst_18 = arith.constant dense<0.000000e+00> : vector<16x256xf32>
    %43 = tpu.matmul %41, %42, %cst_18 {dimension_numbers = #tpu.dot_dimension_numbers<[1], [0], [0], [1], [0, 0, 1, 1], [], []>} : vector<16x3xbf16>, vector<3x256xbf16>, vector<16x256xf32> -> vector<16x256xf32>
    %44 = arith.addf %39, %43 : vector<16x256xf32>
    %c16_i32_19 = arith.constant 16 : i32
    %45 = tpu.dynamic_rotate %14 by %c16_i32_19 dim 1 : vector<3x256xf32>, i32 -> vector<3x256xf32>
    %c240_i32_20 = arith.constant 240 : i32
    %46 = tpu.dynamic_rotate %14 by %c240_i32_20 dim 1 : vector<3x256xf32>, i32 -> vector<3x256xf32>
    %47 = vector.shape_cast %7 : vector<1x256xi1> to vector<1x256xi1>
    %48 = vector.broadcast %47 : vector<1x256xi1> to vector<3x256xi1>
    %49 = arith.select %48, %46, %45 : vector<3x256xi1>, vector<3x256xf32>
    %50 = vector.shape_cast %9 : vector<1x256xi1> to vector<1x256xi1>
    %51 = vector.broadcast %50 : vector<1x256xi1> to vector<3x256xi1>
    %52 = arith.select %51, %45, %46 : vector<3x256xi1>, vector<3x256xf32>
    %c1 = arith.constant 1 : index
    %c0_21 = arith.constant 0 : index
    %c0_22 = arith.constant 0 : index
    %53 = vector.load %arg5[%c1, %c0_21, %c0_22] : memref<9x16x3xbf16, #tpu.memory_space<vmem>>, vector<1x16x3xbf16>
    %54 = vector.shape_cast %53 : vector<1x16x3xbf16> to vector<16x3xbf16>
    %55 = arith.truncf %49 : vector<3x256xf32> to vector<3x256xbf16>
    %cst_23 = arith.constant dense<0.000000e+00> : vector<16x256xf32>
    %56 = tpu.matmul %54, %55, %cst_23 {dimension_numbers = #tpu.dot_dimension_numbers<[1], [0], [0], [1], [0, 0, 1, 1], [], []>} : vector<16x3xbf16>, vector<3x256xbf16>, vector<16x256xf32> -> vector<16x256xf32>
    %57 = arith.addf %44, %56 : vector<16x256xf32>
    %c4 = arith.constant 4 : index
    %c0_24 = arith.constant 0 : index
    %c0_25 = arith.constant 0 : index
    %58 = vector.load %arg5[%c4, %c0_24, %c0_25] : memref<9x16x3xbf16, #tpu.memory_space<vmem>>, vector<1x16x3xbf16>
    %59 = vector.shape_cast %58 : vector<1x16x3xbf16> to vector<16x3xbf16>
    %60 = arith.truncf %14 : vector<3x256xf32> to vector<3x256xbf16>
    %cst_26 = arith.constant dense<0.000000e+00> : vector<16x256xf32>
    %61 = tpu.matmul %59, %60, %cst_26 {dimension_numbers = #tpu.dot_dimension_numbers<[1], [0], [0], [1], [0, 0, 1, 1], [], []>} : vector<16x3xbf16>, vector<3x256xbf16>, vector<16x256xf32> -> vector<16x256xf32>
    %62 = arith.addf %57, %61 : vector<16x256xf32>
    %c7 = arith.constant 7 : index
    %c0_27 = arith.constant 0 : index
    %c0_28 = arith.constant 0 : index
    %63 = vector.load %arg5[%c7, %c0_27, %c0_28] : memref<9x16x3xbf16, #tpu.memory_space<vmem>>, vector<1x16x3xbf16>
    %64 = vector.shape_cast %63 : vector<1x16x3xbf16> to vector<16x3xbf16>
    %65 = arith.truncf %52 : vector<3x256xf32> to vector<3x256xbf16>
    %cst_29 = arith.constant dense<0.000000e+00> : vector<16x256xf32>
    %66 = tpu.matmul %64, %65, %cst_29 {dimension_numbers = #tpu.dot_dimension_numbers<[1], [0], [0], [1], [0, 0, 1, 1], [], []>} : vector<16x3xbf16>, vector<3x256xbf16>, vector<16x256xf32> -> vector<16x256xf32>
    %67 = arith.addf %62, %66 : vector<16x256xf32>
    %c16_i32_30 = arith.constant 16 : i32
    %68 = tpu.dynamic_rotate %22 by %c16_i32_30 dim 1 : vector<3x256xf32>, i32 -> vector<3x256xf32>
    %c240_i32_31 = arith.constant 240 : i32
    %69 = tpu.dynamic_rotate %22 by %c240_i32_31 dim 1 : vector<3x256xf32>, i32 -> vector<3x256xf32>
    %70 = vector.shape_cast %7 : vector<1x256xi1> to vector<1x256xi1>
    %71 = vector.broadcast %70 : vector<1x256xi1> to vector<3x256xi1>
    %72 = arith.select %71, %69, %68 : vector<3x256xi1>, vector<3x256xf32>
    %73 = vector.shape_cast %9 : vector<1x256xi1> to vector<1x256xi1>
    %74 = vector.broadcast %73 : vector<1x256xi1> to vector<3x256xi1>
    %75 = arith.select %74, %68, %69 : vector<3x256xi1>, vector<3x256xf32>
    %c2 = arith.constant 2 : index
    %c0_32 = arith.constant 0 : index
    %c0_33 = arith.constant 0 : index
    %76 = vector.load %arg5[%c2, %c0_32, %c0_33] : memref<9x16x3xbf16, #tpu.memory_space<vmem>>, vector<1x16x3xbf16>
    %77 = vector.shape_cast %76 : vector<1x16x3xbf16> to vector<16x3xbf16>
    %78 = arith.truncf %72 : vector<3x256xf32> to vector<3x256xbf16>
    %cst_34 = arith.constant dense<0.000000e+00> : vector<16x256xf32>
    %79 = tpu.matmul %77, %78, %cst_34 {dimension_numbers = #tpu.dot_dimension_numbers<[1], [0], [0], [1], [0, 0, 1, 1], [], []>} : vector<16x3xbf16>, vector<3x256xbf16>, vector<16x256xf32> -> vector<16x256xf32>
    %80 = arith.addf %67, %79 : vector<16x256xf32>
    %c5 = arith.constant 5 : index
    %c0_35 = arith.constant 0 : index
    %c0_36 = arith.constant 0 : index
    %81 = vector.load %arg5[%c5, %c0_35, %c0_36] : memref<9x16x3xbf16, #tpu.memory_space<vmem>>, vector<1x16x3xbf16>
    %82 = vector.shape_cast %81 : vector<1x16x3xbf16> to vector<16x3xbf16>
    %83 = arith.truncf %22 : vector<3x256xf32> to vector<3x256xbf16>
    %cst_37 = arith.constant dense<0.000000e+00> : vector<16x256xf32>
    %84 = tpu.matmul %82, %83, %cst_37 {dimension_numbers = #tpu.dot_dimension_numbers<[1], [0], [0], [1], [0, 0, 1, 1], [], []>} : vector<16x3xbf16>, vector<3x256xbf16>, vector<16x256xf32> -> vector<16x256xf32>
    %85 = arith.addf %80, %84 : vector<16x256xf32>
    %c8 = arith.constant 8 : index
    %c0_38 = arith.constant 0 : index
    %c0_39 = arith.constant 0 : index
    %86 = vector.load %arg5[%c8, %c0_38, %c0_39] : memref<9x16x3xbf16, #tpu.memory_space<vmem>>, vector<1x16x3xbf16>
    %87 = vector.shape_cast %86 : vector<1x16x3xbf16> to vector<16x3xbf16>
    %88 = arith.truncf %75 : vector<3x256xf32> to vector<3x256xbf16>
    %cst_40 = arith.constant dense<0.000000e+00> : vector<16x256xf32>
    %89 = tpu.matmul %87, %88, %cst_40 {dimension_numbers = #tpu.dot_dimension_numbers<[1], [0], [0], [1], [0, 0, 1, 1], [], []>} : vector<16x3xbf16>, vector<3x256xbf16>, vector<16x256xf32> -> vector<16x256xf32>
    %90 = arith.addf %85, %89 : vector<16x256xf32>
    %c0_41 = arith.constant 0 : index
    %91 = memref.load %arg17[%c0_41] : memref<2xf32, #tpu.memory_space<smem>>
    %c0_42 = arith.constant 0 : index
    %c0_43 = arith.constant 0 : index
    %92 = vector.load %arg6[%c0_42, %c0_43] : memref<48x16xbf16, #tpu.memory_space<vmem>>, vector<48x16xbf16>
    %93 = arith.truncf %90 : vector<16x256xf32> to vector<16x256xbf16>
    %cst_44 = arith.constant dense<0.000000e+00> : vector<48x256xf32>
    %94 = tpu.matmul %92, %93, %cst_44 {dimension_numbers = #tpu.dot_dimension_numbers<[1], [0], [0], [1], [0, 0, 1, 1], [], []>} : vector<48x16xbf16>, vector<16x256xbf16>, vector<48x256xf32> -> vector<48x256xf32>
    %cst_45 = arith.constant 0.000000e+00 : f32
    %95 = vector.broadcast %cst_45 : f32 to vector<48x256xf32>
    %96 = arith.cmpf oge, %94, %95 : vector<48x256xf32>
    %97 = vector.broadcast %91 : f32 to vector<48x256xf32>
    %98 = arith.mulf %97, %94 : vector<48x256xf32>
    %99 = arith.select %96, %94, %98 : vector<48x256xi1>, vector<48x256xf32>
    %c0_46 = arith.constant 0 : index
    %c0_47 = arith.constant 0 : index
    %100 = vector.load %arg7[%c0_46, %c0_47] : memref<12x48xbf16, #tpu.memory_space<vmem>>, vector<12x48xbf16>
    %101 = arith.truncf %99 : vector<48x256xf32> to vector<48x256xbf16>
    %cst_48 = arith.constant dense<0.000000e+00> : vector<12x256xf32>
    %102 = tpu.matmul %100, %101, %cst_48 {dimension_numbers = #tpu.dot_dimension_numbers<[1], [0], [0], [1], [0, 0, 1, 1], [], []>} : vector<12x48xbf16>, vector<48x256xbf16>, vector<12x256xf32> -> vector<12x256xf32>
    %c1_i32_49 = arith.constant 1 : i32
    %103 = tpu.dynamic_rotate %102 by %c1_i32_49 dim 1 : vector<12x256xf32>, i32 -> vector<12x256xf32>
    %c255_i32_50 = arith.constant 255 : i32
    %104 = tpu.dynamic_rotate %102 by %c255_i32_50 dim 1 : vector<12x256xf32>, i32 -> vector<12x256xf32>
    %105 = vector.shape_cast %3 : vector<1x256xi1> to vector<1x256xi1>
    %106 = vector.broadcast %105 : vector<1x256xi1> to vector<12x256xi1>
    %107 = arith.select %106, %104, %103 : vector<12x256xi1>, vector<12x256xf32>
    %108 = vector.shape_cast %5 : vector<1x256xi1> to vector<1x256xi1>
    %109 = vector.broadcast %108 : vector<1x256xi1> to vector<12x256xi1>
    %110 = arith.select %109, %103, %104 : vector<12x256xi1>, vector<12x256xf32>
    %c16_i32_51 = arith.constant 16 : i32
    %111 = tpu.dynamic_rotate %107 by %c16_i32_51 dim 1 : vector<12x256xf32>, i32 -> vector<12x256xf32>
    %c240_i32_52 = arith.constant 240 : i32
    %112 = tpu.dynamic_rotate %107 by %c240_i32_52 dim 1 : vector<12x256xf32>, i32 -> vector<12x256xf32>
    %113 = vector.shape_cast %7 : vector<1x256xi1> to vector<1x256xi1>
    %114 = vector.broadcast %113 : vector<1x256xi1> to vector<12x256xi1>
    %115 = arith.select %114, %112, %111 : vector<12x256xi1>, vector<12x256xf32>
    %116 = vector.shape_cast %9 : vector<1x256xi1> to vector<1x256xi1>
    %117 = vector.broadcast %116 : vector<1x256xi1> to vector<12x256xi1>
    %118 = arith.select %117, %111, %112 : vector<12x256xi1>, vector<12x256xf32>
    %c0_53 = arith.constant 0 : index
    %c0_54 = arith.constant 0 : index
    %c0_55 = arith.constant 0 : index
    %119 = vector.load %arg8[%c0_53, %c0_54, %c0_55] : memref<9x16x12xbf16, #tpu.memory_space<vmem>>, vector<1x16x12xbf16>
    %120 = vector.shape_cast %119 : vector<1x16x12xbf16> to vector<16x12xbf16>
    %121 = arith.truncf %115 : vector<12x256xf32> to vector<12x256xbf16>
    %cst_56 = arith.constant dense<0.000000e+00> : vector<16x256xf32>
    %122 = tpu.matmul %120, %121, %cst_56 {dimension_numbers = #tpu.dot_dimension_numbers<[1], [0], [0], [1], [0, 0, 1, 1], [], []>} : vector<16x12xbf16>, vector<12x256xbf16>, vector<16x256xf32> -> vector<16x256xf32>
    %c3_57 = arith.constant 3 : index
    %c0_58 = arith.constant 0 : index
    %c0_59 = arith.constant 0 : index
    %123 = vector.load %arg8[%c3_57, %c0_58, %c0_59] : memref<9x16x12xbf16, #tpu.memory_space<vmem>>, vector<1x16x12xbf16>
    %124 = vector.shape_cast %123 : vector<1x16x12xbf16> to vector<16x12xbf16>
    %125 = arith.truncf %107 : vector<12x256xf32> to vector<12x256xbf16>
    %cst_60 = arith.constant dense<0.000000e+00> : vector<16x256xf32>
    %126 = tpu.matmul %124, %125, %cst_60 {dimension_numbers = #tpu.dot_dimension_numbers<[1], [0], [0], [1], [0, 0, 1, 1], [], []>} : vector<16x12xbf16>, vector<12x256xbf16>, vector<16x256xf32> -> vector<16x256xf32>
    %127 = arith.addf %122, %126 : vector<16x256xf32>
    %c6_61 = arith.constant 6 : index
    %c0_62 = arith.constant 0 : index
    %c0_63 = arith.constant 0 : index
    %128 = vector.load %arg8[%c6_61, %c0_62, %c0_63] : memref<9x16x12xbf16, #tpu.memory_space<vmem>>, vector<1x16x12xbf16>
    %129 = vector.shape_cast %128 : vector<1x16x12xbf16> to vector<16x12xbf16>
    %130 = arith.truncf %118 : vector<12x256xf32> to vector<12x256xbf16>
    %cst_64 = arith.constant dense<0.000000e+00> : vector<16x256xf32>
    %131 = tpu.matmul %129, %130, %cst_64 {dimension_numbers = #tpu.dot_dimension_numbers<[1], [0], [0], [1], [0, 0, 1, 1], [], []>} : vector<16x12xbf16>, vector<12x256xbf16>, vector<16x256xf32> -> vector<16x256xf32>
    %132 = arith.addf %127, %131 : vector<16x256xf32>
    %c16_i32_65 = arith.constant 16 : i32
    %133 = tpu.dynamic_rotate %102 by %c16_i32_65 dim 1 : vector<12x256xf32>, i32 -> vector<12x256xf32>
    %c240_i32_66 = arith.constant 240 : i32
    %134 = tpu.dynamic_rotate %102 by %c240_i32_66 dim 1 : vector<12x256xf32>, i32 -> vector<12x256xf32>
    %135 = vector.shape_cast %7 : vector<1x256xi1> to vector<1x256xi1>
    %136 = vector.broadcast %135 : vector<1x256xi1> to vector<12x256xi1>
    %137 = arith.select %136, %134, %133 : vector<12x256xi1>, vector<12x256xf32>
    %138 = vector.shape_cast %9 : vector<1x256xi1> to vector<1x256xi1>
    %139 = vector.broadcast %138 : vector<1x256xi1> to vector<12x256xi1>
    %140 = arith.select %139, %133, %134 : vector<12x256xi1>, vector<12x256xf32>
    %c1_67 = arith.constant 1 : index
    %c0_68 = arith.constant 0 : index
    %c0_69 = arith.constant 0 : index
    %141 = vector.load %arg8[%c1_67, %c0_68, %c0_69] : memref<9x16x12xbf16, #tpu.memory_space<vmem>>, vector<1x16x12xbf16>
    %142 = vector.shape_cast %141 : vector<1x16x12xbf16> to vector<16x12xbf16>
    %143 = arith.truncf %137 : vector<12x256xf32> to vector<12x256xbf16>
    %cst_70 = arith.constant dense<0.000000e+00> : vector<16x256xf32>
    %144 = tpu.matmul %142, %143, %cst_70 {dimension_numbers = #tpu.dot_dimension_numbers<[1], [0], [0], [1], [0, 0, 1, 1], [], []>} : vector<16x12xbf16>, vector<12x256xbf16>, vector<16x256xf32> -> vector<16x256xf32>
    %145 = arith.addf %132, %144 : vector<16x256xf32>
    %c4_71 = arith.constant 4 : index
    %c0_72 = arith.constant 0 : index
    %c0_73 = arith.constant 0 : index
    %146 = vector.load %arg8[%c4_71, %c0_72, %c0_73] : memref<9x16x12xbf16, #tpu.memory_space<vmem>>, vector<1x16x12xbf16>
    %147 = vector.shape_cast %146 : vector<1x16x12xbf16> to vector<16x12xbf16>
    %148 = arith.truncf %102 : vector<12x256xf32> to vector<12x256xbf16>
    %cst_74 = arith.constant dense<0.000000e+00> : vector<16x256xf32>
    %149 = tpu.matmul %147, %148, %cst_74 {dimension_numbers = #tpu.dot_dimension_numbers<[1], [0], [0], [1], [0, 0, 1, 1], [], []>} : vector<16x12xbf16>, vector<12x256xbf16>, vector<16x256xf32> -> vector<16x256xf32>
    %150 = arith.addf %145, %149 : vector<16x256xf32>
    %c7_75 = arith.constant 7 : index
    %c0_76 = arith.constant 0 : index
    %c0_77 = arith.constant 0 : index
    %151 = vector.load %arg8[%c7_75, %c0_76, %c0_77] : memref<9x16x12xbf16, #tpu.memory_space<vmem>>, vector<1x16x12xbf16>
    %152 = vector.shape_cast %151 : vector<1x16x12xbf16> to vector<16x12xbf16>
    %153 = arith.truncf %140 : vector<12x256xf32> to vector<12x256xbf16>
    %cst_78 = arith.constant dense<0.000000e+00> : vector<16x256xf32>
    %154 = tpu.matmul %152, %153, %cst_78 {dimension_numbers = #tpu.dot_dimension_numbers<[1], [0], [0], [1], [0, 0, 1, 1], [], []>} : vector<16x12xbf16>, vector<12x256xbf16>, vector<16x256xf32> -> vector<16x256xf32>
    %155 = arith.addf %150, %154 : vector<16x256xf32>
    %c16_i32_79 = arith.constant 16 : i32
    %156 = tpu.dynamic_rotate %110 by %c16_i32_79 dim 1 : vector<12x256xf32>, i32 -> vector<12x256xf32>
    %c240_i32_80 = arith.constant 240 : i32
    %157 = tpu.dynamic_rotate %110 by %c240_i32_80 dim 1 : vector<12x256xf32>, i32 -> vector<12x256xf32>
    %158 = vector.shape_cast %7 : vector<1x256xi1> to vector<1x256xi1>
    %159 = vector.broadcast %158 : vector<1x256xi1> to vector<12x256xi1>
    %160 = arith.select %159, %157, %156 : vector<12x256xi1>, vector<12x256xf32>
    %161 = vector.shape_cast %9 : vector<1x256xi1> to vector<1x256xi1>
    %162 = vector.broadcast %161 : vector<1x256xi1> to vector<12x256xi1>
    %163 = arith.select %162, %156, %157 : vector<12x256xi1>, vector<12x256xf32>
    %c2_81 = arith.constant 2 : index
    %c0_82 = arith.constant 0 : index
    %c0_83 = arith.constant 0 : index
    %164 = vector.load %arg8[%c2_81, %c0_82, %c0_83] : memref<9x16x12xbf16, #tpu.memory_space<vmem>>, vector<1x16x12xbf16>
    %165 = vector.shape_cast %164 : vector<1x16x12xbf16> to vector<16x12xbf16>
    %166 = arith.truncf %160 : vector<12x256xf32> to vector<12x256xbf16>
    %cst_84 = arith.constant dense<0.000000e+00> : vector<16x256xf32>
    %167 = tpu.matmul %165, %166, %cst_84 {dimension_numbers = #tpu.dot_dimension_numbers<[1], [0], [0], [1], [0, 0, 1, 1], [], []>} : vector<16x12xbf16>, vector<12x256xbf16>, vector<16x256xf32> -> vector<16x256xf32>
    %168 = arith.addf %155, %167 : vector<16x256xf32>
    %c5_85 = arith.constant 5 : index
    %c0_86 = arith.constant 0 : index
    %c0_87 = arith.constant 0 : index
    %169 = vector.load %arg8[%c5_85, %c0_86, %c0_87] : memref<9x16x12xbf16, #tpu.memory_space<vmem>>, vector<1x16x12xbf16>
    %170 = vector.shape_cast %169 : vector<1x16x12xbf16> to vector<16x12xbf16>
    %171 = arith.truncf %110 : vector<12x256xf32> to vector<12x256xbf16>
    %cst_88 = arith.constant dense<0.000000e+00> : vector<16x256xf32>
    %172 = tpu.matmul %170, %171, %cst_88 {dimension_numbers = #tpu.dot_dimension_numbers<[1], [0], [0], [1], [0, 0, 1, 1], [], []>} : vector<16x12xbf16>, vector<12x256xbf16>, vector<16x256xf32> -> vector<16x256xf32>
    %173 = arith.addf %168, %172 : vector<16x256xf32>
    %c8_89 = arith.constant 8 : index
    %c0_90 = arith.constant 0 : index
    %c0_91 = arith.constant 0 : index
    %174 = vector.load %arg8[%c8_89, %c0_90, %c0_91] : memref<9x16x12xbf16, #tpu.memory_space<vmem>>, vector<1x16x12xbf16>
    %175 = vector.shape_cast %174 : vector<1x16x12xbf16> to vector<16x12xbf16>
    %176 = arith.truncf %163 : vector<12x256xf32> to vector<12x256xbf16>
    %cst_92 = arith.constant dense<0.000000e+00> : vector<16x256xf32>
    %177 = tpu.matmul %175, %176, %cst_92 {dimension_numbers = #tpu.dot_dimension_numbers<[1], [0], [0], [1], [0, 0, 1, 1], [], []>} : vector<16x12xbf16>, vector<12x256xbf16>, vector<16x256xf32> -> vector<16x256xf32>
    %178 = arith.addf %173, %177 : vector<16x256xf32>
    %179 = arith.addf %90, %178 : vector<16x256xf32>
    %c1_93 = arith.constant 1 : index
    %180 = memref.load %arg17[%c1_93] : memref<2xf32, #tpu.memory_space<smem>>
    %c0_94 = arith.constant 0 : index
    %c0_95 = arith.constant 0 : index
    %181 = vector.load %arg9[%c0_94, %c0_95] : memref<48x16xbf16, #tpu.memory_space<vmem>>, vector<48x16xbf16>
    %182 = arith.truncf %179 : vector<16x256xf32> to vector<16x256xbf16>
    %cst_96 = arith.constant dense<0.000000e+00> : vector<48x256xf32>
    %183 = tpu.matmul %181, %182, %cst_96 {dimension_numbers = #tpu.dot_dimension_numbers<[1], [0], [0], [1], [0, 0, 1, 1], [], []>} : vector<48x16xbf16>, vector<16x256xbf16>, vector<48x256xf32> -> vector<48x256xf32>
    %cst_97 = arith.constant 0.000000e+00 : f32
    %184 = vector.broadcast %cst_97 : f32 to vector<48x256xf32>
    %185 = arith.cmpf oge, %183, %184 : vector<48x256xf32>
    %186 = vector.broadcast %180 : f32 to vector<48x256xf32>
    %187 = arith.mulf %186, %183 : vector<48x256xf32>
    %188 = arith.select %185, %183, %187 : vector<48x256xi1>, vector<48x256xf32>
    %c0_98 = arith.constant 0 : index
    %c0_99 = arith.constant 0 : index
    %189 = vector.load %arg10[%c0_98, %c0_99] : memref<12x48xbf16, #tpu.memory_space<vmem>>, vector<12x48xbf16>
    %190 = arith.truncf %188 : vector<48x256xf32> to vector<48x256xbf16>
    %cst_100 = arith.constant dense<0.000000e+00> : vector<12x256xf32>
    %191 = tpu.matmul %189, %190, %cst_100 {dimension_numbers = #tpu.dot_dimension_numbers<[1], [0], [0], [1], [0, 0, 1, 1], [], []>} : vector<12x48xbf16>, vector<48x256xbf16>, vector<12x256xf32> -> vector<12x256xf32>
    %c1_i32_101 = arith.constant 1 : i32
    %192 = tpu.dynamic_rotate %191 by %c1_i32_101 dim 1 : vector<12x256xf32>, i32 -> vector<12x256xf32>
    %c255_i32_102 = arith.constant 255 : i32
    %193 = tpu.dynamic_rotate %191 by %c255_i32_102 dim 1 : vector<12x256xf32>, i32 -> vector<12x256xf32>
    %194 = vector.shape_cast %3 : vector<1x256xi1> to vector<1x256xi1>
    %195 = vector.broadcast %194 : vector<1x256xi1> to vector<12x256xi1>
    %196 = arith.select %195, %193, %192 : vector<12x256xi1>, vector<12x256xf32>
    %197 = vector.shape_cast %5 : vector<1x256xi1> to vector<1x256xi1>
    %198 = vector.broadcast %197 : vector<1x256xi1> to vector<12x256xi1>
    %199 = arith.select %198, %192, %193 : vector<12x256xi1>, vector<12x256xf32>
    %c16_i32_103 = arith.constant 16 : i32
    %200 = tpu.dynamic_rotate %196 by %c16_i32_103 dim 1 : vector<12x256xf32>, i32 -> vector<12x256xf32>
    %c240_i32_104 = arith.constant 240 : i32
    %201 = tpu.dynamic_rotate %196 by %c240_i32_104 dim 1 : vector<12x256xf32>, i32 -> vector<12x256xf32>
    %202 = vector.shape_cast %7 : vector<1x256xi1> to vector<1x256xi1>
    %203 = vector.broadcast %202 : vector<1x256xi1> to vector<12x256xi1>
    %204 = arith.select %203, %201, %200 : vector<12x256xi1>, vector<12x256xf32>
    %205 = vector.shape_cast %9 : vector<1x256xi1> to vector<1x256xi1>
    %206 = vector.broadcast %205 : vector<1x256xi1> to vector<12x256xi1>
    %207 = arith.select %206, %200, %201 : vector<12x256xi1>, vector<12x256xf32>
    %c0_105 = arith.constant 0 : index
    %c0_106 = arith.constant 0 : index
    %c0_107 = arith.constant 0 : index
    %208 = vector.load %arg11[%c0_105, %c0_106, %c0_107] : memref<9x16x12xbf16, #tpu.memory_space<vmem>>, vector<1x16x12xbf16>
    %209 = vector.shape_cast %208 : vector<1x16x12xbf16> to vector<16x12xbf16>
    %210 = arith.truncf %204 : vector<12x256xf32> to vector<12x256xbf16>
    %cst_108 = arith.constant dense<0.000000e+00> : vector<16x256xf32>
    %211 = tpu.matmul %209, %210, %cst_108 {dimension_numbers = #tpu.dot_dimension_numbers<[1], [0], [0], [1], [0, 0, 1, 1], [], []>} : vector<16x12xbf16>, vector<12x256xbf16>, vector<16x256xf32> -> vector<16x256xf32>
    %c3_109 = arith.constant 3 : index
    %c0_110 = arith.constant 0 : index
    %c0_111 = arith.constant 0 : index
    %212 = vector.load %arg11[%c3_109, %c0_110, %c0_111] : memref<9x16x12xbf16, #tpu.memory_space<vmem>>, vector<1x16x12xbf16>
    %213 = vector.shape_cast %212 : vector<1x16x12xbf16> to vector<16x12xbf16>
    %214 = arith.truncf %196 : vector<12x256xf32> to vector<12x256xbf16>
    %cst_112 = arith.constant dense<0.000000e+00> : vector<16x256xf32>
    %215 = tpu.matmul %213, %214, %cst_112 {dimension_numbers = #tpu.dot_dimension_numbers<[1], [0], [0], [1], [0, 0, 1, 1], [], []>} : vector<16x12xbf16>, vector<12x256xbf16>, vector<16x256xf32> -> vector<16x256xf32>
    %216 = arith.addf %211, %215 : vector<16x256xf32>
    %c6_113 = arith.constant 6 : index
    %c0_114 = arith.constant 0 : index
    %c0_115 = arith.constant 0 : index
    %217 = vector.load %arg11[%c6_113, %c0_114, %c0_115] : memref<9x16x12xbf16, #tpu.memory_space<vmem>>, vector<1x16x12xbf16>
    %218 = vector.shape_cast %217 : vector<1x16x12xbf16> to vector<16x12xbf16>
    %219 = arith.truncf %207 : vector<12x256xf32> to vector<12x256xbf16>
    %cst_116 = arith.constant dense<0.000000e+00> : vector<16x256xf32>
    %220 = tpu.matmul %218, %219, %cst_116 {dimension_numbers = #tpu.dot_dimension_numbers<[1], [0], [0], [1], [0, 0, 1, 1], [], []>} : vector<16x12xbf16>, vector<12x256xbf16>, vector<16x256xf32> -> vector<16x256xf32>
    %221 = arith.addf %216, %220 : vector<16x256xf32>
    %c16_i32_117 = arith.constant 16 : i32
    %222 = tpu.dynamic_rotate %191 by %c16_i32_117 dim 1 : vector<12x256xf32>, i32 -> vector<12x256xf32>
    %c240_i32_118 = arith.constant 240 : i32
    %223 = tpu.dynamic_rotate %191 by %c240_i32_118 dim 1 : vector<12x256xf32>, i32 -> vector<12x256xf32>
    %224 = vector.shape_cast %7 : vector<1x256xi1> to vector<1x256xi1>
    %225 = vector.broadcast %224 : vector<1x256xi1> to vector<12x256xi1>
    %226 = arith.select %225, %223, %222 : vector<12x256xi1>, vector<12x256xf32>
    %227 = vector.shape_cast %9 : vector<1x256xi1> to vector<1x256xi1>
    %228 = vector.broadcast %227 : vector<1x256xi1> to vector<12x256xi1>
    %229 = arith.select %228, %222, %223 : vector<12x256xi1>, vector<12x256xf32>
    %c1_119 = arith.constant 1 : index
    %c0_120 = arith.constant 0 : index
    %c0_121 = arith.constant 0 : index
    %230 = vector.load %arg11[%c1_119, %c0_120, %c0_121] : memref<9x16x12xbf16, #tpu.memory_space<vmem>>, vector<1x16x12xbf16>
    %231 = vector.shape_cast %230 : vector<1x16x12xbf16> to vector<16x12xbf16>
    %232 = arith.truncf %226 : vector<12x256xf32> to vector<12x256xbf16>
    %cst_122 = arith.constant dense<0.000000e+00> : vector<16x256xf32>
    %233 = tpu.matmul %231, %232, %cst_122 {dimension_numbers = #tpu.dot_dimension_numbers<[1], [0], [0], [1], [0, 0, 1, 1], [], []>} : vector<16x12xbf16>, vector<12x256xbf16>, vector<16x256xf32> -> vector<16x256xf32>
    %234 = arith.addf %221, %233 : vector<16x256xf32>
    %c4_123 = arith.constant 4 : index
    %c0_124 = arith.constant 0 : index
    %c0_125 = arith.constant 0 : index
    %235 = vector.load %arg11[%c4_123, %c0_124, %c0_125] : memref<9x16x12xbf16, #tpu.memory_space<vmem>>, vector<1x16x12xbf16>
    %236 = vector.shape_cast %235 : vector<1x16x12xbf16> to vector<16x12xbf16>
    %237 = arith.truncf %191 : vector<12x256xf32> to vector<12x256xbf16>
    %cst_126 = arith.constant dense<0.000000e+00> : vector<16x256xf32>
    %238 = tpu.matmul %236, %237, %cst_126 {dimension_numbers = #tpu.dot_dimension_numbers<[1], [0], [0], [1], [0, 0, 1, 1], [], []>} : vector<16x12xbf16>, vector<12x256xbf16>, vector<16x256xf32> -> vector<16x256xf32>
    %239 = arith.addf %234, %238 : vector<16x256xf32>
    %c7_127 = arith.constant 7 : index
    %c0_128 = arith.constant 0 : index
    %c0_129 = arith.constant 0 : index
    %240 = vector.load %arg11[%c7_127, %c0_128, %c0_129] : memref<9x16x12xbf16, #tpu.memory_space<vmem>>, vector<1x16x12xbf16>
    %241 = vector.shape_cast %240 : vector<1x16x12xbf16> to vector<16x12xbf16>
    %242 = arith.truncf %229 : vector<12x256xf32> to vector<12x256xbf16>
    %cst_130 = arith.constant dense<0.000000e+00> : vector<16x256xf32>
    %243 = tpu.matmul %241, %242, %cst_130 {dimension_numbers = #tpu.dot_dimension_numbers<[1], [0], [0], [1], [0, 0, 1, 1], [], []>} : vector<16x12xbf16>, vector<12x256xbf16>, vector<16x256xf32> -> vector<16x256xf32>
    %244 = arith.addf %239, %243 : vector<16x256xf32>
    %c16_i32_131 = arith.constant 16 : i32
    %245 = tpu.dynamic_rotate %199 by %c16_i32_131 dim 1 : vector<12x256xf32>, i32 -> vector<12x256xf32>
    %c240_i32_132 = arith.constant 240 : i32
    %246 = tpu.dynamic_rotate %199 by %c240_i32_132 dim 1 : vector<12x256xf32>, i32 -> vector<12x256xf32>
    %247 = vector.shape_cast %7 : vector<1x256xi1> to vector<1x256xi1>
    %248 = vector.broadcast %247 : vector<1x256xi1> to vector<12x256xi1>
    %249 = arith.select %248, %246, %245 : vector<12x256xi1>, vector<12x256xf32>
    %250 = vector.shape_cast %9 : vector<1x256xi1> to vector<1x256xi1>
    %251 = vector.broadcast %250 : vector<1x256xi1> to vector<12x256xi1>
    %252 = arith.select %251, %245, %246 : vector<12x256xi1>, vector<12x256xf32>
    %c2_133 = arith.constant 2 : index
    %c0_134 = arith.constant 0 : index
    %c0_135 = arith.constant 0 : index
    %253 = vector.load %arg11[%c2_133, %c0_134, %c0_135] : memref<9x16x12xbf16, #tpu.memory_space<vmem>>, vector<1x16x12xbf16>
    %254 = vector.shape_cast %253 : vector<1x16x12xbf16> to vector<16x12xbf16>
    %255 = arith.truncf %249 : vector<12x256xf32> to vector<12x256xbf16>
    %cst_136 = arith.constant dense<0.000000e+00> : vector<16x256xf32>
    %256 = tpu.matmul %254, %255, %cst_136 {dimension_numbers = #tpu.dot_dimension_numbers<[1], [0], [0], [1], [0, 0, 1, 1], [], []>} : vector<16x12xbf16>, vector<12x256xbf16>, vector<16x256xf32> -> vector<16x256xf32>
    %257 = arith.addf %244, %256 : vector<16x256xf32>
    %c5_137 = arith.constant 5 : index
    %c0_138 = arith.constant 0 : index
    %c0_139 = arith.constant 0 : index
    %258 = vector.load %arg11[%c5_137, %c0_138, %c0_139] : memref<9x16x12xbf16, #tpu.memory_space<vmem>>, vector<1x16x12xbf16>
    %259 = vector.shape_cast %258 : vector<1x16x12xbf16> to vector<16x12xbf16>
    %260 = arith.truncf %199 : vector<12x256xf32> to vector<12x256xbf16>
    %cst_140 = arith.constant dense<0.000000e+00> : vector<16x256xf32>
    %261 = tpu.matmul %259, %260, %cst_140 {dimension_numbers = #tpu.dot_dimension_numbers<[1], [0], [0], [1], [0, 0, 1, 1], [], []>} : vector<16x12xbf16>, vector<12x256xbf16>, vector<16x256xf32> -> vector<16x256xf32>
    %262 = arith.addf %257, %261 : vector<16x256xf32>
    %c8_141 = arith.constant 8 : index
    %c0_142 = arith.constant 0 : index
    %c0_143 = arith.constant 0 : index
    %263 = vector.load %arg11[%c8_141, %c0_142, %c0_143] : memref<9x16x12xbf16, #tpu.memory_space<vmem>>, vector<1x16x12xbf16>
    %264 = vector.shape_cast %263 : vector<1x16x12xbf16> to vector<16x12xbf16>
    %265 = arith.truncf %252 : vector<12x256xf32> to vector<12x256xbf16>
    %cst_144 = arith.constant dense<0.000000e+00> : vector<16x256xf32>
    %266 = tpu.matmul %264, %265, %cst_144 {dimension_numbers = #tpu.dot_dimension_numbers<[1], [0], [0], [1], [0, 0, 1, 1], [], []>} : vector<16x12xbf16>, vector<12x256xbf16>, vector<16x256xf32> -> vector<16x256xf32>
    %267 = arith.addf %262, %266 : vector<16x256xf32>
    %268 = arith.addf %179, %267 : vector<16x256xf32>
    %c17_i32 = arith.constant 17 : i32
    %269 = tpu.dynamic_rotate %268 by %c17_i32 dim 1 : vector<16x256xf32>, i32 -> vector<16x256xf32>
    %c1_i32_145 = arith.constant 1 : i32
    %270 = vector.broadcast %c1_i32_145 : i32 to vector<1x256xi32>
    %271 = arith.cmpi sge, %0, %270 : vector<1x256xi32>
    %c1_i32_146 = arith.constant 1 : i32
    %272 = vector.broadcast %c1_i32_146 : i32 to vector<1x256xi32>
    %273 = arith.cmpi sge, %1, %272 : vector<1x256xi32>
    %274 = arith.andi %271, %273 : vector<1x256xi1>
    %cst_147 = arith.constant 0.000000e+00 : f32
    %275 = vector.shape_cast %274 : vector<1x256xi1> to vector<1x256xi1>
    %276 = vector.broadcast %275 : vector<1x256xi1> to vector<16x256xi1>
    %277 = vector.broadcast %cst_147 : f32 to vector<16x256xf32>
    %278 = arith.select %276, %269, %277 : vector<16x256xi1>, vector<16x256xf32>
    %c0_148 = arith.constant 0 : index
    %c0_149 = arith.constant 0 : index
    %c0_150 = arith.constant 0 : index
    %279 = vector.load %arg12[%c0_148, %c0_149, %c0_150] : memref<9x12x16xbf16, #tpu.memory_space<vmem>>, vector<1x12x16xbf16>
    %280 = vector.shape_cast %279 : vector<1x12x16xbf16> to vector<12x16xbf16>
    %281 = arith.truncf %278 : vector<16x256xf32> to vector<16x256xbf16>
    %cst_151 = arith.constant dense<0.000000e+00> : vector<12x256xf32>
    %282 = tpu.matmul %280, %281, %cst_151 {dimension_numbers = #tpu.dot_dimension_numbers<[1], [0], [0], [1], [0, 0, 1, 1], [], []>} : vector<12x16xbf16>, vector<16x256xbf16>, vector<12x256xf32> -> vector<12x256xf32>
    %c16_i32_152 = arith.constant 16 : i32
    %283 = tpu.dynamic_rotate %268 by %c16_i32_152 dim 1 : vector<16x256xf32>, i32 -> vector<16x256xf32>
    %c1_i32_153 = arith.constant 1 : i32
    %284 = vector.broadcast %c1_i32_153 : i32 to vector<1x256xi32>
    %285 = arith.cmpi sge, %1, %284 : vector<1x256xi32>
    %cst_154 = arith.constant 0.000000e+00 : f32
    %286 = vector.shape_cast %285 : vector<1x256xi1> to vector<1x256xi1>
    %287 = vector.broadcast %286 : vector<1x256xi1> to vector<16x256xi1>
    %288 = vector.broadcast %cst_154 : f32 to vector<16x256xf32>
    %289 = arith.select %287, %283, %288 : vector<16x256xi1>, vector<16x256xf32>
    %c1_155 = arith.constant 1 : index
    %c0_156 = arith.constant 0 : index
    %c0_157 = arith.constant 0 : index
    %290 = vector.load %arg12[%c1_155, %c0_156, %c0_157] : memref<9x12x16xbf16, #tpu.memory_space<vmem>>, vector<1x12x16xbf16>
    %291 = vector.shape_cast %290 : vector<1x12x16xbf16> to vector<12x16xbf16>
    %292 = arith.truncf %289 : vector<16x256xf32> to vector<16x256xbf16>
    %cst_158 = arith.constant dense<0.000000e+00> : vector<12x256xf32>
    %293 = tpu.matmul %291, %292, %cst_158 {dimension_numbers = #tpu.dot_dimension_numbers<[1], [0], [0], [1], [0, 0, 1, 1], [], []>} : vector<12x16xbf16>, vector<16x256xbf16>, vector<12x256xf32> -> vector<12x256xf32>
    %294 = arith.addf %282, %293 : vector<12x256xf32>
    %c15_i32_159 = arith.constant 15 : i32
    %295 = tpu.dynamic_rotate %268 by %c15_i32_159 dim 1 : vector<16x256xf32>, i32 -> vector<16x256xf32>
    %c15_i32_160 = arith.constant 15 : i32
    %296 = vector.broadcast %c15_i32_160 : i32 to vector<1x256xi32>
    %297 = arith.cmpi slt, %0, %296 : vector<1x256xi32>
    %c1_i32_161 = arith.constant 1 : i32
    %298 = vector.broadcast %c1_i32_161 : i32 to vector<1x256xi32>
    %299 = arith.cmpi sge, %1, %298 : vector<1x256xi32>
    %300 = arith.andi %297, %299 : vector<1x256xi1>
    %cst_162 = arith.constant 0.000000e+00 : f32
    %301 = vector.shape_cast %300 : vector<1x256xi1> to vector<1x256xi1>
    %302 = vector.broadcast %301 : vector<1x256xi1> to vector<16x256xi1>
    %303 = vector.broadcast %cst_162 : f32 to vector<16x256xf32>
    %304 = arith.select %302, %295, %303 : vector<16x256xi1>, vector<16x256xf32>
    %c2_163 = arith.constant 2 : index
    %c0_164 = arith.constant 0 : index
    %c0_165 = arith.constant 0 : index
    %305 = vector.load %arg12[%c2_163, %c0_164, %c0_165] : memref<9x12x16xbf16, #tpu.memory_space<vmem>>, vector<1x12x16xbf16>
    %306 = vector.shape_cast %305 : vector<1x12x16xbf16> to vector<12x16xbf16>
    %307 = arith.truncf %304 : vector<16x256xf32> to vector<16x256xbf16>
    %cst_166 = arith.constant dense<0.000000e+00> : vector<12x256xf32>
    %308 = tpu.matmul %306, %307, %cst_166 {dimension_numbers = #tpu.dot_dimension_numbers<[1], [0], [0], [1], [0, 0, 1, 1], [], []>} : vector<12x16xbf16>, vector<16x256xbf16>, vector<12x256xf32> -> vector<12x256xf32>
    %309 = arith.addf %294, %308 : vector<12x256xf32>
    %c1_i32_167 = arith.constant 1 : i32
    %310 = tpu.dynamic_rotate %268 by %c1_i32_167 dim 1 : vector<16x256xf32>, i32 -> vector<16x256xf32>
    %c1_i32_168 = arith.constant 1 : i32
    %311 = vector.broadcast %c1_i32_168 : i32 to vector<1x256xi32>
    %312 = arith.cmpi sge, %0, %311 : vector<1x256xi32>
    %cst_169 = arith.constant 0.000000e+00 : f32
    %313 = vector.shape_cast %312 : vector<1x256xi1> to vector<1x256xi1>
    %314 = vector.broadcast %313 : vector<1x256xi1> to vector<16x256xi1>
    %315 = vector.broadcast %cst_169 : f32 to vector<16x256xf32>
    %316 = arith.select %314, %310, %315 : vector<16x256xi1>, vector<16x256xf32>
    %c3_170 = arith.constant 3 : index
    %c0_171 = arith.constant 0 : index
    %c0_172 = arith.constant 0 : index
    %317 = vector.load %arg12[%c3_170, %c0_171, %c0_172] : memref<9x12x16xbf16, #tpu.memory_space<vmem>>, vector<1x12x16xbf16>
    %318 = vector.shape_cast %317 : vector<1x12x16xbf16> to vector<12x16xbf16>
    %319 = arith.truncf %316 : vector<16x256xf32> to vector<16x256xbf16>
    %cst_173 = arith.constant dense<0.000000e+00> : vector<12x256xf32>
    %320 = tpu.matmul %318, %319, %cst_173 {dimension_numbers = #tpu.dot_dimension_numbers<[1], [0], [0], [1], [0, 0, 1, 1], [], []>} : vector<12x16xbf16>, vector<16x256xbf16>, vector<12x256xf32> -> vector<12x256xf32>
    %321 = arith.addf %309, %320 : vector<12x256xf32>
    %c4_174 = arith.constant 4 : index
    %c0_175 = arith.constant 0 : index
    %c0_176 = arith.constant 0 : index
    %322 = vector.load %arg12[%c4_174, %c0_175, %c0_176] : memref<9x12x16xbf16, #tpu.memory_space<vmem>>, vector<1x12x16xbf16>
    %323 = vector.shape_cast %322 : vector<1x12x16xbf16> to vector<12x16xbf16>
    %324 = arith.truncf %268 : vector<16x256xf32> to vector<16x256xbf16>
    %cst_177 = arith.constant dense<0.000000e+00> : vector<12x256xf32>
    %325 = tpu.matmul %323, %324, %cst_177 {dimension_numbers = #tpu.dot_dimension_numbers<[1], [0], [0], [1], [0, 0, 1, 1], [], []>} : vector<12x16xbf16>, vector<16x256xbf16>, vector<12x256xf32> -> vector<12x256xf32>
    %326 = arith.addf %321, %325 : vector<12x256xf32>
    %c255_i32_178 = arith.constant 255 : i32
    %327 = tpu.dynamic_rotate %268 by %c255_i32_178 dim 1 : vector<16x256xf32>, i32 -> vector<16x256xf32>
    %c15_i32_179 = arith.constant 15 : i32
    %328 = vector.broadcast %c15_i32_179 : i32 to vector<1x256xi32>
    %329 = arith.cmpi slt, %0, %328 : vector<1x256xi32>
    %cst_180 = arith.constant 0.000000e+00 : f32
    %330 = vector.shape_cast %329 : vector<1x256xi1> to vector<1x256xi1>
    %331 = vector.broadcast %330 : vector<1x256xi1> to vector<16x256xi1>
    %332 = vector.broadcast %cst_180 : f32 to vector<16x256xf32>
    %333 = arith.select %331, %327, %332 : vector<16x256xi1>, vector<16x256xf32>
    %c5_181 = arith.constant 5 : index
    %c0_182 = arith.constant 0 : index
    %c0_183 = arith.constant 0 : index
    %334 = vector.load %arg12[%c5_181, %c0_182, %c0_183] : memref<9x12x16xbf16, #tpu.memory_space<vmem>>, vector<1x12x16xbf16>
    %335 = vector.shape_cast %334 : vector<1x12x16xbf16> to vector<12x16xbf16>
    %336 = arith.truncf %333 : vector<16x256xf32> to vector<16x256xbf16>
    %cst_184 = arith.constant dense<0.000000e+00> : vector<12x256xf32>
    %337 = tpu.matmul %335, %336, %cst_184 {dimension_numbers = #tpu.dot_dimension_numbers<[1], [0], [0], [1], [0, 0, 1, 1], [], []>} : vector<12x16xbf16>, vector<16x256xbf16>, vector<12x256xf32> -> vector<12x256xf32>
    %338 = arith.addf %326, %337 : vector<12x256xf32>
    %c241_i32 = arith.constant 241 : i32
    %339 = tpu.dynamic_rotate %268 by %c241_i32 dim 1 : vector<16x256xf32>, i32 -> vector<16x256xf32>
    %c1_i32_185 = arith.constant 1 : i32
    %340 = vector.broadcast %c1_i32_185 : i32 to vector<1x256xi32>
    %341 = arith.cmpi sge, %0, %340 : vector<1x256xi32>
    %c15_i32_186 = arith.constant 15 : i32
    %342 = vector.broadcast %c15_i32_186 : i32 to vector<1x256xi32>
    %343 = arith.cmpi slt, %1, %342 : vector<1x256xi32>
    %344 = arith.andi %341, %343 : vector<1x256xi1>
    %cst_187 = arith.constant 0.000000e+00 : f32
    %345 = vector.shape_cast %344 : vector<1x256xi1> to vector<1x256xi1>
    %346 = vector.broadcast %345 : vector<1x256xi1> to vector<16x256xi1>
    %347 = vector.broadcast %cst_187 : f32 to vector<16x256xf32>
    %348 = arith.select %346, %339, %347 : vector<16x256xi1>, vector<16x256xf32>
    %c6_188 = arith.constant 6 : index
    %c0_189 = arith.constant 0 : index
    %c0_190 = arith.constant 0 : index
    %349 = vector.load %arg12[%c6_188, %c0_189, %c0_190] : memref<9x12x16xbf16, #tpu.memory_space<vmem>>, vector<1x12x16xbf16>
    %350 = vector.shape_cast %349 : vector<1x12x16xbf16> to vector<12x16xbf16>
    %351 = arith.truncf %348 : vector<16x256xf32> to vector<16x256xbf16>
    %cst_191 = arith.constant dense<0.000000e+00> : vector<12x256xf32>
    %352 = tpu.matmul %350, %351, %cst_191 {dimension_numbers = #tpu.dot_dimension_numbers<[1], [0], [0], [1], [0, 0, 1, 1], [], []>} : vector<12x16xbf16>, vector<16x256xbf16>, vector<12x256xf32> -> vector<12x256xf32>
    %353 = arith.addf %338, %352 : vector<12x256xf32>
    %c240_i32_192 = arith.constant 240 : i32
    %354 = tpu.dynamic_rotate %268 by %c240_i32_192 dim 1 : vector<16x256xf32>, i32 -> vector<16x256xf32>
    %c15_i32_193 = arith.constant 15 : i32
    %355 = vector.broadcast %c15_i32_193 : i32 to vector<1x256xi32>
    %356 = arith.cmpi slt, %1, %355 : vector<1x256xi32>
    %cst_194 = arith.constant 0.000000e+00 : f32
    %357 = vector.shape_cast %356 : vector<1x256xi1> to vector<1x256xi1>
    %358 = vector.broadcast %357 : vector<1x256xi1> to vector<16x256xi1>
    %359 = vector.broadcast %cst_194 : f32 to vector<16x256xf32>
    %360 = arith.select %358, %354, %359 : vector<16x256xi1>, vector<16x256xf32>
    %c7_195 = arith.constant 7 : index
    %c0_196 = arith.constant 0 : index
    %c0_197 = arith.constant 0 : index
    %361 = vector.load %arg12[%c7_195, %c0_196, %c0_197] : memref<9x12x16xbf16, #tpu.memory_space<vmem>>, vector<1x12x16xbf16>
    %362 = vector.shape_cast %361 : vector<1x12x16xbf16> to vector<12x16xbf16>
    %363 = arith.truncf %360 : vector<16x256xf32> to vector<16x256xbf16>
    %cst_198 = arith.constant dense<0.000000e+00> : vector<12x256xf32>
    %364 = tpu.matmul %362, %363, %cst_198 {dimension_numbers = #tpu.dot_dimension_numbers<[1], [0], [0], [1], [0, 0, 1, 1], [], []>} : vector<12x16xbf16>, vector<16x256xbf16>, vector<12x256xf32> -> vector<12x256xf32>
    %365 = arith.addf %353, %364 : vector<12x256xf32>
    %c239_i32 = arith.constant 239 : i32
    %366 = tpu.dynamic_rotate %268 by %c239_i32 dim 1 : vector<16x256xf32>, i32 -> vector<16x256xf32>
    %c15_i32_199 = arith.constant 15 : i32
    %367 = vector.broadcast %c15_i32_199 : i32 to vector<1x256xi32>
    %368 = arith.cmpi slt, %0, %367 : vector<1x256xi32>
    %c15_i32_200 = arith.constant 15 : i32
    %369 = vector.broadcast %c15_i32_200 : i32 to vector<1x256xi32>
    %370 = arith.cmpi slt, %1, %369 : vector<1x256xi32>
    %371 = arith.andi %368, %370 : vector<1x256xi1>
    %cst_201 = arith.constant 0.000000e+00 : f32
    %372 = vector.shape_cast %371 : vector<1x256xi1> to vector<1x256xi1>
    %373 = vector.broadcast %372 : vector<1x256xi1> to vector<16x256xi1>
    %374 = vector.broadcast %cst_201 : f32 to vector<16x256xf32>
    %375 = arith.select %373, %366, %374 : vector<16x256xi1>, vector<16x256xf32>
    %c8_202 = arith.constant 8 : index
    %c0_203 = arith.constant 0 : index
    %c0_204 = arith.constant 0 : index
    %376 = vector.load %arg12[%c8_202, %c0_203, %c0_204] : memref<9x12x16xbf16, #tpu.memory_space<vmem>>, vector<1x12x16xbf16>
    %377 = vector.shape_cast %376 : vector<1x12x16xbf16> to vector<12x16xbf16>
    %378 = arith.truncf %375 : vector<16x256xf32> to vector<16x256xbf16>
    %cst_205 = arith.constant dense<0.000000e+00> : vector<12x256xf32>
    %379 = tpu.matmul %377, %378, %cst_205 {dimension_numbers = #tpu.dot_dimension_numbers<[1], [0], [0], [1], [0, 0, 1, 1], [], []>} : vector<12x16xbf16>, vector<16x256xbf16>, vector<12x256xf32> -> vector<12x256xf32>
    %380 = arith.addf %365, %379 : vector<12x256xf32>
    %c0_206 = arith.constant 0 : index
    %c0_207 = arith.constant 0 : index
    %381 = vector.load %arg13[%c0_206, %c0_207] : memref<12x1xf32, #tpu.memory_space<vmem>>, vector<12x1xf32>
    %382 = vector.broadcast %381 : vector<12x1xf32> to vector<12x256xf32>
    %383 = arith.addf %380, %382 : vector<12x256xf32>
    %c34_i32 = arith.constant 34 : i32
    %384 = tpu.dynamic_rotate %14 by %c34_i32 dim 1 : vector<3x256xf32>, i32 -> vector<3x256xf32>
    %c2_i32 = arith.constant 2 : i32
    %385 = vector.broadcast %c2_i32 : i32 to vector<1x256xi32>
    %386 = arith.cmpi sge, %0, %385 : vector<1x256xi32>
    %c2_i32_208 = arith.constant 2 : i32
    %387 = vector.broadcast %c2_i32_208 : i32 to vector<1x256xi32>
    %388 = arith.cmpi sge, %1, %387 : vector<1x256xi32>
    %389 = arith.andi %386, %388 : vector<1x256xi1>
    %cst_209 = arith.constant 0.000000e+00 : f32
    %390 = vector.shape_cast %389 : vector<1x256xi1> to vector<1x256xi1>
    %391 = vector.broadcast %390 : vector<1x256xi1> to vector<3x256xi1>
    %392 = vector.broadcast %cst_209 : f32 to vector<3x256xf32>
    %393 = arith.select %391, %384, %392 : vector<3x256xi1>, vector<3x256xf32>
    %c0_210 = arith.constant 0 : index
    %c0_211 = arith.constant 0 : index
    %c0_212 = arith.constant 0 : index
    %394 = vector.load %arg14[%c0_210, %c0_211, %c0_212] : memref<25x12x3xbf16, #tpu.memory_space<vmem>>, vector<1x12x3xbf16>
    %395 = vector.shape_cast %394 : vector<1x12x3xbf16> to vector<12x3xbf16>
    %396 = arith.truncf %393 : vector<3x256xf32> to vector<3x256xbf16>
    %cst_213 = arith.constant dense<0.000000e+00> : vector<12x256xf32>
    %397 = tpu.matmul %395, %396, %cst_213 {dimension_numbers = #tpu.dot_dimension_numbers<[1], [0], [0], [1], [0, 0, 1, 1], [], []>} : vector<12x3xbf16>, vector<3x256xbf16>, vector<12x256xf32> -> vector<12x256xf32>
    %c33_i32 = arith.constant 33 : i32
    %398 = tpu.dynamic_rotate %14 by %c33_i32 dim 1 : vector<3x256xf32>, i32 -> vector<3x256xf32>
    %c1_i32_214 = arith.constant 1 : i32
    %399 = vector.broadcast %c1_i32_214 : i32 to vector<1x256xi32>
    %400 = arith.cmpi sge, %0, %399 : vector<1x256xi32>
    %c2_i32_215 = arith.constant 2 : i32
    %401 = vector.broadcast %c2_i32_215 : i32 to vector<1x256xi32>
    %402 = arith.cmpi sge, %1, %401 : vector<1x256xi32>
    %403 = arith.andi %400, %402 : vector<1x256xi1>
    %cst_216 = arith.constant 0.000000e+00 : f32
    %404 = vector.shape_cast %403 : vector<1x256xi1> to vector<1x256xi1>
    %405 = vector.broadcast %404 : vector<1x256xi1> to vector<3x256xi1>
    %406 = vector.broadcast %cst_216 : f32 to vector<3x256xf32>
    %407 = arith.select %405, %398, %406 : vector<3x256xi1>, vector<3x256xf32>
    %c1_217 = arith.constant 1 : index
    %c0_218 = arith.constant 0 : index
    %c0_219 = arith.constant 0 : index
    %408 = vector.load %arg14[%c1_217, %c0_218, %c0_219] : memref<25x12x3xbf16, #tpu.memory_space<vmem>>, vector<1x12x3xbf16>
    %409 = vector.shape_cast %408 : vector<1x12x3xbf16> to vector<12x3xbf16>
    %410 = arith.truncf %407 : vector<3x256xf32> to vector<3x256xbf16>
    %cst_220 = arith.constant dense<0.000000e+00> : vector<12x256xf32>
    %411 = tpu.matmul %409, %410, %cst_220 {dimension_numbers = #tpu.dot_dimension_numbers<[1], [0], [0], [1], [0, 0, 1, 1], [], []>} : vector<12x3xbf16>, vector<3x256xbf16>, vector<12x256xf32> -> vector<12x256xf32>
    %412 = arith.addf %397, %411 : vector<12x256xf32>
    %c32_i32 = arith.constant 32 : i32
    %413 = tpu.dynamic_rotate %14 by %c32_i32 dim 1 : vector<3x256xf32>, i32 -> vector<3x256xf32>
    %c2_i32_221 = arith.constant 2 : i32
    %414 = vector.broadcast %c2_i32_221 : i32 to vector<1x256xi32>
    %415 = arith.cmpi sge, %1, %414 : vector<1x256xi32>
    %cst_222 = arith.constant 0.000000e+00 : f32
    %416 = vector.shape_cast %415 : vector<1x256xi1> to vector<1x256xi1>
    %417 = vector.broadcast %416 : vector<1x256xi1> to vector<3x256xi1>
    %418 = vector.broadcast %cst_222 : f32 to vector<3x256xf32>
    %419 = arith.select %417, %413, %418 : vector<3x256xi1>, vector<3x256xf32>
    %c2_223 = arith.constant 2 : index
    %c0_224 = arith.constant 0 : index
    %c0_225 = arith.constant 0 : index
    %420 = vector.load %arg14[%c2_223, %c0_224, %c0_225] : memref<25x12x3xbf16, #tpu.memory_space<vmem>>, vector<1x12x3xbf16>
    %421 = vector.shape_cast %420 : vector<1x12x3xbf16> to vector<12x3xbf16>
    %422 = arith.truncf %419 : vector<3x256xf32> to vector<3x256xbf16>
    %cst_226 = arith.constant dense<0.000000e+00> : vector<12x256xf32>
    %423 = tpu.matmul %421, %422, %cst_226 {dimension_numbers = #tpu.dot_dimension_numbers<[1], [0], [0], [1], [0, 0, 1, 1], [], []>} : vector<12x3xbf16>, vector<3x256xbf16>, vector<12x256xf32> -> vector<12x256xf32>
    %424 = arith.addf %412, %423 : vector<12x256xf32>
    %c31_i32 = arith.constant 31 : i32
    %425 = tpu.dynamic_rotate %14 by %c31_i32 dim 1 : vector<3x256xf32>, i32 -> vector<3x256xf32>
    %c15_i32_227 = arith.constant 15 : i32
    %426 = vector.broadcast %c15_i32_227 : i32 to vector<1x256xi32>
    %427 = arith.cmpi slt, %0, %426 : vector<1x256xi32>
    %c2_i32_228 = arith.constant 2 : i32
    %428 = vector.broadcast %c2_i32_228 : i32 to vector<1x256xi32>
    %429 = arith.cmpi sge, %1, %428 : vector<1x256xi32>
    %430 = arith.andi %427, %429 : vector<1x256xi1>
    %cst_229 = arith.constant 0.000000e+00 : f32
    %431 = vector.shape_cast %430 : vector<1x256xi1> to vector<1x256xi1>
    %432 = vector.broadcast %431 : vector<1x256xi1> to vector<3x256xi1>
    %433 = vector.broadcast %cst_229 : f32 to vector<3x256xf32>
    %434 = arith.select %432, %425, %433 : vector<3x256xi1>, vector<3x256xf32>
    %c3_230 = arith.constant 3 : index
    %c0_231 = arith.constant 0 : index
    %c0_232 = arith.constant 0 : index
    %435 = vector.load %arg14[%c3_230, %c0_231, %c0_232] : memref<25x12x3xbf16, #tpu.memory_space<vmem>>, vector<1x12x3xbf16>
    %436 = vector.shape_cast %435 : vector<1x12x3xbf16> to vector<12x3xbf16>
    %437 = arith.truncf %434 : vector<3x256xf32> to vector<3x256xbf16>
    %cst_233 = arith.constant dense<0.000000e+00> : vector<12x256xf32>
    %438 = tpu.matmul %436, %437, %cst_233 {dimension_numbers = #tpu.dot_dimension_numbers<[1], [0], [0], [1], [0, 0, 1, 1], [], []>} : vector<12x3xbf16>, vector<3x256xbf16>, vector<12x256xf32> -> vector<12x256xf32>
    %439 = arith.addf %424, %438 : vector<12x256xf32>
    %c30_i32 = arith.constant 30 : i32
    %440 = tpu.dynamic_rotate %14 by %c30_i32 dim 1 : vector<3x256xf32>, i32 -> vector<3x256xf32>
    %c14_i32 = arith.constant 14 : i32
    %441 = vector.broadcast %c14_i32 : i32 to vector<1x256xi32>
    %442 = arith.cmpi slt, %0, %441 : vector<1x256xi32>
    %c2_i32_234 = arith.constant 2 : i32
    %443 = vector.broadcast %c2_i32_234 : i32 to vector<1x256xi32>
    %444 = arith.cmpi sge, %1, %443 : vector<1x256xi32>
    %445 = arith.andi %442, %444 : vector<1x256xi1>
    %cst_235 = arith.constant 0.000000e+00 : f32
    %446 = vector.shape_cast %445 : vector<1x256xi1> to vector<1x256xi1>
    %447 = vector.broadcast %446 : vector<1x256xi1> to vector<3x256xi1>
    %448 = vector.broadcast %cst_235 : f32 to vector<3x256xf32>
    %449 = arith.select %447, %440, %448 : vector<3x256xi1>, vector<3x256xf32>
    %c4_236 = arith.constant 4 : index
    %c0_237 = arith.constant 0 : index
    %c0_238 = arith.constant 0 : index
    %450 = vector.load %arg14[%c4_236, %c0_237, %c0_238] : memref<25x12x3xbf16, #tpu.memory_space<vmem>>, vector<1x12x3xbf16>
    %451 = vector.shape_cast %450 : vector<1x12x3xbf16> to vector<12x3xbf16>
    %452 = arith.truncf %449 : vector<3x256xf32> to vector<3x256xbf16>
    %cst_239 = arith.constant dense<0.000000e+00> : vector<12x256xf32>
    %453 = tpu.matmul %451, %452, %cst_239 {dimension_numbers = #tpu.dot_dimension_numbers<[1], [0], [0], [1], [0, 0, 1, 1], [], []>} : vector<12x3xbf16>, vector<3x256xbf16>, vector<12x256xf32> -> vector<12x256xf32>
    %454 = arith.addf %439, %453 : vector<12x256xf32>
    %c18_i32 = arith.constant 18 : i32
    %455 = tpu.dynamic_rotate %14 by %c18_i32 dim 1 : vector<3x256xf32>, i32 -> vector<3x256xf32>
    %c2_i32_240 = arith.constant 2 : i32
    %456 = vector.broadcast %c2_i32_240 : i32 to vector<1x256xi32>
    %457 = arith.cmpi sge, %0, %456 : vector<1x256xi32>
    %c1_i32_241 = arith.constant 1 : i32
    %458 = vector.broadcast %c1_i32_241 : i32 to vector<1x256xi32>
    %459 = arith.cmpi sge, %1, %458 : vector<1x256xi32>
    %460 = arith.andi %457, %459 : vector<1x256xi1>
    %cst_242 = arith.constant 0.000000e+00 : f32
    %461 = vector.shape_cast %460 : vector<1x256xi1> to vector<1x256xi1>
    %462 = vector.broadcast %461 : vector<1x256xi1> to vector<3x256xi1>
    %463 = vector.broadcast %cst_242 : f32 to vector<3x256xf32>
    %464 = arith.select %462, %455, %463 : vector<3x256xi1>, vector<3x256xf32>
    %c5_243 = arith.constant 5 : index
    %c0_244 = arith.constant 0 : index
    %c0_245 = arith.constant 0 : index
    %465 = vector.load %arg14[%c5_243, %c0_244, %c0_245] : memref<25x12x3xbf16, #tpu.memory_space<vmem>>, vector<1x12x3xbf16>
    %466 = vector.shape_cast %465 : vector<1x12x3xbf16> to vector<12x3xbf16>
    %467 = arith.truncf %464 : vector<3x256xf32> to vector<3x256xbf16>
    %cst_246 = arith.constant dense<0.000000e+00> : vector<12x256xf32>
    %468 = tpu.matmul %466, %467, %cst_246 {dimension_numbers = #tpu.dot_dimension_numbers<[1], [0], [0], [1], [0, 0, 1, 1], [], []>} : vector<12x3xbf16>, vector<3x256xbf16>, vector<12x256xf32> -> vector<12x256xf32>
    %469 = arith.addf %454, %468 : vector<12x256xf32>
    %c17_i32_247 = arith.constant 17 : i32
    %470 = tpu.dynamic_rotate %14 by %c17_i32_247 dim 1 : vector<3x256xf32>, i32 -> vector<3x256xf32>
    %c1_i32_248 = arith.constant 1 : i32
    %471 = vector.broadcast %c1_i32_248 : i32 to vector<1x256xi32>
    %472 = arith.cmpi sge, %0, %471 : vector<1x256xi32>
    %c1_i32_249 = arith.constant 1 : i32
    %473 = vector.broadcast %c1_i32_249 : i32 to vector<1x256xi32>
    %474 = arith.cmpi sge, %1, %473 : vector<1x256xi32>
    %475 = arith.andi %472, %474 : vector<1x256xi1>
    %cst_250 = arith.constant 0.000000e+00 : f32
    %476 = vector.shape_cast %475 : vector<1x256xi1> to vector<1x256xi1>
    %477 = vector.broadcast %476 : vector<1x256xi1> to vector<3x256xi1>
    %478 = vector.broadcast %cst_250 : f32 to vector<3x256xf32>
    %479 = arith.select %477, %470, %478 : vector<3x256xi1>, vector<3x256xf32>
    %c6_251 = arith.constant 6 : index
    %c0_252 = arith.constant 0 : index
    %c0_253 = arith.constant 0 : index
    %480 = vector.load %arg14[%c6_251, %c0_252, %c0_253] : memref<25x12x3xbf16, #tpu.memory_space<vmem>>, vector<1x12x3xbf16>
    %481 = vector.shape_cast %480 : vector<1x12x3xbf16> to vector<12x3xbf16>
    %482 = arith.truncf %479 : vector<3x256xf32> to vector<3x256xbf16>
    %cst_254 = arith.constant dense<0.000000e+00> : vector<12x256xf32>
    %483 = tpu.matmul %481, %482, %cst_254 {dimension_numbers = #tpu.dot_dimension_numbers<[1], [0], [0], [1], [0, 0, 1, 1], [], []>} : vector<12x3xbf16>, vector<3x256xbf16>, vector<12x256xf32> -> vector<12x256xf32>
    %484 = arith.addf %469, %483 : vector<12x256xf32>
    %c16_i32_255 = arith.constant 16 : i32
    %485 = tpu.dynamic_rotate %14 by %c16_i32_255 dim 1 : vector<3x256xf32>, i32 -> vector<3x256xf32>
    %c1_i32_256 = arith.constant 1 : i32
    %486 = vector.broadcast %c1_i32_256 : i32 to vector<1x256xi32>
    %487 = arith.cmpi sge, %1, %486 : vector<1x256xi32>
    %cst_257 = arith.constant 0.000000e+00 : f32
    %488 = vector.shape_cast %487 : vector<1x256xi1> to vector<1x256xi1>
    %489 = vector.broadcast %488 : vector<1x256xi1> to vector<3x256xi1>
    %490 = vector.broadcast %cst_257 : f32 to vector<3x256xf32>
    %491 = arith.select %489, %485, %490 : vector<3x256xi1>, vector<3x256xf32>
    %c7_258 = arith.constant 7 : index
    %c0_259 = arith.constant 0 : index
    %c0_260 = arith.constant 0 : index
    %492 = vector.load %arg14[%c7_258, %c0_259, %c0_260] : memref<25x12x3xbf16, #tpu.memory_space<vmem>>, vector<1x12x3xbf16>
    %493 = vector.shape_cast %492 : vector<1x12x3xbf16> to vector<12x3xbf16>
    %494 = arith.truncf %491 : vector<3x256xf32> to vector<3x256xbf16>
    %cst_261 = arith.constant dense<0.000000e+00> : vector<12x256xf32>
    %495 = tpu.matmul %493, %494, %cst_261 {dimension_numbers = #tpu.dot_dimension_numbers<[1], [0], [0], [1], [0, 0, 1, 1], [], []>} : vector<12x3xbf16>, vector<3x256xbf16>, vector<12x256xf32> -> vector<12x256xf32>
    %496 = arith.addf %484, %495 : vector<12x256xf32>
    %c15_i32_262 = arith.constant 15 : i32
    %497 = tpu.dynamic_rotate %14 by %c15_i32_262 dim 1 : vector<3x256xf32>, i32 -> vector<3x256xf32>
    %c15_i32_263 = arith.constant 15 : i32
    %498 = vector.broadcast %c15_i32_263 : i32 to vector<1x256xi32>
    %499 = arith.cmpi slt, %0, %498 : vector<1x256xi32>
    %c1_i32_264 = arith.constant 1 : i32
    %500 = vector.broadcast %c1_i32_264 : i32 to vector<1x256xi32>
    %501 = arith.cmpi sge, %1, %500 : vector<1x256xi32>
    %502 = arith.andi %499, %501 : vector<1x256xi1>
    %cst_265 = arith.constant 0.000000e+00 : f32
    %503 = vector.shape_cast %502 : vector<1x256xi1> to vector<1x256xi1>
    %504 = vector.broadcast %503 : vector<1x256xi1> to vector<3x256xi1>
    %505 = vector.broadcast %cst_265 : f32 to vector<3x256xf32>
    %506 = arith.select %504, %497, %505 : vector<3x256xi1>, vector<3x256xf32>
    %c8_266 = arith.constant 8 : index
    %c0_267 = arith.constant 0 : index
    %c0_268 = arith.constant 0 : index
    %507 = vector.load %arg14[%c8_266, %c0_267, %c0_268] : memref<25x12x3xbf16, #tpu.memory_space<vmem>>, vector<1x12x3xbf16>
    %508 = vector.shape_cast %507 : vector<1x12x3xbf16> to vector<12x3xbf16>
    %509 = arith.truncf %506 : vector<3x256xf32> to vector<3x256xbf16>
    %cst_269 = arith.constant dense<0.000000e+00> : vector<12x256xf32>
    %510 = tpu.matmul %508, %509, %cst_269 {dimension_numbers = #tpu.dot_dimension_numbers<[1], [0], [0], [1], [0, 0, 1, 1], [], []>} : vector<12x3xbf16>, vector<3x256xbf16>, vector<12x256xf32> -> vector<12x256xf32>
    %511 = arith.addf %496, %510 : vector<12x256xf32>
    %c14_i32_270 = arith.constant 14 : i32
    %512 = tpu.dynamic_rotate %14 by %c14_i32_270 dim 1 : vector<3x256xf32>, i32 -> vector<3x256xf32>
    %c14_i32_271 = arith.constant 14 : i32
    %513 = vector.broadcast %c14_i32_271 : i32 to vector<1x256xi32>
    %514 = arith.cmpi slt, %0, %513 : vector<1x256xi32>
    %c1_i32_272 = arith.constant 1 : i32
    %515 = vector.broadcast %c1_i32_272 : i32 to vector<1x256xi32>
    %516 = arith.cmpi sge, %1, %515 : vector<1x256xi32>
    %517 = arith.andi %514, %516 : vector<1x256xi1>
    %cst_273 = arith.constant 0.000000e+00 : f32
    %518 = vector.shape_cast %517 : vector<1x256xi1> to vector<1x256xi1>
    %519 = vector.broadcast %518 : vector<1x256xi1> to vector<3x256xi1>
    %520 = vector.broadcast %cst_273 : f32 to vector<3x256xf32>
    %521 = arith.select %519, %512, %520 : vector<3x256xi1>, vector<3x256xf32>
    %c9 = arith.constant 9 : index
    %c0_274 = arith.constant 0 : index
    %c0_275 = arith.constant 0 : index
    %522 = vector.load %arg14[%c9, %c0_274, %c0_275] : memref<25x12x3xbf16, #tpu.memory_space<vmem>>, vector<1x12x3xbf16>
    %523 = vector.shape_cast %522 : vector<1x12x3xbf16> to vector<12x3xbf16>
    %524 = arith.truncf %521 : vector<3x256xf32> to vector<3x256xbf16>
    %cst_276 = arith.constant dense<0.000000e+00> : vector<12x256xf32>
    %525 = tpu.matmul %523, %524, %cst_276 {dimension_numbers = #tpu.dot_dimension_numbers<[1], [0], [0], [1], [0, 0, 1, 1], [], []>} : vector<12x3xbf16>, vector<3x256xbf16>, vector<12x256xf32> -> vector<12x256xf32>
    %526 = arith.addf %511, %525 : vector<12x256xf32>
    %c2_i32_277 = arith.constant 2 : i32
    %527 = tpu.dynamic_rotate %14 by %c2_i32_277 dim 1 : vector<3x256xf32>, i32 -> vector<3x256xf32>
    %c2_i32_278 = arith.constant 2 : i32
    %528 = vector.broadcast %c2_i32_278 : i32 to vector<1x256xi32>
    %529 = arith.cmpi sge, %0, %528 : vector<1x256xi32>
    %cst_279 = arith.constant 0.000000e+00 : f32
    %530 = vector.shape_cast %529 : vector<1x256xi1> to vector<1x256xi1>
    %531 = vector.broadcast %530 : vector<1x256xi1> to vector<3x256xi1>
    %532 = vector.broadcast %cst_279 : f32 to vector<3x256xf32>
    %533 = arith.select %531, %527, %532 : vector<3x256xi1>, vector<3x256xf32>
    %c10 = arith.constant 10 : index
    %c0_280 = arith.constant 0 : index
    %c0_281 = arith.constant 0 : index
    %534 = vector.load %arg14[%c10, %c0_280, %c0_281] : memref<25x12x3xbf16, #tpu.memory_space<vmem>>, vector<1x12x3xbf16>
    %535 = vector.shape_cast %534 : vector<1x12x3xbf16> to vector<12x3xbf16>
    %536 = arith.truncf %533 : vector<3x256xf32> to vector<3x256xbf16>
    %cst_282 = arith.constant dense<0.000000e+00> : vector<12x256xf32>
    %537 = tpu.matmul %535, %536, %cst_282 {dimension_numbers = #tpu.dot_dimension_numbers<[1], [0], [0], [1], [0, 0, 1, 1], [], []>} : vector<12x3xbf16>, vector<3x256xbf16>, vector<12x256xf32> -> vector<12x256xf32>
    %538 = arith.addf %526, %537 : vector<12x256xf32>
    %c1_i32_283 = arith.constant 1 : i32
    %539 = tpu.dynamic_rotate %14 by %c1_i32_283 dim 1 : vector<3x256xf32>, i32 -> vector<3x256xf32>
    %c1_i32_284 = arith.constant 1 : i32
    %540 = vector.broadcast %c1_i32_284 : i32 to vector<1x256xi32>
    %541 = arith.cmpi sge, %0, %540 : vector<1x256xi32>
    %cst_285 = arith.constant 0.000000e+00 : f32
    %542 = vector.shape_cast %541 : vector<1x256xi1> to vector<1x256xi1>
    %543 = vector.broadcast %542 : vector<1x256xi1> to vector<3x256xi1>
    %544 = vector.broadcast %cst_285 : f32 to vector<3x256xf32>
    %545 = arith.select %543, %539, %544 : vector<3x256xi1>, vector<3x256xf32>
    %c11 = arith.constant 11 : index
    %c0_286 = arith.constant 0 : index
    %c0_287 = arith.constant 0 : index
    %546 = vector.load %arg14[%c11, %c0_286, %c0_287] : memref<25x12x3xbf16, #tpu.memory_space<vmem>>, vector<1x12x3xbf16>
    %547 = vector.shape_cast %546 : vector<1x12x3xbf16> to vector<12x3xbf16>
    %548 = arith.truncf %545 : vector<3x256xf32> to vector<3x256xbf16>
    %cst_288 = arith.constant dense<0.000000e+00> : vector<12x256xf32>
    %549 = tpu.matmul %547, %548, %cst_288 {dimension_numbers = #tpu.dot_dimension_numbers<[1], [0], [0], [1], [0, 0, 1, 1], [], []>} : vector<12x3xbf16>, vector<3x256xbf16>, vector<12x256xf32> -> vector<12x256xf32>
    %550 = arith.addf %538, %549 : vector<12x256xf32>
    %c12 = arith.constant 12 : index
    %c0_289 = arith.constant 0 : index
    %c0_290 = arith.constant 0 : index
    %551 = vector.load %arg14[%c12, %c0_289, %c0_290] : memref<25x12x3xbf16, #tpu.memory_space<vmem>>, vector<1x12x3xbf16>
    %552 = vector.shape_cast %551 : vector<1x12x3xbf16> to vector<12x3xbf16>
    %553 = arith.truncf %14 : vector<3x256xf32> to vector<3x256xbf16>
    %cst_291 = arith.constant dense<0.000000e+00> : vector<12x256xf32>
    %554 = tpu.matmul %552, %553, %cst_291 {dimension_numbers = #tpu.dot_dimension_numbers<[1], [0], [0], [1], [0, 0, 1, 1], [], []>} : vector<12x3xbf16>, vector<3x256xbf16>, vector<12x256xf32> -> vector<12x256xf32>
    %555 = arith.addf %550, %554 : vector<12x256xf32>
    %c255_i32_292 = arith.constant 255 : i32
    %556 = tpu.dynamic_rotate %14 by %c255_i32_292 dim 1 : vector<3x256xf32>, i32 -> vector<3x256xf32>
    %c15_i32_293 = arith.constant 15 : i32
    %557 = vector.broadcast %c15_i32_293 : i32 to vector<1x256xi32>
    %558 = arith.cmpi slt, %0, %557 : vector<1x256xi32>
    %cst_294 = arith.constant 0.000000e+00 : f32
    %559 = vector.shape_cast %558 : vector<1x256xi1> to vector<1x256xi1>
    %560 = vector.broadcast %559 : vector<1x256xi1> to vector<3x256xi1>
    %561 = vector.broadcast %cst_294 : f32 to vector<3x256xf32>
    %562 = arith.select %560, %556, %561 : vector<3x256xi1>, vector<3x256xf32>
    %c13 = arith.constant 13 : index
    %c0_295 = arith.constant 0 : index
    %c0_296 = arith.constant 0 : index
    %563 = vector.load %arg14[%c13, %c0_295, %c0_296] : memref<25x12x3xbf16, #tpu.memory_space<vmem>>, vector<1x12x3xbf16>
    %564 = vector.shape_cast %563 : vector<1x12x3xbf16> to vector<12x3xbf16>
    %565 = arith.truncf %562 : vector<3x256xf32> to vector<3x256xbf16>
    %cst_297 = arith.constant dense<0.000000e+00> : vector<12x256xf32>
    %566 = tpu.matmul %564, %565, %cst_297 {dimension_numbers = #tpu.dot_dimension_numbers<[1], [0], [0], [1], [0, 0, 1, 1], [], []>} : vector<12x3xbf16>, vector<3x256xbf16>, vector<12x256xf32> -> vector<12x256xf32>
    %567 = arith.addf %555, %566 : vector<12x256xf32>
    %c254_i32 = arith.constant 254 : i32
    %568 = tpu.dynamic_rotate %14 by %c254_i32 dim 1 : vector<3x256xf32>, i32 -> vector<3x256xf32>
    %c14_i32_298 = arith.constant 14 : i32
    %569 = vector.broadcast %c14_i32_298 : i32 to vector<1x256xi32>
    %570 = arith.cmpi slt, %0, %569 : vector<1x256xi32>
    %cst_299 = arith.constant 0.000000e+00 : f32
    %571 = vector.shape_cast %570 : vector<1x256xi1> to vector<1x256xi1>
    %572 = vector.broadcast %571 : vector<1x256xi1> to vector<3x256xi1>
    %573 = vector.broadcast %cst_299 : f32 to vector<3x256xf32>
    %574 = arith.select %572, %568, %573 : vector<3x256xi1>, vector<3x256xf32>
    %c14 = arith.constant 14 : index
    %c0_300 = arith.constant 0 : index
    %c0_301 = arith.constant 0 : index
    %575 = vector.load %arg14[%c14, %c0_300, %c0_301] : memref<25x12x3xbf16, #tpu.memory_space<vmem>>, vector<1x12x3xbf16>
    %576 = vector.shape_cast %575 : vector<1x12x3xbf16> to vector<12x3xbf16>
    %577 = arith.truncf %574 : vector<3x256xf32> to vector<3x256xbf16>
    %cst_302 = arith.constant dense<0.000000e+00> : vector<12x256xf32>
    %578 = tpu.matmul %576, %577, %cst_302 {dimension_numbers = #tpu.dot_dimension_numbers<[1], [0], [0], [1], [0, 0, 1, 1], [], []>} : vector<12x3xbf16>, vector<3x256xbf16>, vector<12x256xf32> -> vector<12x256xf32>
    %579 = arith.addf %567, %578 : vector<12x256xf32>
    %c242_i32 = arith.constant 242 : i32
    %580 = tpu.dynamic_rotate %14 by %c242_i32 dim 1 : vector<3x256xf32>, i32 -> vector<3x256xf32>
    %c2_i32_303 = arith.constant 2 : i32
    %581 = vector.broadcast %c2_i32_303 : i32 to vector<1x256xi32>
    %582 = arith.cmpi sge, %0, %581 : vector<1x256xi32>
    %c15_i32_304 = arith.constant 15 : i32
    %583 = vector.broadcast %c15_i32_304 : i32 to vector<1x256xi32>
    %584 = arith.cmpi slt, %1, %583 : vector<1x256xi32>
    %585 = arith.andi %582, %584 : vector<1x256xi1>
    %cst_305 = arith.constant 0.000000e+00 : f32
    %586 = vector.shape_cast %585 : vector<1x256xi1> to vector<1x256xi1>
    %587 = vector.broadcast %586 : vector<1x256xi1> to vector<3x256xi1>
    %588 = vector.broadcast %cst_305 : f32 to vector<3x256xf32>
    %589 = arith.select %587, %580, %588 : vector<3x256xi1>, vector<3x256xf32>
    %c15 = arith.constant 15 : index
    %c0_306 = arith.constant 0 : index
    %c0_307 = arith.constant 0 : index
    %590 = vector.load %arg14[%c15, %c0_306, %c0_307] : memref<25x12x3xbf16, #tpu.memory_space<vmem>>, vector<1x12x3xbf16>
    %591 = vector.shape_cast %590 : vector<1x12x3xbf16> to vector<12x3xbf16>
    %592 = arith.truncf %589 : vector<3x256xf32> to vector<3x256xbf16>
    %cst_308 = arith.constant dense<0.000000e+00> : vector<12x256xf32>
    %593 = tpu.matmul %591, %592, %cst_308 {dimension_numbers = #tpu.dot_dimension_numbers<[1], [0], [0], [1], [0, 0, 1, 1], [], []>} : vector<12x3xbf16>, vector<3x256xbf16>, vector<12x256xf32> -> vector<12x256xf32>
    %594 = arith.addf %579, %593 : vector<12x256xf32>
    %c241_i32_309 = arith.constant 241 : i32
    %595 = tpu.dynamic_rotate %14 by %c241_i32_309 dim 1 : vector<3x256xf32>, i32 -> vector<3x256xf32>
    %c1_i32_310 = arith.constant 1 : i32
    %596 = vector.broadcast %c1_i32_310 : i32 to vector<1x256xi32>
    %597 = arith.cmpi sge, %0, %596 : vector<1x256xi32>
    %c15_i32_311 = arith.constant 15 : i32
    %598 = vector.broadcast %c15_i32_311 : i32 to vector<1x256xi32>
    %599 = arith.cmpi slt, %1, %598 : vector<1x256xi32>
    %600 = arith.andi %597, %599 : vector<1x256xi1>
    %cst_312 = arith.constant 0.000000e+00 : f32
    %601 = vector.shape_cast %600 : vector<1x256xi1> to vector<1x256xi1>
    %602 = vector.broadcast %601 : vector<1x256xi1> to vector<3x256xi1>
    %603 = vector.broadcast %cst_312 : f32 to vector<3x256xf32>
    %604 = arith.select %602, %595, %603 : vector<3x256xi1>, vector<3x256xf32>
    %c16 = arith.constant 16 : index
    %c0_313 = arith.constant 0 : index
    %c0_314 = arith.constant 0 : index
    %605 = vector.load %arg14[%c16, %c0_313, %c0_314] : memref<25x12x3xbf16, #tpu.memory_space<vmem>>, vector<1x12x3xbf16>
    %606 = vector.shape_cast %605 : vector<1x12x3xbf16> to vector<12x3xbf16>
    %607 = arith.truncf %604 : vector<3x256xf32> to vector<3x256xbf16>
    %cst_315 = arith.constant dense<0.000000e+00> : vector<12x256xf32>
    %608 = tpu.matmul %606, %607, %cst_315 {dimension_numbers = #tpu.dot_dimension_numbers<[1], [0], [0], [1], [0, 0, 1, 1], [], []>} : vector<12x3xbf16>, vector<3x256xbf16>, vector<12x256xf32> -> vector<12x256xf32>
    %609 = arith.addf %594, %608 : vector<12x256xf32>
    %c240_i32_316 = arith.constant 240 : i32
    %610 = tpu.dynamic_rotate %14 by %c240_i32_316 dim 1 : vector<3x256xf32>, i32 -> vector<3x256xf32>
    %c15_i32_317 = arith.constant 15 : i32
    %611 = vector.broadcast %c15_i32_317 : i32 to vector<1x256xi32>
    %612 = arith.cmpi slt, %1, %611 : vector<1x256xi32>
    %cst_318 = arith.constant 0.000000e+00 : f32
    %613 = vector.shape_cast %612 : vector<1x256xi1> to vector<1x256xi1>
    %614 = vector.broadcast %613 : vector<1x256xi1> to vector<3x256xi1>
    %615 = vector.broadcast %cst_318 : f32 to vector<3x256xf32>
    %616 = arith.select %614, %610, %615 : vector<3x256xi1>, vector<3x256xf32>
    %c17 = arith.constant 17 : index
    %c0_319 = arith.constant 0 : index
    %c0_320 = arith.constant 0 : index
    %617 = vector.load %arg14[%c17, %c0_319, %c0_320] : memref<25x12x3xbf16, #tpu.memory_space<vmem>>, vector<1x12x3xbf16>
    %618 = vector.shape_cast %617 : vector<1x12x3xbf16> to vector<12x3xbf16>
    %619 = arith.truncf %616 : vector<3x256xf32> to vector<3x256xbf16>
    %cst_321 = arith.constant dense<0.000000e+00> : vector<12x256xf32>
    %620 = tpu.matmul %618, %619, %cst_321 {dimension_numbers = #tpu.dot_dimension_numbers<[1], [0], [0], [1], [0, 0, 1, 1], [], []>} : vector<12x3xbf16>, vector<3x256xbf16>, vector<12x256xf32> -> vector<12x256xf32>
    %621 = arith.addf %609, %620 : vector<12x256xf32>
    %c239_i32_322 = arith.constant 239 : i32
    %622 = tpu.dynamic_rotate %14 by %c239_i32_322 dim 1 : vector<3x256xf32>, i32 -> vector<3x256xf32>
    %c15_i32_323 = arith.constant 15 : i32
    %623 = vector.broadcast %c15_i32_323 : i32 to vector<1x256xi32>
    %624 = arith.cmpi slt, %0, %623 : vector<1x256xi32>
    %c15_i32_324 = arith.constant 15 : i32
    %625 = vector.broadcast %c15_i32_324 : i32 to vector<1x256xi32>
    %626 = arith.cmpi slt, %1, %625 : vector<1x256xi32>
    %627 = arith.andi %624, %626 : vector<1x256xi1>
    %cst_325 = arith.constant 0.000000e+00 : f32
    %628 = vector.shape_cast %627 : vector<1x256xi1> to vector<1x256xi1>
    %629 = vector.broadcast %628 : vector<1x256xi1> to vector<3x256xi1>
    %630 = vector.broadcast %cst_325 : f32 to vector<3x256xf32>
    %631 = arith.select %629, %622, %630 : vector<3x256xi1>, vector<3x256xf32>
    %c18 = arith.constant 18 : index
    %c0_326 = arith.constant 0 : index
    %c0_327 = arith.constant 0 : index
    %632 = vector.load %arg14[%c18, %c0_326, %c0_327] : memref<25x12x3xbf16, #tpu.memory_space<vmem>>, vector<1x12x3xbf16>
    %633 = vector.shape_cast %632 : vector<1x12x3xbf16> to vector<12x3xbf16>
    %634 = arith.truncf %631 : vector<3x256xf32> to vector<3x256xbf16>
    %cst_328 = arith.constant dense<0.000000e+00> : vector<12x256xf32>
    %635 = tpu.matmul %633, %634, %cst_328 {dimension_numbers = #tpu.dot_dimension_numbers<[1], [0], [0], [1], [0, 0, 1, 1], [], []>} : vector<12x3xbf16>, vector<3x256xbf16>, vector<12x256xf32> -> vector<12x256xf32>
    %636 = arith.addf %621, %635 : vector<12x256xf32>
    %c238_i32 = arith.constant 238 : i32
    %637 = tpu.dynamic_rotate %14 by %c238_i32 dim 1 : vector<3x256xf32>, i32 -> vector<3x256xf32>
    %c14_i32_329 = arith.constant 14 : i32
    %638 = vector.broadcast %c14_i32_329 : i32 to vector<1x256xi32>
    %639 = arith.cmpi slt, %0, %638 : vector<1x256xi32>
    %c15_i32_330 = arith.constant 15 : i32
    %640 = vector.broadcast %c15_i32_330 : i32 to vector<1x256xi32>
    %641 = arith.cmpi slt, %1, %640 : vector<1x256xi32>
    %642 = arith.andi %639, %641 : vector<1x256xi1>
    %cst_331 = arith.constant 0.000000e+00 : f32
    %643 = vector.shape_cast %642 : vector<1x256xi1> to vector<1x256xi1>
    %644 = vector.broadcast %643 : vector<1x256xi1> to vector<3x256xi1>
    %645 = vector.broadcast %cst_331 : f32 to vector<3x256xf32>
    %646 = arith.select %644, %637, %645 : vector<3x256xi1>, vector<3x256xf32>
    %c19 = arith.constant 19 : index
    %c0_332 = arith.constant 0 : index
    %c0_333 = arith.constant 0 : index
    %647 = vector.load %arg14[%c19, %c0_332, %c0_333] : memref<25x12x3xbf16, #tpu.memory_space<vmem>>, vector<1x12x3xbf16>
    %648 = vector.shape_cast %647 : vector<1x12x3xbf16> to vector<12x3xbf16>
    %649 = arith.truncf %646 : vector<3x256xf32> to vector<3x256xbf16>
    %cst_334 = arith.constant dense<0.000000e+00> : vector<12x256xf32>
    %650 = tpu.matmul %648, %649, %cst_334 {dimension_numbers = #tpu.dot_dimension_numbers<[1], [0], [0], [1], [0, 0, 1, 1], [], []>} : vector<12x3xbf16>, vector<3x256xbf16>, vector<12x256xf32> -> vector<12x256xf32>
    %651 = arith.addf %636, %650 : vector<12x256xf32>
    %c226_i32 = arith.constant 226 : i32
    %652 = tpu.dynamic_rotate %14 by %c226_i32 dim 1 : vector<3x256xf32>, i32 -> vector<3x256xf32>
    %c2_i32_335 = arith.constant 2 : i32
    %653 = vector.broadcast %c2_i32_335 : i32 to vector<1x256xi32>
    %654 = arith.cmpi sge, %0, %653 : vector<1x256xi32>
    %c14_i32_336 = arith.constant 14 : i32
    %655 = vector.broadcast %c14_i32_336 : i32 to vector<1x256xi32>
    %656 = arith.cmpi slt, %1, %655 : vector<1x256xi32>
    %657 = arith.andi %654, %656 : vector<1x256xi1>
    %cst_337 = arith.constant 0.000000e+00 : f32
    %658 = vector.shape_cast %657 : vector<1x256xi1> to vector<1x256xi1>
    %659 = vector.broadcast %658 : vector<1x256xi1> to vector<3x256xi1>
    %660 = vector.broadcast %cst_337 : f32 to vector<3x256xf32>
    %661 = arith.select %659, %652, %660 : vector<3x256xi1>, vector<3x256xf32>
    %c20 = arith.constant 20 : index
    %c0_338 = arith.constant 0 : index
    %c0_339 = arith.constant 0 : index
    %662 = vector.load %arg14[%c20, %c0_338, %c0_339] : memref<25x12x3xbf16, #tpu.memory_space<vmem>>, vector<1x12x3xbf16>
    %663 = vector.shape_cast %662 : vector<1x12x3xbf16> to vector<12x3xbf16>
    %664 = arith.truncf %661 : vector<3x256xf32> to vector<3x256xbf16>
    %cst_340 = arith.constant dense<0.000000e+00> : vector<12x256xf32>
    %665 = tpu.matmul %663, %664, %cst_340 {dimension_numbers = #tpu.dot_dimension_numbers<[1], [0], [0], [1], [0, 0, 1, 1], [], []>} : vector<12x3xbf16>, vector<3x256xbf16>, vector<12x256xf32> -> vector<12x256xf32>
    %666 = arith.addf %651, %665 : vector<12x256xf32>
    %c225_i32 = arith.constant 225 : i32
    %667 = tpu.dynamic_rotate %14 by %c225_i32 dim 1 : vector<3x256xf32>, i32 -> vector<3x256xf32>
    %c1_i32_341 = arith.constant 1 : i32
    %668 = vector.broadcast %c1_i32_341 : i32 to vector<1x256xi32>
    %669 = arith.cmpi sge, %0, %668 : vector<1x256xi32>
    %c14_i32_342 = arith.constant 14 : i32
    %670 = vector.broadcast %c14_i32_342 : i32 to vector<1x256xi32>
    %671 = arith.cmpi slt, %1, %670 : vector<1x256xi32>
    %672 = arith.andi %669, %671 : vector<1x256xi1>
    %cst_343 = arith.constant 0.000000e+00 : f32
    %673 = vector.shape_cast %672 : vector<1x256xi1> to vector<1x256xi1>
    %674 = vector.broadcast %673 : vector<1x256xi1> to vector<3x256xi1>
    %675 = vector.broadcast %cst_343 : f32 to vector<3x256xf32>
    %676 = arith.select %674, %667, %675 : vector<3x256xi1>, vector<3x256xf32>
    %c21 = arith.constant 21 : index
    %c0_344 = arith.constant 0 : index
    %c0_345 = arith.constant 0 : index
    %677 = vector.load %arg14[%c21, %c0_344, %c0_345] : memref<25x12x3xbf16, #tpu.memory_space<vmem>>, vector<1x12x3xbf16>
    %678 = vector.shape_cast %677 : vector<1x12x3xbf16> to vector<12x3xbf16>
    %679 = arith.truncf %676 : vector<3x256xf32> to vector<3x256xbf16>
    %cst_346 = arith.constant dense<0.000000e+00> : vector<12x256xf32>
    %680 = tpu.matmul %678, %679, %cst_346 {dimension_numbers = #tpu.dot_dimension_numbers<[1], [0], [0], [1], [0, 0, 1, 1], [], []>} : vector<12x3xbf16>, vector<3x256xbf16>, vector<12x256xf32> -> vector<12x256xf32>
    %681 = arith.addf %666, %680 : vector<12x256xf32>
    %c224_i32 = arith.constant 224 : i32
    %682 = tpu.dynamic_rotate %14 by %c224_i32 dim 1 : vector<3x256xf32>, i32 -> vector<3x256xf32>
    %c14_i32_347 = arith.constant 14 : i32
    %683 = vector.broadcast %c14_i32_347 : i32 to vector<1x256xi32>
    %684 = arith.cmpi slt, %1, %683 : vector<1x256xi32>
    %cst_348 = arith.constant 0.000000e+00 : f32
    %685 = vector.shape_cast %684 : vector<1x256xi1> to vector<1x256xi1>
    %686 = vector.broadcast %685 : vector<1x256xi1> to vector<3x256xi1>
    %687 = vector.broadcast %cst_348 : f32 to vector<3x256xf32>
    %688 = arith.select %686, %682, %687 : vector<3x256xi1>, vector<3x256xf32>
    %c22 = arith.constant 22 : index
    %c0_349 = arith.constant 0 : index
    %c0_350 = arith.constant 0 : index
    %689 = vector.load %arg14[%c22, %c0_349, %c0_350] : memref<25x12x3xbf16, #tpu.memory_space<vmem>>, vector<1x12x3xbf16>
    %690 = vector.shape_cast %689 : vector<1x12x3xbf16> to vector<12x3xbf16>
    %691 = arith.truncf %688 : vector<3x256xf32> to vector<3x256xbf16>
    %cst_351 = arith.constant dense<0.000000e+00> : vector<12x256xf32>
    %692 = tpu.matmul %690, %691, %cst_351 {dimension_numbers = #tpu.dot_dimension_numbers<[1], [0], [0], [1], [0, 0, 1, 1], [], []>} : vector<12x3xbf16>, vector<3x256xbf16>, vector<12x256xf32> -> vector<12x256xf32>
    %693 = arith.addf %681, %692 : vector<12x256xf32>
    %c223_i32 = arith.constant 223 : i32
    %694 = tpu.dynamic_rotate %14 by %c223_i32 dim 1 : vector<3x256xf32>, i32 -> vector<3x256xf32>
    %c15_i32_352 = arith.constant 15 : i32
    %695 = vector.broadcast %c15_i32_352 : i32 to vector<1x256xi32>
    %696 = arith.cmpi slt, %0, %695 : vector<1x256xi32>
    %c14_i32_353 = arith.constant 14 : i32
    %697 = vector.broadcast %c14_i32_353 : i32 to vector<1x256xi32>
    %698 = arith.cmpi slt, %1, %697 : vector<1x256xi32>
    %699 = arith.andi %696, %698 : vector<1x256xi1>
    %cst_354 = arith.constant 0.000000e+00 : f32
    %700 = vector.shape_cast %699 : vector<1x256xi1> to vector<1x256xi1>
    %701 = vector.broadcast %700 : vector<1x256xi1> to vector<3x256xi1>
    %702 = vector.broadcast %cst_354 : f32 to vector<3x256xf32>
    %703 = arith.select %701, %694, %702 : vector<3x256xi1>, vector<3x256xf32>
    %c23 = arith.constant 23 : index
    %c0_355 = arith.constant 0 : index
    %c0_356 = arith.constant 0 : index
    %704 = vector.load %arg14[%c23, %c0_355, %c0_356] : memref<25x12x3xbf16, #tpu.memory_space<vmem>>, vector<1x12x3xbf16>
    %705 = vector.shape_cast %704 : vector<1x12x3xbf16> to vector<12x3xbf16>
    %706 = arith.truncf %703 : vector<3x256xf32> to vector<3x256xbf16>
    %cst_357 = arith.constant dense<0.000000e+00> : vector<12x256xf32>
    %707 = tpu.matmul %705, %706, %cst_357 {dimension_numbers = #tpu.dot_dimension_numbers<[1], [0], [0], [1], [0, 0, 1, 1], [], []>} : vector<12x3xbf16>, vector<3x256xbf16>, vector<12x256xf32> -> vector<12x256xf32>
    %708 = arith.addf %693, %707 : vector<12x256xf32>
    %c222_i32 = arith.constant 222 : i32
    %709 = tpu.dynamic_rotate %14 by %c222_i32 dim 1 : vector<3x256xf32>, i32 -> vector<3x256xf32>
    %c14_i32_358 = arith.constant 14 : i32
    %710 = vector.broadcast %c14_i32_358 : i32 to vector<1x256xi32>
    %711 = arith.cmpi slt, %0, %710 : vector<1x256xi32>
    %c14_i32_359 = arith.constant 14 : i32
    %712 = vector.broadcast %c14_i32_359 : i32 to vector<1x256xi32>
    %713 = arith.cmpi slt, %1, %712 : vector<1x256xi32>
    %714 = arith.andi %711, %713 : vector<1x256xi1>
    %cst_360 = arith.constant 0.000000e+00 : f32
    %715 = vector.shape_cast %714 : vector<1x256xi1> to vector<1x256xi1>
    %716 = vector.broadcast %715 : vector<1x256xi1> to vector<3x256xi1>
    %717 = vector.broadcast %cst_360 : f32 to vector<3x256xf32>
    %718 = arith.select %716, %709, %717 : vector<3x256xi1>, vector<3x256xf32>
    %c24 = arith.constant 24 : index
    %c0_361 = arith.constant 0 : index
    %c0_362 = arith.constant 0 : index
    %719 = vector.load %arg14[%c24, %c0_361, %c0_362] : memref<25x12x3xbf16, #tpu.memory_space<vmem>>, vector<1x12x3xbf16>
    %720 = vector.shape_cast %719 : vector<1x12x3xbf16> to vector<12x3xbf16>
    %721 = arith.truncf %718 : vector<3x256xf32> to vector<3x256xbf16>
    %cst_363 = arith.constant dense<0.000000e+00> : vector<12x256xf32>
    %722 = tpu.matmul %720, %721, %cst_363 {dimension_numbers = #tpu.dot_dimension_numbers<[1], [0], [0], [1], [0, 0, 1, 1], [], []>} : vector<12x3xbf16>, vector<3x256xbf16>, vector<12x256xf32> -> vector<12x256xf32>
    %723 = arith.addf %708, %722 : vector<12x256xf32>
    %c0_364 = arith.constant 0 : index
    %c0_365 = arith.constant 0 : index
    %724 = vector.load %arg15[%c0_364, %c0_365] : memref<12x1xf32, #tpu.memory_space<vmem>>, vector<12x1xf32>
    %725 = vector.broadcast %724 : vector<12x1xf32> to vector<12x256xf32>
    %726 = arith.addf %723, %725 : vector<12x256xf32>
    %727 = arith.addf %383, %726 : vector<12x256xf32>
    %c0_366 = arith.constant 0 : index
    %c0_367 = arith.constant 0 : index
    %728 = vector.load %arg16[%c0_366, %c0_367] : memref<12x1xf32, #tpu.memory_space<vmem>>, vector<12x1xf32>
    %729 = vector.broadcast %728 : vector<12x1xf32> to vector<12x256xf32>
    %730 = arith.addf %727, %729 : vector<12x256xf32>
    %731 = arith.negf %730 : vector<12x256xf32>
    %732 = math.exp %731 : vector<12x256xf32>
    %cst_368 = arith.constant 1.000000e+00 : f32
    %733 = vector.broadcast %cst_368 : f32 to vector<12x256xf32>
    %734 = arith.addf %733, %732 : vector<12x256xf32>
    %735 = arith.divf %733, %734 : vector<12x256xf32>
    %c0_369 = arith.constant 0 : index
    %c0_370 = arith.constant 0 : index
    %c0_371 = arith.constant 0 : index
    %736 = vector.load %arg18[%c0_369, %c0_370, %c0_371] : memref<1x12x256xf32, #tpu.memory_space<vmem>>, vector<1x12x256xf32>
    %737 = vector.shape_cast %736 : vector<1x12x256xf32> to vector<12x256xf32>
    %738 = vector.shape_cast %735 : vector<12x256xf32> to vector<1x12x256xf32>
    tpu.vector_store %arg18[%c0_369, %c0_370, %c0_371], %738 {strides = array<i32>} : memref<1x12x256xf32, #tpu.memory_space<vmem>>, vector<1x12x256xf32>,
    return
  }
  func.func @transform_0(%arg0: i32) -> (i32, i32, i32) {
    %c0_i32 = arith.constant 0 : i32
    %c0_i32_0 = arith.constant 0 : i32
    %c0_i32_1 = arith.constant 0 : i32
    return %arg0, %c0_i32, %c0_i32_0 : i32, i32, i32
  }
  func.func @transform_1(%arg0: i32) -> (i32, i32) {
    %c0_i32 = arith.constant 0 : i32
    %c0_i32_0 = arith.constant 0 : i32
    %c0_i32_1 = arith.constant 0 : i32
    return %c0_i32, %c0_i32_0 : i32, i32
  }
  func.func @transform_2(%arg0: i32) -> (i32, i32) {
    %c0_i32 = arith.constant 0 : i32
    %c0_i32_0 = arith.constant 0 : i32
    %c0_i32_1 = arith.constant 0 : i32
    return %c0_i32, %c0_i32_0 : i32, i32
  }
  func.func @transform_3(%arg0: i32) -> (i32, i32) {
    %c0_i32 = arith.constant 0 : i32
    %c0_i32_0 = arith.constant 0 : i32
    %c0_i32_1 = arith.constant 0 : i32
    return %c0_i32, %c0_i32_0 : i32, i32
  }
  func.func @transform_4(%arg0: i32) -> (i32, i32, i32) {
    %c0_i32 = arith.constant 0 : i32
    %c0_i32_0 = arith.constant 0 : i32
    %c0_i32_1 = arith.constant 0 : i32
    %c0_i32_2 = arith.constant 0 : i32
    return %c0_i32, %c0_i32_0, %c0_i32_1 : i32, i32, i32
  }
  func.func @transform_5(%arg0: i32) -> (i32, i32) {
    %c0_i32 = arith.constant 0 : i32
    %c0_i32_0 = arith.constant 0 : i32
    %c0_i32_1 = arith.constant 0 : i32
    return %c0_i32, %c0_i32_0 : i32, i32
  }
  func.func @transform_6(%arg0: i32) -> (i32, i32) {
    %c0_i32 = arith.constant 0 : i32
    %c0_i32_0 = arith.constant 0 : i32
    %c0_i32_1 = arith.constant 0 : i32
    return %c0_i32, %c0_i32_0 : i32, i32
  }
  func.func @transform_7(%arg0: i32) -> (i32, i32, i32) {
    %c0_i32 = arith.constant 0 : i32
    %c0_i32_0 = arith.constant 0 : i32
    %c0_i32_1 = arith.constant 0 : i32
    %c0_i32_2 = arith.constant 0 : i32
    return %c0_i32, %c0_i32_0, %c0_i32_1 : i32, i32, i32
  }
  func.func @transform_8(%arg0: i32) -> (i32, i32) {
    %c0_i32 = arith.constant 0 : i32
    %c0_i32_0 = arith.constant 0 : i32
    %c0_i32_1 = arith.constant 0 : i32
    return %c0_i32, %c0_i32_0 : i32, i32
  }
  func.func @transform_9(%arg0: i32) -> (i32, i32) {
    %c0_i32 = arith.constant 0 : i32
    %c0_i32_0 = arith.constant 0 : i32
    %c0_i32_1 = arith.constant 0 : i32
    return %c0_i32, %c0_i32_0 : i32, i32
  }
  func.func @transform_10(%arg0: i32) -> (i32, i32, i32) {
    %c0_i32 = arith.constant 0 : i32
    %c0_i32_0 = arith.constant 0 : i32
    %c0_i32_1 = arith.constant 0 : i32
    %c0_i32_2 = arith.constant 0 : i32
    return %c0_i32, %c0_i32_0, %c0_i32_1 : i32, i32, i32
  }
  func.func @transform_11(%arg0: i32) -> (i32, i32, i32) {
    %c0_i32 = arith.constant 0 : i32
    %c0_i32_0 = arith.constant 0 : i32
    %c0_i32_1 = arith.constant 0 : i32
    %c0_i32_2 = arith.constant 0 : i32
    return %c0_i32, %c0_i32_0, %c0_i32_1 : i32, i32, i32
  }
  func.func @transform_12(%arg0: i32) -> (i32, i32) {
    %c0_i32 = arith.constant 0 : i32
    %c0_i32_0 = arith.constant 0 : i32
    %c0_i32_1 = arith.constant 0 : i32
    return %c0_i32, %c0_i32_0 : i32, i32
  }
  func.func @transform_13(%arg0: i32) -> (i32, i32, i32) {
    %c0_i32 = arith.constant 0 : i32
    %c0_i32_0 = arith.constant 0 : i32
    %c0_i32_1 = arith.constant 0 : i32
    %c0_i32_2 = arith.constant 0 : i32
    return %c0_i32, %c0_i32_0, %c0_i32_1 : i32, i32, i32
  }
  func.func @transform_14(%arg0: i32) -> (i32, i32) {
    %c0_i32 = arith.constant 0 : i32
    %c0_i32_0 = arith.constant 0 : i32
    %c0_i32_1 = arith.constant 0 : i32
    return %c0_i32, %c0_i32_0 : i32, i32
  }
  func.func @transform_15(%arg0: i32) -> (i32, i32) {
    %c0_i32 = arith.constant 0 : i32
    %c0_i32_0 = arith.constant 0 : i32
    %c0_i32_1 = arith.constant 0 : i32
    return %c0_i32, %c0_i32_0 : i32, i32
  }
  func.func @transform_16(%arg0: i32) -> i32 {
    %c0_i32 = arith.constant 0 : i32
    %c0_i32_0 = arith.constant 0 : i32
    return %c0_i32 : i32
  }
  func.func @transform_17(%arg0: i32) -> (i32, i32, i32) {
    %c0_i32 = arith.constant 0 : i32
    %c0_i32_0 = arith.constant 0 : i32
    %c0_i32_1 = arith.constant 0 : i32
    return %arg0, %c0_i32, %c0_i32_0 : i32, i32, i32
  }
}

</mosaic_0001>

<llo_original>
// kernel: wdsr_forward.1
$region0: #{wdsr_forward.1}
  #allocation0 [shape = 'u32[]', space=smem, size = 0x4, offset = 0x4, fixed_abs, tag = 'smem constant byte address 0x4 - core index']
  #allocation1 [shape = 'u32[144,128]{1,0:T(1,128)}', space=vmem, size = 0x12000, scoped, tag = 'internal scratch']
  %s0 = inlined_call_operand.vmem [shape: f32[2,3,256], index: 0, kind: input, shape index: {}]
  %s1 = inlined_call_operand.vmem [shape: s32[1,256], index: 1, kind: input, shape index: {}]
  %s2 = inlined_call_operand.vmem [shape: s32[1,256], index: 2, kind: input, shape index: {}]
  %s3 = inlined_call_operand.hbm [shape: f32[3,1], index: 3, kind: input, shape index: {}]
  %s4 = inlined_call_operand.vmem [shape: bf16[9,16,3], index: 4, kind: input, shape index: {}]
  %s5 = inlined_call_operand.vmem [shape: bf16[48,16], index: 5, kind: input, shape index: {}]
  %s6 = inlined_call_operand.hbm [shape: bf16[12,48], index: 6, kind: input, shape index: {}]
  %s7 = inlined_call_operand.hbm [shape: bf16[9,16,12], index: 7, kind: input, shape index: {}]
  %s8 = inlined_call_operand.vmem [shape: bf16[48,16], index: 8, kind: input, shape index: {}]
  %s9 = inlined_call_operand.hbm [shape: bf16[12,48], index: 9, kind: input, shape index: {}]
  %s10 = inlined_call_operand.hbm [shape: bf16[9,16,12], index: 10, kind: input, shape index: {}]
  %s11 = inlined_call_operand.hbm [shape: bf16[9,12,16], index: 11, kind: input, shape index: {}]
  %s12 = inlined_call_operand.vmem [shape: f32[12,1], index: 12, kind: input, shape index: {}]
  %s13 = inlined_call_operand.vmem [shape: bf16[25,12,3], index: 13, kind: input, shape index: {}]
  %s14 = inlined_call_operand.vmem [shape: f32[12,1], index: 14, kind: input, shape index: {}]
  %s15 = inlined_call_operand.vmem [shape: f32[12,1], index: 15, kind: input, shape index: {}]
  %s16 = inlined_call_operand.hbm [shape: f32[2], index: 16, kind: input, shape index: {}]
  %s17 = inlined_call_operand.vmem [shape: f32[2,12,256], index: 17, kind: output, shape index: {}]
  %s18 = sld [smem:[#allocation0]]
  $region129: #{wdsr_forward.1} parent=0
    _
  %s20 = ssub.s32 1, %s18
  %s21 = scalar_select 0, %s20, %s18
  $region1: #{wdsr_forward.1} parent=0
    #allocation2 [shape = 'u8[2048]{0}', space=vmem, size = 0x800, scoped, tag = 'input window, operand 3, single buffered']
    #allocation3 [shape = 's32[2]{0}', space=sflag, size = 0x8, scoped, tag = 'scoped memory for wdsr_forward.1']
    #allocation4 [shape = 's32[2]{0}', space=sflag, size = 0x8, scoped, tag = 'scoped memory for wdsr_forward.1']
    #allocation5 [shape = 'u8[4096]{0}', space=vmem, size = 0x1000, scoped, tag = 'input window, operand 6, single buffered']
    #allocation6 [shape = 's32[1]{0}', space=sflag, size = 0x4, scoped, tag = 'scoped memory for wdsr_forward.1']
    #allocation7 [shape = 'u8[36864]{0}', space=vmem, size = 0x9000, scoped, tag = 'input window, operand 7, single buffered']
    #allocation8 [shape = 'u8[4096]{0}', space=vmem, size = 0x1000, scoped, tag = 'input window, operand 9, single buffered']
    #allocation9 [shape = 's32[1]{0}', space=sflag, size = 0x4, scoped, tag = 'scoped memory for wdsr_forward.1']
    #allocation10 [shape = 'u8[36864]{0}', space=vmem, size = 0x9000, scoped, tag = 'input window, operand 10, single buffered']
    #allocation11 [shape = 'u8[36864]{0}', space=vmem, size = 0x9000, scoped, tag = 'input window, operand 11, single buffered']
    #allocation12 [shape = 's32[1]{0}', space=sflag, size = 0x4, scoped, tag = 'scoped memory for wdsr_forward.1']
    #allocation13 [shape = 'u8[512]{0}', space=smem, size = 0x200, scoped, tag = 'input window, operand 16, single buffered']
    %22 = vsyncpa [#allocation3], 0
    %23 = vsyncpa [#allocation6], 0
    %24 = vsyncpa [#allocation9], 0
    %25 = vsyncpa [#allocation12], 0
    %26 = vsyncpa [#allocation4], 0
    loop: start=0, step=1, limit=4
    $region2: #{wdsr_forward.1} parent=1 // loop_pre_header
      _
    $region3: #{wdsr_forward.1} parent=1 // loop_header
      %s28 = sphi 0, %s32
      %p29 = scmp.ge.s32.totalorder %s28, 4
      %s38 = sphi 0, %s40
      %s41 = sphi 0, %s38
      %s42 = sphi 0, %s41
      %s58 = sphi 0, %s42
      %s62 = sphi 0, %s62
      %s64 = sphi 0, %s62
      %s65 = sphi 0, %s64
      %s79 = sphi 0, %s65
      %s83 = sphi 0, %s83
      %s85 = sphi 0, %s83
      %s86 = sphi 0, %s85
      %s100 = sphi 0, %s86
      %s104 = sphi 0, %s104
      %s106 = sphi 0, %s104
      %s107 = sphi 0, %s106
      %s121 = sphi 0, %s107
      %s125 = sphi 0, %s125
      %s127 = sphi 0, %s125
      %s128 = sphi 0, %s127
      %s142 = sphi 0, %s128
      %s146 = sphi 0, %s146
      %s148 = sphi 0, %s146
      %s149 = sphi 0, %s148
      %s163 = sphi 0, %s149
      %s167 = sphi 0, %s167
      %s169 = sphi 0, %s167
      %s170 = sphi 0, %s169
      %s184 = sphi 0, %s170
      %s188 = sphi 0, %s188
      %s190 = sphi 0, %s188
      %s191 = sphi 0, %s190
      %s205 = sphi 0, %s191
      %s209 = sphi 0, %s209
      %s211 = sphi 0, %s209
      %s212 = sphi 0, %s211
      %s226 = sphi 0, %s212
      %s230 = sphi 0, %s230
      %s232 = sphi 0, %s230
      %s233 = sphi 0, %s232
      %s247 = sphi 0, %s233
      %s251 = sphi 0, %s251
      %s253 = sphi 0, %s251
      %s254 = sphi 0, %s253
      %s268 = sphi 0, %s254
      %s272 = sphi 0, %s272
      %s274 = sphi 0, %s272
      %s275 = sphi 0, %s274
      %s289 = sphi 0, %s275
      %s293 = sphi 0, %s293
      %s295 = sphi 0, %s293
      %s296 = sphi 0, %s295
      %s310 = sphi 0, %s296
      %s314 = sphi 0, %s314
      %s316 = sphi 0, %s314
      %s317 = sphi 0, %s316
      %s331 = sphi 0, %s317
      %s335 = sphi 0, %s335
      %s337 = sphi 0, %s335
      %s338 = sphi 0, %s337
      %s352 = sphi 0, %s338
      %s356 = sphi 0, %s356
      %s358 = sphi 0, %s356
      %s359 = sphi 0, %s358
      %s373 = sphi 0, %s359
      %s377 = sphi 0, %s377
      %s379 = sphi 0, %s377
      %s380 = sphi 0, %s379
      %s394 = sphi 0, %s380
      %s400 = sphi 0, %s402
      %s403 = sphi 0, %s400
      %s404 = sphi 0, %s403
      %s420 = sphi 0, %s404
    $region4: #{wdsr_forward.1} parent=1 // loop_header_branch
      %31 = sbr.rel (%p29) target = $region8
    $region5: #{wdsr_forward.1} parent=1 // loop_body
      %s33 = ssub.s32 %s28, 1
      %s34 = ssub.s32 %s28, 2
      %s35 = sadd.s32 %s28, 1
      %s36 = ssub.s32 %s28, %s35
      %p37 = scmp.eq.s32.totalorder %s36, 0
      %s39 = sadd.s32 %s38, 1
      %s40 = scalar_select %p37, %s38, %s39
      %p43 = pneg %p37
      %p44 = scmp.eq.s32.totalorder %s28, 1
      %p45 = por %p43, %p44
      %p46 = scmp.ne.s32.totalorder %s38, %s41
      %p47 = scmp.eq.s32.totalorder %s28, 0
      %p48 = por %p46, %p47
      %p49 = scmp.ne.s32.totalorder %s38, %s41
      %p50 = scmp.eq.s32.totalorder %s33, 1
      %p51 = por %p49, %p50
      %p52 = scmp.ne.s32.totalorder %s41, %s42
      %p53 = scmp.eq.s32.totalorder %s33, 0
      %p54 = por %p52, %p53
      %p55 = scmp.ne.s32.totalorder %s41, %s42
      %p56 = scmp.eq.s32.totalorder %s34, 1
      %p57 = por %p55, %p56
      %p59 = scmp.ne.s32.totalorder %s42, %s58
      %p60 = scmp.eq.s32.totalorder %s34, 0
      %p61 = por %p59, %p60
      %s63 = sadd.s32 %s62, 1
      %p66 = scmp.eq.s32.totalorder %s28, 1
      %p67 = scmp.ne.s32.totalorder %s62, %s64
      %p68 = scmp.eq.s32.totalorder %s28, 0
      %p69 = por %p67, %p68
      %p70 = scmp.ne.s32.totalorder %s62, %s64
      %p71 = scmp.eq.s32.totalorder %s33, 1
      %p72 = por %p70, %p71
      %p73 = scmp.ne.s32.totalorder %s64, %s65
      %p74 = scmp.eq.s32.totalorder %s33, 0
      %p75 = por %p73, %p74
      %p76 = scmp.ne.s32.totalorder %s64, %s65
      %p77 = scmp.eq.s32.totalorder %s34, 1
      %p78 = por %p76, %p77
      %p80 = scmp.ne.s32.totalorder %s65, %s79
      %p81 = scmp.eq.s32.totalorder %s34, 0
      %p82 = por %p80, %p81
      %s84 = sadd.s32 %s83, 1
      %p87 = scmp.eq.s32.totalorder %s28, 1
      %p88 = scmp.ne.s32.totalorder %s83, %s85
      %p89 = scmp.eq.s32.totalorder %s28, 0
      %p90 = por %p88, %p89
      %p91 = scmp.ne.s32.totalorder %s83, %s85
      %p92 = scmp.eq.s32.totalorder %s33, 1
      %p93 = por %p91, %p92
      %p94 = scmp.ne.s32.totalorder %s85, %s86
      %p95 = scmp.eq.s32.totalorder %s33, 0
      %p96 = por %p94, %p95
      %p97 = scmp.ne.s32.totalorder %s85, %s86
      %p98 = scmp.eq.s32.totalorder %s34, 1
      %p99 = por %p97, %p98
      %p101 = scmp.ne.s32.totalorder %s86, %s100
      %p102 = scmp.eq.s32.totalorder %s34, 0
      %p103 = por %p101, %p102
      %s105 = sadd.s32 %s104, 1
      %p108 = scmp.eq.s32.totalorder %s28, 1
      %p109 = scmp.ne.s32.totalorder %s104, %s106
      %p110 = scmp.eq.s32.totalorder %s28, 0
      %p111 = por %p109, %p110
      %p112 = scmp.ne.s32.totalorder %s104, %s106
      %p113 = scmp.eq.s32.totalorder %s33, 1
      %p114 = por %p112, %p113
      %p115 = scmp.ne.s32.totalorder %s106, %s107
      %p116 = scmp.eq.s32.totalorder %s33, 0
      %p117 = por %p115, %p116
      %p118 = scmp.ne.s32.totalorder %s106, %s107
      %p119 = scmp.eq.s32.totalorder %s34, 1
      %p120 = por %p118, %p119
      %p122 = scmp.ne.s32.totalorder %s107, %s121
      %p123 = scmp.eq.s32.totalorder %s34, 0
      %p124 = por %p122, %p123
      %s126 = sadd.s32 %s125, 1
      %p129 = scmp.eq.s32.totalorder %s28, 1
      %p130 = scmp.ne.s32.totalorder %s125, %s127
      %p131 = scmp.eq.s32.totalorder %s28, 0
      %p132 = por %p130, %p131
      %p133 = scmp.ne.s32.totalorder %s125, %s127
      %p134 = scmp.eq.s32.totalorder %s33, 1
      %p135 = por %p133, %p134
      %p136 = scmp.ne.s32.totalorder %s127, %s128
      %p137 = scmp.eq.s32.totalorder %s33, 0
      %p138 = por %p136, %p137
      %p139 = scmp.ne.s32.totalorder %s127, %s128
      %p140 = scmp.eq.s32.totalorder %s34, 1
      %p141 = por %p139, %p140
      %p143 = scmp.ne.s32.totalorder %s128, %s142
      %p144 = scmp.eq.s32.totalorder %s34, 0
      %p145 = por %p143, %p144
      %s147 = sadd.s32 %s146, 1
      %p150 = scmp.eq.s32.totalorder %s28, 1
      %p151 = scmp.ne.s32.totalorder %s146, %s148
      %p152 = scmp.eq.s32.totalorder %s28, 0
      %p153 = por %p151, %p152
      %p154 = scmp.ne.s32.totalorder %s146, %s148
      %p155 = scmp.eq.s32.totalorder %s33, 1
      %p156 = por %p154, %p155
      %p157 = scmp.ne.s32.totalorder %s148, %s149
      %p158 = scmp.eq.s32.totalorder %s33, 0
      %p159 = por %p157, %p158
      %p160 = scmp.ne.s32.totalorder %s148, %s149
      %p161 = scmp.eq.s32.totalorder %s34, 1
      %p162 = por %p160, %p161
      %p164 = scmp.ne.s32.totalorder %s149, %s163
      %p165 = scmp.eq.s32.totalorder %s34, 0
      %p166 = por %p164, %p165
      %s168 = sadd.s32 %s167, 1
      %p171 = scmp.eq.s32.totalorder %s28, 1
      %p172 = scmp.ne.s32.totalorder %s167, %s169
      %p173 = scmp.eq.s32.totalorder %s28, 0
      %p174 = por %p172, %p173
      %p175 = scmp.ne.s32.totalorder %s167, %s169
      %p176 = scmp.eq.s32.totalorder %s33, 1
      %p177 = por %p175, %p176
      %p178 = scmp.ne.s32.totalorder %s169, %s170
      %p179 = scmp.eq.s32.totalorder %s33, 0
      %p180 = por %p178, %p179
      %p181 = scmp.ne.s32.totalorder %s169, %s170
      %p182 = scmp.eq.s32.totalorder %s34, 1
      %p183 = por %p181, %p182
      %p185 = scmp.ne.s32.totalorder %s170, %s184
      %p186 = scmp.eq.s32.totalorder %s34, 0
      %p187 = por %p185, %p186
      %s189 = sadd.s32 %s188, 1
      %p192 = scmp.eq.s32.totalorder %s28, 1
      %p193 = scmp.ne.s32.totalorder %s188, %s190
      %p194 = scmp.eq.s32.totalorder %s28, 0
      %p195 = por %p193, %p194
      %p196 = scmp.ne.s32.totalorder %s188, %s190
      %p197 = scmp.eq.s32.totalorder %s33, 1
      %p198 = por %p196, %p197
      %p199 = scmp.ne.s32.totalorder %s190, %s191
      %p200 = scmp.eq.s32.totalorder %s33, 0
      %p201 = por %p199, %p200
      %p202 = scmp.ne.s32.totalorder %s190, %s191
      %p203 = scmp.eq.s32.totalorder %s34, 1
      %p204 = por %p202, %p203
      %p206 = scmp.ne.s32.totalorder %s191, %s205
      %p207 = scmp.eq.s32.totalorder %s34, 0
      %p208 = por %p206, %p207
      %s210 = sadd.s32 %s209, 1
      %p213 = scmp.eq.s32.totalorder %s28, 1
      %p214 = scmp.ne.s32.totalorder %s209, %s211
      %p215 = scmp.eq.s32.totalorder %s28, 0
      %p216 = por %p214, %p215
      %p217 = scmp.ne.s32.totalorder %s209, %s211
      %p218 = scmp.eq.s32.totalorder %s33, 1
      %p219 = por %p217, %p218
      %p220 = scmp.ne.s32.totalorder %s211, %s212
      %p221 = scmp.eq.s32.totalorder %s33, 0
      %p222 = por %p220, %p221
      %p223 = scmp.ne.s32.totalorder %s211, %s212
      %p224 = scmp.eq.s32.totalorder %s34, 1
      %p225 = por %p223, %p224
      %p227 = scmp.ne.s32.totalorder %s212, %s226
      %p228 = scmp.eq.s32.totalorder %s34, 0
      %p229 = por %p227, %p228
      %s231 = sadd.s32 %s230, 1
      %p234 = scmp.eq.s32.totalorder %s28, 1
      %p235 = scmp.ne.s32.totalorder %s230, %s232
      %p236 = scmp.eq.s32.totalorder %s28, 0
      %p237 = por %p235, %p236
      %p238 = scmp.ne.s32.totalorder %s230, %s232
      %p239 = scmp.eq.s32.totalorder %s33, 1
      %p240 = por %p238, %p239
      %p241 = scmp.ne.s32.totalorder %s232, %s233
      %p242 = scmp.eq.s32.totalorder %s33, 0
      %p243 = por %p241, %p242
      %p244 = scmp.ne.s32.totalorder %s232, %s233
      %p245 = scmp.eq.s32.totalorder %s34, 1
      %p246 = por %p244, %p245
      %p248 = scmp.ne.s32.totalorder %s233, %s247
      %p249 = scmp.eq.s32.totalorder %s34, 0
      %p250 = por %p248, %p249
      %s252 = sadd.s32 %s251, 1
      %p255 = scmp.eq.s32.totalorder %s28, 1
      %p256 = scmp.ne.s32.totalorder %s251, %s253
      %p257 = scmp.eq.s32.totalorder %s28, 0
      %p258 = por %p256, %p257
      %p259 = scmp.ne.s32.totalorder %s251, %s253
      %p260 = scmp.eq.s32.totalorder %s33, 1
      %p261 = por %p259, %p260
      %p262 = scmp.ne.s32.totalorder %s253, %s254
      %p263 = scmp.eq.s32.totalorder %s33, 0
      %p264 = por %p262, %p263
      %p265 = scmp.ne.s32.totalorder %s253, %s254
      %p266 = scmp.eq.s32.totalorder %s34, 1
      %p267 = por %p265, %p266
      %p269 = scmp.ne.s32.totalorder %s254, %s268
      %p270 = scmp.eq.s32.totalorder %s34, 0
      %p271 = por %p269, %p270
      %s273 = sadd.s32 %s272, 1
      %p276 = scmp.eq.s32.totalorder %s28, 1
      %p277 = scmp.ne.s32.totalorder %s272, %s274
      %p278 = scmp.eq.s32.totalorder %s28, 0
      %p279 = por %p277, %p278
      %p280 = scmp.ne.s32.totalorder %s272, %s274
      %p281 = scmp.eq.s32.totalorder %s33, 1
      %p282 = por %p280, %p281
      %p283 = scmp.ne.s32.totalorder %s274, %s275
      %p284 = scmp.eq.s32.totalorder %s33, 0
      %p285 = por %p283, %p284
      %p286 = scmp.ne.s32.totalorder %s274, %s275
      %p287 = scmp.eq.s32.totalorder %s34, 1
      %p288 = por %p286, %p287
      %p290 = scmp.ne.s32.totalorder %s275, %s289
      %p291 = scmp.eq.s32.totalorder %s34, 0
      %p292 = por %p290, %p291
      %s294 = sadd.s32 %s293, 1
      %p297 = scmp.eq.s32.totalorder %s28, 1
      %p298 = scmp.ne.s32.totalorder %s293, %s295
      %p299 = scmp.eq.s32.totalorder %s28, 0
      %p300 = por %p298, %p299
      %p301 = scmp.ne.s32.totalorder %s293, %s295
      %p302 = scmp.eq.s32.totalorder %s33, 1
      %p303 = por %p301, %p302
      %p304 = scmp.ne.s32.totalorder %s295, %s296
      %p305 = scmp.eq.s32.totalorder %s33, 0
      %p306 = por %p304, %p305
      %p307 = scmp.ne.s32.totalorder %s295, %s296
      %p308 = scmp.eq.s32.totalorder %s34, 1
      %p309 = por %p307, %p308
      %p311 = scmp.ne.s32.totalorder %s296, %s310
      %p312 = scmp.eq.s32.totalorder %s34, 0
      %p313 = por %p311, %p312
      %s315 = sadd.s32 %s314, 1
      %p318 = scmp.eq.s32.totalorder %s28, 1
      %p319 = scmp.ne.s32.totalorder %s314, %s316
      %p320 = scmp.eq.s32.totalorder %s28, 0
      %p321 = por %p319, %p320
      %p322 = scmp.ne.s32.totalorder %s314, %s316
      %p323 = scmp.eq.s32.totalorder %s33, 1
      %p324 = por %p322, %p323
      %p325 = scmp.ne.s32.totalorder %s316, %s317
      %p326 = scmp.eq.s32.totalorder %s33, 0
      %p327 = por %p325, %p326
      %p328 = scmp.ne.s32.totalorder %s316, %s317
      %p329 = scmp.eq.s32.totalorder %s34, 1
      %p330 = por %p328, %p329
      %p332 = scmp.ne.s32.totalorder %s317, %s331
      %p333 = scmp.eq.s32.totalorder %s34, 0
      %p334 = por %p332, %p333
      %s336 = sadd.s32 %s335, 1
      %p339 = scmp.eq.s32.totalorder %s28, 1
      %p340 = scmp.ne.s32.totalorder %s335, %s337
      %p341 = scmp.eq.s32.totalorder %s28, 0
      %p342 = por %p340, %p341
      %p343 = scmp.ne.s32.totalorder %s335, %s337
      %p344 = scmp.eq.s32.totalorder %s33, 1
      %p345 = por %p343, %p344
      %p346 = scmp.ne.s32.totalorder %s337, %s338
      %p347 = scmp.eq.s32.totalorder %s33, 0
      %p348 = por %p346, %p347
      %p349 = scmp.ne.s32.totalorder %s337, %s338
      %p350 = scmp.eq.s32.totalorder %s34, 1
      %p351 = por %p349, %p350
      %p353 = scmp.ne.s32.totalorder %s338, %s352
      %p354 = scmp.eq.s32.totalorder %s34, 0
      %p355 = por %p353, %p354
      %s357 = sadd.s32 %s356, 1
      %p360 = scmp.eq.s32.totalorder %s28, 1
      %p361 = scmp.ne.s32.totalorder %s356, %s358
      %p362 = scmp.eq.s32.totalorder %s28, 0
      %p363 = por %p361, %p362
      %p364 = scmp.ne.s32.totalorder %s356, %s358
      %p365 = scmp.eq.s32.totalorder %s33, 1
      %p366 = por %p364, %p365
      %p367 = scmp.ne.s32.totalorder %s358, %s359
      %p368 = scmp.eq.s32.totalorder %s33, 0
      %p369 = por %p367, %p368
      %p370 = scmp.ne.s32.totalorder %s358, %s359
      %p371 = scmp.eq.s32.totalorder %s34, 1
      %p372 = por %p370, %p371
      %p374 = scmp.ne.s32.totalorder %s359, %s373
      %p375 = scmp.eq.s32.totalorder %s34, 0
      %p376 = por %p374, %p375
      %s378 = sadd.s32 %s377, 1
      %p381 = scmp.eq.s32.totalorder %s28, 1
      %p382 = scmp.ne.s32.totalorder %s377, %s379
      %p383 = scmp.eq.s32.totalorder %s28, 0
      %p384 = por %p382, %p383
      %p385 = scmp.ne.s32.totalorder %s377, %s379
      %p386 = scmp.eq.s32.totalorder %s33, 1
      %p387 = por %p385, %p386
      %p388 = scmp.ne.s32.totalorder %s379, %s380
      %p389 = scmp.eq.s32.totalorder %s33, 0
      %p390 = por %p388, %p389
      %p391 = scmp.ne.s32.totalorder %s379, %s380
      %p392 = scmp.eq.s32.totalorder %s34, 1
      %p393 = por %p391, %p392
      %p395 = scmp.ne.s32.totalorder %s380, %s394
      %p396 = scmp.eq.s32.totalorder %s34, 0
      %p397 = por %p395, %p396
      %s398 = ssub.s32 %s28, %s35
      %p399 = scmp.eq.s32.totalorder %s398, 0
      %s401 = sadd.s32 %s400, 1
      %s402 = scalar_select %p399, %s400, %s401
      %p405 = pneg %p399
      %p406 = scmp.eq.s32.totalorder %s28, 1
      %p407 = por %p405, %p406
      %p408 = scmp.ne.s32.totalorder %s400, %s403
      %p409 = scmp.eq.s32.totalorder %s28, 0
      %p410 = por %p408, %p409
      %p411 = scmp.ne.s32.totalorder %s400, %s403
      %p412 = scmp.eq.s32.totalorder %s33, 1
      %p413 = por %p411, %p412
      %p414 = scmp.ne.s32.totalorder %s403, %s404
      %p415 = scmp.eq.s32.totalorder %s33, 0
      %p416 = por %p414, %p415
      %p417 = scmp.ne.s32.totalorder %s403, %s404
      %p418 = scmp.eq.s32.totalorder %s34, 1
      %p419 = por %p417, %p418
      %p421 = scmp.ne.s32.totalorder %s404, %s420
      %p422 = scmp.eq.s32.totalorder %s34, 0
      %p423 = por %p421, %p422
      %p424 = scmp.le.s32.totalorder 1, %s28
      %p425 = scmp.lt.s32.totalorder %s28, 3
      %p426 = pnand %p424, %p425
      %p427 = pneg %p426
      // Predicated region
      $region9: #{wdsr_forward.1} parent=5 // pred_check
        _
      $region10: #{wdsr_forward.1} parent=5 // pred_check_branch
        %429 = sbr.rel (%p426) target = $region12
      $region11: #{wdsr_forward.1} parent=5 // pred_region
        %s430 = ssub.s32 %s28, 1
        // Predicated region
        $region13: #{wdsr_forward.1} parent=11 // pred_check
          %p431 = pneg %p75
        $region14: #{wdsr_forward.1} parent=11 // pred_check_branch
          %433 = sbr.rel (%p431) target = $region16
        $region15: #{wdsr_forward.1} parent=11 // pred_region
          _
        $region16: #{wdsr_forward.1} parent=11 // pred_fallthru
          _
        // Predicated region
        $region17: #{wdsr_forward.1} parent=11 // pred_check
          %p434 = pneg %p96
        $region18: #{wdsr_forward.1} parent=11 // pred_check_branch
          %436 = sbr.rel (%p434) target = $region20
        $region19: #{wdsr_forward.1} parent=11 // pred_region
          _
        $region20: #{wdsr_forward.1} parent=11 // pred_fallthru
          _
        // Predicated region
        $region21: #{wdsr_forward.1} parent=11 // pred_check
          %p437 = pneg %p117
        $region22: #{wdsr_forward.1} parent=11 // pred_check_branch
          %439 = sbr.rel (%p437) target = $region24
        $region23: #{wdsr_forward.1} parent=11 // pred_region
          %s441 = ssub.s32 64, 64
          %442 = vsyncadd [#allocation3], %s441
          %s444 = sshll.u32 [#allocation2], 4
          %s445 = int_to_ptr.vmem [resolvable:$true] %s444
          %447 = dma.hbm_to_vmem [thread:$0]  %s3, 64, %s445, [#allocation3]
        $region24: #{wdsr_forward.1} parent=11 // pred_fallthru
          _
        // Predicated region
        $region25: #{wdsr_forward.1} parent=11 // pred_check
          %p448 = pneg %p138
        $region26: #{wdsr_forward.1} parent=11 // pred_check_branch
          %450 = sbr.rel (%p448) target = $region28
        $region27: #{wdsr_forward.1} parent=11 // pred_region
          _
        $region28: #{wdsr_forward.1} parent=11 // pred_fallthru
          _
        // Predicated region
        $region29: #{wdsr_forward.1} parent=11 // pred_check
          %p451 = pneg %p159
        $region30: #{wdsr_forward.1} parent=11 // pred_check_branch
          %453 = sbr.rel (%p451) target = $region32
        $region31: #{wdsr_forward.1} parent=11 // pred_region
          _
        $region32: #{wdsr_forward.1} parent=11 // pred_fallthru
          _
        // Predicated region
        $region33: #{wdsr_forward.1} parent=11 // pred_check
          %p454 = pneg %p180
        $region34: #{wdsr_forward.1} parent=11 // pred_check_branch
          %456 = sbr.rel (%p454) target = $region36
        $region35: #{wdsr_forward.1} parent=11 // pred_region
          %s458 = ssub.s32 128, 128
          %459 = vsyncadd [#allocation6], %s458
          %s460 = sshll.u32 [#allocation5], 4
          %s461 = int_to_ptr.vmem [resolvable:$true] %s460
          %466 = dma.hbm_to_vmem [thread:$0]  %s6, 128, %s461, [#allocation6], 64, 64, 4
        $region36: #{wdsr_forward.1} parent=11 // pred_fallthru
          _
        // Predicated region
        $region37: #{wdsr_forward.1} parent=11 // pred_check
          %p467 = pneg %p201
        $region38: #{wdsr_forward.1} parent=11 // pred_check_branch
          %469 = sbr.rel (%p467) target = $region40
        $region39: #{wdsr_forward.1} parent=11 // pred_region
          %s471 = ssub.s32 1152, 1152
          %472 = vsyncadd [#allocation6], %s471
          %s473 = sshll.u32 [#allocation7], 4
          %s474 = int_to_ptr.vmem [resolvable:$true] %s473
          %479 = dma.hbm_to_vmem [thread:$0]  %s7, 1152, %s474, [#allocation6], 64, 64, 4
        $region40: #{wdsr_forward.1} parent=11 // pred_fallthru
          _
        // Predicated region
        $region41: #{wdsr_forward.1} parent=11 // pred_check
          %p480 = pneg %p222
        $region42: #{wdsr_forward.1} parent=11 // pred_check_branch
          %482 = sbr.rel (%p480) target = $region44
        $region43: #{wdsr_forward.1} parent=11 // pred_region
          _
        $region44: #{wdsr_forward.1} parent=11 // pred_fallthru
          _
        // Predicated region
        $region45: #{wdsr_forward.1} parent=11 // pred_check
          %p483 = pneg %p243
        $region46: #{wdsr_forward.1} parent=11 // pred_check_branch
          %485 = sbr.rel (%p483) target = $region48
        $region47: #{wdsr_forward.1} parent=11 // pred_region
          %s487 = ssub.s32 128, 128
          %488 = vsyncadd [#allocation9], %s487
          %s489 = sshll.u32 [#allocation8], 4
          %s490 = int_to_ptr.vmem [resolvable:$true] %s489
          %495 = dma.hbm_to_vmem [thread:$0]  %s9, 128, %s490, [#allocation9], 64, 64, 4
        $region48: #{wdsr_forward.1} parent=11 // pred_fallthru
          _
        // Predicated region
        $region49: #{wdsr_forward.1} parent=11 // pred_check
          %p496 = pneg %p264
        $region50: #{wdsr_forward.1} parent=11 // pred_check_branch
          %498 = sbr.rel (%p496) target = $region52
        $region51: #{wdsr_forward.1} parent=11 // pred_region
          %s500 = ssub.s32 1152, 1152
          %501 = vsyncadd [#allocation9], %s500
          %s502 = sshll.u32 [#allocation10], 4
          %s503 = int_to_ptr.vmem [resolvable:$true] %s502
          %508 = dma.hbm_to_vmem [thread:$0]  %s10, 1152, %s503, [#allocation9], 64, 64, 4
        $region52: #{wdsr_forward.1} parent=11 // pred_fallthru
          _
        // Predicated region
        $region53: #{wdsr_forward.1} parent=11 // pred_check
          %p509 = pneg %p285
        $region54: #{wdsr_forward.1} parent=11 // pred_check_branch
          %511 = sbr.rel (%p509) target = $region56
        $region55: #{wdsr_forward.1} parent=11 // pred_region
          %s513 = ssub.s32 1152, 1152
          %514 = vsyncadd [#allocation12], %s513
          %s515 = sshll.u32 [#allocation11], 4
          %s516 = int_to_ptr.vmem [resolvable:$true] %s515
          %521 = dma.hbm_to_vmem [thread:$0]  %s11, 1152, %s516, [#allocation12], 64, 64, 4
        $region56: #{wdsr_forward.1} parent=11 // pred_fallthru
          _
        // Predicated region
        $region57: #{wdsr_forward.1} parent=11 // pred_check
          %p522 = pneg %p306
        $region58: #{wdsr_forward.1} parent=11 // pred_check_branch
          %524 = sbr.rel (%p522) target = $region60
        $region59: #{wdsr_forward.1} parent=11 // pred_region
          _
        $region60: #{wdsr_forward.1} parent=11 // pred_fallthru
          _
        // Predicated region
        $region61: #{wdsr_forward.1} parent=11 // pred_check
          %p525 = pneg %p327
        $region62: #{wdsr_forward.1} parent=11 // pred_check_branch
          %527 = sbr.rel (%p525) target = $region64
        $region63: #{wdsr_forward.1} parent=11 // pred_region
          _
        $region64: #{wdsr_forward.1} parent=11 // pred_fallthru
          _
        // Predicated region
        $region65: #{wdsr_forward.1} parent=11 // pred_check
          %p528 = pneg %p348
        $region66: #{wdsr_forward.1} parent=11 // pred_check_branch
          %530 = sbr.rel (%p528) target = $region68
        $region67: #{wdsr_forward.1} parent=11 // pred_region
          _
        $region68: #{wdsr_forward.1} parent=11 // pred_fallthru
          _
        // Predicated region
        $region69: #{wdsr_forward.1} parent=11 // pred_check
          %p531 = pneg %p369
        $region70: #{wdsr_forward.1} parent=11 // pred_check_branch
          %533 = sbr.rel (%p531) target = $region72
        $region71: #{wdsr_forward.1} parent=11 // pred_region
          _
        $region72: #{wdsr_forward.1} parent=11 // pred_fallthru
          _
        // Predicated region
        $region73: #{wdsr_forward.1} parent=11 // pred_check
          %p534 = pneg %p390
        $region74: #{wdsr_forward.1} parent=11 // pred_check_branch
          %536 = sbr.rel (%p534) target = $region76
        $region75: #{wdsr_forward.1} parent=11 // pred_region
          %s538 = ssub.s32 16, 16
          %539 = vsyncadd [#allocation4], %s538
          %542 = dma.hbm_to_smem %s16, 16, [#allocation13], [#allocation4]
        $region76: #{wdsr_forward.1} parent=11 // pred_fallthru
          _
      $region12: #{wdsr_forward.1} parent=5 // pred_fallthru
        _
      %p543 = scmp.lt.s32.totalorder %s28, 2
      // Predicated region
      $region77: #{wdsr_forward.1} parent=5 // pred_check
        %p544 = pneg %p543
      $region78: #{wdsr_forward.1} parent=5 // pred_check_branch
        %546 = sbr.rel (%p544) target = $region80
      $region79: #{wdsr_forward.1} parent=5 // pred_region
        // Predicated region
        $region81: #{wdsr_forward.1} parent=79 // pred_check
          %p547 = pneg %p48
        $region82: #{wdsr_forward.1} parent=79 // pred_check_branch
          %549 = sbr.rel (%p547) target = $region84
        $region83: #{wdsr_forward.1} parent=79 // pred_region
          %p550 = scmp.lt.s32.totalorder %s28, 1
          %s551 = scalar_select %p550, %s28, 1
          %s552 = smul.addr %s551, 2
          %s553 = smul.addr %s552, 4
          %s554 = scalar_lea.vmem %s0, %s553
        $region84: #{wdsr_forward.1} parent=79 // pred_fallthru
          _
      $region80: #{wdsr_forward.1} parent=5 // pred_fallthru
        _
      %p555 = scmp.le.s32.totalorder 1, %s28
      %p556 = scmp.lt.s32.totalorder %s28, 3
      %p557 = pnand %p555, %p556
      %p558 = pneg %p557
      // Predicated region
      $region85: #{wdsr_forward.1} parent=5 // pred_check
        _
      $region86: #{wdsr_forward.1} parent=5 // pred_check_branch
        %560 = sbr.rel (%p557) target = $region88
      $region87: #{wdsr_forward.1} parent=5 // pred_region
        %s561 = ssub.s32 %s28, 1
        // Predicated region
        $region89: #{wdsr_forward.1} parent=87 // pred_check
          %p562 = pneg %p117
        $region90: #{wdsr_forward.1} parent=87 // pred_check_branch
          %564 = sbr.rel (%p562) target = $region92
        $region91: #{wdsr_forward.1} parent=87 // pred_region
          %565 = dma.done [#allocation3], 64
        $region92: #{wdsr_forward.1} parent=87 // pred_fallthru
          _
        // Predicated region
        $region93: #{wdsr_forward.1} parent=87 // pred_check
          %p566 = pneg %p180
        $region94: #{wdsr_forward.1} parent=87 // pred_check_branch
          %568 = sbr.rel (%p566) target = $region96
        $region95: #{wdsr_forward.1} parent=87 // pred_region
          %569 = dma.done [#allocation6], 128
        $region96: #{wdsr_forward.1} parent=87 // pred_fallthru
          _
        // Predicated region
        $region97: #{wdsr_forward.1} parent=87 // pred_check
          %p570 = pneg %p201
        $region98: #{wdsr_forward.1} parent=87 // pred_check_branch
          %572 = sbr.rel (%p570) target = $region100
        $region99: #{wdsr_forward.1} parent=87 // pred_region
          %573 = dma.done [#allocation6], 1152
        $region100: #{wdsr_forward.1} parent=87 // pred_fallthru
          _
        // Predicated region
        $region101: #{wdsr_forward.1} parent=87 // pred_check
          %p574 = pneg %p243
        $region102: #{wdsr_forward.1} parent=87 // pred_check_branch
          %576 = sbr.rel (%p574) target = $region104
        $region103: #{wdsr_forward.1} parent=87 // pred_region
          %577 = dma.done [#allocation9], 128
        $region104: #{wdsr_forward.1} parent=87 // pred_fallthru
          _
        // Predicated region
        $region105: #{wdsr_forward.1} parent=87 // pred_check
          %p578 = pneg %p264
        $region106: #{wdsr_forward.1} parent=87 // pred_check_branch
          %580 = sbr.rel (%p578) target = $region108
        $region107: #{wdsr_forward.1} parent=87 // pred_region
          %581 = dma.done [#allocation9], 1152
        $region108: #{wdsr_forward.1} parent=87 // pred_fallthru
          _
        // Predicated region
        $region109: #{wdsr_forward.1} parent=87 // pred_check
          %p582 = pneg %p285
        $region110: #{wdsr_forward.1} parent=87 // pred_check_branch
          %584 = sbr.rel (%p582) target = $region112
        $region111: #{wdsr_forward.1} parent=87 // pred_region
          %585 = dma.done [#allocation12], 1152
        $region112: #{wdsr_forward.1} parent=87 // pred_fallthru
          _
        // Predicated region
        $region113: #{wdsr_forward.1} parent=87 // pred_check
          %p586 = pneg %p390
        $region114: #{wdsr_forward.1} parent=87 // pred_check_branch
          %588 = sbr.rel (%p586) target = $region116
        $region115: #{wdsr_forward.1} parent=87 // pred_region
          %589 = dma.done [#allocation4], 16
        $region116: #{wdsr_forward.1} parent=87 // pred_fallthru
          _
        %590 = sfence
        %p591 = scmp.lt.s32.totalorder %s33, 1
        %s592 = scalar_select %p591, %s33, 1
        %s593 = smul.addr %s592, 2
        %s594 = smul.addr %s593, 4
        %s595 = scalar_lea.vmem %s0, %s594
        %p596 = pneg %p54
        %p597 = pneg %p51
        %p598 = pneg %p75
        %p599 = pneg %p72
        %p600 = pneg %p96
        %p601 = pneg %p93
        %p602 = pneg %p117
        %p603 = pneg %p114
        %p604 = pneg %p138
        %p605 = pneg %p135
        %p606 = pneg %p159
        %p607 = pneg %p156
        %p608 = pneg %p180
        %p609 = pneg %p177
        %p610 = pneg %p201
        %p611 = pneg %p198
        %p612 = pneg %p222
        %p613 = pneg %p219
        %p614 = pneg %p243
        %p615 = pneg %p240
        %p616 = pneg %p264
        %p617 = pneg %p261
        %p618 = pneg %p285
        %p619 = pneg %p282
        %p620 = pneg %p306
        %p621 = pneg %p303
        %p622 = pneg %p327
        %p623 = pneg %p324
        %p624 = pneg %p348
        %p625 = pneg %p345
        %p626 = pneg %p369
        %p627 = pneg %p366
        %p628 = pneg %p390
        %p629 = pneg %p387
        %p630 = pneg %p416
        %p631 = pneg %p413
        %p632 = scmp.lt.s32.totalorder %s33, 1
        %s633 = scalar_select %p632, %s33, 1
        %s634 = smul.addr %s633, 4
        %s635 = smul.addr %s634, 8
        %s636 = scalar_lea.vmem %s17, %s635
        %p637 = scmp.lt.s32.totalorder %s33, 1
        %s638 = scalar_select %p637, %s33, 1
        %s639 = smul.addr %s638, 2
        %s640 = smul.addr %s639, 4
        %s641 = scalar_lea.vmem %s0, %s640
        %p642 = scmp.lt.s32.totalorder %s33, 1
        %s643 = scalar_select %p642, %s33, 1
        %s644 = smul.addr %s643, 4
        %s645 = smul.addr %s644, 8
        %s646 = scalar_lea.vmem %s17, %s645
        %v648 = vld [vmem:[%s1] sm:$0x3]
        %v649 = vld [vmem:[%s2] sm:$0x3]
        %vm650 = vcmp.eq.s32.totalorder %v648, 0
        %vm651 = vcmp.eq.s32.totalorder %v648, 15
        %vm652 = vcmp.eq.s32.totalorder %v649, 0
        %vm653 = vcmp.eq.s32.totalorder %v649, 15
        %v654 = vld [vmem:[%s641] sm:$0x77]
        %v655 = vld [vmem:[#allocation2] sm:$0x7]
        %657 = vset.pattern.permute.xlu0 0
        %658 = vperm.xlu0 %657, %v655
        %v659 = vpop.permute.xlu0 %658
        %v661 = vunpack.c.l.s4 839922192
        %v662 = vunpack.c.0.s8 %v661
        %v663 = vlaneseq
        %v664 = vshrl.u32 %v663, 7
        %v665 = vsub.s32 %v662, %v664
        %v666 = vrot.slane %v659, %v665
        %v668 = vsub.f32 %v654, %v666
        %v670 = vcombine.high %v668, %v668
        %672 = vrot.lane.b32.xlu0 %v668, 1
        %v673 = vpop.permute.xlu0 %672
        %674 = vrot.lane.b32.xlu0 %v670, 1
        %v675 = vpop.permute.xlu0 %674
        %v676 = vlaneseq
        %v677 = vand.u32 %v676, 127
        %vm678 = vcmp.lt.s32.totalorder %v677, 1
        %v679 = vsel %vm678, %v673, %v675
        %v680 = vsel %vm678, %v675, %v673
        %681 = vrot.lane.b32.xlu0 %v668, 127
        %v682 = vpop.permute.xlu0 %681
        %683 = vrot.lane.b32.xlu0 %v670, 127
        %v684 = vpop.permute.xlu0 %683
        %vm685 = vcmp.lt.s32.totalorder %v677, 127
        %v686 = vsel %vm685, %v682, %v684
        %v687 = vsel %vm685, %v684, %v682
        %v688 = vsel %vm650, 1, 0
        %v689 = vlaneseq
        %v690 = vshrl.u32 %v689, 7
        %v691 = vsub.s32 0, %v690
        %v692 = vrot.slane %v688, %v691
        %v693 = vlaneseq
        %v694 = vshrl.u32 %v693, 7
        %v695 = vsub.s32 1, %v694
        %v696 = vrot.slane %v688, %v695
        %vm697 = vcmp.eq.s32.totalorder %v692, 1
        %vm698 = vcmp.eq.s32.totalorder %v696, 1
        %v699 = vsel %vm697, %v686, %v680
        %v700 = vsel %vm698, %v687, %v679
        %v701 = vsel %vm651, 1, 0
        %v702 = vlaneseq
        %v703 = vshrl.u32 %v702, 7
        %v704 = vsub.s32 0, %v703
        %v705 = vrot.slane %v701, %v704
        %v706 = vlaneseq
        %v707 = vshrl.u32 %v706, 7
        %v708 = vsub.s32 1, %v707
        %v709 = vrot.slane %v701, %v708
        %vm710 = vcmp.eq.s32.totalorder %v705, 1
        %vm711 = vcmp.eq.s32.totalorder %v709, 1
        %v712 = vsel %vm710, %v680, %v686
        %v713 = vsel %vm711, %v679, %v687
        %714 = vrot.lane.b32.xlu0 %v699, 16
        %v715 = vpop.permute.xlu0 %714
        %716 = vrot.lane.b32.xlu0 %v700, 16
        %v717 = vpop.permute.xlu0 %716
        %vm718 = vcmp.lt.s32.totalorder %v677, 16
        %v719 = vsel %vm718, %v715, %v717
        %v720 = vsel %vm718, %v717, %v715
        %721 = vrot.lane.b32.xlu0 %v699, 112
        %v722 = vpop.permute.xlu0 %721
        %723 = vrot.lane.b32.xlu0 %v700, 112
        %v724 = vpop.permute.xlu0 %723
        %vm725 = vcmp.lt.s32.totalorder %v677, 112
        %v726 = vsel %vm725, %v722, %v724
        %v727 = vsel %vm725, %v724, %v722
        %v728 = vsel %vm652, 1, 0
        %v729 = vlaneseq
        %v730 = vshrl.u32 %v729, 7
        %v731 = vsub.s32 0, %v730
        %v732 = vrot.slane %v728, %v731
        %v733 = vlaneseq
        %v734 = vshrl.u32 %v733, 7
        %v735 = vsub.s32 1, %v734
        %v736 = vrot.slane %v728, %v735
        %vm737 = vcmp.eq.s32.totalorder %v732, 1
        %vm738 = vcmp.eq.s32.totalorder %v736, 1
        %v739 = vsel %vm737, %v726, %v720
        %v740 = vsel %vm738, %v727, %v719
        %v741 = vsel %vm653, 1, 0
        %v742 = vlaneseq
        %v743 = vshrl.u32 %v742, 7
        %v744 = vsub.s32 0, %v743
        %v745 = vrot.slane %v741, %v744
        %v746 = vlaneseq
        %v747 = vshrl.u32 %v746, 7
        %v748 = vsub.s32 1, %v747
        %v749 = vrot.slane %v741, %v748
        %vm750 = vcmp.eq.s32.totalorder %v745, 1
        %vm751 = vcmp.eq.s32.totalorder %v749, 1
        %v752 = vsel %vm750, %v720, %v726
        %v753 = vsel %vm751, %v719, %v727
        %v754 = vld [vmem:[%s4] sm:$0xf]
        %v755 = vld [vmem:[%s4 + $0x4] sm:$0xf]
        %v756 = vpack.c.bf16 %v739, %v739
        %v757 = vpack.c.bf16 %v740, %v740
        %s758 = scalar_lea.vmem %s4, 24
        %v759 = vld [vmem:[%s758] sm:$0xf]
        %v760 = vld [vmem:[%s758 + $0x4] sm:$0xf]
        %v761 = vpack.c.bf16 %v699, %v699
        %v762 = vpack.c.bf16 %v700, %v700
        %v765 = vunpack.c.l.b16 %v759
        %v766 = vunpack.c.l.b16 %v760
        %v767 = vpack.c.b16 %v766, %v765
        %vm768 = vcmask 23552
        %v770 = vsel %vm768, %v767, 0
        %vm772 = vcmask 1040384
        %vm773 = vcmask 1041408
        %v774 = vsel %vm772, 4294967295, 65535
        %v775 = vsel %vm773, %v774, 0
        %v777 = vand.u32 %v761, %v775
        %v780 = vand.u32 %v762, %v775
        %782 = vmatprep.subr.bf16.mxu0 0
        %783 = vmatpush1.bf16.msra.mxu0 0
        %784 = vmatprep.subr.bf16.mxu0 0
        %785 = vmatpush1.bf16.msra.mxu0 0
        %786 = vmatprep.subr.bf16.mxu0 0
        %787 = vmatpush1.bf16.msra.mxu0 0
        %788 = vmatprep.subr.bf16.mxu0 0
        %789 = vmatpush1.bf16.msra.mxu0 0
        %790 = vmatprep.subr.bf16.mxu0 0
        %791 = vmatpush1.bf16.msra.mxu0 0
        %792 = vmatprep.subr.bf16.mxu0 0
        %793 = vmatpush1.bf16.msra.mxu0 0
        %794 = vmatprep.subr.bf16.mxu0 0
        %795 = vmatpush1.bf16.msra.mxu0 0
        %796 = vmatprep.subr.bf16.mxu0 %v780
        %797 = vmatpush1.bf16.msra.mxu0 %v777
        %798 = vmatprep.subr.bf16.mxu0 0
        %799 = vmatpush2.bf16.msra.mxu0 0
        %800 = vmatprep.subr.bf16.mxu0 0
        %801 = vmatpush2.bf16.msra.mxu0 0
        %802 = vmatprep.subr.bf16.mxu0 0
        %803 = vmatpush2.bf16.msra.mxu0 0
        %804 = vmatprep.subr.bf16.mxu0 0
        %805 = vmatpush2.bf16.msra.mxu0 0
        %806 = vmatprep.subr.bf16.mxu0 0
        %807 = vmatpush2.bf16.msra.mxu0 0
        %808 = vmatprep.subr.bf16.mxu0 0
        %809 = vmatpush2.bf16.msra.mxu0 0
        %810 = vmatprep.subr.bf16.mxu0 0
        %811 = vmatpush2.bf16.msra.mxu0 0
        %812 = vmatprep.subr.bf16.mxu0 0
        %813 = vmatpush2.bf16.msra.mxu0 0
        %814 = vmatprep.mubr.bf16.mxu0 0
        %815 = vmatmul.mubr.bf16.gmra.mxu0 %v770
        %v816 = vpop.f32.mrf.mxu0
        %v817 = vadd.f32 0.0, %v816
        %v818 = vpop.f32.mrf.mxu0
        %v819 = vadd.f32 0.0, %v818
        %v820 = vpop.f32.mrf.mxu0
        %v821 = vadd.f32 0.0, %v820
        %v822 = vpop.f32.mrf.mxu0
        %v823 = vadd.f32 0.0, %v822
        %824 = vdwg.mxu0
        %v827 = vunpack.c.l.b16 %v754
        %v828 = vunpack.c.l.b16 %v755
        %v829 = vpack.c.b16 %v828, %v827
        %v831 = vsel %vm768, %v829, 0
        %v834 = vand.u32 %v756, %v775
        %v837 = vand.u32 %v757, %v775
        %839 = vmatprep.subr.bf16.mxu0 0
        %840 = vmatpush1.bf16.msra.mxu0 0
        %841 = vmatprep.subr.bf16.mxu0 0
        %842 = vmatpush1.bf16.msra.mxu0 0
        %843 = vmatprep.subr.bf16.mxu0 0
        %844 = vmatpush1.bf16.msra.mxu0 0
        %845 = vmatprep.subr.bf16.mxu0 0
        %846 = vmatpush1.bf16.msra.mxu0 0
        %847 = vmatprep.subr.bf16.mxu0 0
        %848 = vmatpush1.bf16.msra.mxu0 0
        %849 = vmatprep.subr.bf16.mxu0 0
        %850 = vmatpush1.bf16.msra.mxu0 0
        %851 = vmatprep.subr.bf16.mxu0 0
        %852 = vmatpush1.bf16.msra.mxu0 0
        %853 = vmatprep.subr.bf16.mxu0 %v837
        %854 = vmatpush1.bf16.msra.mxu0 %v834
        %855 = vmatprep.subr.bf16.mxu0 0
        %856 = vmatpush2.bf16.msra.mxu0 0
        %857 = vmatprep.subr.bf16.mxu0 0
        %858 = vmatpush2.bf16.msra.mxu0 0
        %859 = vmatprep.subr.bf16.mxu0 0
        %860 = vmatpush2.bf16.msra.mxu0 0
        %861 = vmatprep.subr.bf16.mxu0 0
        %862 = vmatpush2.bf16.msra.mxu0 0
        %863 = vmatprep.subr.bf16.mxu0 0
        %864 = vmatpush2.bf16.msra.mxu0 0
        %865 = vmatprep.subr.bf16.mxu0 0
        %866 = vmatpush2.bf16.msra.mxu0 0
        %867 = vmatprep.subr.bf16.mxu0 0
        %868 = vmatpush2.bf16.msra.mxu0 0
        %869 = vmatprep.subr.bf16.mxu0 0
        %870 = vmatpush2.bf16.msra.mxu0 0
        %871 = vmatprep.mubr.bf16.mxu0 0
        %872 = vmatmul.mubr.bf16.gmra.mxu0 %v831
        %v873 = vpop.f32.mrf.mxu0
        %v874 = vadd.f32 %v817, %v873
        %v875 = vpop.f32.mrf.mxu0
        %v876 = vadd.f32 %v819, %v875
        %v877 = vpop.f32.mrf.mxu0
        %v878 = vadd.f32 %v821, %v877
        %v879 = vpop.f32.mrf.mxu0
        %v880 = vadd.f32 %v823, %v879
        %881 = vdwg.mxu0
        %s882 = scalar_lea.vmem %s4, 48
        %v883 = vld [vmem:[%s882] sm:$0xf]
        %v884 = vld [vmem:[%s882 + $0x4] sm:$0xf]
        %v885 = vpack.c.bf16 %v752, %v752
        %v886 = vpack.c.bf16 %v753, %v753
        %v889 = vunpack.c.l.b16 %v883
        %v890 = vunpack.c.l.b16 %v884
        %v891 = vpack.c.b16 %v890, %v889
        %v893 = vsel %vm768, %v891, 0
        %v896 = vand.u32 %v885, %v775
        %v899 = vand.u32 %v886, %v775
        %901 = vmatprep.subr.bf16.mxu0 0
        %902 = vmatpush1.bf16.msra.mxu0 0
        %903 = vmatprep.subr.bf16.mxu0 0
        %904 = vmatpush1.bf16.msra.mxu0 0
        %905 = vmatprep.subr.bf16.mxu0 0
        %906 = vmatpush1.bf16.msra.mxu0 0
        %907 = vmatprep.subr.bf16.mxu0 0
        %908 = vmatpush1.bf16.msra.mxu0 0
        %909 = vmatprep.subr.bf16.mxu0 0
        %910 = vmatpush1.bf16.msra.mxu0 0
        %911 = vmatprep.subr.bf16.mxu0 0
        %912 = vmatpush1.bf16.msra.mxu0 0
        %913 = vmatprep.subr.bf16.mxu0 0
        %914 = vmatpush1.bf16.msra.mxu0 0
        %915 = vmatprep.subr.bf16.mxu0 %v899
        %916 = vmatpush1.bf16.msra.mxu0 %v896
        %917 = vmatprep.subr.bf16.mxu0 0
        %918 = vmatpush2.bf16.msra.mxu0 0
        %919 = vmatprep.subr.bf16.mxu0 0
        %920 = vmatpush2.bf16.msra.mxu0 0
        %921 = vmatprep.subr.bf16.mxu0 0
        %922 = vmatpush2.bf16.msra.mxu0 0
        %923 = vmatprep.subr.bf16.mxu0 0
        %924 = vmatpush2.bf16.msra.mxu0 0
        %925 = vmatprep.subr.bf16.mxu0 0
        %926 = vmatpush2.bf16.msra.mxu0 0
        %927 = vmatprep.subr.bf16.mxu0 0
        %928 = vmatpush2.bf16.msra.mxu0 0
        %929 = vmatprep.subr.bf16.mxu0 0
        %930 = vmatpush2.bf16.msra.mxu0 0
        %931 = vmatprep.subr.bf16.mxu0 0
        %932 = vmatpush2.bf16.msra.mxu0 0
        %933 = vmatprep.mubr.bf16.mxu0 0
        %934 = vmatmul.mubr.bf16.gmra.mxu0 %v893
        %v935 = vpop.f32.mrf.mxu0
        %v936 = vadd.f32 0.0, %v935
        %v937 = vpop.f32.mrf.mxu0
        %v938 = vadd.f32 0.0, %v937
        %v939 = vpop.f32.mrf.mxu0
        %v940 = vadd.f32 0.0, %v939
        %v941 = vpop.f32.mrf.mxu0
        %v942 = vadd.f32 0.0, %v941
        %943 = vdwg.mxu0
        %v944 = vadd.f32 %v874, %v936
        %v945 = vadd.f32 %v876, %v938
        %v946 = vadd.f32 %v878, %v940
        %v947 = vadd.f32 %v880, %v942
        %948 = vrot.lane.b32.xlu0 %v668, 16
        %v949 = vpop.permute.xlu0 %948
        %950 = vrot.lane.b32.xlu0 %v670, 16
        %v951 = vpop.permute.xlu0 %950
        %v952 = vsel %vm718, %v949, %v951
        %v953 = vsel %vm718, %v951, %v949
        %954 = vrot.lane.b32.xlu0 %v668, 112
        %v955 = vpop.permute.xlu0 %954
        %956 = vrot.lane.b32.xlu0 %v670, 112
        %v957 = vpop.permute.xlu0 %956
        %v958 = vsel %vm725, %v955, %v957
        %v959 = vsel %vm725, %v957, %v955
        %v960 = vsel %vm737, %v958, %v953
        %v961 = vsel %vm738, %v959, %v952
        %v962 = vsel %vm750, %v953, %v958
        %v963 = vsel %vm751, %v952, %v959
        %s964 = scalar_lea.vmem %s4, 8
        %v965 = vld [vmem:[%s964] sm:$0xf]
        %v966 = vld [vmem:[%s964 + $0x4] sm:$0xf]
        %v967 = vpack.c.bf16 %v960, %v960
        %v968 = vpack.c.bf16 %v961, %v961
        %v971 = vunpack.c.l.b16 %v965
        %v972 = vunpack.c.l.b16 %v966
        %v973 = vpack.c.b16 %v972, %v971
        %v975 = vsel %vm768, %v973, 0
        %v978 = vand.u32 %v967, %v775
        %v981 = vand.u32 %v968, %v775
        %983 = vmatprep.subr.bf16.mxu0 0
        %984 = vmatpush1.bf16.msra.mxu0 0
        %985 = vmatprep.subr.bf16.mxu0 0
        %986 = vmatpush1.bf16.msra.mxu0 0
        %987 = vmatprep.subr.bf16.mxu0 0
        %988 = vmatpush1.bf16.msra.mxu0 0
        %989 = vmatprep.subr.bf16.mxu0 0
        %990 = vmatpush1.bf16.msra.mxu0 0
        %991 = vmatprep.subr.bf16.mxu0 0
        %992 = vmatpush1.bf16.msra.mxu0 0
        %993 = vmatprep.subr.bf16.mxu0 0
        %994 = vmatpush1.bf16.msra.mxu0 0
        %995 = vmatprep.subr.bf16.mxu0 0
        %996 = vmatpush1.bf16.msra.mxu0 0
        %997 = vmatprep.subr.bf16.mxu0 %v981
        %998 = vmatpush1.bf16.msra.mxu0 %v978
        %999 = vmatprep.subr.bf16.mxu0 0
        %1000 = vmatpush2.bf16.msra.mxu0 0
        %1001 = vmatprep.subr.bf16.mxu0 0
        %1002 = vmatpush2.bf16.msra.mxu0 0
        %1003 = vmatprep.subr.bf16.mxu0 0
        %1004 = vmatpush2.bf16.msra.mxu0 0
        %1005 = vmatprep.subr.bf16.mxu0 0
        %1006 = vmatpush2.bf16.msra.mxu0 0
        %1007 = vmatprep.subr.bf16.mxu0 0
        %1008 = vmatpush2.bf16.msra.mxu0 0
        %1009 = vmatprep.subr.bf16.mxu0 0
        %1010 = vmatpush2.bf16.msra.mxu0 0
        %1011 = vmatprep.subr.bf16.mxu0 0
        %1012 = vmatpush2.bf16.msra.mxu0 0
        %1013 = vmatprep.subr.bf16.mxu0 0
        %1014 = vmatpush2.bf16.msra.mxu0 0
        %1015 = vmatprep.mubr.bf16.mxu0 0
        %1016 = vmatmul.mubr.bf16.gmra.mxu0 %v975
        %v1017 = vpop.f32.mrf.mxu0
        %v1018 = vadd.f32 0.0, %v1017
        %v1019 = vpop.f32.mrf.mxu0
        %v1020 = vadd.f32 0.0, %v1019
        %v1021 = vpop.f32.mrf.mxu0
        %v1022 = vadd.f32 0.0, %v1021
        %v1023 = vpop.f32.mrf.mxu0
        %v1024 = vadd.f32 0.0, %v1023
        %1025 = vdwg.mxu0
        %v1026 = vadd.f32 %v944, %v1018
        %v1027 = vadd.f32 %v945, %v1020
        %v1028 = vadd.f32 %v946, %v1022
        %v1029 = vadd.f32 %v947, %v1024
        %s1030 = scalar_lea.vmem %s4, 32
        %v1031 = vld [vmem:[%s1030] sm:$0xf]
        %v1032 = vld [vmem:[%s1030 + $0x4] sm:$0xf]
        %v1033 = vpack.c.bf16 %v668, %v668
        %v1034 = vpack.c.bf16 %v670, %v670
        %v1037 = vunpack.c.l.b16 %v1031
        %v1038 = vunpack.c.l.b16 %v1032
        %v1039 = vpack.c.b16 %v1038, %v1037
        %v1041 = vsel %vm768, %v1039, 0
        %v1044 = vand.u32 %v1033, %v775
        %v1047 = vand.u32 %v1034, %v775
        %1049 = vmatprep.subr.bf16.mxu0 0
        %1050 = vmatpush1.bf16.msra.mxu0 0
        %1051 = vmatprep.subr.bf16.mxu0 0
        %1052 = vmatpush1.bf16.msra.mxu0 0
        %1053 = vmatprep.subr.bf16.mxu0 0
        %1054 = vmatpush1.bf16.msra.mxu0 0
        %1055 = vmatprep.subr.bf16.mxu0 0
        %1056 = vmatpush1.bf16.msra.mxu0 0
        %1057 = vmatprep.subr.bf16.mxu0 0
        %1058 = vmatpush1.bf16.msra.mxu0 0
        %1059 = vmatprep.subr.bf16.mxu0 0
        %1060 = vmatpush1.bf16.msra.mxu0 0
        %1061 = vmatprep.subr.bf16.mxu0 0
        %1062 = vmatpush1.bf16.msra.mxu0 0
        %1063 = vmatprep.subr.bf16.mxu0 %v1047
        %1064 = vmatpush1.bf16.msra.mxu0 %v1044
        %1065 = vmatprep.subr.bf16.mxu0 0
        %1066 = vmatpush2.bf16.msra.mxu0 0
        %1067 = vmatprep.subr.bf16.mxu0 0
        %1068 = vmatpush2.bf16.msra.mxu0 0
        %1069 = vmatprep.subr.bf16.mxu0 0
        %1070 = vmatpush2.bf16.msra.mxu0 0
        %1071 = vmatprep.subr.bf16.mxu0 0
        %1072 = vmatpush2.bf16.msra.mxu0 0
        %1073 = vmatprep.subr.bf16.mxu0 0
        %1074 = vmatpush2.bf16.msra.mxu0 0
        %1075 = vmatprep.subr.bf16.mxu0 0
        %1076 = vmatpush2.bf16.msra.mxu0 0
        %1077 = vmatprep.subr.bf16.mxu0 0
        %1078 = vmatpush2.bf16.msra.mxu0 0
        %1079 = vmatprep.subr.bf16.mxu0 0
        %1080 = vmatpush2.bf16.msra.mxu0 0
        %1081 = vmatprep.mubr.bf16.mxu0 0
        %1082 = vmatmul.mubr.bf16.gmra.mxu0 %v1041
        %v1083 = vpop.f32.mrf.mxu0
        %v1084 = vadd.f32 0.0, %v1083
        %v1085 = vpop.f32.mrf.mxu0
        %v1086 = vadd.f32 0.0, %v1085
        %v1087 = vpop.f32.mrf.mxu0
        %v1088 = vadd.f32 0.0, %v1087
        %v1089 = vpop.f32.mrf.mxu0
        %v1090 = vadd.f32 0.0, %v1089
        %1091 = vdwg.mxu0
        %v1092 = vadd.f32 %v1026, %v1084
        %v1093 = vadd.f32 %v1027, %v1086
        %v1094 = vadd.f32 %v1028, %v1088
        %v1095 = vadd.f32 %v1029, %v1090
        %s1096 = scalar_lea.vmem %s4, 56
        %v1097 = vld [vmem:[%s1096] sm:$0xf]
        %v1098 = vld [vmem:[%s1096 + $0x4] sm:$0xf]
        %v1099 = vpack.c.bf16 %v962, %v962
        %v1100 = vpack.c.bf16 %v963, %v963
        %v1103 = vunpack.c.l.b16 %v1097
        %v1104 = vunpack.c.l.b16 %v1098
        %v1105 = vpack.c.b16 %v1104, %v1103
        %v1107 = vsel %vm768, %v1105, 0
        %v1110 = vand.u32 %v1099, %v775
        %v1113 = vand.u32 %v1100, %v775
        %1115 = vmatprep.subr.bf16.mxu0 0
        %1116 = vmatpush1.bf16.msra.mxu0 0
        %1117 = vmatprep.subr.bf16.mxu0 0
        %1118 = vmatpush1.bf16.msra.mxu0 0
        %1119 = vmatprep.subr.bf16.mxu0 0
        %1120 = vmatpush1.bf16.msra.mxu0 0
        %1121 = vmatprep.subr.bf16.mxu0 0
        %1122 = vmatpush1.bf16.msra.mxu0 0
        %1123 = vmatprep.subr.bf16.mxu0 0
        %1124 = vmatpush1.bf16.msra.mxu0 0
        %1125 = vmatprep.subr.bf16.mxu0 0
        %1126 = vmatpush1.bf16.msra.mxu0 0
        %1127 = vmatprep.subr.bf16.mxu0 0
        %1128 = vmatpush1.bf16.msra.mxu0 0
        %1129 = vmatprep.subr.bf16.mxu0 %v1113
        %1130 = vmatpush1.bf16.msra.mxu0 %v1110
        %1131 = vmatprep.subr.bf16.mxu0 0
        %1132 = vmatpush2.bf16.msra.mxu0 0
        %1133 = vmatprep.subr.bf16.mxu0 0
        %1134 = vmatpush2.bf16.msra.mxu0 0
        %1135 = vmatprep.subr.bf16.mxu0 0
        %1136 = vmatpush2.bf16.msra.mxu0 0
        %1137 = vmatprep.subr.bf16.mxu0 0
        %1138 = vmatpush2.bf16.msra.mxu0 0
        %1139 = vmatprep.subr.bf16.mxu0 0
        %1140 = vmatpush2.bf16.msra.mxu0 0
        %1141 = vmatprep.subr.bf16.mxu0 0
        %1142 = vmatpush2.bf16.msra.mxu0 0
        %1143 = vmatprep.subr.bf16.mxu0 0
        %1144 = vmatpush2.bf16.msra.mxu0 0
        %1145 = vmatprep.subr.bf16.mxu0 0
        %1146 = vmatpush2.bf16.msra.mxu0 0
        %1147 = vmatprep.mubr.bf16.mxu0 0
        %1148 = vmatmul.mubr.bf16.gmra.mxu0 %v1107
        %v1149 = vpop.f32.mrf.mxu0
        %v1150 = vadd.f32 0.0, %v1149
        %v1151 = vpop.f32.mrf.mxu0
        %v1152 = vadd.f32 0.0, %v1151
        %v1153 = vpop.f32.mrf.mxu0
        %v1154 = vadd.f32 0.0, %v1153
        %v1155 = vpop.f32.mrf.mxu0
        %v1156 = vadd.f32 0.0, %v1155
        %1157 = vdwg.mxu0
        %v1158 = vadd.f32 %v1092, %v1150
        %v1159 = vadd.f32 %v1093, %v1152
        %v1160 = vadd.f32 %v1094, %v1154
        %v1161 = vadd.f32 %v1095, %v1156
        %1162 = vrot.lane.b32.xlu0 %v712, 16
        %v1163 = vpop.permute.xlu0 %1162
        %1164 = vrot.lane.b32.xlu0 %v713, 16
        %v1165 = vpop.permute.xlu0 %1164
        %v1166 = vsel %vm718, %v1163, %v1165
        %v1167 = vsel %vm718, %v1165, %v1163
        %1168 = vrot.lane.b32.xlu0 %v712, 112
        %v1169 = vpop.permute.xlu0 %1168
        %1170 = vrot.lane.b32.xlu0 %v713, 112
        %v1171 = vpop.permute.xlu0 %1170
        %v1172 = vsel %vm725, %v1169, %v1171
        %v1173 = vsel %vm725, %v1171, %v1169
        %v1174 = vsel %vm737, %v1172, %v1167
        %v1175 = vsel %vm738, %v1173, %v1166
        %v1176 = vsel %vm750, %v1167, %v1172
        %v1177 = vsel %vm751, %v1166, %v1173
        %s1178 = scalar_lea.vmem %s4, 16
        %v1179 = vld [vmem:[%s1178] sm:$0xf]
        %v1180 = vld [vmem:[%s1178 + $0x4] sm:$0xf]
        %v1181 = vpack.c.bf16 %v1174, %v1174
        %v1182 = vpack.c.bf16 %v1175, %v1175
        %v1185 = vunpack.c.l.b16 %v1179
        %v1186 = vunpack.c.l.b16 %v1180
        %v1187 = vpack.c.b16 %v1186, %v1185
        %v1189 = vsel %vm768, %v1187, 0
        %v1192 = vand.u32 %v1181, %v775
        %v1195 = vand.u32 %v1182, %v775
        %1197 = vmatprep.subr.bf16.mxu0 0
        %1198 = vmatpush1.bf16.msra.mxu0 0
        %1199 = vmatprep.subr.bf16.mxu0 0
        %1200 = vmatpush1.bf16.msra.mxu0 0
        %1201 = vmatprep.subr.bf16.mxu0 0
        %1202 = vmatpush1.bf16.msra.mxu0 0
        %1203 = vmatprep.subr.bf16.mxu0 0
        %1204 = vmatpush1.bf16.msra.mxu0 0
        %1205 = vmatprep.subr.bf16.mxu0 0
        %1206 = vmatpush1.bf16.msra.mxu0 0
        %1207 = vmatprep.subr.bf16.mxu0 0
        %1208 = vmatpush1.bf16.msra.mxu0 0
        %1209 = vmatprep.subr.bf16.mxu0 0
        %1210 = vmatpush1.bf16.msra.mxu0 0
        %1211 = vmatprep.subr.bf16.mxu0 %v1195
        %1212 = vmatpush1.bf16.msra.mxu0 %v1192
        %1213 = vmatprep.subr.bf16.mxu0 0
        %1214 = vmatpush2.bf16.msra.mxu0 0
        %1215 = vmatprep.subr.bf16.mxu0 0
        %1216 = vmatpush2.bf16.msra.mxu0 0
        %1217 = vmatprep.subr.bf16.mxu0 0
        %1218 = vmatpush2.bf16.msra.mxu0 0
        %1219 = vmatprep.subr.bf16.mxu0 0
        %1220 = vmatpush2.bf16.msra.mxu0 0
        %1221 = vmatprep.subr.bf16.mxu0 0
        %1222 = vmatpush2.bf16.msra.mxu0 0
        %1223 = vmatprep.subr.bf16.mxu0 0
        %1224 = vmatpush2.bf16.msra.mxu0 0
        %1225 = vmatprep.subr.bf16.mxu0 0
        %1226 = vmatpush2.bf16.msra.mxu0 0
        %1227 = vmatprep.subr.bf16.mxu0 0
        %1228 = vmatpush2.bf16.msra.mxu0 0
        %1229 = vmatprep.mubr.bf16.mxu0 0
        %1230 = vmatmul.mubr.bf16.gmra.mxu0 %v1189
        %v1231 = vpop.f32.mrf.mxu0
        %v1232 = vadd.f32 0.0, %v1231
        %v1233 = vpop.f32.mrf.mxu0
        %v1234 = vadd.f32 0.0, %v1233
        %v1235 = vpop.f32.mrf.mxu0
        %v1236 = vadd.f32 0.0, %v1235
        %v1237 = vpop.f32.mrf.mxu0
        %v1238 = vadd.f32 0.0, %v1237
        %1239 = vdwg.mxu0
        %v1240 = vadd.f32 %v1158, %v1232
        %v1241 = vadd.f32 %v1159, %v1234
        %v1242 = vadd.f32 %v1160, %v1236
        %v1243 = vadd.f32 %v1161, %v1238
        %s1244 = scalar_lea.vmem %s4, 40
        %v1245 = vld [vmem:[%s1244] sm:$0xf]
        %v1246 = vld [vmem:[%s1244 + $0x4] sm:$0xf]
        %v1247 = vpack.c.bf16 %v712, %v712
        %v1248 = vpack.c.bf16 %v713, %v713
        %v1251 = vunpack.c.l.b16 %v1245
        %v1252 = vunpack.c.l.b16 %v1246
        %v1253 = vpack.c.b16 %v1252, %v1251
        %v1255 = vsel %vm768, %v1253, 0
        %v1258 = vand.u32 %v1247, %v775
        %v1261 = vand.u32 %v1248, %v775
        %1263 = vmatprep.subr.bf16.mxu0 0
        %1264 = vmatpush1.bf16.msra.mxu0 0
        %1265 = vmatprep.subr.bf16.mxu0 0
        %1266 = vmatpush1.bf16.msra.mxu0 0
        %1267 = vmatprep.subr.bf16.mxu0 0
        %1268 = vmatpush1.bf16.msra.mxu0 0
        %1269 = vmatprep.subr.bf16.mxu0 0
        %1270 = vmatpush1.bf16.msra.mxu0 0
        %1271 = vmatprep.subr.bf16.mxu0 0
        %1272 = vmatpush1.bf16.msra.mxu0 0
        %1273 = vmatprep.subr.bf16.mxu0 0
        %1274 = vmatpush1.bf16.msra.mxu0 0
        %1275 = vmatprep.subr.bf16.mxu0 0
        %1276 = vmatpush1.bf16.msra.mxu0 0
        %1277 = vmatprep.subr.bf16.mxu0 %v1261
        %1278 = vmatpush1.bf16.msra.mxu0 %v1258
        %1279 = vmatprep.subr.bf16.mxu0 0
        %1280 = vmatpush2.bf16.msra.mxu0 0
        %1281 = vmatprep.subr.bf16.mxu0 0
        %1282 = vmatpush2.bf16.msra.mxu0 0
        %1283 = vmatprep.subr.bf16.mxu0 0
        %1284 = vmatpush2.bf16.msra.mxu0 0
        %1285 = vmatprep.subr.bf16.mxu0 0
        %1286 = vmatpush2.bf16.msra.mxu0 0
        %1287 = vmatprep.subr.bf16.mxu0 0
        %1288 = vmatpush2.bf16.msra.mxu0 0
        %1289 = vmatprep.subr.bf16.mxu0 0
        %1290 = vmatpush2.bf16.msra.mxu0 0
        %1291 = vmatprep.subr.bf16.mxu0 0
        %1292 = vmatpush2.bf16.msra.mxu0 0
        %1293 = vmatprep.subr.bf16.mxu0 0
        %1294 = vmatpush2.bf16.msra.mxu0 0
        %1295 = vmatprep.mubr.bf16.mxu0 0
        %1296 = vmatmul.mubr.bf16.gmra.mxu0 %v1255
        %v1297 = vpop.f32.mrf.mxu0
        %v1298 = vadd.f32 0.0, %v1297
        %v1299 = vpop.f32.mrf.mxu0
        %v1300 = vadd.f32 0.0, %v1299
        %v1301 = vpop.f32.mrf.mxu0
        %v1302 = vadd.f32 0.0, %v1301
        %v1303 = vpop.f32.mrf.mxu0
        %v1304 = vadd.f32 0.0, %v1303
        %1305 = vdwg.mxu0
        %v1306 = vadd.f32 %v1240, %v1298
        %v1307 = vadd.f32 %v1241, %v1300
        %v1308 = vadd.f32 %v1242, %v1302
        %v1309 = vadd.f32 %v1243, %v1304
        %s1310 = scalar_lea.vmem %s4, 64
        %v1311 = vld [vmem:[%s1310] sm:$0xf]
        %v1312 = vld [vmem:[%s1310 + $0x4] sm:$0xf]
        %v1313 = vpack.c.bf16 %v1176, %v1176
        %v1314 = vpack.c.bf16 %v1177, %v1177
        %v1317 = vunpack.c.l.b16 %v1311
        %v1318 = vunpack.c.l.b16 %v1312
        %v1319 = vpack.c.b16 %v1318, %v1317
        %v1321 = vsel %vm768, %v1319, 0
        %v1324 = vand.u32 %v1313, %v775
        %v1327 = vand.u32 %v1314, %v775
        %1329 = vmatprep.subr.bf16.mxu0 0
        %1330 = vmatpush1.bf16.msra.mxu0 0
        %1331 = vmatprep.subr.bf16.mxu0 0
        %1332 = vmatpush1.bf16.msra.mxu0 0
        %1333 = vmatprep.subr.bf16.mxu0 0
        %1334 = vmatpush1.bf16.msra.mxu0 0
        %1335 = vmatprep.subr.bf16.mxu0 0
        %1336 = vmatpush1.bf16.msra.mxu0 0
        %1337 = vmatprep.subr.bf16.mxu0 0
        %1338 = vmatpush1.bf16.msra.mxu0 0
        %1339 = vmatprep.subr.bf16.mxu0 0
        %1340 = vmatpush1.bf16.msra.mxu0 0
        %1341 = vmatprep.subr.bf16.mxu0 0
        %1342 = vmatpush1.bf16.msra.mxu0 0
        %1343 = vmatprep.subr.bf16.mxu0 %v1327
        %1344 = vmatpush1.bf16.msra.mxu0 %v1324
        %1345 = vmatprep.subr.bf16.mxu0 0
        %1346 = vmatpush2.bf16.msra.mxu0 0
        %1347 = vmatprep.subr.bf16.mxu0 0
        %1348 = vmatpush2.bf16.msra.mxu0 0
        %1349 = vmatprep.subr.bf16.mxu0 0
        %1350 = vmatpush2.bf16.msra.mxu0 0
        %1351 = vmatprep.subr.bf16.mxu0 0
        %1352 = vmatpush2.bf16.msra.mxu0 0
        %1353 = vmatprep.subr.bf16.mxu0 0
        %1354 = vmatpush2.bf16.msra.mxu0 0
        %1355 = vmatprep.subr.bf16.mxu0 0
        %1356 = vmatpush2.bf16.msra.mxu0 0
        %1357 = vmatprep.subr.bf16.mxu0 0
        %1358 = vmatpush2.bf16.msra.mxu0 0
        %1359 = vmatprep.subr.bf16.mxu0 0
        %1360 = vmatpush2.bf16.msra.mxu0 0
        %1361 = vmatprep.mubr.bf16.mxu0 0
        %1362 = vmatmul.mubr.bf16.gmra.mxu0 %v1321
        %v1363 = vpop.f32.mrf.mxu0
        %v1364 = vadd.f32 0.0, %v1363
        %v1365 = vpop.f32.mrf.mxu0
        %v1366 = vadd.f32 0.0, %v1365
        %v1367 = vpop.f32.mrf.mxu0
        %v1368 = vadd.f32 0.0, %v1367
        %v1369 = vpop.f32.mrf.mxu0
        %v1370 = vadd.f32 0.0, %v1369
        %1371 = vdwg.mxu0
        %v1372 = vadd.f32 %v1306, %v1364
        %v1373 = vadd.f32 %v1307, %v1366
        %v1374 = vadd.f32 %v1308, %v1368
        %v1375 = vadd.f32 %v1309, %v1370
        %s1376 = sld [smem:[#allocation13]]
        %v1377 = vld [vmem:[%s5] sm:$0xf]
        %v1378 = vld [vmem:[%s5 + $0x4] sm:$0xf]
        %v1379 = vld [vmem:[%s5 + $0x8] sm:$0xf]
        %v1380 = vld [vmem:[%s5 + $0xc] sm:$0xf]
        %v1381 = vld [vmem:[%s5 + $0x10] sm:$0xf]
        %v1382 = vld [vmem:[%s5 + $0x14] sm:$0xf]
        %v1383 = vpack.c.bf16 %v1374, %v1372
        %v1384 = vpack.c.bf16 %v1375, %v1373
        %v1391 = vunpack.c.l.b16 %v1377
        %v1392 = vunpack.c.l.b16 %v1378
        %v1393 = vunpack.c.l.b16 %v1379
        %v1394 = vunpack.c.l.b16 %v1380
        %v1395 = vunpack.c.l.b16 %v1381
        %v1396 = vunpack.c.l.b16 %v1382
        %v1397 = vpack.c.b16 %v1392, %v1391
        %v1398 = vpack.c.b16 %v1394, %v1393
        %v1399 = vpack.c.b16 %v1396, %v1395
        %vm1400 = vcmask 130048
        %v1402 = vsel %vm1400, %v1397, 0
        %v1405 = vsel %vm1400, %v1398, 0
        %v1408 = vsel %vm1400, %v1399, 0
        %1410 = vmatprep.subr.bf16.mxu0 0
        %1411 = vmatpush1.bf16.msra.mxu0 0
        %1412 = vmatprep.subr.bf16.mxu0 0
        %1413 = vmatpush1.bf16.msra.mxu0 0
        %1414 = vmatprep.subr.bf16.mxu0 0
        %1415 = vmatpush1.bf16.msra.mxu0 0
        %1416 = vmatprep.subr.bf16.mxu0 0
        %1417 = vmatpush1.bf16.msra.mxu0 0
        %1418 = vmatprep.subr.bf16.mxu0 0
        %1419 = vmatpush1.bf16.msra.mxu0 0
        %1420 = vmatprep.subr.bf16.mxu0 0
        %1421 = vmatpush1.bf16.msra.mxu0 0
        %1422 = vmatprep.subr.bf16.mxu0 0
        %1423 = vmatpush1.bf16.msra.mxu0 0
        %1424 = vmatprep.subr.bf16.mxu0 %v1384
        %1425 = vmatpush1.bf16.msra.mxu0 %v1383
        %1426 = vmatprep.subr.bf16.mxu0 0
        %1427 = vmatpush2.bf16.msra.mxu0 0
        %1428 = vmatprep.subr.bf16.mxu0 0
        %1429 = vmatpush2.bf16.msra.mxu0 0
        %1430 = vmatprep.subr.bf16.mxu0 0
        %1431 = vmatpush2.bf16.msra.mxu0 0
        %1432 = vmatprep.subr.bf16.mxu0 0
        %1433 = vmatpush2.bf16.msra.mxu0 0
        %1434 = vmatprep.subr.bf16.mxu0 0
        %1435 = vmatpush2.bf16.msra.mxu0 0
        %1436 = vmatprep.subr.bf16.mxu0 0
        %1437 = vmatpush2.bf16.msra.mxu0 0
        %1438 = vmatprep.subr.bf16.mxu0 0
        %1439 = vmatpush2.bf16.msra.mxu0 0
        %1440 = vmatprep.subr.bf16.mxu0 0
        %1441 = vmatpush2.bf16.msra.mxu0 0
        %1442 = vmatprep.mubr.bf16.mxu0 0
        %1443 = vmatmul.mubr.bf16.gmra.mxu0 %v1402
        %v1444 = vpop.f32.mrf.mxu0
        %v1445 = vadd.f32 0.0, %v1444
        %v1446 = vpop.f32.mrf.mxu0
        %v1447 = vadd.f32 0.0, %v1446
        %v1448 = vpop.f32.mrf.mxu0
        %v1449 = vadd.f32 0.0, %v1448
        %v1450 = vpop.f32.mrf.mxu0
        %v1451 = vadd.f32 0.0, %v1450
        %1452 = vmatprep.mubr.bf16.mxu0 0
        %1453 = vmatmul.mubr.bf16.gmra.mxu0 %v1405
        %v1454 = vpop.f32.mrf.mxu0
        %v1455 = vadd.f32 0.0, %v1454
        %v1456 = vpop.f32.mrf.mxu0
        %v1457 = vadd.f32 0.0, %v1456
        %v1458 = vpop.f32.mrf.mxu0
        %v1459 = vadd.f32 0.0, %v1458
        %v1460 = vpop.f32.mrf.mxu0
        %v1461 = vadd.f32 0.0, %v1460
        %1462 = vmatprep.mubr.bf16.mxu0 0
        %1463 = vmatmul.mubr.bf16.gmra.mxu0 %v1408
        %v1464 = vpop.f32.mrf.mxu0
        %v1465 = vadd.f32 0.0, %v1464
        %v1466 = vpop.f32.mrf.mxu0
        %v1467 = vadd.f32 0.0, %v1466
        %v1468 = vpop.f32.mrf.mxu0
        %v1469 = vadd.f32 0.0, %v1468
        %v1470 = vpop.f32.mrf.mxu0
        %v1471 = vadd.f32 0.0, %v1470
        %1472 = vdwg.mxu0
        %vm1473 = vcmp.ge.f32.partialorder %v1445, 0.0
        %vm1474 = vcmp.ge.f32.partialorder %v1447, 0.0
        %vm1475 = vcmp.ge.f32.partialorder %v1449, 0.0
        %vm1476 = vcmp.ge.f32.partialorder %v1451, 0.0
        %vm1477 = vcmp.ge.f32.partialorder %v1455, 0.0
        %vm1478 = vcmp.ge.f32.partialorder %v1457, 0.0
        %vm1479 = vcmp.ge.f32.partialorder %v1459, 0.0
        %vm1480 = vcmp.ge.f32.partialorder %v1461, 0.0
        %vm1481 = vcmp.ge.f32.partialorder %v1465, 0.0
        %vm1482 = vcmp.ge.f32.partialorder %v1467, 0.0
        %vm1483 = vcmp.ge.f32.partialorder %v1469, 0.0
        %vm1484 = vcmp.ge.f32.partialorder %v1471, 0.0
        %v1485 = vstv %s1376
        %v1486 = vmul.f32 %v1485, %v1445
        %v1487 = vmul.f32 %v1485, %v1447
        %v1488 = vmul.f32 %v1485, %v1449
        %v1489 = vmul.f32 %v1485, %v1451
        %v1490 = vmul.f32 %v1485, %v1455
        %v1491 = vmul.f32 %v1485, %v1457
        %v1492 = vmul.f32 %v1485, %v1459
        %v1493 = vmul.f32 %v1485, %v1461
        %v1494 = vmul.f32 %v1485, %v1465
        %v1495 = vmul.f32 %v1485, %v1467
        %v1496 = vmul.f32 %v1485, %v1469
        %v1497 = vmul.f32 %v1485, %v1471
        %v1498 = vsel %vm1473, %v1445, %v1486
        %v1499 = vsel %vm1474, %v1447, %v1487
        %v1500 = vsel %vm1475, %v1449, %v1488
        %v1501 = vsel %vm1476, %v1451, %v1489
        %v1502 = vsel %vm1477, %v1455, %v1490
        %v1503 = vsel %vm1478, %v1457, %v1491
        %v1504 = vsel %vm1479, %v1459, %v1492
        %v1505 = vsel %vm1480, %v1461, %v1493
        %v1506 = vsel %vm1481, %v1465, %v1494
        %v1507 = vsel %vm1482, %v1467, %v1495
        %v1508 = vsel %vm1483, %v1469, %v1496
        %v1509 = vsel %vm1484, %v1471, %v1497
        %v1510 = vld [vmem:[#allocation5] sm:$0xf]
        %v1511 = vld [vmem:[#allocation5 + $0x4] sm:$0x3]
        %v1512 = vpack.c.bf16 %v1500, %v1498
        %v1513 = vpack.c.bf16 %v1501, %v1499
        %v1514 = vpack.c.bf16 %v1504, %v1502
        %v1515 = vpack.c.bf16 %v1505, %v1503
        %v1516 = vpack.c.bf16 %v1508, %v1506
        %v1517 = vpack.c.bf16 %v1509, %v1507
        %v1520 = vunpack.c.l.b16 %v1510
        %v1521 = vunpack.c.l.b16 %v1511
        %v1522 = vpack.c.b16 %v1521, %v1520
        %vm1523 = vcmask 392192
        %v1525 = vsel %vm1523, %v1522, 0
        %1527 = vmatprep.subr.bf16.mxu0 0
        %1528 = vmatpush1.bf16.msra.mxu0 0
        %1529 = vmatprep.subr.bf16.mxu0 0
        %1530 = vmatpush1.bf16.msra.mxu0 0
        %1531 = vmatprep.subr.bf16.mxu0 0
        %1532 = vmatpush1.bf16.msra.mxu0 0
        %1533 = vmatprep.subr.bf16.mxu0 0
        %1534 = vmatpush1.bf16.msra.mxu0 0
        %1535 = vmatprep.subr.bf16.mxu0 0
        %1536 = vmatpush1.bf16.msra.mxu0 0
        %1537 = vmatprep.subr.bf16.mxu0 %v1517
        %1538 = vmatpush1.bf16.msra.mxu0 %v1516
        %1539 = vmatprep.subr.bf16.mxu0 %v1515
        %1540 = vmatpush1.bf16.msra.mxu0 %v1514
        %1541 = vmatprep.subr.bf16.mxu0 %v1513
        %1542 = vmatpush1.bf16.msra.mxu0 %v1512
        %1543 = vmatprep.subr.bf16.mxu0 0
        %1544 = vmatpush2.bf16.msra.mxu0 0
        %1545 = vmatprep.subr.bf16.mxu0 0
        %1546 = vmatpush2.bf16.msra.mxu0 0
        %1547 = vmatprep.subr.bf16.mxu0 0
        %1548 = vmatpush2.bf16.msra.mxu0 0
        %1549 = vmatprep.subr.bf16.mxu0 0
        %1550 = vmatpush2.bf16.msra.mxu0 0
        %1551 = vmatprep.subr.bf16.mxu0 0
        %1552 = vmatpush2.bf16.msra.mxu0 0
        %1553 = vmatprep.subr.bf16.mxu0 0
        %1554 = vmatpush2.bf16.msra.mxu0 0
        %1555 = vmatprep.subr.bf16.mxu0 0
        %1556 = vmatpush2.bf16.msra.mxu0 0
        %1557 = vmatprep.subr.bf16.mxu0 0
        %1558 = vmatpush2.bf16.msra.mxu0 0
        %1559 = vmatprep.mubr.bf16.mxu0 0
        %1560 = vmatmul.mubr.bf16.gmra.mxu0 %v1525
        %v1561 = vpop.f32.mrf.mxu0
        %v1562 = vadd.f32 0.0, %v1561
        %v1563 = vpop.f32.mrf.mxu0
        %v1564 = vadd.f32 0.0, %v1563
        %v1565 = vpop.f32.mrf.mxu0
        %v1566 = vadd.f32 0.0, %v1565
        %v1567 = vpop.f32.mrf.mxu0
        %v1568 = vadd.f32 0.0, %v1567
        %1569 = vdwg.mxu0
        %1570 = vrot.lane.b32.xlu0 %v1562, 1
        %v1571 = vpop.permute.xlu0 %1570
        %1572 = vrot.lane.b32.xlu0 %v1566, 1
        %v1573 = vpop.permute.xlu0 %1572
        %1574 = vrot.lane.b32.xlu0 %v1564, 1
        %v1575 = vpop.permute.xlu0 %1574
        %1576 = vrot.lane.b32.xlu0 %v1568, 1
        %v1577 = vpop.permute.xlu0 %1576
        %v1578 = vsel %vm678, %v1571, %v1575
        %v1579 = vsel %vm678, %v1573, %v1577
        %v1580 = vsel %vm678, %v1575, %v1571
        %v1581 = vsel %vm678, %v1577, %v1573
        %1582 = vrot.lane.b32.xlu0 %v1562, 127
        %v1583 = vpop.permute.xlu0 %1582
        %1584 = vrot.lane.b32.xlu0 %v1566, 127
        %v1585 = vpop.permute.xlu0 %1584
        %1586 = vrot.lane.b32.xlu0 %v1564, 127
        %v1587 = vpop.permute.xlu0 %1586
        %1588 = vrot.lane.b32.xlu0 %v1568, 127
        %v1589 = vpop.permute.xlu0 %1588
        %v1590 = vsel %vm685, %v1583, %v1587
        %v1591 = vsel %vm685, %v1585, %v1589
        %v1592 = vsel %vm685, %v1587, %v1583
        %v1593 = vsel %vm685, %v1589, %v1585
        %v1594 = vsel %vm697, %v1590, %v1580
        %v1595 = vsel %vm698, %v1592, %v1578
        %v1596 = vsel %vm697, %v1591, %v1581
        %v1597 = vsel %vm698, %v1593, %v1579
        %v1598 = vsel %vm710, %v1580, %v1590
        %v1599 = vsel %vm711, %v1578, %v1592
        %v1600 = vsel %vm710, %v1581, %v1591
        %v1601 = vsel %vm711, %v1579, %v1593
        %1602 = vrot.lane.b32.xlu0 %v1594, 16
        %v1603 = vpop.permute.xlu0 %1602
        %1604 = vrot.lane.b32.xlu0 %v1596, 16
        %v1605 = vpop.permute.xlu0 %1604
        %1606 = vrot.lane.b32.xlu0 %v1595, 16
        %v1607 = vpop.permute.xlu0 %1606
        %1608 = vrot.lane.b32.xlu0 %v1597, 16
        %v1609 = vpop.permute.xlu0 %1608
        %v1610 = vsel %vm718, %v1603, %v1607
        %v1611 = vsel %vm718, %v1605, %v1609
        %v1612 = vsel %vm718, %v1607, %v1603
        %v1613 = vsel %vm718, %v1609, %v1605
        %1614 = vrot.lane.b32.xlu0 %v1594, 112
        %v1615 = vpop.permute.xlu0 %1614
        %1616 = vrot.lane.b32.xlu0 %v1596, 112
        %v1617 = vpop.permute.xlu0 %1616
        %1618 = vrot.lane.b32.xlu0 %v1595, 112
        %v1619 = vpop.permute.xlu0 %1618
        %1620 = vrot.lane.b32.xlu0 %v1597, 112
        %v1621 = vpop.permute.xlu0 %1620
        %v1622 = vsel %vm725, %v1615, %v1619
        %v1623 = vsel %vm725, %v1617, %v1621
        %v1624 = vsel %vm725, %v1619, %v1615
        %v1625 = vsel %vm725, %v1621, %v1617
        %v1626 = vsel %vm737, %v1622, %v1612
        %v1627 = vsel %vm738, %v1624, %v1610
        %v1628 = vsel %vm737, %v1623, %v1613
        %v1629 = vsel %vm738, %v1625, %v1611
        %v1630 = vsel %vm750, %v1612, %v1622
        %v1631 = vsel %vm751, %v1610, %v1624
        %v1632 = vsel %vm750, %v1613, %v1623
        %v1633 = vsel %vm751, %v1611, %v1625
        %v1634 = vld [vmem:[#allocation7] sm:$0xf]
        %v1635 = vld [vmem:[#allocation7 + $0x4] sm:$0xf]
        %v1636 = vpack.c.bf16 %v1628, %v1626
        %v1637 = vpack.c.bf16 %v1629, %v1627
        %s1638 = scalar_lea.vmem [#allocation7], 24
        %v1639 = vld [vmem:[%s1638] sm:$0xf]
        %v1640 = vld [vmem:[%s1638 + $0x4] sm:$0xf]
        %v1641 = vpack.c.bf16 %v1596, %v1594
        %v1642 = vpack.c.bf16 %v1597, %v1595
        %v1645 = vunpack.c.l.b16 %v1639
        %v1646 = vunpack.c.l.b16 %v1640
        %v1647 = vpack.c.b16 %v1646, %v1645
        %vm1648 = vcmask 97280
        %v1650 = vsel %vm1648, %v1647, 0
        %vm1652 = vcmask 1045504
        %v1654 = vsel %vm1652, %v1641, 0
        %v1657 = vsel %vm1652, %v1642, 0
        %1659 = vmatprep.subr.bf16.mxu0 0
        %1660 = vmatpush1.bf16.msra.mxu0 0
        %1661 = vmatprep.subr.bf16.mxu0 0
        %1662 = vmatpush1.bf16.msra.mxu0 0
        %1663 = vmatprep.subr.bf16.mxu0 0
        %1664 = vmatpush1.bf16.msra.mxu0 0
        %1665 = vmatprep.subr.bf16.mxu0 0
        %1666 = vmatpush1.bf16.msra.mxu0 0
        %1667 = vmatprep.subr.bf16.mxu0 0
        %1668 = vmatpush1.bf16.msra.mxu0 0
        %1669 = vmatprep.subr.bf16.mxu0 0
        %1670 = vmatpush1.bf16.msra.mxu0 0
        %1671 = vmatprep.subr.bf16.mxu0 0
        %1672 = vmatpush1.bf16.msra.mxu0 0
        %1673 = vmatprep.subr.bf16.mxu0 %v1657
        %1674 = vmatpush1.bf16.msra.mxu0 %v1654
        %1675 = vmatprep.subr.bf16.mxu0 0
        %1676 = vmatpush2.bf16.msra.mxu0 0
        %1677 = vmatprep.subr.bf16.mxu0 0
        %1678 = vmatpush2.bf16.msra.mxu0 0
        %1679 = vmatprep.subr.bf16.mxu0 0
        %1680 = vmatpush2.bf16.msra.mxu0 0
        %1681 = vmatprep.subr.bf16.mxu0 0
        %1682 = vmatpush2.bf16.msra.mxu0 0
        %1683 = vmatprep.subr.bf16.mxu0 0
        %1684 = vmatpush2.bf16.msra.mxu0 0
        %1685 = vmatprep.subr.bf16.mxu0 0
        %1686 = vmatpush2.bf16.msra.mxu0 0
        %1687 = vmatprep.subr.bf16.mxu0 0
        %1688 = vmatpush2.bf16.msra.mxu0 0
        %1689 = vmatprep.subr.bf16.mxu0 0
        %1690 = vmatpush2.bf16.msra.mxu0 0
        %1691 = vmatprep.mubr.bf16.mxu0 0
        %1692 = vmatmul.mubr.bf16.gmra.mxu0 %v1650
        %v1693 = vpop.f32.mrf.mxu0
        %v1694 = vadd.f32 0.0, %v1693
        %v1695 = vpop.f32.mrf.mxu0
        %v1696 = vadd.f32 0.0, %v1695
        %v1697 = vpop.f32.mrf.mxu0
        %v1698 = vadd.f32 0.0, %v1697
        %v1699 = vpop.f32.mrf.mxu0
        %v1700 = vadd.f32 0.0, %v1699
        %1701 = vdwg.mxu0
        %v1704 = vunpack.c.l.b16 %v1634
        %v1705 = vunpack.c.l.b16 %v1635
        %v1706 = vpack.c.b16 %v1705, %v1704
        %v1708 = vsel %vm1648, %v1706, 0
        %v1711 = vsel %vm1652, %v1636, 0
        %v1714 = vsel %vm1652, %v1637, 0
        %1716 = vmatprep.subr.bf16.mxu0 0
        %1717 = vmatpush1.bf16.msra.mxu0 0
        %1718 = vmatprep.subr.bf16.mxu0 0
        %1719 = vmatpush1.bf16.msra.mxu0 0
        %1720 = vmatprep.subr.bf16.mxu0 0
        %1721 = vmatpush1.bf16.msra.mxu0 0
        %1722 = vmatprep.subr.bf16.mxu0 0
        %1723 = vmatpush1.bf16.msra.mxu0 0
        %1724 = vmatprep.subr.bf16.mxu0 0
        %1725 = vmatpush1.bf16.msra.mxu0 0
        %1726 = vmatprep.subr.bf16.mxu0 0
        %1727 = vmatpush1.bf16.msra.mxu0 0
        %1728 = vmatprep.subr.bf16.mxu0 0
        %1729 = vmatpush1.bf16.msra.mxu0 0
        %1730 = vmatprep.subr.bf16.mxu0 %v1714
        %1731 = vmatpush1.bf16.msra.mxu0 %v1711
        %1732 = vmatprep.subr.bf16.mxu0 0
        %1733 = vmatpush2.bf16.msra.mxu0 0
        %1734 = vmatprep.subr.bf16.mxu0 0
        %1735 = vmatpush2.bf16.msra.mxu0 0
        %1736 = vmatprep.subr.bf16.mxu0 0
        %1737 = vmatpush2.bf16.msra.mxu0 0
        %1738 = vmatprep.subr.bf16.mxu0 0
        %1739 = vmatpush2.bf16.msra.mxu0 0
        %1740 = vmatprep.subr.bf16.mxu0 0
        %1741 = vmatpush2.bf16.msra.mxu0 0
        %1742 = vmatprep.subr.bf16.mxu0 0
        %1743 = vmatpush2.bf16.msra.mxu0 0
        %1744 = vmatprep.subr.bf16.mxu0 0
        %1745 = vmatpush2.bf16.msra.mxu0 0
        %1746 = vmatprep.subr.bf16.mxu0 0
        %1747 = vmatpush2.bf16.msra.mxu0 0
        %1748 = vmatprep.mubr.bf16.mxu0 0
        %1749 = vmatmul.mubr.bf16.gmra.mxu0 %v1708
        %v1750 = vpop.f32.mrf.mxu0
        %v1751 = vadd.f32 %v1694, %v1750
        %v1752 = vpop.f32.mrf.mxu0
        %v1753 = vadd.f32 %v1696, %v1752
        %v1754 = vpop.f32.mrf.mxu0
        %v1755 = vadd.f32 %v1698, %v1754
        %v1756 = vpop.f32.mrf.mxu0
        %v1757 = vadd.f32 %v1700, %v1756
        %1758 = vdwg.mxu0
        %s1759 = scalar_lea.vmem [#allocation7], 48
        %v1760 = vld [vmem:[%s1759] sm:$0xf]
        %v1761 = vld [vmem:[%s1759 + $0x4] sm:$0xf]
        %v1762 = vpack.c.bf16 %v1632, %v1630
        %v1763 = vpack.c.bf16 %v1633, %v1631
        %v1766 = vunpack.c.l.b16 %v1760
        %v1767 = vunpack.c.l.b16 %v1761
        %v1768 = vpack.c.b16 %v1767, %v1766
        %v1770 = vsel %vm1648, %v1768, 0
        %v1773 = vsel %vm1652, %v1762, 0
        %v1776 = vsel %vm1652, %v1763, 0
        %1778 = vmatprep.subr.bf16.mxu0 0
        %1779 = vmatpush1.bf16.msra.mxu0 0
        %1780 = vmatprep.subr.bf16.mxu0 0
        %1781 = vmatpush1.bf16.msra.mxu0 0
        %1782 = vmatprep.subr.bf16.mxu0 0
        %1783 = vmatpush1.bf16.msra.mxu0 0
        %1784 = vmatprep.subr.bf16.mxu0 0
        %1785 = vmatpush1.bf16.msra.mxu0 0
        %1786 = vmatprep.subr.bf16.mxu0 0
        %1787 = vmatpush1.bf16.msra.mxu0 0
        %1788 = vmatprep.subr.bf16.mxu0 0
        %1789 = vmatpush1.bf16.msra.mxu0 0
        %1790 = vmatprep.subr.bf16.mxu0 0
        %1791 = vmatpush1.bf16.msra.mxu0 0
        %1792 = vmatprep.subr.bf16.mxu0 %v1776
        %1793 = vmatpush1.bf16.msra.mxu0 %v1773
        %1794 = vmatprep.subr.bf16.mxu0 0
        %1795 = vmatpush2.bf16.msra.mxu0 0
        %1796 = vmatprep.subr.bf16.mxu0 0
        %1797 = vmatpush2.bf16.msra.mxu0 0
        %1798 = vmatprep.subr.bf16.mxu0 0
        %1799 = vmatpush2.bf16.msra.mxu0 0
        %1800 = vmatprep.subr.bf16.mxu0 0
        %1801 = vmatpush2.bf16.msra.mxu0 0
        %1802 = vmatprep.subr.bf16.mxu0 0
        %1803 = vmatpush2.bf16.msra.mxu0 0
        %1804 = vmatprep.subr.bf16.mxu0 0
        %1805 = vmatpush2.bf16.msra.mxu0 0
        %1806 = vmatprep.subr.bf16.mxu0 0
        %1807 = vmatpush2.bf16.msra.mxu0 0
        %1808 = vmatprep.subr.bf16.mxu0 0
        %1809 = vmatpush2.bf16.msra.mxu0 0
        %1810 = vmatprep.mubr.bf16.mxu0 0
        %1811 = vmatmul.mubr.bf16.gmra.mxu0 %v1770
        %v1812 = vpop.f32.mrf.mxu0
        %v1813 = vadd.f32 0.0, %v1812
        %v1814 = vpop.f32.mrf.mxu0
        %v1815 = vadd.f32 0.0, %v1814
        %v1816 = vpop.f32.mrf.mxu0
        %v1817 = vadd.f32 0.0, %v1816
        %v1818 = vpop.f32.mrf.mxu0
        %v1819 = vadd.f32 0.0, %v1818
        %1820 = vdwg.mxu0
        %v1821 = vadd.f32 %v1751, %v1813
        %v1822 = vadd.f32 %v1753, %v1815
        %v1823 = vadd.f32 %v1755, %v1817
        %v1824 = vadd.f32 %v1757, %v1819
        %1825 = vrot.lane.b32.xlu0 %v1562, 16
        %v1826 = vpop.permute.xlu0 %1825
        %1827 = vrot.lane.b32.xlu0 %v1566, 16
        %v1828 = vpop.permute.xlu0 %1827
        %1829 = vrot.lane.b32.xlu0 %v1564, 16
        %v1830 = vpop.permute.xlu0 %1829
        %1831 = vrot.lane.b32.xlu0 %v1568, 16
        %v1832 = vpop.permute.xlu0 %1831
        %v1833 = vsel %vm718, %v1826, %v1830
        %v1834 = vsel %vm718, %v1828, %v1832
        %v1835 = vsel %vm718, %v1830, %v1826
        %v1836 = vsel %vm718, %v1832, %v1828
        %1837 = vrot.lane.b32.xlu0 %v1562, 112
        %v1838 = vpop.permute.xlu0 %1837
        %1839 = vrot.lane.b32.xlu0 %v1566, 112
        %v1840 = vpop.permute.xlu0 %1839
        %1841 = vrot.lane.b32.xlu0 %v1564, 112
        %v1842 = vpop.permute.xlu0 %1841
        %1843 = vrot.lane.b32.xlu0 %v1568, 112
        %v1844 = vpop.permute.xlu0 %1843
        %v1845 = vsel %vm725, %v1838, %v1842
        %v1846 = vsel %vm725, %v1840, %v1844
        %v1847 = vsel %vm725, %v1842, %v1838
        %v1848 = vsel %vm725, %v1844, %v1840
        %v1849 = vsel %vm737, %v1845, %v1835
        %v1850 = vsel %vm738, %v1847, %v1833
        %v1851 = vsel %vm737, %v1846, %v1836
        %v1852 = vsel %vm738, %v1848, %v1834
        %v1853 = vsel %vm750, %v1835, %v1845
        %v1854 = vsel %vm751, %v1833, %v1847
        %v1855 = vsel %vm750, %v1836, %v1846
        %v1856 = vsel %vm751, %v1834, %v1848
        %s1857 = scalar_lea.vmem [#allocation7], 8
        %v1858 = vld [vmem:[%s1857] sm:$0xf]
        %v1859 = vld [vmem:[%s1857 + $0x4] sm:$0xf]
        %v1860 = vpack.c.bf16 %v1851, %v1849
        %v1861 = vpack.c.bf16 %v1852, %v1850
        %v1864 = vunpack.c.l.b16 %v1858
        %v1865 = vunpack.c.l.b16 %v1859
        %v1866 = vpack.c.b16 %v1865, %v1864
        %v1868 = vsel %vm1648, %v1866, 0
        %v1871 = vsel %vm1652, %v1860, 0
        %v1874 = vsel %vm1652, %v1861, 0
        %1876 = vmatprep.subr.bf16.mxu0 0
        %1877 = vmatpush1.bf16.msra.mxu0 0
        %1878 = vmatprep.subr.bf16.mxu0 0
        %1879 = vmatpush1.bf16.msra.mxu0 0
        %1880 = vmatprep.subr.bf16.mxu0 0
        %1881 = vmatpush1.bf16.msra.mxu0 0
        %1882 = vmatprep.subr.bf16.mxu0 0
        %1883 = vmatpush1.bf16.msra.mxu0 0
        %1884 = vmatprep.subr.bf16.mxu0 0
        %1885 = vmatpush1.bf16.msra.mxu0 0
        %1886 = vmatprep.subr.bf16.mxu0 0
        %1887 = vmatpush1.bf16.msra.mxu0 0
        %1888 = vmatprep.subr.bf16.mxu0 0
        %1889 = vmatpush1.bf16.msra.mxu0 0
        %1890 = vmatprep.subr.bf16.mxu0 %v1874
        %1891 = vmatpush1.bf16.msra.mxu0 %v1871
        %1892 = vmatprep.subr.bf16.mxu0 0
        %1893 = vmatpush2.bf16.msra.mxu0 0
        %1894 = vmatprep.subr.bf16.mxu0 0
        %1895 = vmatpush2.bf16.msra.mxu0 0
        %1896 = vmatprep.subr.bf16.mxu0 0
        %1897 = vmatpush2.bf16.msra.mxu0 0
        %1898 = vmatprep.subr.bf16.mxu0 0
        %1899 = vmatpush2.bf16.msra.mxu0 0
        %1900 = vmatprep.subr.bf16.mxu0 0
        %1901 = vmatpush2.bf16.msra.mxu0 0
        %1902 = vmatprep.subr.bf16.mxu0 0
        %1903 = vmatpush2.bf16.msra.mxu0 0
        %1904 = vmatprep.subr.bf16.mxu0 0
        %1905 = vmatpush2.bf16.msra.mxu0 0
        %1906 = vmatprep.subr.bf16.mxu0 0
        %1907 = vmatpush2.bf16.msra.mxu0 0
        %1908 = vmatprep.mubr.bf16.mxu0 0
        %1909 = vmatmul.mubr.bf16.gmra.mxu0 %v1868
        %v1910 = vpop.f32.mrf.mxu0
        %v1911 = vadd.f32 0.0, %v1910
        %v1912 = vpop.f32.mrf.mxu0
        %v1913 = vadd.f32 0.0, %v1912
        %v1914 = vpop.f32.mrf.mxu0
        %v1915 = vadd.f32 0.0, %v1914
        %v1916 = vpop.f32.mrf.mxu0
        %v1917 = vadd.f32 0.0, %v1916
        %1918 = vdwg.mxu0
        %v1919 = vadd.f32 %v1821, %v1911
        %v1920 = vadd.f32 %v1822, %v1913
        %v1921 = vadd.f32 %v1823, %v1915
        %v1922 = vadd.f32 %v1824, %v1917
        %s1923 = scalar_lea.vmem [#allocation7], 32
        %v1924 = vld [vmem:[%s1923] sm:$0xf]
        %v1925 = vld [vmem:[%s1923 + $0x4] sm:$0xf]
        %v1926 = vpack.c.bf16 %v1566, %v1562
        %v1927 = vpack.c.bf16 %v1568, %v1564
        %v1930 = vunpack.c.l.b16 %v1924
        %v1931 = vunpack.c.l.b16 %v1925
        %v1932 = vpack.c.b16 %v1931, %v1930
        %v1934 = vsel %vm1648, %v1932, 0
        %v1937 = vsel %vm1652, %v1926, 0
        %v1940 = vsel %vm1652, %v1927, 0
        %1942 = vmatprep.subr.bf16.mxu0 0
        %1943 = vmatpush1.bf16.msra.mxu0 0
        %1944 = vmatprep.subr.bf16.mxu0 0
        %1945 = vmatpush1.bf16.msra.mxu0 0
        %1946 = vmatprep.subr.bf16.mxu0 0
        %1947 = vmatpush1.bf16.msra.mxu0 0
        %1948 = vmatprep.subr.bf16.mxu0 0
        %1949 = vmatpush1.bf16.msra.mxu0 0
        %1950 = vmatprep.subr.bf16.mxu0 0
        %1951 = vmatpush1.bf16.msra.mxu0 0
        %1952 = vmatprep.subr.bf16.mxu0 0
        %1953 = vmatpush1.bf16.msra.mxu0 0
        %1954 = vmatprep.subr.bf16.mxu0 0
        %1955 = vmatpush1.bf16.msra.mxu0 0
        %1956 = vmatprep.subr.bf16.mxu0 %v1940
        %1957 = vmatpush1.bf16.msra.mxu0 %v1937
        %1958 = vmatprep.subr.bf16.mxu0 0
        %1959 = vmatpush2.bf16.msra.mxu0 0
        %1960 = vmatprep.subr.bf16.mxu0 0
        %1961 = vmatpush2.bf16.msra.mxu0 0
        %1962 = vmatprep.subr.bf16.mxu0 0
        %1963 = vmatpush2.bf16.msra.mxu0 0
        %1964 = vmatprep.subr.bf16.mxu0 0
        %1965 = vmatpush2.bf16.msra.mxu0 0
        %1966 = vmatprep.subr.bf16.mxu0 0
        %1967 = vmatpush2.bf16.msra.mxu0 0
        %1968 = vmatprep.subr.bf16.mxu0 0
        %1969 = vmatpush2.bf16.msra.mxu0 0
        %1970 = vmatprep.subr.bf16.mxu0 0
        %1971 = vmatpush2.bf16.msra.mxu0 0
        %1972 = vmatprep.subr.bf16.mxu0 0
        %1973 = vmatpush2.bf16.msra.mxu0 0
        %1974 = vmatprep.mubr.bf16.mxu0 0
        %1975 = vmatmul.mubr.bf16.gmra.mxu0 %v1934
        %v1976 = vpop.f32.mrf.mxu0
        %v1977 = vadd.f32 0.0, %v1976
        %v1978 = vpop.f32.mrf.mxu0
        %v1979 = vadd.f32 0.0, %v1978
        %v1980 = vpop.f32.mrf.mxu0
        %v1981 = vadd.f32 0.0, %v1980
        %v1982 = vpop.f32.mrf.mxu0
        %v1983 = vadd.f32 0.0, %v1982
        %1984 = vdwg.mxu0
        %v1985 = vadd.f32 %v1919, %v1977
        %v1986 = vadd.f32 %v1920, %v1979
        %v1987 = vadd.f32 %v1921, %v1981
        %v1988 = vadd.f32 %v1922, %v1983
        %s1989 = scalar_lea.vmem [#allocation7], 56
        %v1990 = vld [vmem:[%s1989] sm:$0xf]
        %v1991 = vld [vmem:[%s1989 + $0x4] sm:$0xf]
        %v1992 = vpack.c.bf16 %v1855, %v1853
        %v1993 = vpack.c.bf16 %v1856, %v1854
        %v1996 = vunpack.c.l.b16 %v1990
        %v1997 = vunpack.c.l.b16 %v1991
        %v1998 = vpack.c.b16 %v1997, %v1996
        %v2000 = vsel %vm1648, %v1998, 0
        %v2003 = vsel %vm1652, %v1992, 0
        %v2006 = vsel %vm1652, %v1993, 0
        %2008 = vmatprep.subr.bf16.mxu0 0
        %2009 = vmatpush1.bf16.msra.mxu0 0
        %2010 = vmatprep.subr.bf16.mxu0 0
        %2011 = vmatpush1.bf16.msra.mxu0 0
        %2012 = vmatprep.subr.bf16.mxu0 0
        %2013 = vmatpush1.bf16.msra.mxu0 0
        %2014 = vmatprep.subr.bf16.mxu0 0
        %2015 = vmatpush1.bf16.msra.mxu0 0
        %2016 = vmatprep.subr.bf16.mxu0 0
        %2017 = vmatpush1.bf16.msra.mxu0 0
        %2018 = vmatprep.subr.bf16.mxu0 0
        %2019 = vmatpush1.bf16.msra.mxu0 0
        %2020 = vmatprep.subr.bf16.mxu0 0
        %2021 = vmatpush1.bf16.msra.mxu0 0
        %2022 = vmatprep.subr.bf16.mxu0 %v2006
        %2023 = vmatpush1.bf16.msra.mxu0 %v2003
        %2024 = vmatprep.subr.bf16.mxu0 0
        %2025 = vmatpush2.bf16.msra.mxu0 0
        %2026 = vmatprep.subr.bf16.mxu0 0
        %2027 = vmatpush2.bf16.msra.mxu0 0
        %2028 = vmatprep.subr.bf16.mxu0 0
        %2029 = vmatpush2.bf16.msra.mxu0 0
        %2030 = vmatprep.subr.bf16.mxu0 0
        %2031 = vmatpush2.bf16.msra.mxu0 0
        %2032 = vmatprep.subr.bf16.mxu0 0
        %2033 = vmatpush2.bf16.msra.mxu0 0
        %2034 = vmatprep.subr.bf16.mxu0 0
        %2035 = vmatpush2.bf16.msra.mxu0 0
        %2036 = vmatprep.subr.bf16.mxu0 0
        %2037 = vmatpush2.bf16.msra.mxu0 0
        %2038 = vmatprep.subr.bf16.mxu0 0
        %2039 = vmatpush2.bf16.msra.mxu0 0
        %2040 = vmatprep.mubr.bf16.mxu0 0
        %2041 = vmatmul.mubr.bf16.gmra.mxu0 %v2000
        %v2042 = vpop.f32.mrf.mxu0
        %v2043 = vadd.f32 0.0, %v2042
        %v2044 = vpop.f32.mrf.mxu0
        %v2045 = vadd.f32 0.0, %v2044
        %v2046 = vpop.f32.mrf.mxu0
        %v2047 = vadd.f32 0.0, %v2046
        %v2048 = vpop.f32.mrf.mxu0
        %v2049 = vadd.f32 0.0, %v2048
        %2050 = vdwg.mxu0
        %v2051 = vadd.f32 %v1985, %v2043
        %v2052 = vadd.f32 %v1986, %v2045
        %v2053 = vadd.f32 %v1987, %v2047
        %v2054 = vadd.f32 %v1988, %v2049
        %2055 = vrot.lane.b32.xlu0 %v1598, 16
        %v2056 = vpop.permute.xlu0 %2055
        %2057 = vrot.lane.b32.xlu0 %v1600, 16
        %v2058 = vpop.permute.xlu0 %2057
        %2059 = vrot.lane.b32.xlu0 %v1599, 16
        %v2060 = vpop.permute.xlu0 %2059
        %2061 = vrot.lane.b32.xlu0 %v1601, 16
        %v2062 = vpop.permute.xlu0 %2061
        %v2063 = vsel %vm718, %v2056, %v2060
        %v2064 = vsel %vm718, %v2058, %v2062
        %v2065 = vsel %vm718, %v2060, %v2056
        %v2066 = vsel %vm718, %v2062, %v2058
        %2067 = vrot.lane.b32.xlu0 %v1598, 112
        %v2068 = vpop.permute.xlu0 %2067
        %2069 = vrot.lane.b32.xlu0 %v1600, 112
        %v2070 = vpop.permute.xlu0 %2069
        %2071 = vrot.lane.b32.xlu0 %v1599, 112
        %v2072 = vpop.permute.xlu0 %2071
        %2073 = vrot.lane.b32.xlu0 %v1601, 112
        %v2074 = vpop.permute.xlu0 %2073
        %v2075 = vsel %vm725, %v2068, %v2072
        %v2076 = vsel %vm725, %v2070, %v2074
        %v2077 = vsel %vm725, %v2072, %v2068
        %v2078 = vsel %vm725, %v2074, %v2070
        %v2079 = vsel %vm737, %v2075, %v2065
        %v2080 = vsel %vm738, %v2077, %v2063
        %v2081 = vsel %vm737, %v2076, %v2066
        %v2082 = vsel %vm738, %v2078, %v2064
        %v2083 = vsel %vm750, %v2065, %v2075
        %v2084 = vsel %vm751, %v2063, %v2077
        %v2085 = vsel %vm750, %v2066, %v2076
        %v2086 = vsel %vm751, %v2064, %v2078
        %s2087 = scalar_lea.vmem [#allocation7], 16
        %v2088 = vld [vmem:[%s2087] sm:$0xf]
        %v2089 = vld [vmem:[%s2087 + $0x4] sm:$0xf]
        %v2090 = vpack.c.bf16 %v2081, %v2079
        %v2091 = vpack.c.bf16 %v2082, %v2080
        %v2094 = vunpack.c.l.b16 %v2088
        %v2095 = vunpack.c.l.b16 %v2089
        %v2096 = vpack.c.b16 %v2095, %v2094
        %v2098 = vsel %vm1648, %v2096, 0
        %v2101 = vsel %vm1652, %v2090, 0
        %v2104 = vsel %vm1652, %v2091, 0
        %2106 = vmatprep.subr.bf16.mxu0 0
        %2107 = vmatpush1.bf16.msra.mxu0 0
        %2108 = vmatprep.subr.bf16.mxu0 0
        %2109 = vmatpush1.bf16.msra.mxu0 0
        %2110 = vmatprep.subr.bf16.mxu0 0
        %2111 = vmatpush1.bf16.msra.mxu0 0
        %2112 = vmatprep.subr.bf16.mxu0 0
        %2113 = vmatpush1.bf16.msra.mxu0 0
        %2114 = vmatprep.subr.bf16.mxu0 0
        %2115 = vmatpush1.bf16.msra.mxu0 0
        %2116 = vmatprep.subr.bf16.mxu0 0
        %2117 = vmatpush1.bf16.msra.mxu0 0
        %2118 = vmatprep.subr.bf16.mxu0 0
        %2119 = vmatpush1.bf16.msra.mxu0 0
        %2120 = vmatprep.subr.bf16.mxu0 %v2104
        %2121 = vmatpush1.bf16.msra.mxu0 %v2101
        %2122 = vmatprep.subr.bf16.mxu0 0
        %2123 = vmatpush2.bf16.msra.mxu0 0
        %2124 = vmatprep.subr.bf16.mxu0 0
        %2125 = vmatpush2.bf16.msra.mxu0 0
        %2126 = vmatprep.subr.bf16.mxu0 0
        %2127 = vmatpush2.bf16.msra.mxu0 0
        %2128 = vmatprep.subr.bf16.mxu0 0
        %2129 = vmatpush2.bf16.msra.mxu0 0
        %2130 = vmatprep.subr.bf16.mxu0 0
        %2131 = vmatpush2.bf16.msra.mxu0 0
        %2132 = vmatprep.subr.bf16.mxu0 0
        %2133 = vmatpush2.bf16.msra.mxu0 0
        %2134 = vmatprep.subr.bf16.mxu0 0
        %2135 = vmatpush2.bf16.msra.mxu0 0
        %2136 = vmatprep.subr.bf16.mxu0 0
        %2137 = vmatpush2.bf16.msra.mxu0 0
        %2138 = vmatprep.mubr.bf16.mxu0 0
        %2139 = vmatmul.mubr.bf16.gmra.mxu0 %v2098
        %v2140 = vpop.f32.mrf.mxu0
        %v2141 = vadd.f32 0.0, %v2140
        %v2142 = vpop.f32.mrf.mxu0
        %v2143 = vadd.f32 0.0, %v2142
        %v2144 = vpop.f32.mrf.mxu0
        %v2145 = vadd.f32 0.0, %v2144
        %v2146 = vpop.f32.mrf.mxu0
        %v2147 = vadd.f32 0.0, %v2146
        %2148 = vdwg.mxu0
        %v2149 = vadd.f32 %v2051, %v2141
        %v2150 = vadd.f32 %v2052, %v2143
        %v2151 = vadd.f32 %v2053, %v2145
        %v2152 = vadd.f32 %v2054, %v2147
        %s2153 = scalar_lea.vmem [#allocation7], 40
        %v2154 = vld [vmem:[%s2153] sm:$0xf]
        %v2155 = vld [vmem:[%s2153 + $0x4] sm:$0xf]
        %v2156 = vpack.c.bf16 %v1600, %v1598
        %v2157 = vpack.c.bf16 %v1601, %v1599
        %v2160 = vunpack.c.l.b16 %v2154
        %v2161 = vunpack.c.l.b16 %v2155
        %v2162 = vpack.c.b16 %v2161, %v2160
        %v2164 = vsel %vm1648, %v2162, 0
        %v2167 = vsel %vm1652, %v2156, 0
        %v2170 = vsel %vm1652, %v2157, 0
        %2172 = vmatprep.subr.bf16.mxu0 0
        %2173 = vmatpush1.bf16.msra.mxu0 0
        %2174 = vmatprep.subr.bf16.mxu0 0
        %2175 = vmatpush1.bf16.msra.mxu0 0
        %2176 = vmatprep.subr.bf16.mxu0 0
        %2177 = vmatpush1.bf16.msra.mxu0 0
        %2178 = vmatprep.subr.bf16.mxu0 0
        %2179 = vmatpush1.bf16.msra.mxu0 0
        %2180 = vmatprep.subr.bf16.mxu0 0
        %2181 = vmatpush1.bf16.msra.mxu0 0
        %2182 = vmatprep.subr.bf16.mxu0 0
        %2183 = vmatpush1.bf16.msra.mxu0 0
        %2184 = vmatprep.subr.bf16.mxu0 0
        %2185 = vmatpush1.bf16.msra.mxu0 0
        %2186 = vmatprep.subr.bf16.mxu0 %v2170
        %2187 = vmatpush1.bf16.msra.mxu0 %v2167
        %2188 = vmatprep.subr.bf16.mxu0 0
        %2189 = vmatpush2.bf16.msra.mxu0 0
        %2190 = vmatprep.subr.bf16.mxu0 0
        %2191 = vmatpush2.bf16.msra.mxu0 0
        %2192 = vmatprep.subr.bf16.mxu0 0
        %2193 = vmatpush2.bf16.msra.mxu0 0
        %2194 = vmatprep.subr.bf16.mxu0 0
        %2195 = vmatpush2.bf16.msra.mxu0 0
        %2196 = vmatprep.subr.bf16.mxu0 0
        %2197 = vmatpush2.bf16.msra.mxu0 0
        %2198 = vmatprep.subr.bf16.mxu0 0
        %2199 = vmatpush2.bf16.msra.mxu0 0
        %2200 = vmatprep.subr.bf16.mxu0 0
        %2201 = vmatpush2.bf16.msra.mxu0 0
        %2202 = vmatprep.subr.bf16.mxu0 0
        %2203 = vmatpush2.bf16.msra.mxu0 0
        %2204 = vmatprep.mubr.bf16.mxu0 0
        %2205 = vmatmul.mubr.bf16.gmra.mxu0 %v2164
        %v2206 = vpop.f32.mrf.mxu0
        %v2207 = vadd.f32 0.0, %v2206
        %v2208 = vpop.f32.mrf.mxu0
        %v2209 = vadd.f32 0.0, %v2208
        %v2210 = vpop.f32.mrf.mxu0
        %v2211 = vadd.f32 0.0, %v2210
        %v2212 = vpop.f32.mrf.mxu0
        %v2213 = vadd.f32 0.0, %v2212
        %2214 = vdwg.mxu0
        %v2215 = vadd.f32 %v2149, %v2207
        %v2216 = vadd.f32 %v2150, %v2209
        %v2217 = vadd.f32 %v2151, %v2211
        %v2218 = vadd.f32 %v2152, %v2213
        %s2219 = scalar_lea.vmem [#allocation7], 64
        %v2220 = vld [vmem:[%s2219] sm:$0xf]
        %v2221 = vld [vmem:[%s2219 + $0x4] sm:$0xf]
        %v2222 = vpack.c.bf16 %v2085, %v2083
        %v2223 = vpack.c.bf16 %v2086, %v2084
        %v2226 = vunpack.c.l.b16 %v2220
        %v2227 = vunpack.c.l.b16 %v2221
        %v2228 = vpack.c.b16 %v2227, %v2226
        %v2230 = vsel %vm1648, %v2228, 0
        %v2233 = vsel %vm1652, %v2222, 0
        %v2236 = vsel %vm1652, %v2223, 0
        %2238 = vmatprep.subr.bf16.mxu0 0
        %2239 = vmatpush1.bf16.msra.mxu0 0
        %2240 = vmatprep.subr.bf16.mxu0 0
        %2241 = vmatpush1.bf16.msra.mxu0 0
        %2242 = vmatprep.subr.bf16.mxu0 0
        %2243 = vmatpush1.bf16.msra.mxu0 0
        %2244 = vmatprep.subr.bf16.mxu0 0
        %2245 = vmatpush1.bf16.msra.mxu0 0
        %2246 = vmatprep.subr.bf16.mxu0 0
        %2247 = vmatpush1.bf16.msra.mxu0 0
        %2248 = vmatprep.subr.bf16.mxu0 0
        %2249 = vmatpush1.bf16.msra.mxu0 0
        %2250 = vmatprep.subr.bf16.mxu0 0
        %2251 = vmatpush1.bf16.msra.mxu0 0
        %2252 = vmatprep.subr.bf16.mxu0 %v2236
        %2253 = vmatpush1.bf16.msra.mxu0 %v2233
        %2254 = vmatprep.subr.bf16.mxu0 0
        %2255 = vmatpush2.bf16.msra.mxu0 0
        %2256 = vmatprep.subr.bf16.mxu0 0
        %2257 = vmatpush2.bf16.msra.mxu0 0
        %2258 = vmatprep.subr.bf16.mxu0 0
        %2259 = vmatpush2.bf16.msra.mxu0 0
        %2260 = vmatprep.subr.bf16.mxu0 0
        %2261 = vmatpush2.bf16.msra.mxu0 0
        %2262 = vmatprep.subr.bf16.mxu0 0
        %2263 = vmatpush2.bf16.msra.mxu0 0
        %2264 = vmatprep.subr.bf16.mxu0 0
        %2265 = vmatpush2.bf16.msra.mxu0 0
        %2266 = vmatprep.subr.bf16.mxu0 0
        %2267 = vmatpush2.bf16.msra.mxu0 0
        %2268 = vmatprep.subr.bf16.mxu0 0
        %2269 = vmatpush2.bf16.msra.mxu0 0
        %2270 = vmatprep.mubr.bf16.mxu0 0
        %2271 = vmatmul.mubr.bf16.gmra.mxu0 %v2230
        %v2272 = vpop.f32.mrf.mxu0
        %v2273 = vadd.f32 0.0, %v2272
        %v2274 = vpop.f32.mrf.mxu0
        %v2275 = vadd.f32 0.0, %v2274
        %v2276 = vpop.f32.mrf.mxu0
        %v2277 = vadd.f32 0.0, %v2276
        %v2278 = vpop.f32.mrf.mxu0
        %v2279 = vadd.f32 0.0, %v2278
        %2280 = vdwg.mxu0
        %v2281 = vadd.f32 %v2215, %v2273
        %v2282 = vadd.f32 %v2216, %v2275
        %v2283 = vadd.f32 %v2217, %v2277
        %v2284 = vadd.f32 %v2218, %v2279
        %v2285 = vadd.f32 %v1372, %v2281
        %v2286 = vadd.f32 %v1373, %v2282
        %v2287 = vadd.f32 %v1374, %v2283
        %v2288 = vadd.f32 %v1375, %v2284
        %s2289 = sld [smem:[#allocation13 + $0x1]]
        %v2290 = vld [vmem:[%s8] sm:$0xf]
        %v2291 = vld [vmem:[%s8 + $0x4] sm:$0xf]
        %v2292 = vld [vmem:[%s8 + $0x8] sm:$0xf]
        %v2293 = vld [vmem:[%s8 + $0xc] sm:$0xf]
        %v2294 = vld [vmem:[%s8 + $0x10] sm:$0xf]
        %v2295 = vld [vmem:[%s8 + $0x14] sm:$0xf]
        %v2296 = vpack.c.bf16 %v2287, %v2285
        %v2297 = vpack.c.bf16 %v2288, %v2286
        %v2304 = vunpack.c.l.b16 %v2290
        %v2305 = vunpack.c.l.b16 %v2291
        %v2306 = vunpack.c.l.b16 %v2292
        %v2307 = vunpack.c.l.b16 %v2293
        %v2308 = vunpack.c.l.b16 %v2294
        %v2309 = vunpack.c.l.b16 %v2295
        %v2310 = vpack.c.b16 %v2305, %v2304
        %v2311 = vpack.c.b16 %v2307, %v2306
        %v2312 = vpack.c.b16 %v2309, %v2308
        %v2314 = vsel %vm1400, %v2310, 0
        %v2317 = vsel %vm1400, %v2311, 0
        %v2320 = vsel %vm1400, %v2312, 0
        %2322 = vmatprep.subr.bf16.mxu0 0
        %2323 = vmatpush1.bf16.msra.mxu0 0
        %2324 = vmatprep.subr.bf16.mxu0 0
        %2325 = vmatpush1.bf16.msra.mxu0 0
        %2326 = vmatprep.subr.bf16.mxu0 0
        %2327 = vmatpush1.bf16.msra.mxu0 0
        %2328 = vmatprep.subr.bf16.mxu0 0
        %2329 = vmatpush1.bf16.msra.mxu0 0
        %2330 = vmatprep.subr.bf16.mxu0 0
        %2331 = vmatpush1.bf16.msra.mxu0 0
        %2332 = vmatprep.subr.bf16.mxu0 0
        %2333 = vmatpush1.bf16.msra.mxu0 0
        %2334 = vmatprep.subr.bf16.mxu0 0
        %2335 = vmatpush1.bf16.msra.mxu0 0
        %2336 = vmatprep.subr.bf16.mxu0 %v2297
        %2337 = vmatpush1.bf16.msra.mxu0 %v2296
        %2338 = vmatprep.subr.bf16.mxu0 0
        %2339 = vmatpush2.bf16.msra.mxu0 0
        %2340 = vmatprep.subr.bf16.mxu0 0
        %2341 = vmatpush2.bf16.msra.mxu0 0
        %2342 = vmatprep.subr.bf16.mxu0 0
        %2343 = vmatpush2.bf16.msra.mxu0 0
        %2344 = vmatprep.subr.bf16.mxu0 0
        %2345 = vmatpush2.bf16.msra.mxu0 0
        %2346 = vmatprep.subr.bf16.mxu0 0
        %2347 = vmatpush2.bf16.msra.mxu0 0
        %2348 = vmatprep.subr.bf16.mxu0 0
        %2349 = vmatpush2.bf16.msra.mxu0 0
        %2350 = vmatprep.subr.bf16.mxu0 0
        %2351 = vmatpush2.bf16.msra.mxu0 0
        %2352 = vmatprep.subr.bf16.mxu0 0
        %2353 = vmatpush2.bf16.msra.mxu0 0
        %2354 = vmatprep.mubr.bf16.mxu0 0
        %2355 = vmatmul.mubr.bf16.gmra.mxu0 %v2314
        %v2356 = vpop.f32.mrf.mxu0
        %v2357 = vadd.f32 0.0, %v2356
        %v2358 = vpop.f32.mrf.mxu0
        %v2359 = vadd.f32 0.0, %v2358
        %v2360 = vpop.f32.mrf.mxu0
        %v2361 = vadd.f32 0.0, %v2360
        %v2362 = vpop.f32.mrf.mxu0
        %v2363 = vadd.f32 0.0, %v2362
        %2364 = vmatprep.mubr.bf16.mxu0 0
        %2365 = vmatmul.mubr.bf16.gmra.mxu0 %v2317
        %v2366 = vpop.f32.mrf.mxu0
        %v2367 = vadd.f32 0.0, %v2366
        %v2368 = vpop.f32.mrf.mxu0
        %v2369 = vadd.f32 0.0, %v2368
        %v2370 = vpop.f32.mrf.mxu0
        %v2371 = vadd.f32 0.0, %v2370
        %v2372 = vpop.f32.mrf.mxu0
        %v2373 = vadd.f32 0.0, %v2372
        %2374 = vmatprep.mubr.bf16.mxu0 0
        %2375 = vmatmul.mubr.bf16.gmra.mxu0 %v2320
        %v2376 = vpop.f32.mrf.mxu0
        %v2377 = vadd.f32 0.0, %v2376
        %v2378 = vpop.f32.mrf.mxu0
        %v2379 = vadd.f32 0.0, %v2378
        %v2380 = vpop.f32.mrf.mxu0
        %v2381 = vadd.f32 0.0, %v2380
        %v2382 = vpop.f32.mrf.mxu0
        %v2383 = vadd.f32 0.0, %v2382
        %2384 = vdwg.mxu0
        %vm2385 = vcmp.ge.f32.partialorder %v2357, 0.0
        %vm2386 = vcmp.ge.f32.partialorder %v2359, 0.0
        %vm2387 = vcmp.ge.f32.partialorder %v2361, 0.0
        %vm2388 = vcmp.ge.f32.partialorder %v2363, 0.0
        %vm2389 = vcmp.ge.f32.partialorder %v2367, 0.0
        %vm2390 = vcmp.ge.f32.partialorder %v2369, 0.0
        %vm2391 = vcmp.ge.f32.partialorder %v2371, 0.0
        %vm2392 = vcmp.ge.f32.partialorder %v2373, 0.0
        %vm2393 = vcmp.ge.f32.partialorder %v2377, 0.0
        %vm2394 = vcmp.ge.f32.partialorder %v2379, 0.0
        %vm2395 = vcmp.ge.f32.partialorder %v2381, 0.0
        %vm2396 = vcmp.ge.f32.partialorder %v2383, 0.0
        %v2397 = vstv %s2289
        %v2398 = vmul.f32 %v2397, %v2357
        %v2399 = vmul.f32 %v2397, %v2359
        %v2400 = vmul.f32 %v2397, %v2361
        %v2401 = vmul.f32 %v2397, %v2363
        %v2402 = vmul.f32 %v2397, %v2367
        %v2403 = vmul.f32 %v2397, %v2369
        %v2404 = vmul.f32 %v2397, %v2371
        %v2405 = vmul.f32 %v2397, %v2373
        %v2406 = vmul.f32 %v2397, %v2377
        %v2407 = vmul.f32 %v2397, %v2379
        %v2408 = vmul.f32 %v2397, %v2381
        %v2409 = vmul.f32 %v2397, %v2383
        %v2410 = vsel %vm2385, %v2357, %v2398
        %v2411 = vsel %vm2386, %v2359, %v2399
        %v2412 = vsel %vm2387, %v2361, %v2400
        %v2413 = vsel %vm2388, %v2363, %v2401
        %v2414 = vsel %vm2389, %v2367, %v2402
        %v2415 = vsel %vm2390, %v2369, %v2403
        %v2416 = vsel %vm2391, %v2371, %v2404
        %v2417 = vsel %vm2392, %v2373, %v2405
        %v2418 = vsel %vm2393, %v2377, %v2406
        %v2419 = vsel %vm2394, %v2379, %v2407
        %v2420 = vsel %vm2395, %v2381, %v2408
        %v2421 = vsel %vm2396, %v2383, %v2409
        %v2422 = vld [vmem:[#allocation8] sm:$0xf]
        %v2423 = vld [vmem:[#allocation8 + $0x4] sm:$0x3]
        %v2424 = vpack.c.bf16 %v2412, %v2410
        %v2425 = vpack.c.bf16 %v2413, %v2411
        %v2426 = vpack.c.bf16 %v2416, %v2414
        %v2427 = vpack.c.bf16 %v2417, %v2415
        %v2428 = vpack.c.bf16 %v2420, %v2418
        %v2429 = vpack.c.bf16 %v2421, %v2419
        %v2432 = vunpack.c.l.b16 %v2422
        %v2433 = vunpack.c.l.b16 %v2423
        %v2434 = vpack.c.b16 %v2433, %v2432
        %v2436 = vsel %vm1523, %v2434, 0
        %2438 = vmatprep.subr.bf16.mxu0 0
        %2439 = vmatpush1.bf16.msra.mxu0 0
        %2440 = vmatprep.subr.bf16.mxu0 0
        %2441 = vmatpush1.bf16.msra.mxu0 0
        %2442 = vmatprep.subr.bf16.mxu0 0
        %2443 = vmatpush1.bf16.msra.mxu0 0
        %2444 = vmatprep.subr.bf16.mxu0 0
        %2445 = vmatpush1.bf16.msra.mxu0 0
        %2446 = vmatprep.subr.bf16.mxu0 0
        %2447 = vmatpush1.bf16.msra.mxu0 0
        %2448 = vmatprep.subr.bf16.mxu0 %v2429
        %2449 = vmatpush1.bf16.msra.mxu0 %v2428
        %2450 = vmatprep.subr.bf16.mxu0 %v2427
        %2451 = vmatpush1.bf16.msra.mxu0 %v2426
        %2452 = vmatprep.subr.bf16.mxu0 %v2425
        %2453 = vmatpush1.bf16.msra.mxu0 %v2424
        %2454 = vmatprep.subr.bf16.mxu0 0
        %2455 = vmatpush2.bf16.msra.mxu0 0
        %2456 = vmatprep.subr.bf16.mxu0 0
        %2457 = vmatpush2.bf16.msra.mxu0 0
        %2458 = vmatprep.subr.bf16.mxu0 0
        %2459 = vmatpush2.bf16.msra.mxu0 0
        %2460 = vmatprep.subr.bf16.mxu0 0
        %2461 = vmatpush2.bf16.msra.mxu0 0
        %2462 = vmatprep.subr.bf16.mxu0 0
        %2463 = vmatpush2.bf16.msra.mxu0 0
        %2464 = vmatprep.subr.bf16.mxu0 0
        %2465 = vmatpush2.bf16.msra.mxu0 0
        %2466 = vmatprep.subr.bf16.mxu0 0
        %2467 = vmatpush2.bf16.msra.mxu0 0
        %2468 = vmatprep.subr.bf16.mxu0 0
        %2469 = vmatpush2.bf16.msra.mxu0 0
        %2470 = vmatprep.mubr.bf16.mxu0 0
        %2471 = vmatmul.mubr.bf16.gmra.mxu0 %v2436
        %v2472 = vpop.f32.mrf.mxu0
        %v2473 = vadd.f32 0.0, %v2472
        %v2474 = vpop.f32.mrf.mxu0
        %v2475 = vadd.f32 0.0, %v2474
        %v2476 = vpop.f32.mrf.mxu0
        %v2477 = vadd.f32 0.0, %v2476
        %v2478 = vpop.f32.mrf.mxu0
        %v2479 = vadd.f32 0.0, %v2478
        %2480 = vdwg.mxu0
        %2481 = vrot.lane.b32.xlu0 %v2473, 1
        %v2482 = vpop.permute.xlu0 %2481
        %2483 = vrot.lane.b32.xlu0 %v2477, 1
        %v2484 = vpop.permute.xlu0 %2483
        %2485 = vrot.lane.b32.xlu0 %v2475, 1
        %v2486 = vpop.permute.xlu0 %2485
        %2487 = vrot.lane.b32.xlu0 %v2479, 1
        %v2488 = vpop.permute.xlu0 %2487
        %v2489 = vsel %vm678, %v2482, %v2486
        %v2490 = vsel %vm678, %v2484, %v2488
        %v2491 = vsel %vm678, %v2486, %v2482
        %v2492 = vsel %vm678, %v2488, %v2484
        %2493 = vrot.lane.b32.xlu0 %v2473, 127
        %v2494 = vpop.permute.xlu0 %2493
        %2495 = vrot.lane.b32.xlu0 %v2477, 127
        %v2496 = vpop.permute.xlu0 %2495
        %2497 = vrot.lane.b32.xlu0 %v2475, 127
        %v2498 = vpop.permute.xlu0 %2497
        %2499 = vrot.lane.b32.xlu0 %v2479, 127
        %v2500 = vpop.permute.xlu0 %2499
        %v2501 = vsel %vm685, %v2494, %v2498
        %v2502 = vsel %vm685, %v2496, %v2500
        %v2503 = vsel %vm685, %v2498, %v2494
        %v2504 = vsel %vm685, %v2500, %v2496
        %v2505 = vsel %vm697, %v2501, %v2491
        %v2506 = vsel %vm698, %v2503, %v2489
        %v2507 = vsel %vm697, %v2502, %v2492
        %v2508 = vsel %vm698, %v2504, %v2490
        %v2509 = vsel %vm710, %v2491, %v2501
        %v2510 = vsel %vm711, %v2489, %v2503
        %v2511 = vsel %vm710, %v2492, %v2502
        %v2512 = vsel %vm711, %v2490, %v2504
        %2513 = vrot.lane.b32.xlu0 %v2505, 16
        %v2514 = vpop.permute.xlu0 %2513
        %2515 = vrot.lane.b32.xlu0 %v2507, 16
        %v2516 = vpop.permute.xlu0 %2515
        %2517 = vrot.lane.b32.xlu0 %v2506, 16
        %v2518 = vpop.permute.xlu0 %2517
        %2519 = vrot.lane.b32.xlu0 %v2508, 16
        %v2520 = vpop.permute.xlu0 %2519
        %v2521 = vsel %vm718, %v2514, %v2518
        %v2522 = vsel %vm718, %v2516, %v2520
        %v2523 = vsel %vm718, %v2518, %v2514
        %v2524 = vsel %vm718, %v2520, %v2516
        %2525 = vrot.lane.b32.xlu0 %v2505, 112
        %v2526 = vpop.permute.xlu0 %2525
        %2527 = vrot.lane.b32.xlu0 %v2507, 112
        %v2528 = vpop.permute.xlu0 %2527
        %2529 = vrot.lane.b32.xlu0 %v2506, 112
        %v2530 = vpop.permute.xlu0 %2529
        %2531 = vrot.lane.b32.xlu0 %v2508, 112
        %v2532 = vpop.permute.xlu0 %2531
        %v2533 = vsel %vm725, %v2526, %v2530
        %v2534 = vsel %vm725, %v2528, %v2532
        %v2535 = vsel %vm725, %v2530, %v2526
        %v2536 = vsel %vm725, %v2532, %v2528
        %v2537 = vsel %vm737, %v2533, %v2523
        %v2538 = vsel %vm738, %v2535, %v2521
        %v2539 = vsel %vm737, %v2534, %v2524
        %v2540 = vsel %vm738, %v2536, %v2522
        %v2541 = vsel %vm750, %v2523, %v2533
        %v2542 = vsel %vm751, %v2521, %v2535
        %v2543 = vsel %vm750, %v2524, %v2534
        %v2544 = vsel %vm751, %v2522, %v2536
        %v2545 = vld [vmem:[#allocation10] sm:$0xf]
        %v2546 = vld [vmem:[#allocation10 + $0x4] sm:$0xf]
        %v2547 = vpack.c.bf16 %v2539, %v2537
        %v2548 = vpack.c.bf16 %v2540, %v2538
        %s2549 = scalar_lea.vmem [#allocation10], 24
        %v2550 = vld [vmem:[%s2549] sm:$0xf]
        %v2551 = vld [vmem:[%s2549 + $0x4] sm:$0xf]
        %v2552 = vpack.c.bf16 %v2507, %v2505
        %v2553 = vpack.c.bf16 %v2508, %v2506
        %v2556 = vunpack.c.l.b16 %v2550
        %v2557 = vunpack.c.l.b16 %v2551
        %v2558 = vpack.c.b16 %v2557, %v2556
        %v2560 = vsel %vm1648, %v2558, 0
        %v2563 = vsel %vm1652, %v2552, 0
        %v2566 = vsel %vm1652, %v2553, 0
        %2568 = vmatprep.subr.bf16.mxu0 0
        %2569 = vmatpush1.bf16.msra.mxu0 0
        %2570 = vmatprep.subr.bf16.mxu0 0
        %2571 = vmatpush1.bf16.msra.mxu0 0
        %2572 = vmatprep.subr.bf16.mxu0 0
        %2573 = vmatpush1.bf16.msra.mxu0 0
        %2574 = vmatprep.subr.bf16.mxu0 0
        %2575 = vmatpush1.bf16.msra.mxu0 0
        %2576 = vmatprep.subr.bf16.mxu0 0
        %2577 = vmatpush1.bf16.msra.mxu0 0
        %2578 = vmatprep.subr.bf16.mxu0 0
        %2579 = vmatpush1.bf16.msra.mxu0 0
        %2580 = vmatprep.subr.bf16.mxu0 0
        %2581 = vmatpush1.bf16.msra.mxu0 0
        %2582 = vmatprep.subr.bf16.mxu0 %v2566
        %2583 = vmatpush1.bf16.msra.mxu0 %v2563
        %2584 = vmatprep.subr.bf16.mxu0 0
        %2585 = vmatpush2.bf16.msra.mxu0 0
        %2586 = vmatprep.subr.bf16.mxu0 0
        %2587 = vmatpush2.bf16.msra.mxu0 0
        %2588 = vmatprep.subr.bf16.mxu0 0
        %2589 = vmatpush2.bf16.msra.mxu0 0
        %2590 = vmatprep.subr.bf16.mxu0 0
        %2591 = vmatpush2.bf16.msra.mxu0 0
        %2592 = vmatprep.subr.bf16.mxu0 0
        %2593 = vmatpush2.bf16.msra.mxu0 0
        %2594 = vmatprep.subr.bf16.mxu0 0
        %2595 = vmatpush2.bf16.msra.mxu0 0
        %2596 = vmatprep.subr.bf16.mxu0 0
        %2597 = vmatpush2.bf16.msra.mxu0 0
        %2598 = vmatprep.subr.bf16.mxu0 0
        %2599 = vmatpush2.bf16.msra.mxu0 0
        %2600 = vmatprep.mubr.bf16.mxu0 0
        %2601 = vmatmul.mubr.bf16.gmra.mxu0 %v2560
        %v2602 = vpop.f32.mrf.mxu0
        %v2603 = vadd.f32 0.0, %v2602
        %v2604 = vpop.f32.mrf.mxu0
        %v2605 = vadd.f32 0.0, %v2604
        %v2606 = vpop.f32.mrf.mxu0
        %v2607 = vadd.f32 0.0, %v2606
        %v2608 = vpop.f32.mrf.mxu0
        %v2609 = vadd.f32 0.0, %v2608
        %2610 = vdwg.mxu0
        %v2613 = vunpack.c.l.b16 %v2545
        %v2614 = vunpack.c.l.b16 %v2546
        %v2615 = vpack.c.b16 %v2614, %v2613
        %v2617 = vsel %vm1648, %v2615, 0
        %v2620 = vsel %vm1652, %v2547, 0
        %v2623 = vsel %vm1652, %v2548, 0
        %2625 = vmatprep.subr.bf16.mxu0 0
        %2626 = vmatpush1.bf16.msra.mxu0 0
        %2627 = vmatprep.subr.bf16.mxu0 0
        %2628 = vmatpush1.bf16.msra.mxu0 0
        %2629 = vmatprep.subr.bf16.mxu0 0
        %2630 = vmatpush1.bf16.msra.mxu0 0
        %2631 = vmatprep.subr.bf16.mxu0 0
        %2632 = vmatpush1.bf16.msra.mxu0 0
        %2633 = vmatprep.subr.bf16.mxu0 0
        %2634 = vmatpush1.bf16.msra.mxu0 0
        %2635 = vmatprep.subr.bf16.mxu0 0
        %2636 = vmatpush1.bf16.msra.mxu0 0
        %2637 = vmatprep.subr.bf16.mxu0 0
        %2638 = vmatpush1.bf16.msra.mxu0 0
        %2639 = vmatprep.subr.bf16.mxu0 %v2623
        %2640 = vmatpush1.bf16.msra.mxu0 %v2620
        %2641 = vmatprep.subr.bf16.mxu0 0
        %2642 = vmatpush2.bf16.msra.mxu0 0
        %2643 = vmatprep.subr.bf16.mxu0 0
        %2644 = vmatpush2.bf16.msra.mxu0 0
        %2645 = vmatprep.subr.bf16.mxu0 0
        %2646 = vmatpush2.bf16.msra.mxu0 0
        %2647 = vmatprep.subr.bf16.mxu0 0
        %2648 = vmatpush2.bf16.msra.mxu0 0
        %2649 = vmatprep.subr.bf16.mxu0 0
        %2650 = vmatpush2.bf16.msra.mxu0 0
        %2651 = vmatprep.subr.bf16.mxu0 0
        %2652 = vmatpush2.bf16.msra.mxu0 0
        %2653 = vmatprep.subr.bf16.mxu0 0
        %2654 = vmatpush2.bf16.msra.mxu0 0
        %2655 = vmatprep.subr.bf16.mxu0 0
        %2656 = vmatpush2.bf16.msra.mxu0 0
        %2657 = vmatprep.mubr.bf16.mxu0 0
        %2658 = vmatmul.mubr.bf16.gmra.mxu0 %v2617
        %v2659 = vpop.f32.mrf.mxu0
        %v2660 = vadd.f32 %v2603, %v2659
        %v2661 = vpop.f32.mrf.mxu0
        %v2662 = vadd.f32 %v2605, %v2661
        %v2663 = vpop.f32.mrf.mxu0
        %v2664 = vadd.f32 %v2607, %v2663
        %v2665 = vpop.f32.mrf.mxu0
        %v2666 = vadd.f32 %v2609, %v2665
        %2667 = vdwg.mxu0
        %s2668 = scalar_lea.vmem [#allocation10], 48
        %v2669 = vld [vmem:[%s2668] sm:$0xf]
        %v2670 = vld [vmem:[%s2668 + $0x4] sm:$0xf]
        %v2671 = vpack.c.bf16 %v2543, %v2541
        %v2672 = vpack.c.bf16 %v2544, %v2542
        %v2675 = vunpack.c.l.b16 %v2669
        %v2676 = vunpack.c.l.b16 %v2670
        %v2677 = vpack.c.b16 %v2676, %v2675
        %v2679 = vsel %vm1648, %v2677, 0
        %v2682 = vsel %vm1652, %v2671, 0
        %v2685 = vsel %vm1652, %v2672, 0
        %2687 = vmatprep.subr.bf16.mxu0 0
        %2688 = vmatpush1.bf16.msra.mxu0 0
        %2689 = vmatprep.subr.bf16.mxu0 0
        %2690 = vmatpush1.bf16.msra.mxu0 0
        %2691 = vmatprep.subr.bf16.mxu0 0
        %2692 = vmatpush1.bf16.msra.mxu0 0
        %2693 = vmatprep.subr.bf16.mxu0 0
        %2694 = vmatpush1.bf16.msra.mxu0 0
        %2695 = vmatprep.subr.bf16.mxu0 0
        %2696 = vmatpush1.bf16.msra.mxu0 0
        %2697 = vmatprep.subr.bf16.mxu0 0
        %2698 = vmatpush1.bf16.msra.mxu0 0
        %2699 = vmatprep.subr.bf16.mxu0 0
        %2700 = vmatpush1.bf16.msra.mxu0 0
        %2701 = vmatprep.subr.bf16.mxu0 %v2685
        %2702 = vmatpush1.bf16.msra.mxu0 %v2682
        %2703 = vmatprep.subr.bf16.mxu0 0
        %2704 = vmatpush2.bf16.msra.mxu0 0
        %2705 = vmatprep.subr.bf16.mxu0 0
        %2706 = vmatpush2.bf16.msra.mxu0 0
        %2707 = vmatprep.subr.bf16.mxu0 0
        %2708 = vmatpush2.bf16.msra.mxu0 0
        %2709 = vmatprep.subr.bf16.mxu0 0
        %2710 = vmatpush2.bf16.msra.mxu0 0
        %2711 = vmatprep.subr.bf16.mxu0 0
        %2712 = vmatpush2.bf16.msra.mxu0 0
        %2713 = vmatprep.subr.bf16.mxu0 0
        %2714 = vmatpush2.bf16.msra.mxu0 0
        %2715 = vmatprep.subr.bf16.mxu0 0
        %2716 = vmatpush2.bf16.msra.mxu0 0
        %2717 = vmatprep.subr.bf16.mxu0 0
        %2718 = vmatpush2.bf16.msra.mxu0 0
        %2719 = vmatprep.mubr.bf16.mxu0 0
        %2720 = vmatmul.mubr.bf16.gmra.mxu0 %v2679
        %v2721 = vpop.f32.mrf.mxu0
        %v2722 = vadd.f32 0.0, %v2721
        %v2723 = vpop.f32.mrf.mxu0
        %v2724 = vadd.f32 0.0, %v2723
        %v2725 = vpop.f32.mrf.mxu0
        %v2726 = vadd.f32 0.0, %v2725
        %v2727 = vpop.f32.mrf.mxu0
        %v2728 = vadd.f32 0.0, %v2727
        %2729 = vdwg.mxu0
        %v2730 = vadd.f32 %v2660, %v2722
        %v2731 = vadd.f32 %v2662, %v2724
        %v2732 = vadd.f32 %v2664, %v2726
        %v2733 = vadd.f32 %v2666, %v2728
        %2734 = vrot.lane.b32.xlu0 %v2473, 16
        %v2735 = vpop.permute.xlu0 %2734
        %2736 = vrot.lane.b32.xlu0 %v2477, 16
        %v2737 = vpop.permute.xlu0 %2736
        %2738 = vrot.lane.b32.xlu0 %v2475, 16
        %v2739 = vpop.permute.xlu0 %2738
        %2740 = vrot.lane.b32.xlu0 %v2479, 16
        %v2741 = vpop.permute.xlu0 %2740
        %v2742 = vsel %vm718, %v2735, %v2739
        %v2743 = vsel %vm718, %v2737, %v2741
        %v2744 = vsel %vm718, %v2739, %v2735
        %v2745 = vsel %vm718, %v2741, %v2737
        %2746 = vrot.lane.b32.xlu0 %v2473, 112
        %v2747 = vpop.permute.xlu0 %2746
        %2748 = vrot.lane.b32.xlu0 %v2477, 112
        %v2749 = vpop.permute.xlu0 %2748
        %2750 = vrot.lane.b32.xlu0 %v2475, 112
        %v2751 = vpop.permute.xlu0 %2750
        %2752 = vrot.lane.b32.xlu0 %v2479, 112
        %v2753 = vpop.permute.xlu0 %2752
        %v2754 = vsel %vm725, %v2747, %v2751
        %v2755 = vsel %vm725, %v2749, %v2753
        %v2756 = vsel %vm725, %v2751, %v2747
        %v2757 = vsel %vm725, %v2753, %v2749
        %v2758 = vsel %vm737, %v2754, %v2744
        %v2759 = vsel %vm738, %v2756, %v2742
        %v2760 = vsel %vm737, %v2755, %v2745
        %v2761 = vsel %vm738, %v2757, %v2743
        %v2762 = vsel %vm750, %v2744, %v2754
        %v2763 = vsel %vm751, %v2742, %v2756
        %v2764 = vsel %vm750, %v2745, %v2755
        %v2765 = vsel %vm751, %v2743, %v2757
        %s2766 = scalar_lea.vmem [#allocation10], 8
        %v2767 = vld [vmem:[%s2766] sm:$0xf]
        %v2768 = vld [vmem:[%s2766 + $0x4] sm:$0xf]
        %v2769 = vpack.c.bf16 %v2760, %v2758
        %v2770 = vpack.c.bf16 %v2761, %v2759
        %v2773 = vunpack.c.l.b16 %v2767
        %v2774 = vunpack.c.l.b16 %v2768
        %v2775 = vpack.c.b16 %v2774, %v2773
        %v2777 = vsel %vm1648, %v2775, 0
        %v2780 = vsel %vm1652, %v2769, 0
        %v2783 = vsel %vm1652, %v2770, 0
        %2785 = vmatprep.subr.bf16.mxu0 0
        %2786 = vmatpush1.bf16.msra.mxu0 0
        %2787 = vmatprep.subr.bf16.mxu0 0
        %2788 = vmatpush1.bf16.msra.mxu0 0
        %2789 = vmatprep.subr.bf16.mxu0 0
        %2790 = vmatpush1.bf16.msra.mxu0 0
        %2791 = vmatprep.subr.bf16.mxu0 0
        %2792 = vmatpush1.bf16.msra.mxu0 0
        %2793 = vmatprep.subr.bf16.mxu0 0
        %2794 = vmatpush1.bf16.msra.mxu0 0
        %2795 = vmatprep.subr.bf16.mxu0 0
        %2796 = vmatpush1.bf16.msra.mxu0 0
        %2797 = vmatprep.subr.bf16.mxu0 0
        %2798 = vmatpush1.bf16.msra.mxu0 0
        %2799 = vmatprep.subr.bf16.mxu0 %v2783
        %2800 = vmatpush1.bf16.msra.mxu0 %v2780
        %2801 = vmatprep.subr.bf16.mxu0 0
        %2802 = vmatpush2.bf16.msra.mxu0 0
        %2803 = vmatprep.subr.bf16.mxu0 0
        %2804 = vmatpush2.bf16.msra.mxu0 0
        %2805 = vmatprep.subr.bf16.mxu0 0
        %2806 = vmatpush2.bf16.msra.mxu0 0
        %2807 = vmatprep.subr.bf16.mxu0 0
        %2808 = vmatpush2.bf16.msra.mxu0 0
        %2809 = vmatprep.subr.bf16.mxu0 0
        %2810 = vmatpush2.bf16.msra.mxu0 0
        %2811 = vmatprep.subr.bf16.mxu0 0
        %2812 = vmatpush2.bf16.msra.mxu0 0
        %2813 = vmatprep.subr.bf16.mxu0 0
        %2814 = vmatpush2.bf16.msra.mxu0 0
        %2815 = vmatprep.subr.bf16.mxu0 0
        %2816 = vmatpush2.bf16.msra.mxu0 0
        %2817 = vmatprep.mubr.bf16.mxu0 0
        %2818 = vmatmul.mubr.bf16.gmra.mxu0 %v2777
        %v2819 = vpop.f32.mrf.mxu0
        %v2820 = vadd.f32 0.0, %v2819
        %v2821 = vpop.f32.mrf.mxu0
        %v2822 = vadd.f32 0.0, %v2821
        %v2823 = vpop.f32.mrf.mxu0
        %v2824 = vadd.f32 0.0, %v2823
        %v2825 = vpop.f32.mrf.mxu0
        %v2826 = vadd.f32 0.0, %v2825
        %2827 = vdwg.mxu0
        %v2828 = vadd.f32 %v2730, %v2820
        %v2829 = vadd.f32 %v2731, %v2822
        %v2830 = vadd.f32 %v2732, %v2824
        %v2831 = vadd.f32 %v2733, %v2826
        %s2832 = scalar_lea.vmem [#allocation10], 32
        %v2833 = vld [vmem:[%s2832] sm:$0xf]
        %v2834 = vld [vmem:[%s2832 + $0x4] sm:$0xf]
        %v2835 = vpack.c.bf16 %v2477, %v2473
        %v2836 = vpack.c.bf16 %v2479, %v2475
        %v2839 = vunpack.c.l.b16 %v2833
        %v2840 = vunpack.c.l.b16 %v2834
        %v2841 = vpack.c.b16 %v2840, %v2839
        %v2843 = vsel %vm1648, %v2841, 0
        %v2846 = vsel %vm1652, %v2835, 0
        %v2849 = vsel %vm1652, %v2836, 0
        %2851 = vmatprep.subr.bf16.mxu0 0
        %2852 = vmatpush1.bf16.msra.mxu0 0
        %2853 = vmatprep.subr.bf16.mxu0 0
        %2854 = vmatpush1.bf16.msra.mxu0 0
        %2855 = vmatprep.subr.bf16.mxu0 0
        %2856 = vmatpush1.bf16.msra.mxu0 0
        %2857 = vmatprep.subr.bf16.mxu0 0
        %2858 = vmatpush1.bf16.msra.mxu0 0
        %2859 = vmatprep.subr.bf16.mxu0 0
        %2860 = vmatpush1.bf16.msra.mxu0 0
        %2861 = vmatprep.subr.bf16.mxu0 0
        %2862 = vmatpush1.bf16.msra.mxu0 0
        %2863 = vmatprep.subr.bf16.mxu0 0
        %2864 = vmatpush1.bf16.msra.mxu0 0
        %2865 = vmatprep.subr.bf16.mxu0 %v2849
        %2866 = vmatpush1.bf16.msra.mxu0 %v2846
        %2867 = vmatprep.subr.bf16.mxu0 0
        %2868 = vmatpush2.bf16.msra.mxu0 0
        %2869 = vmatprep.subr.bf16.mxu0 0
        %2870 = vmatpush2.bf16.msra.mxu0 0
        %2871 = vmatprep.subr.bf16.mxu0 0
        %2872 = vmatpush2.bf16.msra.mxu0 0
        %2873 = vmatprep.subr.bf16.mxu0 0
        %2874 = vmatpush2.bf16.msra.mxu0 0
        %2875 = vmatprep.subr.bf16.mxu0 0
        %2876 = vmatpush2.bf16.msra.mxu0 0
        %2877 = vmatprep.subr.bf16.mxu0 0
        %2878 = vmatpush2.bf16.msra.mxu0 0
        %2879 = vmatprep.subr.bf16.mxu0 0
        %2880 = vmatpush2.bf16.msra.mxu0 0
        %2881 = vmatprep.subr.bf16.mxu0 0
        %2882 = vmatpush2.bf16.msra.mxu0 0
        %2883 = vmatprep.mubr.bf16.mxu0 0
        %2884 = vmatmul.mubr.bf16.gmra.mxu0 %v2843
        %v2885 = vpop.f32.mrf.mxu0
        %v2886 = vadd.f32 0.0, %v2885
        %v2887 = vpop.f32.mrf.mxu0
        %v2888 = vadd.f32 0.0, %v2887
        %v2889 = vpop.f32.mrf.mxu0
        %v2890 = vadd.f32 0.0, %v2889
        %v2891 = vpop.f32.mrf.mxu0
        %v2892 = vadd.f32 0.0, %v2891
        %2893 = vdwg.mxu0
        %v2894 = vadd.f32 %v2828, %v2886
        %v2895 = vadd.f32 %v2829, %v2888
        %v2896 = vadd.f32 %v2830, %v2890
        %v2897 = vadd.f32 %v2831, %v2892
        %s2898 = scalar_lea.vmem [#allocation10], 56
        %v2899 = vld [vmem:[%s2898] sm:$0xf]
        %v2900 = vld [vmem:[%s2898 + $0x4] sm:$0xf]
        %v2901 = vpack.c.bf16 %v2764, %v2762
        %v2902 = vpack.c.bf16 %v2765, %v2763
        %v2905 = vunpack.c.l.b16 %v2899
        %v2906 = vunpack.c.l.b16 %v2900
        %v2907 = vpack.c.b16 %v2906, %v2905
        %v2909 = vsel %vm1648, %v2907, 0
        %v2912 = vsel %vm1652, %v2901, 0
        %v2915 = vsel %vm1652, %v2902, 0
        %2917 = vmatprep.subr.bf16.mxu0 0
        %2918 = vmatpush1.bf16.msra.mxu0 0
        %2919 = vmatprep.subr.bf16.mxu0 0
        %2920 = vmatpush1.bf16.msra.mxu0 0
        %2921 = vmatprep.subr.bf16.mxu0 0
        %2922 = vmatpush1.bf16.msra.mxu0 0
        %2923 = vmatprep.subr.bf16.mxu0 0
        %2924 = vmatpush1.bf16.msra.mxu0 0
        %2925 = vmatprep.subr.bf16.mxu0 0
        %2926 = vmatpush1.bf16.msra.mxu0 0
        %2927 = vmatprep.subr.bf16.mxu0 0
        %2928 = vmatpush1.bf16.msra.mxu0 0
        %2929 = vmatprep.subr.bf16.mxu0 0
        %2930 = vmatpush1.bf16.msra.mxu0 0
        %2931 = vmatprep.subr.bf16.mxu0 %v2915
        %2932 = vmatpush1.bf16.msra.mxu0 %v2912
        %2933 = vmatprep.subr.bf16.mxu0 0
        %2934 = vmatpush2.bf16.msra.mxu0 0
        %2935 = vmatprep.subr.bf16.mxu0 0
        %2936 = vmatpush2.bf16.msra.mxu0 0
        %2937 = vmatprep.subr.bf16.mxu0 0
        %2938 = vmatpush2.bf16.msra.mxu0 0
        %2939 = vmatprep.subr.bf16.mxu0 0
        %2940 = vmatpush2.bf16.msra.mxu0 0
        %2941 = vmatprep.subr.bf16.mxu0 0
        %2942 = vmatpush2.bf16.msra.mxu0 0
        %2943 = vmatprep.subr.bf16.mxu0 0
        %2944 = vmatpush2.bf16.msra.mxu0 0
        %2945 = vmatprep.subr.bf16.mxu0 0
        %2946 = vmatpush2.bf16.msra.mxu0 0
        %2947 = vmatprep.subr.bf16.mxu0 0
        %2948 = vmatpush2.bf16.msra.mxu0 0
        %2949 = vmatprep.mubr.bf16.mxu0 0
        %2950 = vmatmul.mubr.bf16.gmra.mxu0 %v2909
        %v2951 = vpop.f32.mrf.mxu0
        %v2952 = vadd.f32 0.0, %v2951
        %v2953 = vpop.f32.mrf.mxu0
        %v2954 = vadd.f32 0.0, %v2953
        %v2955 = vpop.f32.mrf.mxu0
        %v2956 = vadd.f32 0.0, %v2955
        %v2957 = vpop.f32.mrf.mxu0
        %v2958 = vadd.f32 0.0, %v2957
        %2959 = vdwg.mxu0
        %v2960 = vadd.f32 %v2894, %v2952
        %v2961 = vadd.f32 %v2895, %v2954
        %v2962 = vadd.f32 %v2896, %v2956
        %v2963 = vadd.f32 %v2897, %v2958
        %2964 = vrot.lane.b32.xlu0 %v2509, 16
        %v2965 = vpop.permute.xlu0 %2964
        %2966 = vrot.lane.b32.xlu0 %v2511, 16
        %v2967 = vpop.permute.xlu0 %2966
        %2968 = vrot.lane.b32.xlu0 %v2510, 16
        %v2969 = vpop.permute.xlu0 %2968
        %2970 = vrot.lane.b32.xlu0 %v2512, 16
        %v2971 = vpop.permute.xlu0 %2970
        %v2972 = vsel %vm718, %v2965, %v2969
        %v2973 = vsel %vm718, %v2967, %v2971
        %v2974 = vsel %vm718, %v2969, %v2965
        %v2975 = vsel %vm718, %v2971, %v2967
        %2976 = vrot.lane.b32.xlu0 %v2509, 112
        %v2977 = vpop.permute.xlu0 %2976
        %2978 = vrot.lane.b32.xlu0 %v2511, 112
        %v2979 = vpop.permute.xlu0 %2978
        %2980 = vrot.lane.b32.xlu0 %v2510, 112
        %v2981 = vpop.permute.xlu0 %2980
        %2982 = vrot.lane.b32.xlu0 %v2512, 112
        %v2983 = vpop.permute.xlu0 %2982
        %v2984 = vsel %vm725, %v2977, %v2981
        %v2985 = vsel %vm725, %v2979, %v2983
        %v2986 = vsel %vm725, %v2981, %v2977
        %v2987 = vsel %vm725, %v2983, %v2979
        %v2988 = vsel %vm737, %v2984, %v2974
        %v2989 = vsel %vm738, %v2986, %v2972
        %v2990 = vsel %vm737, %v2985, %v2975
        %v2991 = vsel %vm738, %v2987, %v2973
        %v2992 = vsel %vm750, %v2974, %v2984
        %v2993 = vsel %vm751, %v2972, %v2986
        %v2994 = vsel %vm750, %v2975, %v2985
        %v2995 = vsel %vm751, %v2973, %v2987
        %s2996 = scalar_lea.vmem [#allocation10], 16
        %v2997 = vld [vmem:[%s2996] sm:$0xf]
        %v2998 = vld [vmem:[%s2996 + $0x4] sm:$0xf]
        %v2999 = vpack.c.bf16 %v2990, %v2988
        %v3000 = vpack.c.bf16 %v2991, %v2989
        %v3003 = vunpack.c.l.b16 %v2997
        %v3004 = vunpack.c.l.b16 %v2998
        %v3005 = vpack.c.b16 %v3004, %v3003
        %v3007 = vsel %vm1648, %v3005, 0
        %v3010 = vsel %vm1652, %v2999, 0
        %v3013 = vsel %vm1652, %v3000, 0
        %3015 = vmatprep.subr.bf16.mxu0 0
        %3016 = vmatpush1.bf16.msra.mxu0 0
        %3017 = vmatprep.subr.bf16.mxu0 0
        %3018 = vmatpush1.bf16.msra.mxu0 0
        %3019 = vmatprep.subr.bf16.mxu0 0
        %3020 = vmatpush1.bf16.msra.mxu0 0
        %3021 = vmatprep.subr.bf16.mxu0 0
        %3022 = vmatpush1.bf16.msra.mxu0 0
        %3023 = vmatprep.subr.bf16.mxu0 0
        %3024 = vmatpush1.bf16.msra.mxu0 0
        %3025 = vmatprep.subr.bf16.mxu0 0
        %3026 = vmatpush1.bf16.msra.mxu0 0
        %3027 = vmatprep.subr.bf16.mxu0 0
        %3028 = vmatpush1.bf16.msra.mxu0 0
        %3029 = vmatprep.subr.bf16.mxu0 %v3013
        %3030 = vmatpush1.bf16.msra.mxu0 %v3010
        %3031 = vmatprep.subr.bf16.mxu0 0
        %3032 = vmatpush2.bf16.msra.mxu0 0
        %3033 = vmatprep.subr.bf16.mxu0 0
        %3034 = vmatpush2.bf16.msra.mxu0 0
        %3035 = vmatprep.subr.bf16.mxu0 0
        %3036 = vmatpush2.bf16.msra.mxu0 0
        %3037 = vmatprep.subr.bf16.mxu0 0
        %3038 = vmatpush2.bf16.msra.mxu0 0
        %3039 = vmatprep.subr.bf16.mxu0 0
        %3040 = vmatpush2.bf16.msra.mxu0 0
        %3041 = vmatprep.subr.bf16.mxu0 0
        %3042 = vmatpush2.bf16.msra.mxu0 0
        %3043 = vmatprep.subr.bf16.mxu0 0
        %3044 = vmatpush2.bf16.msra.mxu0 0
        %3045 = vmatprep.subr.bf16.mxu0 0
        %3046 = vmatpush2.bf16.msra.mxu0 0
        %3047 = vmatprep.mubr.bf16.mxu0 0
        %3048 = vmatmul.mubr.bf16.gmra.mxu0 %v3007
        %v3049 = vpop.f32.mrf.mxu0
        %v3050 = vadd.f32 0.0, %v3049
        %v3051 = vpop.f32.mrf.mxu0
        %v3052 = vadd.f32 0.0, %v3051
        %v3053 = vpop.f32.mrf.mxu0
        %v3054 = vadd.f32 0.0, %v3053
        %v3055 = vpop.f32.mrf.mxu0
        %v3056 = vadd.f32 0.0, %v3055
        %3057 = vdwg.mxu0
        %v3058 = vadd.f32 %v2960, %v3050
        %v3059 = vadd.f32 %v2961, %v3052
        %v3060 = vadd.f32 %v2962, %v3054
        %v3061 = vadd.f32 %v2963, %v3056
        %s3062 = scalar_lea.vmem [#allocation10], 40
        %v3063 = vld [vmem:[%s3062] sm:$0xf]
        %v3064 = vld [vmem:[%s3062 + $0x4] sm:$0xf]
        %v3065 = vpack.c.bf16 %v2511, %v2509
        %v3066 = vpack.c.bf16 %v2512, %v2510
        %v3069 = vunpack.c.l.b16 %v3063
        %v3070 = vunpack.c.l.b16 %v3064
        %v3071 = vpack.c.b16 %v3070, %v3069
        %v3073 = vsel %vm1648, %v3071, 0
        %v3076 = vsel %vm1652, %v3065, 0
        %v3079 = vsel %vm1652, %v3066, 0
        %3081 = vmatprep.subr.bf16.mxu0 0
        %3082 = vmatpush1.bf16.msra.mxu0 0
        %3083 = vmatprep.subr.bf16.mxu0 0
        %3084 = vmatpush1.bf16.msra.mxu0 0
        %3085 = vmatprep.subr.bf16.mxu0 0
        %3086 = vmatpush1.bf16.msra.mxu0 0
        %3087 = vmatprep.subr.bf16.mxu0 0
        %3088 = vmatpush1.bf16.msra.mxu0 0
        %3089 = vmatprep.subr.bf16.mxu0 0
        %3090 = vmatpush1.bf16.msra.mxu0 0
        %3091 = vmatprep.subr.bf16.mxu0 0
        %3092 = vmatpush1.bf16.msra.mxu0 0
        %3093 = vmatprep.subr.bf16.mxu0 0
        %3094 = vmatpush1.bf16.msra.mxu0 0
        %3095 = vmatprep.subr.bf16.mxu0 %v3079
        %3096 = vmatpush1.bf16.msra.mxu0 %v3076
        %3097 = vmatprep.subr.bf16.mxu0 0
        %3098 = vmatpush2.bf16.msra.mxu0 0
        %3099 = vmatprep.subr.bf16.mxu0 0
        %3100 = vmatpush2.bf16.msra.mxu0 0
        %3101 = vmatprep.subr.bf16.mxu0 0
        %3102 = vmatpush2.bf16.msra.mxu0 0
        %3103 = vmatprep.subr.bf16.mxu0 0
        %3104 = vmatpush2.bf16.msra.mxu0 0
        %3105 = vmatprep.subr.bf16.mxu0 0
        %3106 = vmatpush2.bf16.msra.mxu0 0
        %3107 = vmatprep.subr.bf16.mxu0 0
        %3108 = vmatpush2.bf16.msra.mxu0 0
        %3109 = vmatprep.subr.bf16.mxu0 0
        %3110 = vmatpush2.bf16.msra.mxu0 0
        %3111 = vmatprep.subr.bf16.mxu0 0
        %3112 = vmatpush2.bf16.msra.mxu0 0
        %3113 = vmatprep.mubr.bf16.mxu0 0
        %3114 = vmatmul.mubr.bf16.gmra.mxu0 %v3073
        %v3115 = vpop.f32.mrf.mxu0
        %v3116 = vadd.f32 0.0, %v3115
        %v3117 = vpop.f32.mrf.mxu0
        %v3118 = vadd.f32 0.0, %v3117
        %v3119 = vpop.f32.mrf.mxu0
        %v3120 = vadd.f32 0.0, %v3119
        %v3121 = vpop.f32.mrf.mxu0
        %v3122 = vadd.f32 0.0, %v3121
        %3123 = vdwg.mxu0
        %v3124 = vadd.f32 %v3058, %v3116
        %v3125 = vadd.f32 %v3059, %v3118
        %v3126 = vadd.f32 %v3060, %v3120
        %v3127 = vadd.f32 %v3061, %v3122
        %s3128 = scalar_lea.vmem [#allocation10], 64
        %v3129 = vld [vmem:[%s3128] sm:$0xf]
        %v3130 = vld [vmem:[%s3128 + $0x4] sm:$0xf]
        %v3131 = vpack.c.bf16 %v2994, %v2992
        %v3132 = vpack.c.bf16 %v2995, %v2993
        %v3135 = vunpack.c.l.b16 %v3129
        %v3136 = vunpack.c.l.b16 %v3130
        %v3137 = vpack.c.b16 %v3136, %v3135
        %v3139 = vsel %vm1648, %v3137, 0
        %v3142 = vsel %vm1652, %v3131, 0
        %v3145 = vsel %vm1652, %v3132, 0
        %3147 = vmatprep.subr.bf16.mxu0 0
        %3148 = vmatpush1.bf16.msra.mxu0 0
        %3149 = vmatprep.subr.bf16.mxu0 0
        %3150 = vmatpush1.bf16.msra.mxu0 0
        %3151 = vmatprep.subr.bf16.mxu0 0
        %3152 = vmatpush1.bf16.msra.mxu0 0
        %3153 = vmatprep.subr.bf16.mxu0 0
        %3154 = vmatpush1.bf16.msra.mxu0 0
        %3155 = vmatprep.subr.bf16.mxu0 0
        %3156 = vmatpush1.bf16.msra.mxu0 0
        %3157 = vmatprep.subr.bf16.mxu0 0
        %3158 = vmatpush1.bf16.msra.mxu0 0
        %3159 = vmatprep.subr.bf16.mxu0 0
        %3160 = vmatpush1.bf16.msra.mxu0 0
        %3161 = vmatprep.subr.bf16.mxu0 %v3145
        %3162 = vmatpush1.bf16.msra.mxu0 %v3142
        %3163 = vmatprep.subr.bf16.mxu0 0
        %3164 = vmatpush2.bf16.msra.mxu0 0
        %3165 = vmatprep.subr.bf16.mxu0 0
        %3166 = vmatpush2.bf16.msra.mxu0 0
        %3167 = vmatprep.subr.bf16.mxu0 0
        %3168 = vmatpush2.bf16.msra.mxu0 0
        %3169 = vmatprep.subr.bf16.mxu0 0
        %3170 = vmatpush2.bf16.msra.mxu0 0
        %3171 = vmatprep.subr.bf16.mxu0 0
        %3172 = vmatpush2.bf16.msra.mxu0 0
        %3173 = vmatprep.subr.bf16.mxu0 0
        %3174 = vmatpush2.bf16.msra.mxu0 0
        %3175 = vmatprep.subr.bf16.mxu0 0
        %3176 = vmatpush2.bf16.msra.mxu0 0
        %3177 = vmatprep.subr.bf16.mxu0 0
        %3178 = vmatpush2.bf16.msra.mxu0 0
        %3179 = vmatprep.mubr.bf16.mxu0 0
        %3180 = vmatmul.mubr.bf16.gmra.mxu0 %v3139
        %v3181 = vpop.f32.mrf.mxu0
        %v3182 = vadd.f32 0.0, %v3181
        %v3183 = vpop.f32.mrf.mxu0
        %v3184 = vadd.f32 0.0, %v3183
        %v3185 = vpop.f32.mrf.mxu0
        %v3186 = vadd.f32 0.0, %v3185
        %v3187 = vpop.f32.mrf.mxu0
        %v3188 = vadd.f32 0.0, %v3187
        %3189 = vdwg.mxu0
        %v3190 = vadd.f32 %v3124, %v3182
        %v3191 = vadd.f32 %v3125, %v3184
        %v3192 = vadd.f32 %v3126, %v3186
        %v3193 = vadd.f32 %v3127, %v3188
        %v3194 = vadd.f32 %v2285, %v3190
        %v3195 = vadd.f32 %v2286, %v3191
        %v3196 = vadd.f32 %v2287, %v3192
        %v3197 = vadd.f32 %v2288, %v3193
        %3198 = vrot.lane.b32.xlu0 %v3194, 17
        %v3199 = vpop.permute.xlu0 %3198
        %3200 = vrot.lane.b32.xlu0 %v3196, 17
        %v3201 = vpop.permute.xlu0 %3200
        %3202 = vrot.lane.b32.xlu0 %v3195, 17
        %v3203 = vpop.permute.xlu0 %3202
        %3204 = vrot.lane.b32.xlu0 %v3197, 17
        %v3205 = vpop.permute.xlu0 %3204
        %vm3206 = vcmp.lt.s32.totalorder %v677, 17
        %v3207 = vsel %vm3206, %v3199, %v3203
        %v3208 = vsel %vm3206, %v3201, %v3205
        %v3209 = vsel %vm3206, %v3203, %v3199
        %v3210 = vsel %vm3206, %v3205, %v3201
        %vm3211 = vcmp.ge.s32.totalorder %v648, 1
        %vm3212 = vcmp.ge.s32.totalorder %v649, 1
        %vm3213 = vmand %vm3211, %vm3212
        %v3214 = vsel %vm3213, 1, 0
        %v3215 = vlaneseq
        %v3216 = vshrl.u32 %v3215, 7
        %v3217 = vsub.s32 0, %v3216
        %v3218 = vrot.slane %v3214, %v3217
        %v3219 = vlaneseq
        %v3220 = vshrl.u32 %v3219, 7
        %v3221 = vsub.s32 1, %v3220
        %v3222 = vrot.slane %v3214, %v3221
        %vm3223 = vcmp.eq.s32.totalorder %v3218, 1
        %vm3224 = vcmp.eq.s32.totalorder %v3222, 1
        %v3225 = vsel %vm3223, %v3209, 0.0
        %v3226 = vsel %vm3224, %v3207, 0.0
        %v3227 = vsel %vm3223, %v3210, 0.0
        %v3228 = vsel %vm3224, %v3208, 0.0
        %v3229 = vld [vmem:[#allocation11] sm:$0xf]
        %v3230 = vld [vmem:[#allocation11 + $0x4] sm:$0x3]
        %v3231 = vpack.c.bf16 %v3227, %v3225
        %v3232 = vpack.c.bf16 %v3228, %v3226
        %3233 = vrot.lane.b32.xlu0 %v3194, 16
        %v3234 = vpop.permute.xlu0 %3233
        %3235 = vrot.lane.b32.xlu0 %v3196, 16
        %v3236 = vpop.permute.xlu0 %3235
        %3237 = vrot.lane.b32.xlu0 %v3195, 16
        %v3238 = vpop.permute.xlu0 %3237
        %3239 = vrot.lane.b32.xlu0 %v3197, 16
        %v3240 = vpop.permute.xlu0 %3239
        %v3241 = vsel %vm718, %v3234, %v3238
        %v3242 = vsel %vm718, %v3236, %v3240
        %v3243 = vsel %vm718, %v3238, %v3234
        %v3244 = vsel %vm718, %v3240, %v3236
        %v3245 = vsel %vm3212, 1, 0
        %v3246 = vlaneseq
        %v3247 = vshrl.u32 %v3246, 7
        %v3248 = vsub.s32 0, %v3247
        %v3249 = vrot.slane %v3245, %v3248
        %v3250 = vlaneseq
        %v3251 = vshrl.u32 %v3250, 7
        %v3252 = vsub.s32 1, %v3251
        %v3253 = vrot.slane %v3245, %v3252
        %vm3254 = vcmp.eq.s32.totalorder %v3249, 1
        %vm3255 = vcmp.eq.s32.totalorder %v3253, 1
        %v3256 = vsel %vm3254, %v3243, 0.0
        %v3257 = vsel %vm3255, %v3241, 0.0
        %v3258 = vsel %vm3254, %v3244, 0.0
        %v3259 = vsel %vm3255, %v3242, 0.0
        %s3260 = scalar_lea.vmem [#allocation11], 8
        %v3261 = vld [vmem:[%s3260] sm:$0xf]
        %v3262 = vld [vmem:[%s3260 + $0x4] sm:$0x3]
        %v3263 = vpack.c.bf16 %v3258, %v3256
        %v3264 = vpack.c.bf16 %v3259, %v3257
        %v3267 = vunpack.c.l.b16 %v3261
        %v3268 = vunpack.c.l.b16 %v3262
        %v3269 = vpack.c.b16 %v3268, %v3267
        %v3271 = vsel %vm1400, %v3269, 0
        %3273 = vmatprep.subr.bf16.mxu0 0
        %3274 = vmatpush1.bf16.msra.mxu0 0
        %3275 = vmatprep.subr.bf16.mxu0 0
        %3276 = vmatpush1.bf16.msra.mxu0 0
        %3277 = vmatprep.subr.bf16.mxu0 0
        %3278 = vmatpush1.bf16.msra.mxu0 0
        %3279 = vmatprep.subr.bf16.mxu0 0
        %3280 = vmatpush1.bf16.msra.mxu0 0
        %3281 = vmatprep.subr.bf16.mxu0 0
        %3282 = vmatpush1.bf16.msra.mxu0 0
        %3283 = vmatprep.subr.bf16.mxu0 0
        %3284 = vmatpush1.bf16.msra.mxu0 0
        %3285 = vmatprep.subr.bf16.mxu0 0
        %3286 = vmatpush1.bf16.msra.mxu0 0
        %3287 = vmatprep.subr.bf16.mxu0 %v3264
        %3288 = vmatpush1.bf16.msra.mxu0 %v3263
        %3289 = vmatprep.subr.bf16.mxu0 0
        %3290 = vmatpush2.bf16.msra.mxu0 0
        %3291 = vmatprep.subr.bf16.mxu0 0
        %3292 = vmatpush2.bf16.msra.mxu0 0
        %3293 = vmatprep.subr.bf16.mxu0 0
        %3294 = vmatpush2.bf16.msra.mxu0 0
        %3295 = vmatprep.subr.bf16.mxu0 0
        %3296 = vmatpush2.bf16.msra.mxu0 0
        %3297 = vmatprep.subr.bf16.mxu0 0
        %3298 = vmatpush2.bf16.msra.mxu0 0
        %3299 = vmatprep.subr.bf16.mxu0 0
        %3300 = vmatpush2.bf16.msra.mxu0 0
        %3301 = vmatprep.subr.bf16.mxu0 0
        %3302 = vmatpush2.bf16.msra.mxu0 0
        %3303 = vmatprep.subr.bf16.mxu0 0
        %3304 = vmatpush2.bf16.msra.mxu0 0
        %3305 = vmatprep.mubr.bf16.mxu0 0
        %3306 = vmatmul.mubr.bf16.gmra.mxu0 %v3271
        %v3307 = vpop.f32.mrf.mxu0
        %v3308 = vadd.f32 0.0, %v3307
        %v3309 = vpop.f32.mrf.mxu0
        %v3310 = vadd.f32 0.0, %v3309
        %v3311 = vpop.f32.mrf.mxu0
        %v3312 = vadd.f32 0.0, %v3311
        %v3313 = vpop.f32.mrf.mxu0
        %v3314 = vadd.f32 0.0, %v3313
        %3315 = vdwg.mxu0
        %v3318 = vunpack.c.l.b16 %v3229
        %v3319 = vunpack.c.l.b16 %v3230
        %v3320 = vpack.c.b16 %v3319, %v3318
        %v3322 = vsel %vm1400, %v3320, 0
        %3324 = vmatprep.subr.bf16.mxu0 0
        %3325 = vmatpush1.bf16.msra.mxu0 0
        %3326 = vmatprep.subr.bf16.mxu0 0
        %3327 = vmatpush1.bf16.msra.mxu0 0
        %3328 = vmatprep.subr.bf16.mxu0 0
        %3329 = vmatpush1.bf16.msra.mxu0 0
        %3330 = vmatprep.subr.bf16.mxu0 0
        %3331 = vmatpush1.bf16.msra.mxu0 0
        %3332 = vmatprep.subr.bf16.mxu0 0
        %3333 = vmatpush1.bf16.msra.mxu0 0
        %3334 = vmatprep.subr.bf16.mxu0 0
        %3335 = vmatpush1.bf16.msra.mxu0 0
        %3336 = vmatprep.subr.bf16.mxu0 0
        %3337 = vmatpush1.bf16.msra.mxu0 0
        %3338 = vmatprep.subr.bf16.mxu0 %v3232
        %3339 = vmatpush1.bf16.msra.mxu0 %v3231
        %3340 = vmatprep.subr.bf16.mxu0 0
        %3341 = vmatpush2.bf16.msra.mxu0 0
        %3342 = vmatprep.subr.bf16.mxu0 0
        %3343 = vmatpush2.bf16.msra.mxu0 0
        %3344 = vmatprep.subr.bf16.mxu0 0
        %3345 = vmatpush2.bf16.msra.mxu0 0
        %3346 = vmatprep.subr.bf16.mxu0 0
        %3347 = vmatpush2.bf16.msra.mxu0 0
        %3348 = vmatprep.subr.bf16.mxu0 0
        %3349 = vmatpush2.bf16.msra.mxu0 0
        %3350 = vmatprep.subr.bf16.mxu0 0
        %3351 = vmatpush2.bf16.msra.mxu0 0
        %3352 = vmatprep.subr.bf16.mxu0 0
        %3353 = vmatpush2.bf16.msra.mxu0 0
        %3354 = vmatprep.subr.bf16.mxu0 0
        %3355 = vmatpush2.bf16.msra.mxu0 0
        %3356 = vmatprep.mubr.bf16.mxu0 0
        %3357 = vmatmul.mubr.bf16.gmra.mxu0 %v3322
        %v3358 = vpop.f32.mrf.mxu0
        %v3359 = vadd.f32 %v3308, %v3358
        %v3360 = vpop.f32.mrf.mxu0
        %v3361 = vadd.f32 %v3310, %v3360
        %v3362 = vpop.f32.mrf.mxu0
        %v3363 = vadd.f32 %v3312, %v3362
        %v3364 = vpop.f32.mrf.mxu0
        %v3365 = vadd.f32 %v3314, %v3364
        %3366 = vdwg.mxu0
        %3367 = vrot.lane.b32.xlu0 %v3194, 15
        %v3368 = vpop.permute.xlu0 %3367
        %3369 = vrot.lane.b32.xlu0 %v3196, 15
        %v3370 = vpop.permute.xlu0 %3369
        %3371 = vrot.lane.b32.xlu0 %v3195, 15
        %v3372 = vpop.permute.xlu0 %3371
        %3373 = vrot.lane.b32.xlu0 %v3197, 15
        %v3374 = vpop.permute.xlu0 %3373
        %vm3375 = vcmp.lt.s32.totalorder %v677, 15
        %v3376 = vsel %vm3375, %v3368, %v3372
        %v3377 = vsel %vm3375, %v3370, %v3374
        %v3378 = vsel %vm3375, %v3372, %v3368
        %v3379 = vsel %vm3375, %v3374, %v3370
        %vm3380 = vcmp.lt.s32.totalorder %v648, 15
        %vm3381 = vmand %vm3380, %vm3212
        %v3382 = vsel %vm3381, 1, 0
        %v3383 = vlaneseq
        %v3384 = vshrl.u32 %v3383, 7
        %v3385 = vsub.s32 0, %v3384
        %v3386 = vrot.slane %v3382, %v3385
        %v3387 = vlaneseq
        %v3388 = vshrl.u32 %v3387, 7
        %v3389 = vsub.s32 1, %v3388
        %v3390 = vrot.slane %v3382, %v3389
        %vm3391 = vcmp.eq.s32.totalorder %v3386, 1
        %vm3392 = vcmp.eq.s32.totalorder %v3390, 1
        %v3393 = vsel %vm3391, %v3378, 0.0
        %v3394 = vsel %vm3392, %v3376, 0.0
        %v3395 = vsel %vm3391, %v3379, 0.0
        %v3396 = vsel %vm3392, %v3377, 0.0
        %s3397 = scalar_lea.vmem [#allocation11], 16
        %v3398 = vld [vmem:[%s3397] sm:$0xf]
        %v3399 = vld [vmem:[%s3397 + $0x4] sm:$0x3]
        %v3400 = vpack.c.bf16 %v3395, %v3393
        %v3401 = vpack.c.bf16 %v3396, %v3394
        %v3404 = vunpack.c.l.b16 %v3398
        %v3405 = vunpack.c.l.b16 %v3399
        %v3406 = vpack.c.b16 %v3405, %v3404
        %v3408 = vsel %vm1400, %v3406, 0
        %3410 = vmatprep.subr.bf16.mxu0 0
        %3411 = vmatpush1.bf16.msra.mxu0 0
        %3412 = vmatprep.subr.bf16.mxu0 0
        %3413 = vmatpush1.bf16.msra.mxu0 0
        %3414 = vmatprep.subr.bf16.mxu0 0
        %3415 = vmatpush1.bf16.msra.mxu0 0
        %3416 = vmatprep.subr.bf16.mxu0 0
        %3417 = vmatpush1.bf16.msra.mxu0 0
        %3418 = vmatprep.subr.bf16.mxu0 0
        %3419 = vmatpush1.bf16.msra.mxu0 0
        %3420 = vmatprep.subr.bf16.mxu0 0
        %3421 = vmatpush1.bf16.msra.mxu0 0
        %3422 = vmatprep.subr.bf16.mxu0 0
        %3423 = vmatpush1.bf16.msra.mxu0 0
        %3424 = vmatprep.subr.bf16.mxu0 %v3401
        %3425 = vmatpush1.bf16.msra.mxu0 %v3400
        %3426 = vmatprep.subr.bf16.mxu0 0
        %3427 = vmatpush2.bf16.msra.mxu0 0
        %3428 = vmatprep.subr.bf16.mxu0 0
        %3429 = vmatpush2.bf16.msra.mxu0 0
        %3430 = vmatprep.subr.bf16.mxu0 0
        %3431 = vmatpush2.bf16.msra.mxu0 0
        %3432 = vmatprep.subr.bf16.mxu0 0
        %3433 = vmatpush2.bf16.msra.mxu0 0
        %3434 = vmatprep.subr.bf16.mxu0 0
        %3435 = vmatpush2.bf16.msra.mxu0 0
        %3436 = vmatprep.subr.bf16.mxu0 0
        %3437 = vmatpush2.bf16.msra.mxu0 0
        %3438 = vmatprep.subr.bf16.mxu0 0
        %3439 = vmatpush2.bf16.msra.mxu0 0
        %3440 = vmatprep.subr.bf16.mxu0 0
        %3441 = vmatpush2.bf16.msra.mxu0 0
        %3442 = vmatprep.mubr.bf16.mxu0 0
        %3443 = vmatmul.mubr.bf16.gmra.mxu0 %v3408
        %v3444 = vpop.f32.mrf.mxu0
        %v3445 = vadd.f32 0.0, %v3444
        %v3446 = vpop.f32.mrf.mxu0
        %v3447 = vadd.f32 0.0, %v3446
        %v3448 = vpop.f32.mrf.mxu0
        %v3449 = vadd.f32 0.0, %v3448
        %v3450 = vpop.f32.mrf.mxu0
        %v3451 = vadd.f32 0.0, %v3450
        %3452 = vdwg.mxu0
        %v3453 = vadd.f32 %v3359, %v3445
        %v3454 = vadd.f32 %v3361, %v3447
        %v3455 = vadd.f32 %v3363, %v3449
        %v3456 = vadd.f32 %v3365, %v3451
        %3457 = vrot.lane.b32.xlu0 %v3194, 1
        %v3458 = vpop.permute.xlu0 %3457
        %3459 = vrot.lane.b32.xlu0 %v3196, 1
        %v3460 = vpop.permute.xlu0 %3459
        %3461 = vrot.lane.b32.xlu0 %v3195, 1
        %v3462 = vpop.permute.xlu0 %3461
        %3463 = vrot.lane.b32.xlu0 %v3197, 1
        %v3464 = vpop.permute.xlu0 %3463
        %v3465 = vsel %vm678, %v3458, %v3462
        %v3466 = vsel %vm678, %v3460, %v3464
        %v3467 = vsel %vm678, %v3462, %v3458
        %v3468 = vsel %vm678, %v3464, %v3460
        %v3469 = vsel %vm3211, 1, 0
        %v3470 = vlaneseq
        %v3471 = vshrl.u32 %v3470, 7
        %v3472 = vsub.s32 0, %v3471
        %v3473 = vrot.slane %v3469, %v3472
        %v3474 = vlaneseq
        %v3475 = vshrl.u32 %v3474, 7
        %v3476 = vsub.s32 1, %v3475
        %v3477 = vrot.slane %v3469, %v3476
        %vm3478 = vcmp.eq.s32.totalorder %v3473, 1
        %vm3479 = vcmp.eq.s32.totalorder %v3477, 1
        %v3480 = vsel %vm3478, %v3467, 0.0
        %v3481 = vsel %vm3479, %v3465, 0.0
        %v3482 = vsel %vm3478, %v3468, 0.0
        %v3483 = vsel %vm3479, %v3466, 0.0
        %s3484 = scalar_lea.vmem [#allocation11], 24
        %v3485 = vld [vmem:[%s3484] sm:$0xf]
        %v3486 = vld [vmem:[%s3484 + $0x4] sm:$0x3]
        %v3487 = vpack.c.bf16 %v3482, %v3480
        %v3488 = vpack.c.bf16 %v3483, %v3481
        %v3491 = vunpack.c.l.b16 %v3485
        %v3492 = vunpack.c.l.b16 %v3486
        %v3493 = vpack.c.b16 %v3492, %v3491
        %v3495 = vsel %vm1400, %v3493, 0
        %3497 = vmatprep.subr.bf16.mxu0 0
        %3498 = vmatpush1.bf16.msra.mxu0 0
        %3499 = vmatprep.subr.bf16.mxu0 0
        %3500 = vmatpush1.bf16.msra.mxu0 0
        %3501 = vmatprep.subr.bf16.mxu0 0
        %3502 = vmatpush1.bf16.msra.mxu0 0
        %3503 = vmatprep.subr.bf16.mxu0 0
        %3504 = vmatpush1.bf16.msra.mxu0 0
        %3505 = vmatprep.subr.bf16.mxu0 0
        %3506 = vmatpush1.bf16.msra.mxu0 0
        %3507 = vmatprep.subr.bf16.mxu0 0
        %3508 = vmatpush1.bf16.msra.mxu0 0
        %3509 = vmatprep.subr.bf16.mxu0 0
        %3510 = vmatpush1.bf16.msra.mxu0 0
        %3511 = vmatprep.subr.bf16.mxu0 %v3488
        %3512 = vmatpush1.bf16.msra.mxu0 %v3487
        %3513 = vmatprep.subr.bf16.mxu0 0
        %3514 = vmatpush2.bf16.msra.mxu0 0
        %3515 = vmatprep.subr.bf16.mxu0 0
        %3516 = vmatpush2.bf16.msra.mxu0 0
        %3517 = vmatprep.subr.bf16.mxu0 0
        %3518 = vmatpush2.bf16.msra.mxu0 0
        %3519 = vmatprep.subr.bf16.mxu0 0
        %3520 = vmatpush2.bf16.msra.mxu0 0
        %3521 = vmatprep.subr.bf16.mxu0 0
        %3522 = vmatpush2.bf16.msra.mxu0 0
        %3523 = vmatprep.subr.bf16.mxu0 0
        %3524 = vmatpush2.bf16.msra.mxu0 0
        %3525 = vmatprep.subr.bf16.mxu0 0
        %3526 = vmatpush2.bf16.msra.mxu0 0
        %3527 = vmatprep.subr.bf16.mxu0 0
        %3528 = vmatpush2.bf16.msra.mxu0 0
        %3529 = vmatprep.mubr.bf16.mxu0 0
        %3530 = vmatmul.mubr.bf16.gmra.mxu0 %v3495
        %v3531 = vpop.f32.mrf.mxu0
        %v3532 = vadd.f32 0.0, %v3531
        %v3533 = vpop.f32.mrf.mxu0
        %v3534 = vadd.f32 0.0, %v3533
        %v3535 = vpop.f32.mrf.mxu0
        %v3536 = vadd.f32 0.0, %v3535
        %v3537 = vpop.f32.mrf.mxu0
        %v3538 = vadd.f32 0.0, %v3537
        %3539 = vdwg.mxu0
        %v3540 = vadd.f32 %v3453, %v3532
        %v3541 = vadd.f32 %v3454, %v3534
        %v3542 = vadd.f32 %v3455, %v3536
        %v3543 = vadd.f32 %v3456, %v3538
        %s3544 = scalar_lea.vmem [#allocation11], 32
        %v3545 = vld [vmem:[%s3544] sm:$0xf]
        %v3546 = vld [vmem:[%s3544 + $0x4] sm:$0x3]
        %v3547 = vpack.c.bf16 %v3196, %v3194
        %v3548 = vpack.c.bf16 %v3197, %v3195
        %v3551 = vunpack.c.l.b16 %v3545
        %v3552 = vunpack.c.l.b16 %v3546
        %v3553 = vpack.c.b16 %v3552, %v3551
        %v3555 = vsel %vm1400, %v3553, 0
        %3557 = vmatprep.subr.bf16.mxu0 0
        %3558 = vmatpush1.bf16.msra.mxu0 0
        %3559 = vmatprep.subr.bf16.mxu0 0
        %3560 = vmatpush1.bf16.msra.mxu0 0
        %3561 = vmatprep.subr.bf16.mxu0 0
        %3562 = vmatpush1.bf16.msra.mxu0 0
        %3563 = vmatprep.subr.bf16.mxu0 0
        %3564 = vmatpush1.bf16.msra.mxu0 0
        %3565 = vmatprep.subr.bf16.mxu0 0
        %3566 = vmatpush1.bf16.msra.mxu0 0
        %3567 = vmatprep.subr.bf16.mxu0 0
        %3568 = vmatpush1.bf16.msra.mxu0 0
        %3569 = vmatprep.subr.bf16.mxu0 0
        %3570 = vmatpush1.bf16.msra.mxu0 0
        %3571 = vmatprep.subr.bf16.mxu0 %v3548
        %3572 = vmatpush1.bf16.msra.mxu0 %v3547
        %3573 = vmatprep.subr.bf16.mxu0 0
        %3574 = vmatpush2.bf16.msra.mxu0 0
        %3575 = vmatprep.subr.bf16.mxu0 0
        %3576 = vmatpush2.bf16.msra.mxu0 0
        %3577 = vmatprep.subr.bf16.mxu0 0
        %3578 = vmatpush2.bf16.msra.mxu0 0
        %3579 = vmatprep.subr.bf16.mxu0 0
        %3580 = vmatpush2.bf16.msra.mxu0 0
        %3581 = vmatprep.subr.bf16.mxu0 0
        %3582 = vmatpush2.bf16.msra.mxu0 0
        %3583 = vmatprep.subr.bf16.mxu0 0
        %3584 = vmatpush2.bf16.msra.mxu0 0
        %3585 = vmatprep.subr.bf16.mxu0 0
        %3586 = vmatpush2.bf16.msra.mxu0 0
        %3587 = vmatprep.subr.bf16.mxu0 0
        %3588 = vmatpush2.bf16.msra.mxu0 0
        %3589 = vmatprep.mubr.bf16.mxu0 0
        %3590 = vmatmul.mubr.bf16.gmra.mxu0 %v3555
        %v3591 = vpop.f32.mrf.mxu0
        %v3592 = vadd.f32 0.0, %v3591
        %v3593 = vpop.f32.mrf.mxu0
        %v3594 = vadd.f32 0.0, %v3593
        %v3595 = vpop.f32.mrf.mxu0
        %v3596 = vadd.f32 0.0, %v3595
        %v3597 = vpop.f32.mrf.mxu0
        %v3598 = vadd.f32 0.0, %v3597
        %3599 = vdwg.mxu0
        %v3600 = vadd.f32 %v3540, %v3592
        %v3601 = vadd.f32 %v3541, %v3594
        %v3602 = vadd.f32 %v3542, %v3596
        %v3603 = vadd.f32 %v3543, %v3598
        %3604 = vrot.lane.b32.xlu0 %v3194, 127
        %v3605 = vpop.permute.xlu0 %3604
        %3606 = vrot.lane.b32.xlu0 %v3196, 127
        %v3607 = vpop.permute.xlu0 %3606
        %3608 = vrot.lane.b32.xlu0 %v3195, 127
        %v3609 = vpop.permute.xlu0 %3608
        %3610 = vrot.lane.b32.xlu0 %v3197, 127
        %v3611 = vpop.permute.xlu0 %3610
        %v3612 = vsel %vm685, %v3605, %v3609
        %v3613 = vsel %vm685, %v3607, %v3611
        %v3614 = vsel %vm685, %v3609, %v3605
        %v3615 = vsel %vm685, %v3611, %v3607
        %v3616 = vsel %vm3380, 1, 0
        %v3617 = vlaneseq
        %v3618 = vshrl.u32 %v3617, 7
        %v3619 = vsub.s32 0, %v3618
        %v3620 = vrot.slane %v3616, %v3619
        %v3621 = vlaneseq
        %v3622 = vshrl.u32 %v3621, 7
        %v3623 = vsub.s32 1, %v3622
        %v3624 = vrot.slane %v3616, %v3623
        %vm3625 = vcmp.eq.s32.totalorder %v3620, 1
        %vm3626 = vcmp.eq.s32.totalorder %v3624, 1
        %v3627 = vsel %vm3625, %v3612, 0.0
        %v3628 = vsel %vm3626, %v3614, 0.0
        %v3629 = vsel %vm3625, %v3613, 0.0
        %v3630 = vsel %vm3626, %v3615, 0.0
        %s3631 = scalar_lea.vmem [#allocation11], 40
        %v3632 = vld [vmem:[%s3631] sm:$0xf]
        %v3633 = vld [vmem:[%s3631 + $0x4] sm:$0x3]
        %v3634 = vpack.c.bf16 %v3629, %v3627
        %v3635 = vpack.c.bf16 %v3630, %v3628
        %v3638 = vunpack.c.l.b16 %v3632
        %v3639 = vunpack.c.l.b16 %v3633
        %v3640 = vpack.c.b16 %v3639, %v3638
        %v3642 = vsel %vm1400, %v3640, 0
        %3644 = vmatprep.subr.bf16.mxu0 0
        %3645 = vmatpush1.bf16.msra.mxu0 0
        %3646 = vmatprep.subr.bf16.mxu0 0
        %3647 = vmatpush1.bf16.msra.mxu0 0
        %3648 = vmatprep.subr.bf16.mxu0 0
        %3649 = vmatpush1.bf16.msra.mxu0 0
        %3650 = vmatprep.subr.bf16.mxu0 0
        %3651 = vmatpush1.bf16.msra.mxu0 0
        %3652 = vmatprep.subr.bf16.mxu0 0
        %3653 = vmatpush1.bf16.msra.mxu0 0
        %3654 = vmatprep.subr.bf16.mxu0 0
        %3655 = vmatpush1.bf16.msra.mxu0 0
        %3656 = vmatprep.subr.bf16.mxu0 0
        %3657 = vmatpush1.bf16.msra.mxu0 0
        %3658 = vmatprep.subr.bf16.mxu0 %v3635
        %3659 = vmatpush1.bf16.msra.mxu0 %v3634
        %3660 = vmatprep.subr.bf16.mxu0 0
        %3661 = vmatpush2.bf16.msra.mxu0 0
        %3662 = vmatprep.subr.bf16.mxu0 0
        %3663 = vmatpush2.bf16.msra.mxu0 0
        %3664 = vmatprep.subr.bf16.mxu0 0
        %3665 = vmatpush2.bf16.msra.mxu0 0
        %3666 = vmatprep.subr.bf16.mxu0 0
        %3667 = vmatpush2.bf16.msra.mxu0 0
        %3668 = vmatprep.subr.bf16.mxu0 0
        %3669 = vmatpush2.bf16.msra.mxu0 0
        %3670 = vmatprep.subr.bf16.mxu0 0
        %3671 = vmatpush2.bf16.msra.mxu0 0
        %3672 = vmatprep.subr.bf16.mxu0 0
        %3673 = vmatpush2.bf16.msra.mxu0 0
        %3674 = vmatprep.subr.bf16.mxu0 0
        %3675 = vmatpush2.bf16.msra.mxu0 0
        %3676 = vmatprep.mubr.bf16.mxu0 0
        %3677 = vmatmul.mubr.bf16.gmra.mxu0 %v3642
        %v3678 = vpop.f32.mrf.mxu0
        %v3679 = vadd.f32 0.0, %v3678
        %v3680 = vpop.f32.mrf.mxu0
        %v3681 = vadd.f32 0.0, %v3680
        %v3682 = vpop.f32.mrf.mxu0
        %v3683 = vadd.f32 0.0, %v3682
        %v3684 = vpop.f32.mrf.mxu0
        %v3685 = vadd.f32 0.0, %v3684
        %3686 = vdwg.mxu0
        %v3687 = vadd.f32 %v3600, %v3679
        %v3688 = vadd.f32 %v3601, %v3681
        %v3689 = vadd.f32 %v3602, %v3683
        %v3690 = vadd.f32 %v3603, %v3685
        %3691 = vrot.lane.b32.xlu0 %v3194, 113
        %v3692 = vpop.permute.xlu0 %3691
        %3693 = vrot.lane.b32.xlu0 %v3196, 113
        %v3694 = vpop.permute.xlu0 %3693
        %3695 = vrot.lane.b32.xlu0 %v3195, 113
        %v3696 = vpop.permute.xlu0 %3695
        %3697 = vrot.lane.b32.xlu0 %v3197, 113
        %v3698 = vpop.permute.xlu0 %3697
        %vm3699 = vcmp.lt.s32.totalorder %v677, 113
        %v3700 = vsel %vm3699, %v3692, %v3696
        %v3701 = vsel %vm3699, %v3694, %v3698
        %v3702 = vsel %vm3699, %v3696, %v3692
        %v3703 = vsel %vm3699, %v3698, %v3694
        %vm3704 = vcmp.lt.s32.totalorder %v649, 15
        %vm3705 = vmand %vm3211, %vm3704
        %v3706 = vsel %vm3705, 1, 0
        %v3707 = vlaneseq
        %v3708 = vshrl.u32 %v3707, 7
        %v3709 = vsub.s32 0, %v3708
        %v3710 = vrot.slane %v3706, %v3709
        %v3711 = vlaneseq
        %v3712 = vshrl.u32 %v3711, 7
        %v3713 = vsub.s32 1, %v3712
        %v3714 = vrot.slane %v3706, %v3713
        %vm3715 = vcmp.eq.s32.totalorder %v3710, 1
        %vm3716 = vcmp.eq.s32.totalorder %v3714, 1
        %v3717 = vsel %vm3715, %v3700, 0.0
        %v3718 = vsel %vm3716, %v3702, 0.0
        %v3719 = vsel %vm3715, %v3701, 0.0
        %v3720 = vsel %vm3716, %v3703, 0.0
        %s3721 = scalar_lea.vmem [#allocation11], 48
        %v3722 = vld [vmem:[%s3721] sm:$0xf]
        %v3723 = vld [vmem:[%s3721 + $0x4] sm:$0x3]
        %v3724 = vpack.c.bf16 %v3719, %v3717
        %v3725 = vpack.c.bf16 %v3720, %v3718
        %v3728 = vunpack.c.l.b16 %v3722
        %v3729 = vunpack.c.l.b16 %v3723
        %v3730 = vpack.c.b16 %v3729, %v3728
        %v3732 = vsel %vm1400, %v3730, 0
        %3734 = vmatprep.subr.bf16.mxu0 0
        %3735 = vmatpush1.bf16.msra.mxu0 0
        %3736 = vmatprep.subr.bf16.mxu0 0
        %3737 = vmatpush1.bf16.msra.mxu0 0
        %3738 = vmatprep.subr.bf16.mxu0 0
        %3739 = vmatpush1.bf16.msra.mxu0 0
        %3740 = vmatprep.subr.bf16.mxu0 0
        %3741 = vmatpush1.bf16.msra.mxu0 0
        %3742 = vmatprep.subr.bf16.mxu0 0
        %3743 = vmatpush1.bf16.msra.mxu0 0
        %3744 = vmatprep.subr.bf16.mxu0 0
        %3745 = vmatpush1.bf16.msra.mxu0 0
        %3746 = vmatprep.subr.bf16.mxu0 0
        %3747 = vmatpush1.bf16.msra.mxu0 0
        %3748 = vmatprep.subr.bf16.mxu0 %v3725
        %3749 = vmatpush1.bf16.msra.mxu0 %v3724
        %3750 = vmatprep.subr.bf16.mxu0 0
        %3751 = vmatpush2.bf16.msra.mxu0 0
        %3752 = vmatprep.subr.bf16.mxu0 0
        %3753 = vmatpush2.bf16.msra.mxu0 0
        %3754 = vmatprep.subr.bf16.mxu0 0
        %3755 = vmatpush2.bf16.msra.mxu0 0
        %3756 = vmatprep.subr.bf16.mxu0 0
        %3757 = vmatpush2.bf16.msra.mxu0 0
        %3758 = vmatprep.subr.bf16.mxu0 0
        %3759 = vmatpush2.bf16.msra.mxu0 0
        %3760 = vmatprep.subr.bf16.mxu0 0
        %3761 = vmatpush2.bf16.msra.mxu0 0
        %3762 = vmatprep.subr.bf16.mxu0 0
        %3763 = vmatpush2.bf16.msra.mxu0 0
        %3764 = vmatprep.subr.bf16.mxu0 0
        %3765 = vmatpush2.bf16.msra.mxu0 0
        %3766 = vmatprep.mubr.bf16.mxu0 0
        %3767 = vmatmul.mubr.bf16.gmra.mxu0 %v3732
        %v3768 = vpop.f32.mrf.mxu0
        %v3769 = vadd.f32 0.0, %v3768
        %v3770 = vpop.f32.mrf.mxu0
        %v3771 = vadd.f32 0.0, %v3770
        %v3772 = vpop.f32.mrf.mxu0
        %v3773 = vadd.f32 0.0, %v3772
        %v3774 = vpop.f32.mrf.mxu0
        %v3775 = vadd.f32 0.0, %v3774
        %3776 = vdwg.mxu0
        %v3777 = vadd.f32 %v3687, %v3769
        %v3778 = vadd.f32 %v3688, %v3771
        %v3779 = vadd.f32 %v3689, %v3773
        %v3780 = vadd.f32 %v3690, %v3775
        %3781 = vrot.lane.b32.xlu0 %v3194, 112
        %v3782 = vpop.permute.xlu0 %3781
        %3783 = vrot.lane.b32.xlu0 %v3196, 112
        %v3784 = vpop.permute.xlu0 %3783
        %3785 = vrot.lane.b32.xlu0 %v3195, 112
        %v3786 = vpop.permute.xlu0 %3785
        %3787 = vrot.lane.b32.xlu0 %v3197, 112
        %v3788 = vpop.permute.xlu0 %3787
        %v3789 = vsel %vm725, %v3782, %v3786
        %v3790 = vsel %vm725, %v3784, %v3788
        %v3791 = vsel %vm725, %v3786, %v3782
        %v3792 = vsel %vm725, %v3788, %v3784
        %v3793 = vsel %vm3704, 1, 0
        %v3794 = vlaneseq
        %v3795 = vshrl.u32 %v3794, 7
        %v3796 = vsub.s32 0, %v3795
        %v3797 = vrot.slane %v3793, %v3796
        %v3798 = vlaneseq
        %v3799 = vshrl.u32 %v3798, 7
        %v3800 = vsub.s32 1, %v3799
        %v3801 = vrot.slane %v3793, %v3800
        %vm3802 = vcmp.eq.s32.totalorder %v3797, 1
        %vm3803 = vcmp.eq.s32.totalorder %v3801, 1
        %v3804 = vsel %vm3802, %v3789, 0.0
        %v3805 = vsel %vm3803, %v3791, 0.0
        %v3806 = vsel %vm3802, %v3790, 0.0
        %v3807 = vsel %vm3803, %v3792, 0.0
        %s3808 = scalar_lea.vmem [#allocation11], 56
        %v3809 = vld [vmem:[%s3808] sm:$0xf]
        %v3810 = vld [vmem:[%s3808 + $0x4] sm:$0x3]
        %v3811 = vpack.c.bf16 %v3806, %v3804
        %v3812 = vpack.c.bf16 %v3807, %v3805
        %v3815 = vunpack.c.l.b16 %v3809
        %v3816 = vunpack.c.l.b16 %v3810
        %v3817 = vpack.c.b16 %v3816, %v3815
        %v3819 = vsel %vm1400, %v3817, 0
        %3821 = vmatprep.subr.bf16.mxu0 0
        %3822 = vmatpush1.bf16.msra.mxu0 0
        %3823 = vmatprep.subr.bf16.mxu0 0
        %3824 = vmatpush1.bf16.msra.mxu0 0
        %3825 = vmatprep.subr.bf16.mxu0 0
        %3826 = vmatpush1.bf16.msra.mxu0 0
        %3827 = vmatprep.subr.bf16.mxu0 0
        %3828 = vmatpush1.bf16.msra.mxu0 0
        %3829 = vmatprep.subr.bf16.mxu0 0
        %3830 = vmatpush1.bf16.msra.mxu0 0
        %3831 = vmatprep.subr.bf16.mxu0 0
        %3832 = vmatpush1.bf16.msra.mxu0 0
        %3833 = vmatprep.subr.bf16.mxu0 0
        %3834 = vmatpush1.bf16.msra.mxu0 0
        %3835 = vmatprep.subr.bf16.mxu0 %v3812
        %3836 = vmatpush1.bf16.msra.mxu0 %v3811
        %3837 = vmatprep.subr.bf16.mxu0 0
        %3838 = vmatpush2.bf16.msra.mxu0 0
        %3839 = vmatprep.subr.bf16.mxu0 0
        %3840 = vmatpush2.bf16.msra.mxu0 0
        %3841 = vmatprep.subr.bf16.mxu0 0
        %3842 = vmatpush2.bf16.msra.mxu0 0
        %3843 = vmatprep.subr.bf16.mxu0 0
        %3844 = vmatpush2.bf16.msra.mxu0 0
        %3845 = vmatprep.subr.bf16.mxu0 0
        %3846 = vmatpush2.bf16.msra.mxu0 0
        %3847 = vmatprep.subr.bf16.mxu0 0
        %3848 = vmatpush2.bf16.msra.mxu0 0
        %3849 = vmatprep.subr.bf16.mxu0 0
        %3850 = vmatpush2.bf16.msra.mxu0 0
        %3851 = vmatprep.subr.bf16.mxu0 0
        %3852 = vmatpush2.bf16.msra.mxu0 0
        %3853 = vmatprep.mubr.bf16.mxu0 0
        %3854 = vmatmul.mubr.bf16.gmra.mxu0 %v3819
        %v3855 = vpop.f32.mrf.mxu0
        %v3856 = vadd.f32 0.0, %v3855
        %v3857 = vpop.f32.mrf.mxu0
        %v3858 = vadd.f32 0.0, %v3857
        %v3859 = vpop.f32.mrf.mxu0
        %v3860 = vadd.f32 0.0, %v3859
        %v3861 = vpop.f32.mrf.mxu0
        %v3862 = vadd.f32 0.0, %v3861
        %3863 = vdwg.mxu0
        %v3864 = vadd.f32 %v3777, %v3856
        %v3865 = vadd.f32 %v3778, %v3858
        %v3866 = vadd.f32 %v3779, %v3860
        %v3867 = vadd.f32 %v3780, %v3862
        %3868 = vrot.lane.b32.xlu0 %v3194, 111
        %v3869 = vpop.permute.xlu0 %3868
        %3870 = vrot.lane.b32.xlu0 %v3196, 111
        %v3871 = vpop.permute.xlu0 %3870
        %3872 = vrot.lane.b32.xlu0 %v3195, 111
        %v3873 = vpop.permute.xlu0 %3872
        %3874 = vrot.lane.b32.xlu0 %v3197, 111
        %v3875 = vpop.permute.xlu0 %3874
        %vm3876 = vcmp.lt.s32.totalorder %v677, 111
        %v3877 = vsel %vm3876, %v3869, %v3873
        %v3878 = vsel %vm3876, %v3871, %v3875
        %v3879 = vsel %vm3876, %v3873, %v3869
        %v3880 = vsel %vm3876, %v3875, %v3871
        %vm3881 = vmand %vm3380, %vm3704
        %v3882 = vsel %vm3881, 1, 0
        %v3883 = vlaneseq
        %v3884 = vshrl.u32 %v3883, 7
        %v3885 = vsub.s32 0, %v3884
        %v3886 = vrot.slane %v3882, %v3885
        %v3887 = vlaneseq
        %v3888 = vshrl.u32 %v3887, 7
        %v3889 = vsub.s32 1, %v3888
        %v3890 = vrot.slane %v3882, %v3889
        %vm3891 = vcmp.eq.s32.totalorder %v3886, 1
        %vm3892 = vcmp.eq.s32.totalorder %v3890, 1
        %v3893 = vsel %vm3891, %v3877, 0.0
        %v3894 = vsel %vm3892, %v3879, 0.0
        %v3895 = vsel %vm3891, %v3878, 0.0
        %v3896 = vsel %vm3892, %v3880, 0.0
        %s3897 = scalar_lea.vmem [#allocation11], 64
        %v3898 = vld [vmem:[%s3897] sm:$0xf]
        %v3899 = vld [vmem:[%s3897 + $0x4] sm:$0x3]
        %v3900 = vpack.c.bf16 %v3895, %v3893
        %v3901 = vpack.c.bf16 %v3896, %v3894
        %v3904 = vunpack.c.l.b16 %v3898
        %v3905 = vunpack.c.l.b16 %v3899
        %v3906 = vpack.c.b16 %v3905, %v3904
        %v3908 = vsel %vm1400, %v3906, 0
        %3910 = vmatprep.subr.bf16.mxu0 0
        %3911 = vmatpush1.bf16.msra.mxu0 0
        %3912 = vmatprep.subr.bf16.mxu0 0
        %3913 = vmatpush1.bf16.msra.mxu0 0
        %3914 = vmatprep.subr.bf16.mxu0 0
        %3915 = vmatpush1.bf16.msra.mxu0 0
        %3916 = vmatprep.subr.bf16.mxu0 0
        %3917 = vmatpush1.bf16.msra.mxu0 0
        %3918 = vmatprep.subr.bf16.mxu0 0
        %3919 = vmatpush1.bf16.msra.mxu0 0
        %3920 = vmatprep.subr.bf16.mxu0 0
        %3921 = vmatpush1.bf16.msra.mxu0 0
        %3922 = vmatprep.subr.bf16.mxu0 0
        %3923 = vmatpush1.bf16.msra.mxu0 0
        %3924 = vmatprep.subr.bf16.mxu0 %v3901
        %3925 = vmatpush1.bf16.msra.mxu0 %v3900
        %3926 = vmatprep.subr.bf16.mxu0 0
        %3927 = vmatpush2.bf16.msra.mxu0 0
        %3928 = vmatprep.subr.bf16.mxu0 0
        %3929 = vmatpush2.bf16.msra.mxu0 0
        %3930 = vmatprep.subr.bf16.mxu0 0
        %3931 = vmatpush2.bf16.msra.mxu0 0
        %3932 = vmatprep.subr.bf16.mxu0 0
        %3933 = vmatpush2.bf16.msra.mxu0 0
        %3934 = vmatprep.subr.bf16.mxu0 0
        %3935 = vmatpush2.bf16.msra.mxu0 0
        %3936 = vmatprep.subr.bf16.mxu0 0
        %3937 = vmatpush2.bf16.msra.mxu0 0
        %3938 = vmatprep.subr.bf16.mxu0 0
        %3939 = vmatpush2.bf16.msra.mxu0 0
        %3940 = vmatprep.subr.bf16.mxu0 0
        %3941 = vmatpush2.bf16.msra.mxu0 0
        %3942 = vmatprep.mubr.bf16.mxu0 0
        %3943 = vmatmul.mubr.bf16.gmra.mxu0 %v3908
        %v3944 = vpop.f32.mrf.mxu0
        %v3945 = vadd.f32 0.0, %v3944
        %v3946 = vpop.f32.mrf.mxu0
        %v3947 = vadd.f32 0.0, %v3946
        %v3948 = vpop.f32.mrf.mxu0
        %v3949 = vadd.f32 0.0, %v3948
        %v3950 = vpop.f32.mrf.mxu0
        %v3951 = vadd.f32 0.0, %v3950
        %3952 = vdwg.mxu0
        %v3953 = vadd.f32 %v3864, %v3945
        %v3954 = vadd.f32 %v3865, %v3947
        %v3955 = vadd.f32 %v3866, %v3949
        %v3956 = vadd.f32 %v3867, %v3951
        %v3957 = vld [vmem:[%s12] sm:$0xff]
        %v3958 = vld [vmem:[%s12 + $0x8] sm:$0xf]
        %3960 = vset.pattern.permute.xlu0 0
        %3961 = vperm.xlu0 %3960, %v3957
        %v3962 = vpop.permute.xlu0 %3961
        %3965 = vset.pattern.permute.xlu0 0
        %3966 = vperm.xlu0 %3965, %v3958
        %v3967 = vpop.permute.xlu0 %3966
        %v3969 = vadd.f32 %v3953, %v3962
        %v3970 = vadd.f32 %v3954, %v3962
        %v3971 = vadd.f32 %v3955, %v3967
        %v3972 = vadd.f32 %v3956, %v3967
        %3973 = vrot.lane.b32.xlu0 %v668, 34
        %v3974 = vpop.permute.xlu0 %3973
        %3975 = vrot.lane.b32.xlu0 %v670, 34
        %v3976 = vpop.permute.xlu0 %3975
        %vm3977 = vcmp.lt.s32.totalorder %v677, 34
        %v3978 = vsel %vm3977, %v3974, %v3976
        %v3979 = vsel %vm3977, %v3976, %v3974
        %vm3980 = vcmp.ge.s32.totalorder %v648, 2
        %vm3981 = vcmp.ge.s32.totalorder %v649, 2
        %vm3982 = vmand %vm3980, %vm3981
        %v3983 = vsel %vm3982, 1, 0
        %v3984 = vlaneseq
        %v3985 = vshrl.u32 %v3984, 7
        %v3986 = vsub.s32 0, %v3985
        %v3987 = vrot.slane %v3983, %v3986
        %v3988 = vlaneseq
        %v3989 = vshrl.u32 %v3988, 7
        %v3990 = vsub.s32 1, %v3989
        %v3991 = vrot.slane %v3983, %v3990
        %vm3992 = vcmp.eq.s32.totalorder %v3987, 1
        %vm3993 = vcmp.eq.s32.totalorder %v3991, 1
        %v3994 = vsel %vm3992, %v3979, 0.0
        %v3995 = vsel %vm3993, %v3978, 0.0
        %v3996 = vld [vmem:[%s13] sm:$0xf]
        %v3997 = vld [vmem:[%s13 + $0x4] sm:$0x3]
        %v3998 = vpack.c.bf16 %v3994, %v3994
        %v3999 = vpack.c.bf16 %v3995, %v3995
        %4000 = vrot.lane.b32.xlu0 %v668, 33
        %v4001 = vpop.permute.xlu0 %4000
        %4002 = vrot.lane.b32.xlu0 %v670, 33
        %v4003 = vpop.permute.xlu0 %4002
        %vm4004 = vcmp.lt.s32.totalorder %v677, 33
        %v4005 = vsel %vm4004, %v4001, %v4003
        %v4006 = vsel %vm4004, %v4003, %v4001
        %vm4007 = vmand %vm3211, %vm3981
        %v4008 = vsel %vm4007, 1, 0
        %v4009 = vlaneseq
        %v4010 = vshrl.u32 %v4009, 7
        %v4011 = vsub.s32 0, %v4010
        %v4012 = vrot.slane %v4008, %v4011
        %v4013 = vlaneseq
        %v4014 = vshrl.u32 %v4013, 7
        %v4015 = vsub.s32 1, %v4014
        %v4016 = vrot.slane %v4008, %v4015
        %vm4017 = vcmp.eq.s32.totalorder %v4012, 1
        %vm4018 = vcmp.eq.s32.totalorder %v4016, 1
        %v4019 = vsel %vm4017, %v4006, 0.0
        %v4020 = vsel %vm4018, %v4005, 0.0
        %s4021 = scalar_lea.vmem %s13, 8
        %v4022 = vld [vmem:[%s4021] sm:$0xf]
        %v4023 = vld [vmem:[%s4021 + $0x4] sm:$0x3]
        %v4024 = vpack.c.bf16 %v4019, %v4019
        %v4025 = vpack.c.bf16 %v4020, %v4020
        %v4028 = vunpack.c.l.b16 %v4022
        %v4029 = vunpack.c.l.b16 %v4023
        %v4030 = vpack.c.b16 %v4029, %v4028
        %v4032 = vsel %vm768, %v4030, 0
        %v4035 = vand.u32 %v4024, %v775
        %v4038 = vand.u32 %v4025, %v775
        %4040 = vmatprep.subr.bf16.mxu0 0
        %4041 = vmatpush1.bf16.msra.mxu0 0
        %4042 = vmatprep.subr.bf16.mxu0 0
        %4043 = vmatpush1.bf16.msra.mxu0 0
        %4044 = vmatprep.subr.bf16.mxu0 0
        %4045 = vmatpush1.bf16.msra.mxu0 0
        %4046 = vmatprep.subr.bf16.mxu0 0
        %4047 = vmatpush1.bf16.msra.mxu0 0
        %4048 = vmatprep.subr.bf16.mxu0 0
        %4049 = vmatpush1.bf16.msra.mxu0 0
        %4050 = vmatprep.subr.bf16.mxu0 0
        %4051 = vmatpush1.bf16.msra.mxu0 0
        %4052 = vmatprep.subr.bf16.mxu0 0
        %4053 = vmatpush1.bf16.msra.mxu0 0
        %4054 = vmatprep.subr.bf16.mxu0 %v4038
        %4055 = vmatpush1.bf16.msra.mxu0 %v4035
        %4056 = vmatprep.subr.bf16.mxu0 0
        %4057 = vmatpush2.bf16.msra.mxu0 0
        %4058 = vmatprep.subr.bf16.mxu0 0
        %4059 = vmatpush2.bf16.msra.mxu0 0
        %4060 = vmatprep.subr.bf16.mxu0 0
        %4061 = vmatpush2.bf16.msra.mxu0 0
        %4062 = vmatprep.subr.bf16.mxu0 0
        %4063 = vmatpush2.bf16.msra.mxu0 0
        %4064 = vmatprep.subr.bf16.mxu0 0
        %4065 = vmatpush2.bf16.msra.mxu0 0
        %4066 = vmatprep.subr.bf16.mxu0 0
        %4067 = vmatpush2.bf16.msra.mxu0 0
        %4068 = vmatprep.subr.bf16.mxu0 0
        %4069 = vmatpush2.bf16.msra.mxu0 0
        %4070 = vmatprep.subr.bf16.mxu0 0
        %4071 = vmatpush2.bf16.msra.mxu0 0
        %4072 = vmatprep.mubr.bf16.mxu0 0
        %4073 = vmatmul.mubr.bf16.gmra.mxu0 %v4032
        %v4074 = vpop.f32.mrf.mxu0
        %v4075 = vadd.f32 0.0, %v4074
        %v4076 = vpop.f32.mrf.mxu0
        %v4077 = vadd.f32 0.0, %v4076
        %v4078 = vpop.f32.mrf.mxu0
        %v4079 = vadd.f32 0.0, %v4078
        %v4080 = vpop.f32.mrf.mxu0
        %v4081 = vadd.f32 0.0, %v4080
        %4082 = vdwg.mxu0
        %v4085 = vunpack.c.l.b16 %v3996
        %v4086 = vunpack.c.l.b16 %v3997
        %v4087 = vpack.c.b16 %v4086, %v4085
        %v4089 = vsel %vm768, %v4087, 0
        %v4092 = vand.u32 %v3998, %v775
        %v4095 = vand.u32 %v3999, %v775
        %4097 = vmatprep.subr.bf16.mxu0 0
        %4098 = vmatpush1.bf16.msra.mxu0 0
        %4099 = vmatprep.subr.bf16.mxu0 0
        %4100 = vmatpush1.bf16.msra.mxu0 0
        %4101 = vmatprep.subr.bf16.mxu0 0
        %4102 = vmatpush1.bf16.msra.mxu0 0
        %4103 = vmatprep.subr.bf16.mxu0 0
        %4104 = vmatpush1.bf16.msra.mxu0 0
        %4105 = vmatprep.subr.bf16.mxu0 0
        %4106 = vmatpush1.bf16.msra.mxu0 0
        %4107 = vmatprep.subr.bf16.mxu0 0
        %4108 = vmatpush1.bf16.msra.mxu0 0
        %4109 = vmatprep.subr.bf16.mxu0 0
        %4110 = vmatpush1.bf16.msra.mxu0 0
        %4111 = vmatprep.subr.bf16.mxu0 %v4095
        %4112 = vmatpush1.bf16.msra.mxu0 %v4092
        %4113 = vmatprep.subr.bf16.mxu0 0
        %4114 = vmatpush2.bf16.msra.mxu0 0
        %4115 = vmatprep.subr.bf16.mxu0 0
        %4116 = vmatpush2.bf16.msra.mxu0 0
        %4117 = vmatprep.subr.bf16.mxu0 0
        %4118 = vmatpush2.bf16.msra.mxu0 0
        %4119 = vmatprep.subr.bf16.mxu0 0
        %4120 = vmatpush2.bf16.msra.mxu0 0
        %4121 = vmatprep.subr.bf16.mxu0 0
        %4122 = vmatpush2.bf16.msra.mxu0 0
        %4123 = vmatprep.subr.bf16.mxu0 0
        %4124 = vmatpush2.bf16.msra.mxu0 0
        %4125 = vmatprep.subr.bf16.mxu0 0
        %4126 = vmatpush2.bf16.msra.mxu0 0
        %4127 = vmatprep.subr.bf16.mxu0 0
        %4128 = vmatpush2.bf16.msra.mxu0 0
        %4129 = vmatprep.mubr.bf16.mxu0 0
        %4130 = vmatmul.mubr.bf16.gmra.mxu0 %v4089
        %v4131 = vpop.f32.mrf.mxu0
        %v4132 = vadd.f32 %v4075, %v4131
        %v4133 = vpop.f32.mrf.mxu0
        %v4134 = vadd.f32 %v4077, %v4133
        %v4135 = vpop.f32.mrf.mxu0
        %v4136 = vadd.f32 %v4079, %v4135
        %v4137 = vpop.f32.mrf.mxu0
        %v4138 = vadd.f32 %v4081, %v4137
        %4139 = vdwg.mxu0
        %4140 = vrot.lane.b32.xlu0 %v668, 32
        %v4141 = vpop.permute.xlu0 %4140
        %4142 = vrot.lane.b32.xlu0 %v670, 32
        %v4143 = vpop.permute.xlu0 %4142
        %vm4144 = vcmp.lt.s32.totalorder %v677, 32
        %v4145 = vsel %vm4144, %v4141, %v4143
        %v4146 = vsel %vm4144, %v4143, %v4141
        %v4147 = vsel %vm3981, 1, 0
        %v4148 = vlaneseq
        %v4149 = vshrl.u32 %v4148, 7
        %v4150 = vsub.s32 0, %v4149
        %v4151 = vrot.slane %v4147, %v4150
        %v4152 = vlaneseq
        %v4153 = vshrl.u32 %v4152, 7
        %v4154 = vsub.s32 1, %v4153
        %v4155 = vrot.slane %v4147, %v4154
        %vm4156 = vcmp.eq.s32.totalorder %v4151, 1
        %vm4157 = vcmp.eq.s32.totalorder %v4155, 1
        %v4158 = vsel %vm4156, %v4146, 0.0
        %v4159 = vsel %vm4157, %v4145, 0.0
        %s4160 = scalar_lea.vmem %s13, 16
        %v4161 = vld [vmem:[%s4160] sm:$0xf]
        %v4162 = vld [vmem:[%s4160 + $0x4] sm:$0x3]
        %v4163 = vpack.c.bf16 %v4158, %v4158
        %v4164 = vpack.c.bf16 %v4159, %v4159
        %v4167 = vunpack.c.l.b16 %v4161
        %v4168 = vunpack.c.l.b16 %v4162
        %v4169 = vpack.c.b16 %v4168, %v4167
        %v4171 = vsel %vm768, %v4169, 0
        %v4174 = vand.u32 %v4163, %v775
        %v4177 = vand.u32 %v4164, %v775
        %4179 = vmatprep.subr.bf16.mxu0 0
        %4180 = vmatpush1.bf16.msra.mxu0 0
        %4181 = vmatprep.subr.bf16.mxu0 0
        %4182 = vmatpush1.bf16.msra.mxu0 0
        %4183 = vmatprep.subr.bf16.mxu0 0
        %4184 = vmatpush1.bf16.msra.mxu0 0
        %4185 = vmatprep.subr.bf16.mxu0 0
        %4186 = vmatpush1.bf16.msra.mxu0 0
        %4187 = vmatprep.subr.bf16.mxu0 0
        %4188 = vmatpush1.bf16.msra.mxu0 0
        %4189 = vmatprep.subr.bf16.mxu0 0
        %4190 = vmatpush1.bf16.msra.mxu0 0
        %4191 = vmatprep.subr.bf16.mxu0 0
        %4192 = vmatpush1.bf16.msra.mxu0 0
        %4193 = vmatprep.subr.bf16.mxu0 %v4177
        %4194 = vmatpush1.bf16.msra.mxu0 %v4174
        %4195 = vmatprep.subr.bf16.mxu0 0
        %4196 = vmatpush2.bf16.msra.mxu0 0
        %4197 = vmatprep.subr.bf16.mxu0 0
        %4198 = vmatpush2.bf16.msra.mxu0 0
        %4199 = vmatprep.subr.bf16.mxu0 0
        %4200 = vmatpush2.bf16.msra.mxu0 0
        %4201 = vmatprep.subr.bf16.mxu0 0
        %4202 = vmatpush2.bf16.msra.mxu0 0
        %4203 = vmatprep.subr.bf16.mxu0 0
        %4204 = vmatpush2.bf16.msra.mxu0 0
        %4205 = vmatprep.subr.bf16.mxu0 0
        %4206 = vmatpush2.bf16.msra.mxu0 0
        %4207 = vmatprep.subr.bf16.mxu0 0
        %4208 = vmatpush2.bf16.msra.mxu0 0
        %4209 = vmatprep.subr.bf16.mxu0 0
        %4210 = vmatpush2.bf16.msra.mxu0 0
        %4211 = vmatprep.mubr.bf16.mxu0 0
        %4212 = vmatmul.mubr.bf16.gmra.mxu0 %v4171
        %v4213 = vpop.f32.mrf.mxu0
        %v4214 = vadd.f32 0.0, %v4213
        %v4215 = vpop.f32.mrf.mxu0
        %v4216 = vadd.f32 0.0, %v4215
        %v4217 = vpop.f32.mrf.mxu0
        %v4218 = vadd.f32 0.0, %v4217
        %v4219 = vpop.f32.mrf.mxu0
        %v4220 = vadd.f32 0.0, %v4219
        %4221 = vdwg.mxu0
        %v4222 = vadd.f32 %v4132, %v4214
        %v4223 = vadd.f32 %v4134, %v4216
        %v4224 = vadd.f32 %v4136, %v4218
        %v4225 = vadd.f32 %v4138, %v4220
        %4226 = vrot.lane.b32.xlu0 %v668, 31
        %v4227 = vpop.permute.xlu0 %4226
        %4228 = vrot.lane.b32.xlu0 %v670, 31
        %v4229 = vpop.permute.xlu0 %4228
        %vm4230 = vcmp.lt.s32.totalorder %v677, 31
        %v4231 = vsel %vm4230, %v4227, %v4229
        %v4232 = vsel %vm4230, %v4229, %v4227
        %vm4233 = vmand %vm3380, %vm3981
        %v4234 = vsel %vm4233, 1, 0
        %v4235 = vlaneseq
        %v4236 = vshrl.u32 %v4235, 7
        %v4237 = vsub.s32 0, %v4236
        %v4238 = vrot.slane %v4234, %v4237
        %v4239 = vlaneseq
        %v4240 = vshrl.u32 %v4239, 7
        %v4241 = vsub.s32 1, %v4240
        %v4242 = vrot.slane %v4234, %v4241
        %vm4243 = vcmp.eq.s32.totalorder %v4238, 1
        %vm4244 = vcmp.eq.s32.totalorder %v4242, 1
        %v4245 = vsel %vm4243, %v4232, 0.0
        %v4246 = vsel %vm4244, %v4231, 0.0
        %s4247 = scalar_lea.vmem %s13, 24
        %v4248 = vld [vmem:[%s4247] sm:$0xf]
        %v4249 = vld [vmem:[%s4247 + $0x4] sm:$0x3]
        %v4250 = vpack.c.bf16 %v4245, %v4245
        %v4251 = vpack.c.bf16 %v4246, %v4246
        %v4254 = vunpack.c.l.b16 %v4248
        %v4255 = vunpack.c.l.b16 %v4249
        %v4256 = vpack.c.b16 %v4255, %v4254
        %v4258 = vsel %vm768, %v4256, 0
        %v4261 = vand.u32 %v4250, %v775
        %v4264 = vand.u32 %v4251, %v775
        %4266 = vmatprep.subr.bf16.mxu0 0
        %4267 = vmatpush1.bf16.msra.mxu0 0
        %4268 = vmatprep.subr.bf16.mxu0 0
        %4269 = vmatpush1.bf16.msra.mxu0 0
        %4270 = vmatprep.subr.bf16.mxu0 0
        %4271 = vmatpush1.bf16.msra.mxu0 0
        %4272 = vmatprep.subr.bf16.mxu0 0
        %4273 = vmatpush1.bf16.msra.mxu0 0
        %4274 = vmatprep.subr.bf16.mxu0 0
        %4275 = vmatpush1.bf16.msra.mxu0 0
        %4276 = vmatprep.subr.bf16.mxu0 0
        %4277 = vmatpush1.bf16.msra.mxu0 0
        %4278 = vmatprep.subr.bf16.mxu0 0
        %4279 = vmatpush1.bf16.msra.mxu0 0
        %4280 = vmatprep.subr.bf16.mxu0 %v4264
        %4281 = vmatpush1.bf16.msra.mxu0 %v4261
        %4282 = vmatprep.subr.bf16.mxu0 0
        %4283 = vmatpush2.bf16.msra.mxu0 0
        %4284 = vmatprep.subr.bf16.mxu0 0
        %4285 = vmatpush2.bf16.msra.mxu0 0
        %4286 = vmatprep.subr.bf16.mxu0 0
        %4287 = vmatpush2.bf16.msra.mxu0 0
        %4288 = vmatprep.subr.bf16.mxu0 0
        %4289 = vmatpush2.bf16.msra.mxu0 0
        %4290 = vmatprep.subr.bf16.mxu0 0
        %4291 = vmatpush2.bf16.msra.mxu0 0
        %4292 = vmatprep.subr.bf16.mxu0 0
        %4293 = vmatpush2.bf16.msra.mxu0 0
        %4294 = vmatprep.subr.bf16.mxu0 0
        %4295 = vmatpush2.bf16.msra.mxu0 0
        %4296 = vmatprep.subr.bf16.mxu0 0
        %4297 = vmatpush2.bf16.msra.mxu0 0
        %4298 = vmatprep.mubr.bf16.mxu0 0
        %4299 = vmatmul.mubr.bf16.gmra.mxu0 %v4258
        %v4300 = vpop.f32.mrf.mxu0
        %v4301 = vadd.f32 0.0, %v4300
        %v4302 = vpop.f32.mrf.mxu0
        %v4303 = vadd.f32 0.0, %v4302
        %v4304 = vpop.f32.mrf.mxu0
        %v4305 = vadd.f32 0.0, %v4304
        %v4306 = vpop.f32.mrf.mxu0
        %v4307 = vadd.f32 0.0, %v4306
        %4308 = vdwg.mxu0
        %v4309 = vadd.f32 %v4222, %v4301
        %v4310 = vadd.f32 %v4223, %v4303
        %v4311 = vadd.f32 %v4224, %v4305
        %v4312 = vadd.f32 %v4225, %v4307
        %4313 = vrot.lane.b32.xlu0 %v668, 30
        %v4314 = vpop.permute.xlu0 %4313
        %4315 = vrot.lane.b32.xlu0 %v670, 30
        %v4316 = vpop.permute.xlu0 %4315
        %vm4317 = vcmp.lt.s32.totalorder %v677, 30
        %v4318 = vsel %vm4317, %v4314, %v4316
        %v4319 = vsel %vm4317, %v4316, %v4314
        %vm4320 = vcmp.lt.s32.totalorder %v648, 14
        %vm4321 = vmand %vm4320, %vm3981
        %v4322 = vsel %vm4321, 1, 0
        %v4323 = vlaneseq
        %v4324 = vshrl.u32 %v4323, 7
        %v4325 = vsub.s32 0, %v4324
        %v4326 = vrot.slane %v4322, %v4325
        %v4327 = vlaneseq
        %v4328 = vshrl.u32 %v4327, 7
        %v4329 = vsub.s32 1, %v4328
        %v4330 = vrot.slane %v4322, %v4329
        %vm4331 = vcmp.eq.s32.totalorder %v4326, 1
        %vm4332 = vcmp.eq.s32.totalorder %v4330, 1
        %v4333 = vsel %vm4331, %v4319, 0.0
        %v4334 = vsel %vm4332, %v4318, 0.0
        %s4335 = scalar_lea.vmem %s13, 32
        %v4336 = vld [vmem:[%s4335] sm:$0xf]
        %v4337 = vld [vmem:[%s4335 + $0x4] sm:$0x3]
        %v4338 = vpack.c.bf16 %v4333, %v4333
        %v4339 = vpack.c.bf16 %v4334, %v4334
        %v4342 = vunpack.c.l.b16 %v4336
        %v4343 = vunpack.c.l.b16 %v4337
        %v4344 = vpack.c.b16 %v4343, %v4342
        %v4346 = vsel %vm768, %v4344, 0
        %v4349 = vand.u32 %v4338, %v775
        %v4352 = vand.u32 %v4339, %v775
        %4354 = vmatprep.subr.bf16.mxu0 0
        %4355 = vmatpush1.bf16.msra.mxu0 0
        %4356 = vmatprep.subr.bf16.mxu0 0
        %4357 = vmatpush1.bf16.msra.mxu0 0
        %4358 = vmatprep.subr.bf16.mxu0 0
        %4359 = vmatpush1.bf16.msra.mxu0 0
        %4360 = vmatprep.subr.bf16.mxu0 0
        %4361 = vmatpush1.bf16.msra.mxu0 0
        %4362 = vmatprep.subr.bf16.mxu0 0
        %4363 = vmatpush1.bf16.msra.mxu0 0
        %4364 = vmatprep.subr.bf16.mxu0 0
        %4365 = vmatpush1.bf16.msra.mxu0 0
        %4366 = vmatprep.subr.bf16.mxu0 0
        %4367 = vmatpush1.bf16.msra.mxu0 0
        %4368 = vmatprep.subr.bf16.mxu0 %v4352
        %4369 = vmatpush1.bf16.msra.mxu0 %v4349
        %4370 = vmatprep.subr.bf16.mxu0 0
        %4371 = vmatpush2.bf16.msra.mxu0 0
        %4372 = vmatprep.subr.bf16.mxu0 0
        %4373 = vmatpush2.bf16.msra.mxu0 0
        %4374 = vmatprep.subr.bf16.mxu0 0
        %4375 = vmatpush2.bf16.msra.mxu0 0
        %4376 = vmatprep.subr.bf16.mxu0 0
        %4377 = vmatpush2.bf16.msra.mxu0 0
        %4378 = vmatprep.subr.bf16.mxu0 0
        %4379 = vmatpush2.bf16.msra.mxu0 0
        %4380 = vmatprep.subr.bf16.mxu0 0
        %4381 = vmatpush2.bf16.msra.mxu0 0
        %4382 = vmatprep.subr.bf16.mxu0 0
        %4383 = vmatpush2.bf16.msra.mxu0 0
        %4384 = vmatprep.subr.bf16.mxu0 0
        %4385 = vmatpush2.bf16.msra.mxu0 0
        %4386 = vmatprep.mubr.bf16.mxu0 0
        %4387 = vmatmul.mubr.bf16.gmra.mxu0 %v4346
        %v4388 = vpop.f32.mrf.mxu0
        %v4389 = vadd.f32 0.0, %v4388
        %v4390 = vpop.f32.mrf.mxu0
        %v4391 = vadd.f32 0.0, %v4390
        %v4392 = vpop.f32.mrf.mxu0
        %v4393 = vadd.f32 0.0, %v4392
        %v4394 = vpop.f32.mrf.mxu0
        %v4395 = vadd.f32 0.0, %v4394
        %4396 = vdwg.mxu0
        %v4397 = vadd.f32 %v4309, %v4389
        %v4398 = vadd.f32 %v4310, %v4391
        %v4399 = vadd.f32 %v4311, %v4393
        %v4400 = vadd.f32 %v4312, %v4395
        %4401 = vrot.lane.b32.xlu0 %v668, 18
        %v4402 = vpop.permute.xlu0 %4401
        %4403 = vrot.lane.b32.xlu0 %v670, 18
        %v4404 = vpop.permute.xlu0 %4403
        %vm4405 = vcmp.lt.s32.totalorder %v677, 18
        %v4406 = vsel %vm4405, %v4402, %v4404
        %v4407 = vsel %vm4405, %v4404, %v4402
        %vm4408 = vmand %vm3980, %vm3212
        %v4409 = vsel %vm4408, 1, 0
        %v4410 = vlaneseq
        %v4411 = vshrl.u32 %v4410, 7
        %v4412 = vsub.s32 0, %v4411
        %v4413 = vrot.slane %v4409, %v4412
        %v4414 = vlaneseq
        %v4415 = vshrl.u32 %v4414, 7
        %v4416 = vsub.s32 1, %v4415
        %v4417 = vrot.slane %v4409, %v4416
        %vm4418 = vcmp.eq.s32.totalorder %v4413, 1
        %vm4419 = vcmp.eq.s32.totalorder %v4417, 1
        %v4420 = vsel %vm4418, %v4407, 0.0
        %v4421 = vsel %vm4419, %v4406, 0.0
        %s4422 = scalar_lea.vmem %s13, 40
        %v4423 = vld [vmem:[%s4422] sm:$0xf]
        %v4424 = vld [vmem:[%s4422 + $0x4] sm:$0x3]
        %v4425 = vpack.c.bf16 %v4420, %v4420
        %v4426 = vpack.c.bf16 %v4421, %v4421
        %v4429 = vunpack.c.l.b16 %v4423
        %v4430 = vunpack.c.l.b16 %v4424
        %v4431 = vpack.c.b16 %v4430, %v4429
        %v4433 = vsel %vm768, %v4431, 0
        %v4436 = vand.u32 %v4425, %v775
        %v4439 = vand.u32 %v4426, %v775
        %4441 = vmatprep.subr.bf16.mxu0 0
        %4442 = vmatpush1.bf16.msra.mxu0 0
        %4443 = vmatprep.subr.bf16.mxu0 0
        %4444 = vmatpush1.bf16.msra.mxu0 0
        %4445 = vmatprep.subr.bf16.mxu0 0
        %4446 = vmatpush1.bf16.msra.mxu0 0
        %4447 = vmatprep.subr.bf16.mxu0 0
        %4448 = vmatpush1.bf16.msra.mxu0 0
        %4449 = vmatprep.subr.bf16.mxu0 0
        %4450 = vmatpush1.bf16.msra.mxu0 0
        %4451 = vmatprep.subr.bf16.mxu0 0
        %4452 = vmatpush1.bf16.msra.mxu0 0
        %4453 = vmatprep.subr.bf16.mxu0 0
        %4454 = vmatpush1.bf16.msra.mxu0 0
        %4455 = vmatprep.subr.bf16.mxu0 %v4439
        %4456 = vmatpush1.bf16.msra.mxu0 %v4436
        %4457 = vmatprep.subr.bf16.mxu0 0
        %4458 = vmatpush2.bf16.msra.mxu0 0
        %4459 = vmatprep.subr.bf16.mxu0 0
        %4460 = vmatpush2.bf16.msra.mxu0 0
        %4461 = vmatprep.subr.bf16.mxu0 0
        %4462 = vmatpush2.bf16.msra.mxu0 0
        %4463 = vmatprep.subr.bf16.mxu0 0
        %4464 = vmatpush2.bf16.msra.mxu0 0
        %4465 = vmatprep.subr.bf16.mxu0 0
        %4466 = vmatpush2.bf16.msra.mxu0 0
        %4467 = vmatprep.subr.bf16.mxu0 0
        %4468 = vmatpush2.bf16.msra.mxu0 0
        %4469 = vmatprep.subr.bf16.mxu0 0
        %4470 = vmatpush2.bf16.msra.mxu0 0
        %4471 = vmatprep.subr.bf16.mxu0 0
        %4472 = vmatpush2.bf16.msra.mxu0 0
        %4473 = vmatprep.mubr.bf16.mxu0 0
        %4474 = vmatmul.mubr.bf16.gmra.mxu0 %v4433
        %v4475 = vpop.f32.mrf.mxu0
        %v4476 = vadd.f32 0.0, %v4475
        %v4477 = vpop.f32.mrf.mxu0
        %v4478 = vadd.f32 0.0, %v4477
        %v4479 = vpop.f32.mrf.mxu0
        %v4480 = vadd.f32 0.0, %v4479
        %v4481 = vpop.f32.mrf.mxu0
        %v4482 = vadd.f32 0.0, %v4481
        %4483 = vdwg.mxu0
        %v4484 = vadd.f32 %v4397, %v4476
        %v4485 = vadd.f32 %v4398, %v4478
        %v4486 = vadd.f32 %v4399, %v4480
        %v4487 = vadd.f32 %v4400, %v4482
        %4488 = vrot.lane.b32.xlu0 %v668, 17
        %v4489 = vpop.permute.xlu0 %4488
        %4490 = vrot.lane.b32.xlu0 %v670, 17
        %v4491 = vpop.permute.xlu0 %4490
        %v4492 = vsel %vm3206, %v4489, %v4491
        %v4493 = vsel %vm3206, %v4491, %v4489
        %v4494 = vsel %vm3223, %v4493, 0.0
        %v4495 = vsel %vm3224, %v4492, 0.0
        %s4496 = scalar_lea.vmem %s13, 48
        %v4497 = vld [vmem:[%s4496] sm:$0xf]
        %v4498 = vld [vmem:[%s4496 + $0x4] sm:$0x3]
        %v4499 = vpack.c.bf16 %v4494, %v4494
        %v4500 = vpack.c.bf16 %v4495, %v4495
        %v4503 = vunpack.c.l.b16 %v4497
        %v4504 = vunpack.c.l.b16 %v4498
        %v4505 = vpack.c.b16 %v4504, %v4503
        %v4507 = vsel %vm768, %v4505, 0
        %v4510 = vand.u32 %v4499, %v775
        %v4513 = vand.u32 %v4500, %v775
        %4515 = vmatprep.subr.bf16.mxu0 0
        %4516 = vmatpush1.bf16.msra.mxu0 0
        %4517 = vmatprep.subr.bf16.mxu0 0
        %4518 = vmatpush1.bf16.msra.mxu0 0
        %4519 = vmatprep.subr.bf16.mxu0 0
        %4520 = vmatpush1.bf16.msra.mxu0 0
        %4521 = vmatprep.subr.bf16.mxu0 0
        %4522 = vmatpush1.bf16.msra.mxu0 0
        %4523 = vmatprep.subr.bf16.mxu0 0
        %4524 = vmatpush1.bf16.msra.mxu0 0
        %4525 = vmatprep.subr.bf16.mxu0 0
        %4526 = vmatpush1.bf16.msra.mxu0 0
        %4527 = vmatprep.subr.bf16.mxu0 0
        %4528 = vmatpush1.bf16.msra.mxu0 0
        %4529 = vmatprep.subr.bf16.mxu0 %v4513
        %4530 = vmatpush1.bf16.msra.mxu0 %v4510
        %4531 = vmatprep.subr.bf16.mxu0 0
        %4532 = vmatpush2.bf16.msra.mxu0 0
        %4533 = vmatprep.subr.bf16.mxu0 0
        %4534 = vmatpush2.bf16.msra.mxu0 0
        %4535 = vmatprep.subr.bf16.mxu0 0
        %4536 = vmatpush2.bf16.msra.mxu0 0
        %4537 = vmatprep.subr.bf16.mxu0 0
        %4538 = vmatpush2.bf16.msra.mxu0 0
        %4539 = vmatprep.subr.bf16.mxu0 0
        %4540 = vmatpush2.bf16.msra.mxu0 0
        %4541 = vmatprep.subr.bf16.mxu0 0
        %4542 = vmatpush2.bf16.msra.mxu0 0
        %4543 = vmatprep.subr.bf16.mxu0 0
        %4544 = vmatpush2.bf16.msra.mxu0 0
        %4545 = vmatprep.subr.bf16.mxu0 0
        %4546 = vmatpush2.bf16.msra.mxu0 0
        %4547 = vmatprep.mubr.bf16.mxu0 0
        %4548 = vmatmul.mubr.bf16.gmra.mxu0 %v4507
        %v4549 = vpop.f32.mrf.mxu0
        %v4550 = vadd.f32 0.0, %v4549
        %v4551 = vpop.f32.mrf.mxu0
        %v4552 = vadd.f32 0.0, %v4551
        %v4553 = vpop.f32.mrf.mxu0
        %v4554 = vadd.f32 0.0, %v4553
        %v4555 = vpop.f32.mrf.mxu0
        %v4556 = vadd.f32 0.0, %v4555
        %4557 = vdwg.mxu0
        %v4558 = vadd.f32 %v4484, %v4550
        %v4559 = vadd.f32 %v4485, %v4552
        %v4560 = vadd.f32 %v4486, %v4554
        %v4561 = vadd.f32 %v4487, %v4556
        %v4562 = vsel %vm3254, %v953, 0.0
        %v4563 = vsel %vm3255, %v952, 0.0
        %s4564 = scalar_lea.vmem %s13, 56
        %v4565 = vld [vmem:[%s4564] sm:$0xf]
        %v4566 = vld [vmem:[%s4564 + $0x4] sm:$0x3]
        %v4567 = vpack.c.bf16 %v4562, %v4562
        %v4568 = vpack.c.bf16 %v4563, %v4563
        %v4571 = vunpack.c.l.b16 %v4565
        %v4572 = vunpack.c.l.b16 %v4566
        %v4573 = vpack.c.b16 %v4572, %v4571
        %v4575 = vsel %vm768, %v4573, 0
        %v4578 = vand.u32 %v4567, %v775
        %v4581 = vand.u32 %v4568, %v775
        %4583 = vmatprep.subr.bf16.mxu0 0
        %4584 = vmatpush1.bf16.msra.mxu0 0
        %4585 = vmatprep.subr.bf16.mxu0 0
        %4586 = vmatpush1.bf16.msra.mxu0 0
        %4587 = vmatprep.subr.bf16.mxu0 0
        %4588 = vmatpush1.bf16.msra.mxu0 0
        %4589 = vmatprep.subr.bf16.mxu0 0
        %4590 = vmatpush1.bf16.msra.mxu0 0
        %4591 = vmatprep.subr.bf16.mxu0 0
        %4592 = vmatpush1.bf16.msra.mxu0 0
        %4593 = vmatprep.subr.bf16.mxu0 0
        %4594 = vmatpush1.bf16.msra.mxu0 0
        %4595 = vmatprep.subr.bf16.mxu0 0
        %4596 = vmatpush1.bf16.msra.mxu0 0
        %4597 = vmatprep.subr.bf16.mxu0 %v4581
        %4598 = vmatpush1.bf16.msra.mxu0 %v4578
        %4599 = vmatprep.subr.bf16.mxu0 0
        %4600 = vmatpush2.bf16.msra.mxu0 0
        %4601 = vmatprep.subr.bf16.mxu0 0
        %4602 = vmatpush2.bf16.msra.mxu0 0
        %4603 = vmatprep.subr.bf16.mxu0 0
        %4604 = vmatpush2.bf16.msra.mxu0 0
        %4605 = vmatprep.subr.bf16.mxu0 0
        %4606 = vmatpush2.bf16.msra.mxu0 0
        %4607 = vmatprep.subr.bf16.mxu0 0
        %4608 = vmatpush2.bf16.msra.mxu0 0
        %4609 = vmatprep.subr.bf16.mxu0 0
        %4610 = vmatpush2.bf16.msra.mxu0 0
        %4611 = vmatprep.subr.bf16.mxu0 0
        %4612 = vmatpush2.bf16.msra.mxu0 0
        %4613 = vmatprep.subr.bf16.mxu0 0
        %4614 = vmatpush2.bf16.msra.mxu0 0
        %4615 = vmatprep.mubr.bf16.mxu0 0
        %4616 = vmatmul.mubr.bf16.gmra.mxu0 %v4575
        %v4617 = vpop.f32.mrf.mxu0
        %v4618 = vadd.f32 0.0, %v4617
        %v4619 = vpop.f32.mrf.mxu0
        %v4620 = vadd.f32 0.0, %v4619
        %v4621 = vpop.f32.mrf.mxu0
        %v4622 = vadd.f32 0.0, %v4621
        %v4623 = vpop.f32.mrf.mxu0
        %v4624 = vadd.f32 0.0, %v4623
        %4625 = vdwg.mxu0
        %v4626 = vadd.f32 %v4558, %v4618
        %v4627 = vadd.f32 %v4559, %v4620
        %v4628 = vadd.f32 %v4560, %v4622
        %v4629 = vadd.f32 %v4561, %v4624
        %4630 = vrot.lane.b32.xlu0 %v668, 15
        %v4631 = vpop.permute.xlu0 %4630
        %4632 = vrot.lane.b32.xlu0 %v670, 15
        %v4633 = vpop.permute.xlu0 %4632
        %v4634 = vsel %vm3375, %v4631, %v4633
        %v4635 = vsel %vm3375, %v4633, %v4631
        %v4636 = vsel %vm3391, %v4635, 0.0
        %v4637 = vsel %vm3392, %v4634, 0.0
        %s4638 = scalar_lea.vmem %s13, 64
        %v4639 = vld [vmem:[%s4638] sm:$0xf]
        %v4640 = vld [vmem:[%s4638 + $0x4] sm:$0x3]
        %v4641 = vpack.c.bf16 %v4636, %v4636
        %v4642 = vpack.c.bf16 %v4637, %v4637
        %v4645 = vunpack.c.l.b16 %v4639
        %v4646 = vunpack.c.l.b16 %v4640
        %v4647 = vpack.c.b16 %v4646, %v4645
        %v4649 = vsel %vm768, %v4647, 0
        %v4652 = vand.u32 %v4641, %v775
        %v4655 = vand.u32 %v4642, %v775
        %4657 = vmatprep.subr.bf16.mxu0 0
        %4658 = vmatpush1.bf16.msra.mxu0 0
        %4659 = vmatprep.subr.bf16.mxu0 0
        %4660 = vmatpush1.bf16.msra.mxu0 0
        %4661 = vmatprep.subr.bf16.mxu0 0
        %4662 = vmatpush1.bf16.msra.mxu0 0
        %4663 = vmatprep.subr.bf16.mxu0 0
        %4664 = vmatpush1.bf16.msra.mxu0 0
        %4665 = vmatprep.subr.bf16.mxu0 0
        %4666 = vmatpush1.bf16.msra.mxu0 0
        %4667 = vmatprep.subr.bf16.mxu0 0
        %4668 = vmatpush1.bf16.msra.mxu0 0
        %4669 = vmatprep.subr.bf16.mxu0 0
        %4670 = vmatpush1.bf16.msra.mxu0 0
        %4671 = vmatprep.subr.bf16.mxu0 %v4655
        %4672 = vmatpush1.bf16.msra.mxu0 %v4652
        %4673 = vmatprep.subr.bf16.mxu0 0
        %4674 = vmatpush2.bf16.msra.mxu0 0
        %4675 = vmatprep.subr.bf16.mxu0 0
        %4676 = vmatpush2.bf16.msra.mxu0 0
        %4677 = vmatprep.subr.bf16.mxu0 0
        %4678 = vmatpush2.bf16.msra.mxu0 0
        %4679 = vmatprep.subr.bf16.mxu0 0
        %4680 = vmatpush2.bf16.msra.mxu0 0
        %4681 = vmatprep.subr.bf16.mxu0 0
        %4682 = vmatpush2.bf16.msra.mxu0 0
        %4683 = vmatprep.subr.bf16.mxu0 0
        %4684 = vmatpush2.bf16.msra.mxu0 0
        %4685 = vmatprep.subr.bf16.mxu0 0
        %4686 = vmatpush2.bf16.msra.mxu0 0
        %4687 = vmatprep.subr.bf16.mxu0 0
        %4688 = vmatpush2.bf16.msra.mxu0 0
        %4689 = vmatprep.mubr.bf16.mxu0 0
        %4690 = vmatmul.mubr.bf16.gmra.mxu0 %v4649
        %v4691 = vpop.f32.mrf.mxu0
        %v4692 = vadd.f32 0.0, %v4691
        %v4693 = vpop.f32.mrf.mxu0
        %v4694 = vadd.f32 0.0, %v4693
        %v4695 = vpop.f32.mrf.mxu0
        %v4696 = vadd.f32 0.0, %v4695
        %v4697 = vpop.f32.mrf.mxu0
        %v4698 = vadd.f32 0.0, %v4697
        %4699 = vdwg.mxu0
        %v4700 = vadd.f32 %v4626, %v4692
        %v4701 = vadd.f32 %v4627, %v4694
        %v4702 = vadd.f32 %v4628, %v4696
        %v4703 = vadd.f32 %v4629, %v4698
        %4704 = vrot.lane.b32.xlu0 %v668, 14
        %v4705 = vpop.permute.xlu0 %4704
        %4706 = vrot.lane.b32.xlu0 %v670, 14
        %v4707 = vpop.permute.xlu0 %4706
        %vm4708 = vcmp.lt.s32.totalorder %v677, 14
        %v4709 = vsel %vm4708, %v4705, %v4707
        %v4710 = vsel %vm4708, %v4707, %v4705
        %vm4711 = vmand %vm4320, %vm3212
        %v4712 = vsel %vm4711, 1, 0
        %v4713 = vlaneseq
        %v4714 = vshrl.u32 %v4713, 7
        %v4715 = vsub.s32 0, %v4714
        %v4716 = vrot.slane %v4712, %v4715
        %v4717 = vlaneseq
        %v4718 = vshrl.u32 %v4717, 7
        %v4719 = vsub.s32 1, %v4718
        %v4720 = vrot.slane %v4712, %v4719
        %vm4721 = vcmp.eq.s32.totalorder %v4716, 1
        %vm4722 = vcmp.eq.s32.totalorder %v4720, 1
        %v4723 = vsel %vm4721, %v4710, 0.0
        %v4724 = vsel %vm4722, %v4709, 0.0
        %s4725 = scalar_lea.vmem %s13, 72
        %v4726 = vld [vmem:[%s4725] sm:$0xf]
        %v4727 = vld [vmem:[%s4725 + $0x4] sm:$0x3]
        %v4728 = vpack.c.bf16 %v4723, %v4723
        %v4729 = vpack.c.bf16 %v4724, %v4724
        %v4732 = vunpack.c.l.b16 %v4726
        %v4733 = vunpack.c.l.b16 %v4727
        %v4734 = vpack.c.b16 %v4733, %v4732
        %v4736 = vsel %vm768, %v4734, 0
        %v4739 = vand.u32 %v4728, %v775
        %v4742 = vand.u32 %v4729, %v775
        %4744 = vmatprep.subr.bf16.mxu0 0
        %4745 = vmatpush1.bf16.msra.mxu0 0
        %4746 = vmatprep.subr.bf16.mxu0 0
        %4747 = vmatpush1.bf16.msra.mxu0 0
        %4748 = vmatprep.subr.bf16.mxu0 0
        %4749 = vmatpush1.bf16.msra.mxu0 0
        %4750 = vmatprep.subr.bf16.mxu0 0
        %4751 = vmatpush1.bf16.msra.mxu0 0
        %4752 = vmatprep.subr.bf16.mxu0 0
        %4753 = vmatpush1.bf16.msra.mxu0 0
        %4754 = vmatprep.subr.bf16.mxu0 0
        %4755 = vmatpush1.bf16.msra.mxu0 0
        %4756 = vmatprep.subr.bf16.mxu0 0
        %4757 = vmatpush1.bf16.msra.mxu0 0
        %4758 = vmatprep.subr.bf16.mxu0 %v4742
        %4759 = vmatpush1.bf16.msra.mxu0 %v4739
        %4760 = vmatprep.subr.bf16.mxu0 0
        %4761 = vmatpush2.bf16.msra.mxu0 0
        %4762 = vmatprep.subr.bf16.mxu0 0
        %4763 = vmatpush2.bf16.msra.mxu0 0
        %4764 = vmatprep.subr.bf16.mxu0 0
        %4765 = vmatpush2.bf16.msra.mxu0 0
        %4766 = vmatprep.subr.bf16.mxu0 0
        %4767 = vmatpush2.bf16.msra.mxu0 0
        %4768 = vmatprep.subr.bf16.mxu0 0
        %4769 = vmatpush2.bf16.msra.mxu0 0
        %4770 = vmatprep.subr.bf16.mxu0 0
        %4771 = vmatpush2.bf16.msra.mxu0 0
        %4772 = vmatprep.subr.bf16.mxu0 0
        %4773 = vmatpush2.bf16.msra.mxu0 0
        %4774 = vmatprep.subr.bf16.mxu0 0
        %4775 = vmatpush2.bf16.msra.mxu0 0
        %4776 = vmatprep.mubr.bf16.mxu0 0
        %4777 = vmatmul.mubr.bf16.gmra.mxu0 %v4736
        %v4778 = vpop.f32.mrf.mxu0
        %v4779 = vadd.f32 0.0, %v4778
        %v4780 = vpop.f32.mrf.mxu0
        %v4781 = vadd.f32 0.0, %v4780
        %v4782 = vpop.f32.mrf.mxu0
        %v4783 = vadd.f32 0.0, %v4782
        %v4784 = vpop.f32.mrf.mxu0
        %v4785 = vadd.f32 0.0, %v4784
        %4786 = vdwg.mxu0
        %v4787 = vadd.f32 %v4700, %v4779
        %v4788 = vadd.f32 %v4701, %v4781
        %v4789 = vadd.f32 %v4702, %v4783
        %v4790 = vadd.f32 %v4703, %v4785
        %4791 = vrot.lane.b32.xlu0 %v668, 2
        %v4792 = vpop.permute.xlu0 %4791
        %4793 = vrot.lane.b32.xlu0 %v670, 2
        %v4794 = vpop.permute.xlu0 %4793
        %vm4795 = vcmp.lt.s32.totalorder %v677, 2
        %v4796 = vsel %vm4795, %v4792, %v4794
        %v4797 = vsel %vm4795, %v4794, %v4792
        %v4798 = vsel %vm3980, 1, 0
        %v4799 = vlaneseq
        %v4800 = vshrl.u32 %v4799, 7
        %v4801 = vsub.s32 0, %v4800
        %v4802 = vrot.slane %v4798, %v4801
        %v4803 = vlaneseq
        %v4804 = vshrl.u32 %v4803, 7
        %v4805 = vsub.s32 1, %v4804
        %v4806 = vrot.slane %v4798, %v4805
        %vm4807 = vcmp.eq.s32.totalorder %v4802, 1
        %vm4808 = vcmp.eq.s32.totalorder %v4806, 1
        %v4809 = vsel %vm4807, %v4797, 0.0
        %v4810 = vsel %vm4808, %v4796, 0.0
        %s4811 = scalar_lea.vmem %s13, 80
        %v4812 = vld [vmem:[%s4811] sm:$0xf]
        %v4813 = vld [vmem:[%s4811 + $0x4] sm:$0x3]
        %v4814 = vpack.c.bf16 %v4809, %v4809
        %v4815 = vpack.c.bf16 %v4810, %v4810
        %v4818 = vunpack.c.l.b16 %v4812
        %v4819 = vunpack.c.l.b16 %v4813
        %v4820 = vpack.c.b16 %v4819, %v4818
        %v4822 = vsel %vm768, %v4820, 0
        %v4825 = vand.u32 %v4814, %v775
        %v4828 = vand.u32 %v4815, %v775
        %4830 = vmatprep.subr.bf16.mxu0 0
        %4831 = vmatpush1.bf16.msra.mxu0 0
        %4832 = vmatprep.subr.bf16.mxu0 0
        %4833 = vmatpush1.bf16.msra.mxu0 0
        %4834 = vmatprep.subr.bf16.mxu0 0
        %4835 = vmatpush1.bf16.msra.mxu0 0
        %4836 = vmatprep.subr.bf16.mxu0 0
        %4837 = vmatpush1.bf16.msra.mxu0 0
        %4838 = vmatprep.subr.bf16.mxu0 0
        %4839 = vmatpush1.bf16.msra.mxu0 0
        %4840 = vmatprep.subr.bf16.mxu0 0
        %4841 = vmatpush1.bf16.msra.mxu0 0
        %4842 = vmatprep.subr.bf16.mxu0 0
        %4843 = vmatpush1.bf16.msra.mxu0 0
        %4844 = vmatprep.subr.bf16.mxu0 %v4828
        %4845 = vmatpush1.bf16.msra.mxu0 %v4825
        %4846 = vmatprep.subr.bf16.mxu0 0
        %4847 = vmatpush2.bf16.msra.mxu0 0
        %4848 = vmatprep.subr.bf16.mxu0 0
        %4849 = vmatpush2.bf16.msra.mxu0 0
        %4850 = vmatprep.subr.bf16.mxu0 0
        %4851 = vmatpush2.bf16.msra.mxu0 0
        %4852 = vmatprep.subr.bf16.mxu0 0
        %4853 = vmatpush2.bf16.msra.mxu0 0
        %4854 = vmatprep.subr.bf16.mxu0 0
        %4855 = vmatpush2.bf16.msra.mxu0 0
        %4856 = vmatprep.subr.bf16.mxu0 0
        %4857 = vmatpush2.bf16.msra.mxu0 0
        %4858 = vmatprep.subr.bf16.mxu0 0
        %4859 = vmatpush2.bf16.msra.mxu0 0
        %4860 = vmatprep.subr.bf16.mxu0 0
        %4861 = vmatpush2.bf16.msra.mxu0 0
        %4862 = vmatprep.mubr.bf16.mxu0 0
        %4863 = vmatmul.mubr.bf16.gmra.mxu0 %v4822
        %v4864 = vpop.f32.mrf.mxu0
        %v4865 = vadd.f32 0.0, %v4864
        %v4866 = vpop.f32.mrf.mxu0
        %v4867 = vadd.f32 0.0, %v4866
        %v4868 = vpop.f32.mrf.mxu0
        %v4869 = vadd.f32 0.0, %v4868
        %v4870 = vpop.f32.mrf.mxu0
        %v4871 = vadd.f32 0.0, %v4870
        %4872 = vdwg.mxu0
        %v4873 = vadd.f32 %v4787, %v4865
        %v4874 = vadd.f32 %v4788, %v4867
        %v4875 = vadd.f32 %v4789, %v4869
        %v4876 = vadd.f32 %v4790, %v4871
        %v4877 = vsel %vm3478, %v680, 0.0
        %v4878 = vsel %vm3479, %v679, 0.0
        %s4879 = scalar_lea.vmem %s13, 88
        %v4880 = vld [vmem:[%s4879] sm:$0xf]
        %v4881 = vld [vmem:[%s4879 + $0x4] sm:$0x3]
        %v4882 = vpack.c.bf16 %v4877, %v4877
        %v4883 = vpack.c.bf16 %v4878, %v4878
        %v4886 = vunpack.c.l.b16 %v4880
        %v4887 = vunpack.c.l.b16 %v4881
        %v4888 = vpack.c.b16 %v4887, %v4886
        %v4890 = vsel %vm768, %v4888, 0
        %v4893 = vand.u32 %v4882, %v775
        %v4896 = vand.u32 %v4883, %v775
        %4898 = vmatprep.subr.bf16.mxu0 0
        %4899 = vmatpush1.bf16.msra.mxu0 0
        %4900 = vmatprep.subr.bf16.mxu0 0
        %4901 = vmatpush1.bf16.msra.mxu0 0
        %4902 = vmatprep.subr.bf16.mxu0 0
        %4903 = vmatpush1.bf16.msra.mxu0 0
        %4904 = vmatprep.subr.bf16.mxu0 0
        %4905 = vmatpush1.bf16.msra.mxu0 0
        %4906 = vmatprep.subr.bf16.mxu0 0
        %4907 = vmatpush1.bf16.msra.mxu0 0
        %4908 = vmatprep.subr.bf16.mxu0 0
        %4909 = vmatpush1.bf16.msra.mxu0 0
        %4910 = vmatprep.subr.bf16.mxu0 0
        %4911 = vmatpush1.bf16.msra.mxu0 0
        %4912 = vmatprep.subr.bf16.mxu0 %v4896
        %4913 = vmatpush1.bf16.msra.mxu0 %v4893
        %4914 = vmatprep.subr.bf16.mxu0 0
        %4915 = vmatpush2.bf16.msra.mxu0 0
        %4916 = vmatprep.subr.bf16.mxu0 0
        %4917 = vmatpush2.bf16.msra.mxu0 0
        %4918 = vmatprep.subr.bf16.mxu0 0
        %4919 = vmatpush2.bf16.msra.mxu0 0
        %4920 = vmatprep.subr.bf16.mxu0 0
        %4921 = vmatpush2.bf16.msra.mxu0 0
        %4922 = vmatprep.subr.bf16.mxu0 0
        %4923 = vmatpush2.bf16.msra.mxu0 0
        %4924 = vmatprep.subr.bf16.mxu0 0
        %4925 = vmatpush2.bf16.msra.mxu0 0
        %4926 = vmatprep.subr.bf16.mxu0 0
        %4927 = vmatpush2.bf16.msra.mxu0 0
        %4928 = vmatprep.subr.bf16.mxu0 0
        %4929 = vmatpush2.bf16.msra.mxu0 0
        %4930 = vmatprep.mubr.bf16.mxu0 0
        %4931 = vmatmul.mubr.bf16.gmra.mxu0 %v4890
        %v4932 = vpop.f32.mrf.mxu0
        %v4933 = vadd.f32 0.0, %v4932
        %v4934 = vpop.f32.mrf.mxu0
        %v4935 = vadd.f32 0.0, %v4934
        %v4936 = vpop.f32.mrf.mxu0
        %v4937 = vadd.f32 0.0, %v4936
        %v4938 = vpop.f32.mrf.mxu0
        %v4939 = vadd.f32 0.0, %v4938
        %4940 = vdwg.mxu0
        %v4941 = vadd.f32 %v4873, %v4933
        %v4942 = vadd.f32 %v4874, %v4935
        %v4943 = vadd.f32 %v4875, %v4937
        %v4944 = vadd.f32 %v4876, %v4939
        %s4945 = scalar_lea.vmem %s13, 96
        %v4946 = vld [vmem:[%s4945] sm:$0xf]
        %v4947 = vld [vmem:[%s4945 + $0x4] sm:$0x3]
        %v4950 = vunpack.c.l.b16 %v4946
        %v4951 = vunpack.c.l.b16 %v4947
        %v4952 = vpack.c.b16 %v4951, %v4950
        %v4954 = vsel %vm768, %v4952, 0
        %4956 = vmatprep.subr.bf16.mxu0 0
        %4957 = vmatpush1.bf16.msra.mxu0 0
        %4958 = vmatprep.subr.bf16.mxu0 0
        %4959 = vmatpush1.bf16.msra.mxu0 0
        %4960 = vmatprep.subr.bf16.mxu0 0
        %4961 = vmatpush1.bf16.msra.mxu0 0
        %4962 = vmatprep.subr.bf16.mxu0 0
        %4963 = vmatpush1.bf16.msra.mxu0 0
        %4964 = vmatprep.subr.bf16.mxu0 0
        %4965 = vmatpush1.bf16.msra.mxu0 0
        %4966 = vmatprep.subr.bf16.mxu0 0
        %4967 = vmatpush1.bf16.msra.mxu0 0
        %4968 = vmatprep.subr.bf16.mxu0 0
        %4969 = vmatpush1.bf16.msra.mxu0 0
        %4970 = vmatprep.subr.bf16.mxu0 %v1047
        %4971 = vmatpush1.bf16.msra.mxu0 %v1044
        %4972 = vmatprep.subr.bf16.mxu0 0
        %4973 = vmatpush2.bf16.msra.mxu0 0
        %4974 = vmatprep.subr.bf16.mxu0 0
        %4975 = vmatpush2.bf16.msra.mxu0 0
        %4976 = vmatprep.subr.bf16.mxu0 0
        %4977 = vmatpush2.bf16.msra.mxu0 0
        %4978 = vmatprep.subr.bf16.mxu0 0
        %4979 = vmatpush2.bf16.msra.mxu0 0
        %4980 = vmatprep.subr.bf16.mxu0 0
        %4981 = vmatpush2.bf16.msra.mxu0 0
        %4982 = vmatprep.subr.bf16.mxu0 0
        %4983 = vmatpush2.bf16.msra.mxu0 0
        %4984 = vmatprep.subr.bf16.mxu0 0
        %4985 = vmatpush2.bf16.msra.mxu0 0
        %4986 = vmatprep.subr.bf16.mxu0 0
        %4987 = vmatpush2.bf16.msra.mxu0 0
        %4988 = vmatprep.mubr.bf16.mxu0 0
        %4989 = vmatmul.mubr.bf16.gmra.mxu0 %v4954
        %v4990 = vpop.f32.mrf.mxu0
        %v4991 = vadd.f32 0.0, %v4990
        %v4992 = vpop.f32.mrf.mxu0
        %v4993 = vadd.f32 0.0, %v4992
        %v4994 = vpop.f32.mrf.mxu0
        %v4995 = vadd.f32 0.0, %v4994
        %v4996 = vpop.f32.mrf.mxu0
        %v4997 = vadd.f32 0.0, %v4996
        %4998 = vdwg.mxu0
        %v4999 = vadd.f32 %v4941, %v4991
        %v5000 = vadd.f32 %v4942, %v4993
        %v5001 = vadd.f32 %v4943, %v4995
        %v5002 = vadd.f32 %v4944, %v4997
        %v5003 = vsel %vm3625, %v686, 0.0
        %v5004 = vsel %vm3626, %v687, 0.0
        %s5005 = scalar_lea.vmem %s13, 104
        %v5006 = vld [vmem:[%s5005] sm:$0xf]
        %v5007 = vld [vmem:[%s5005 + $0x4] sm:$0x3]
        %v5008 = vpack.c.bf16 %v5003, %v5003
        %v5009 = vpack.c.bf16 %v5004, %v5004
        %v5012 = vunpack.c.l.b16 %v5006
        %v5013 = vunpack.c.l.b16 %v5007
        %v5014 = vpack.c.b16 %v5013, %v5012
        %v5016 = vsel %vm768, %v5014, 0
        %v5019 = vand.u32 %v5008, %v775
        %v5022 = vand.u32 %v5009, %v775
        %5024 = vmatprep.subr.bf16.mxu0 0
        %5025 = vmatpush1.bf16.msra.mxu0 0
        %5026 = vmatprep.subr.bf16.mxu0 0
        %5027 = vmatpush1.bf16.msra.mxu0 0
        %5028 = vmatprep.subr.bf16.mxu0 0
        %5029 = vmatpush1.bf16.msra.mxu0 0
        %5030 = vmatprep.subr.bf16.mxu0 0
        %5031 = vmatpush1.bf16.msra.mxu0 0
        %5032 = vmatprep.subr.bf16.mxu0 0
        %5033 = vmatpush1.bf16.msra.mxu0 0
        %5034 = vmatprep.subr.bf16.mxu0 0
        %5035 = vmatpush1.bf16.msra.mxu0 0
        %5036 = vmatprep.subr.bf16.mxu0 0
        %5037 = vmatpush1.bf16.msra.mxu0 0
        %5038 = vmatprep.subr.bf16.mxu0 %v5022
        %5039 = vmatpush1.bf16.msra.mxu0 %v5019
        %5040 = vmatprep.subr.bf16.mxu0 0
        %5041 = vmatpush2.bf16.msra.mxu0 0
        %5042 = vmatprep.subr.bf16.mxu0 0
        %5043 = vmatpush2.bf16.msra.mxu0 0
        %5044 = vmatprep.subr.bf16.mxu0 0
        %5045 = vmatpush2.bf16.msra.mxu0 0
        %5046 = vmatprep.subr.bf16.mxu0 0
        %5047 = vmatpush2.bf16.msra.mxu0 0
        %5048 = vmatprep.subr.bf16.mxu0 0
        %5049 = vmatpush2.bf16.msra.mxu0 0
        %5050 = vmatprep.subr.bf16.mxu0 0
        %5051 = vmatpush2.bf16.msra.mxu0 0
        %5052 = vmatprep.subr.bf16.mxu0 0
        %5053 = vmatpush2.bf16.msra.mxu0 0
        %5054 = vmatprep.subr.bf16.mxu0 0
        %5055 = vmatpush2.bf16.msra.mxu0 0
        %5056 = vmatprep.mubr.bf16.mxu0 0
        %5057 = vmatmul.mubr.bf16.gmra.mxu0 %v5016
        %v5058 = vpop.f32.mrf.mxu0
        %v5059 = vadd.f32 0.0, %v5058
        %v5060 = vpop.f32.mrf.mxu0
        %v5061 = vadd.f32 0.0, %v5060
        %v5062 = vpop.f32.mrf.mxu0
        %v5063 = vadd.f32 0.0, %v5062
        %v5064 = vpop.f32.mrf.mxu0
        %v5065 = vadd.f32 0.0, %v5064
        %5066 = vdwg.mxu0
        %v5067 = vadd.f32 %v4999, %v5059
        %v5068 = vadd.f32 %v5000, %v5061
        %v5069 = vadd.f32 %v5001, %v5063
        %v5070 = vadd.f32 %v5002, %v5065
        %5071 = vrot.lane.b32.xlu0 %v668, 126
        %v5072 = vpop.permute.xlu0 %5071
        %5073 = vrot.lane.b32.xlu0 %v670, 126
        %v5074 = vpop.permute.xlu0 %5073
        %vm5075 = vcmp.lt.s32.totalorder %v677, 126
        %v5076 = vsel %vm5075, %v5072, %v5074
        %v5077 = vsel %vm5075, %v5074, %v5072
        %v5078 = vsel %vm4320, 1, 0
        %v5079 = vlaneseq
        %v5080 = vshrl.u32 %v5079, 7
        %v5081 = vsub.s32 0, %v5080
        %v5082 = vrot.slane %v5078, %v5081
        %v5083 = vlaneseq
        %v5084 = vshrl.u32 %v5083, 7
        %v5085 = vsub.s32 1, %v5084
        %v5086 = vrot.slane %v5078, %v5085
        %vm5087 = vcmp.eq.s32.totalorder %v5082, 1
        %vm5088 = vcmp.eq.s32.totalorder %v5086, 1
        %v5089 = vsel %vm5087, %v5076, 0.0
        %v5090 = vsel %vm5088, %v5077, 0.0
        %s5091 = scalar_lea.vmem %s13, 112
        %v5092 = vld [vmem:[%s5091] sm:$0xf]
        %v5093 = vld [vmem:[%s5091 + $0x4] sm:$0x3]
        %v5094 = vpack.c.bf16 %v5089, %v5089
        %v5095 = vpack.c.bf16 %v5090, %v5090
        %v5098 = vunpack.c.l.b16 %v5092
        %v5099 = vunpack.c.l.b16 %v5093
        %v5100 = vpack.c.b16 %v5099, %v5098
        %v5102 = vsel %vm768, %v5100, 0
        %v5105 = vand.u32 %v5094, %v775
        %v5108 = vand.u32 %v5095, %v775
        %5110 = vmatprep.subr.bf16.mxu0 0
        %5111 = vmatpush1.bf16.msra.mxu0 0
        %5112 = vmatprep.subr.bf16.mxu0 0
        %5113 = vmatpush1.bf16.msra.mxu0 0
        %5114 = vmatprep.subr.bf16.mxu0 0
        %5115 = vmatpush1.bf16.msra.mxu0 0
        %5116 = vmatprep.subr.bf16.mxu0 0
        %5117 = vmatpush1.bf16.msra.mxu0 0
        %5118 = vmatprep.subr.bf16.mxu0 0
        %5119 = vmatpush1.bf16.msra.mxu0 0
        %5120 = vmatprep.subr.bf16.mxu0 0
        %5121 = vmatpush1.bf16.msra.mxu0 0
        %5122 = vmatprep.subr.bf16.mxu0 0
        %5123 = vmatpush1.bf16.msra.mxu0 0
        %5124 = vmatprep.subr.bf16.mxu0 %v5108
        %5125 = vmatpush1.bf16.msra.mxu0 %v5105
        %5126 = vmatprep.subr.bf16.mxu0 0
        %5127 = vmatpush2.bf16.msra.mxu0 0
        %5128 = vmatprep.subr.bf16.mxu0 0
        %5129 = vmatpush2.bf16.msra.mxu0 0
        %5130 = vmatprep.subr.bf16.mxu0 0
        %5131 = vmatpush2.bf16.msra.mxu0 0
        %5132 = vmatprep.subr.bf16.mxu0 0
        %5133 = vmatpush2.bf16.msra.mxu0 0
        %5134 = vmatprep.subr.bf16.mxu0 0
        %5135 = vmatpush2.bf16.msra.mxu0 0
        %5136 = vmatprep.subr.bf16.mxu0 0
        %5137 = vmatpush2.bf16.msra.mxu0 0
        %5138 = vmatprep.subr.bf16.mxu0 0
        %5139 = vmatpush2.bf16.msra.mxu0 0
        %5140 = vmatprep.subr.bf16.mxu0 0
        %5141 = vmatpush2.bf16.msra.mxu0 0
        %5142 = vmatprep.mubr.bf16.mxu0 0
        %5143 = vmatmul.mubr.bf16.gmra.mxu0 %v5102
        %v5144 = vpop.f32.mrf.mxu0
        %v5145 = vadd.f32 0.0, %v5144
        %v5146 = vpop.f32.mrf.mxu0
        %v5147 = vadd.f32 0.0, %v5146
        %v5148 = vpop.f32.mrf.mxu0
        %v5149 = vadd.f32 0.0, %v5148
        %v5150 = vpop.f32.mrf.mxu0
        %v5151 = vadd.f32 0.0, %v5150
        %5152 = vdwg.mxu0
        %v5153 = vadd.f32 %v5067, %v5145
        %v5154 = vadd.f32 %v5068, %v5147
        %v5155 = vadd.f32 %v5069, %v5149
        %v5156 = vadd.f32 %v5070, %v5151
        %5157 = vrot.lane.b32.xlu0 %v668, 114
        %v5158 = vpop.permute.xlu0 %5157
        %5159 = vrot.lane.b32.xlu0 %v670, 114
        %v5160 = vpop.permute.xlu0 %5159
        %vm5161 = vcmp.lt.s32.totalorder %v677, 114
        %v5162 = vsel %vm5161, %v5158, %v5160
        %v5163 = vsel %vm5161, %v5160, %v5158
        %vm5164 = vmand %vm3980, %vm3704
        %v5165 = vsel %vm5164, 1, 0
        %v5166 = vlaneseq
        %v5167 = vshrl.u32 %v5166, 7
        %v5168 = vsub.s32 0, %v5167
        %v5169 = vrot.slane %v5165, %v5168
        %v5170 = vlaneseq
        %v5171 = vshrl.u32 %v5170, 7
        %v5172 = vsub.s32 1, %v5171
        %v5173 = vrot.slane %v5165, %v5172
        %vm5174 = vcmp.eq.s32.totalorder %v5169, 1
        %vm5175 = vcmp.eq.s32.totalorder %v5173, 1
        %v5176 = vsel %vm5174, %v5162, 0.0
        %v5177 = vsel %vm5175, %v5163, 0.0
        %s5178 = scalar_lea.vmem %s13, 120
        %v5179 = vld [vmem:[%s5178] sm:$0xf]
        %v5180 = vld [vmem:[%s5178 + $0x4] sm:$0x3]
        %v5181 = vpack.c.bf16 %v5176, %v5176
        %v5182 = vpack.c.bf16 %v5177, %v5177
        %v5185 = vunpack.c.l.b16 %v5179
        %v5186 = vunpack.c.l.b16 %v5180
        %v5187 = vpack.c.b16 %v5186, %v5185
        %v5189 = vsel %vm768, %v5187, 0
        %v5192 = vand.u32 %v5181, %v775
        %v5195 = vand.u32 %v5182, %v775
        %5197 = vmatprep.subr.bf16.mxu0 0
        %5198 = vmatpush1.bf16.msra.mxu0 0
        %5199 = vmatprep.subr.bf16.mxu0 0
        %5200 = vmatpush1.bf16.msra.mxu0 0
        %5201 = vmatprep.subr.bf16.mxu0 0
        %5202 = vmatpush1.bf16.msra.mxu0 0
        %5203 = vmatprep.subr.bf16.mxu0 0
        %5204 = vmatpush1.bf16.msra.mxu0 0
        %5205 = vmatprep.subr.bf16.mxu0 0
        %5206 = vmatpush1.bf16.msra.mxu0 0
        %5207 = vmatprep.subr.bf16.mxu0 0
        %5208 = vmatpush1.bf16.msra.mxu0 0
        %5209 = vmatprep.subr.bf16.mxu0 0
        %5210 = vmatpush1.bf16.msra.mxu0 0
        %5211 = vmatprep.subr.bf16.mxu0 %v5195
        %5212 = vmatpush1.bf16.msra.mxu0 %v5192
        %5213 = vmatprep.subr.bf16.mxu0 0
        %5214 = vmatpush2.bf16.msra.mxu0 0
        %5215 = vmatprep.subr.bf16.mxu0 0
        %5216 = vmatpush2.bf16.msra.mxu0 0
        %5217 = vmatprep.subr.bf16.mxu0 0
        %5218 = vmatpush2.bf16.msra.mxu0 0
        %5219 = vmatprep.subr.bf16.mxu0 0
        %5220 = vmatpush2.bf16.msra.mxu0 0
        %5221 = vmatprep.subr.bf16.mxu0 0
        %5222 = vmatpush2.bf16.msra.mxu0 0
        %5223 = vmatprep.subr.bf16.mxu0 0
        %5224 = vmatpush2.bf16.msra.mxu0 0
        %5225 = vmatprep.subr.bf16.mxu0 0
        %5226 = vmatpush2.bf16.msra.mxu0 0
        %5227 = vmatprep.subr.bf16.mxu0 0
        %5228 = vmatpush2.bf16.msra.mxu0 0
        %5229 = vmatprep.mubr.bf16.mxu0 0
        %5230 = vmatmul.mubr.bf16.gmra.mxu0 %v5189
        %v5231 = vpop.f32.mrf.mxu0
        %v5232 = vadd.f32 0.0, %v5231
        %v5233 = vpop.f32.mrf.mxu0
        %v5234 = vadd.f32 0.0, %v5233
        %v5235 = vpop.f32.mrf.mxu0
        %v5236 = vadd.f32 0.0, %v5235
        %v5237 = vpop.f32.mrf.mxu0
        %v5238 = vadd.f32 0.0, %v5237
        %5239 = vdwg.mxu0
        %v5240 = vadd.f32 %v5153, %v5232
        %v5241 = vadd.f32 %v5154, %v5234
        %v5242 = vadd.f32 %v5155, %v5236
        %v5243 = vadd.f32 %v5156, %v5238
        %5244 = vrot.lane.b32.xlu0 %v668, 113
        %v5245 = vpop.permute.xlu0 %5244
        %5246 = vrot.lane.b32.xlu0 %v670, 113
        %v5247 = vpop.permute.xlu0 %5246
        %v5248 = vsel %vm3699, %v5245, %v5247
        %v5249 = vsel %vm3699, %v5247, %v5245
        %v5250 = vsel %vm3715, %v5248, 0.0
        %v5251 = vsel %vm3716, %v5249, 0.0
        %s5252 = scalar_lea.vmem %s13, 128
        %v5253 = vld [vmem:[%s5252] sm:$0xf]
        %v5254 = vld [vmem:[%s5252 + $0x4] sm:$0x3]
        %v5255 = vpack.c.bf16 %v5250, %v5250
        %v5256 = vpack.c.bf16 %v5251, %v5251
        %v5259 = vunpack.c.l.b16 %v5253
        %v5260 = vunpack.c.l.b16 %v5254
        %v5261 = vpack.c.b16 %v5260, %v5259
        %v5263 = vsel %vm768, %v5261, 0
        %v5266 = vand.u32 %v5255, %v775
        %v5269 = vand.u32 %v5256, %v775
        %5271 = vmatprep.subr.bf16.mxu0 0
        %5272 = vmatpush1.bf16.msra.mxu0 0
        %5273 = vmatprep.subr.bf16.mxu0 0
        %5274 = vmatpush1.bf16.msra.mxu0 0
        %5275 = vmatprep.subr.bf16.mxu0 0
        %5276 = vmatpush1.bf16.msra.mxu0 0
        %5277 = vmatprep.subr.bf16.mxu0 0
        %5278 = vmatpush1.bf16.msra.mxu0 0
        %5279 = vmatprep.subr.bf16.mxu0 0
        %5280 = vmatpush1.bf16.msra.mxu0 0
        %5281 = vmatprep.subr.bf16.mxu0 0
        %5282 = vmatpush1.bf16.msra.mxu0 0
        %5283 = vmatprep.subr.bf16.mxu0 0
        %5284 = vmatpush1.bf16.msra.mxu0 0
        %5285 = vmatprep.subr.bf16.mxu0 %v5269
        %5286 = vmatpush1.bf16.msra.mxu0 %v5266
        %5287 = vmatprep.subr.bf16.mxu0 0
        %5288 = vmatpush2.bf16.msra.mxu0 0
        %5289 = vmatprep.subr.bf16.mxu0 0
        %5290 = vmatpush2.bf16.msra.mxu0 0
        %5291 = vmatprep.subr.bf16.mxu0 0
        %5292 = vmatpush2.bf16.msra.mxu0 0
        %5293 = vmatprep.subr.bf16.mxu0 0
        %5294 = vmatpush2.bf16.msra.mxu0 0
        %5295 = vmatprep.subr.bf16.mxu0 0
        %5296 = vmatpush2.bf16.msra.mxu0 0
        %5297 = vmatprep.subr.bf16.mxu0 0
        %5298 = vmatpush2.bf16.msra.mxu0 0
        %5299 = vmatprep.subr.bf16.mxu0 0
        %5300 = vmatpush2.bf16.msra.mxu0 0
        %5301 = vmatprep.subr.bf16.mxu0 0
        %5302 = vmatpush2.bf16.msra.mxu0 0
        %5303 = vmatprep.mubr.bf16.mxu0 0
        %5304 = vmatmul.mubr.bf16.gmra.mxu0 %v5263
        %v5305 = vpop.f32.mrf.mxu0
        %v5306 = vadd.f32 0.0, %v5305
        %v5307 = vpop.f32.mrf.mxu0
        %v5308 = vadd.f32 0.0, %v5307
        %v5309 = vpop.f32.mrf.mxu0
        %v5310 = vadd.f32 0.0, %v5309
        %v5311 = vpop.f32.mrf.mxu0
        %v5312 = vadd.f32 0.0, %v5311
        %5313 = vdwg.mxu0
        %v5314 = vadd.f32 %v5240, %v5306
        %v5315 = vadd.f32 %v5241, %v5308
        %v5316 = vadd.f32 %v5242, %v5310
        %v5317 = vadd.f32 %v5243, %v5312
        %v5318 = vsel %vm3802, %v958, 0.0
        %v5319 = vsel %vm3803, %v959, 0.0
        %s5320 = scalar_lea.vmem %s13, 136
        %v5321 = vld [vmem:[%s5320] sm:$0xf]
        %v5322 = vld [vmem:[%s5320 + $0x4] sm:$0x3]
        %v5323 = vpack.c.bf16 %v5318, %v5318
        %v5324 = vpack.c.bf16 %v5319, %v5319
        %v5327 = vunpack.c.l.b16 %v5321
        %v5328 = vunpack.c.l.b16 %v5322
        %v5329 = vpack.c.b16 %v5328, %v5327
        %v5331 = vsel %vm768, %v5329, 0
        %v5334 = vand.u32 %v5323, %v775
        %v5337 = vand.u32 %v5324, %v775
        %5339 = vmatprep.subr.bf16.mxu0 0
        %5340 = vmatpush1.bf16.msra.mxu0 0
        %5341 = vmatprep.subr.bf16.mxu0 0
        %5342 = vmatpush1.bf16.msra.mxu0 0
        %5343 = vmatprep.subr.bf16.mxu0 0
        %5344 = vmatpush1.bf16.msra.mxu0 0
        %5345 = vmatprep.subr.bf16.mxu0 0
        %5346 = vmatpush1.bf16.msra.mxu0 0
        %5347 = vmatprep.subr.bf16.mxu0 0
        %5348 = vmatpush1.bf16.msra.mxu0 0
        %5349 = vmatprep.subr.bf16.mxu0 0
        %5350 = vmatpush1.bf16.msra.mxu0 0
        %5351 = vmatprep.subr.bf16.mxu0 0
        %5352 = vmatpush1.bf16.msra.mxu0 0
        %5353 = vmatprep.subr.bf16.mxu0 %v5337
        %5354 = vmatpush1.bf16.msra.mxu0 %v5334
        %5355 = vmatprep.subr.bf16.mxu0 0
        %5356 = vmatpush2.bf16.msra.mxu0 0
        %5357 = vmatprep.subr.bf16.mxu0 0
        %5358 = vmatpush2.bf16.msra.mxu0 0
        %5359 = vmatprep.subr.bf16.mxu0 0
        %5360 = vmatpush2.bf16.msra.mxu0 0
        %5361 = vmatprep.subr.bf16.mxu0 0
        %5362 = vmatpush2.bf16.msra.mxu0 0
        %5363 = vmatprep.subr.bf16.mxu0 0
        %5364 = vmatpush2.bf16.msra.mxu0 0
        %5365 = vmatprep.subr.bf16.mxu0 0
        %5366 = vmatpush2.bf16.msra.mxu0 0
        %5367 = vmatprep.subr.bf16.mxu0 0
        %5368 = vmatpush2.bf16.msra.mxu0 0
        %5369 = vmatprep.subr.bf16.mxu0 0
        %5370 = vmatpush2.bf16.msra.mxu0 0
        %5371 = vmatprep.mubr.bf16.mxu0 0
        %5372 = vmatmul.mubr.bf16.gmra.mxu0 %v5331
        %v5373 = vpop.f32.mrf.mxu0
        %v5374 = vadd.f32 0.0, %v5373
        %v5375 = vpop.f32.mrf.mxu0
        %v5376 = vadd.f32 0.0, %v5375
        %v5377 = vpop.f32.mrf.mxu0
        %v5378 = vadd.f32 0.0, %v5377
        %v5379 = vpop.f32.mrf.mxu0
        %v5380 = vadd.f32 0.0, %v5379
        %5381 = vdwg.mxu0
        %v5382 = vadd.f32 %v5314, %v5374
        %v5383 = vadd.f32 %v5315, %v5376
        %v5384 = vadd.f32 %v5316, %v5378
        %v5385 = vadd.f32 %v5317, %v5380
        %5386 = vrot.lane.b32.xlu0 %v668, 111
        %v5387 = vpop.permute.xlu0 %5386
        %5388 = vrot.lane.b32.xlu0 %v670, 111
        %v5389 = vpop.permute.xlu0 %5388
        %v5390 = vsel %vm3876, %v5387, %v5389
        %v5391 = vsel %vm3876, %v5389, %v5387
        %v5392 = vsel %vm3891, %v5390, 0.0
        %v5393 = vsel %vm3892, %v5391, 0.0
        %s5394 = scalar_lea.vmem %s13, 144
        %v5395 = vld [vmem:[%s5394] sm:$0xf]
        %v5396 = vld [vmem:[%s5394 + $0x4] sm:$0x3]
        %v5397 = vpack.c.bf16 %v5392, %v5392
        %v5398 = vpack.c.bf16 %v5393, %v5393
        %v5401 = vunpack.c.l.b16 %v5395
        %v5402 = vunpack.c.l.b16 %v5396
        %v5403 = vpack.c.b16 %v5402, %v5401
        %v5405 = vsel %vm768, %v5403, 0
        %v5408 = vand.u32 %v5397, %v775
        %v5411 = vand.u32 %v5398, %v775
        %5413 = vmatprep.subr.bf16.mxu0 0
        %5414 = vmatpush1.bf16.msra.mxu0 0
        %5415 = vmatprep.subr.bf16.mxu0 0
        %5416 = vmatpush1.bf16.msra.mxu0 0
        %5417 = vmatprep.subr.bf16.mxu0 0
        %5418 = vmatpush1.bf16.msra.mxu0 0
        %5419 = vmatprep.subr.bf16.mxu0 0
        %5420 = vmatpush1.bf16.msra.mxu0 0
        %5421 = vmatprep.subr.bf16.mxu0 0
        %5422 = vmatpush1.bf16.msra.mxu0 0
        %5423 = vmatprep.subr.bf16.mxu0 0
        %5424 = vmatpush1.bf16.msra.mxu0 0
        %5425 = vmatprep.subr.bf16.mxu0 0
        %5426 = vmatpush1.bf16.msra.mxu0 0
        %5427 = vmatprep.subr.bf16.mxu0 %v5411
        %5428 = vmatpush1.bf16.msra.mxu0 %v5408
        %5429 = vmatprep.subr.bf16.mxu0 0
        %5430 = vmatpush2.bf16.msra.mxu0 0
        %5431 = vmatprep.subr.bf16.mxu0 0
        %5432 = vmatpush2.bf16.msra.mxu0 0
        %5433 = vmatprep.subr.bf16.mxu0 0
        %5434 = vmatpush2.bf16.msra.mxu0 0
        %5435 = vmatprep.subr.bf16.mxu0 0
        %5436 = vmatpush2.bf16.msra.mxu0 0
        %5437 = vmatprep.subr.bf16.mxu0 0
        %5438 = vmatpush2.bf16.msra.mxu0 0
        %5439 = vmatprep.subr.bf16.mxu0 0
        %5440 = vmatpush2.bf16.msra.mxu0 0
        %5441 = vmatprep.subr.bf16.mxu0 0
        %5442 = vmatpush2.bf16.msra.mxu0 0
        %5443 = vmatprep.subr.bf16.mxu0 0
        %5444 = vmatpush2.bf16.msra.mxu0 0
        %5445 = vmatprep.mubr.bf16.mxu0 0
        %5446 = vmatmul.mubr.bf16.gmra.mxu0 %v5405
        %v5447 = vpop.f32.mrf.mxu0
        %v5448 = vadd.f32 0.0, %v5447
        %v5449 = vpop.f32.mrf.mxu0
        %v5450 = vadd.f32 0.0, %v5449
        %v5451 = vpop.f32.mrf.mxu0
        %v5452 = vadd.f32 0.0, %v5451
        %v5453 = vpop.f32.mrf.mxu0
        %v5454 = vadd.f32 0.0, %v5453
        %5455 = vdwg.mxu0
        %v5456 = vadd.f32 %v5382, %v5448
        %v5457 = vadd.f32 %v5383, %v5450
        %v5458 = vadd.f32 %v5384, %v5452
        %v5459 = vadd.f32 %v5385, %v5454
        %5460 = vrot.lane.b32.xlu0 %v668, 110
        %v5461 = vpop.permute.xlu0 %5460
        %5462 = vrot.lane.b32.xlu0 %v670, 110
        %v5463 = vpop.permute.xlu0 %5462
        %vm5464 = vcmp.lt.s32.totalorder %v677, 110
        %v5465 = vsel %vm5464, %v5461, %v5463
        %v5466 = vsel %vm5464, %v5463, %v5461
        %vm5467 = vmand %vm4320, %vm3704
        %v5468 = vsel %vm5467, 1, 0
        %v5469 = vlaneseq
        %v5470 = vshrl.u32 %v5469, 7
        %v5471 = vsub.s32 0, %v5470
        %v5472 = vrot.slane %v5468, %v5471
        %v5473 = vlaneseq
        %v5474 = vshrl.u32 %v5473, 7
        %v5475 = vsub.s32 1, %v5474
        %v5476 = vrot.slane %v5468, %v5475
        %vm5477 = vcmp.eq.s32.totalorder %v5472, 1
        %vm5478 = vcmp.eq.s32.totalorder %v5476, 1
        %v5479 = vsel %vm5477, %v5465, 0.0
        %v5480 = vsel %vm5478, %v5466, 0.0
        %s5481 = scalar_lea.vmem %s13, 152
        %v5482 = vld [vmem:[%s5481] sm:$0xf]
        %v5483 = vld [vmem:[%s5481 + $0x4] sm:$0x3]
        %v5484 = vpack.c.bf16 %v5479, %v5479
        %v5485 = vpack.c.bf16 %v5480, %v5480
        %v5488 = vunpack.c.l.b16 %v5482
        %v5489 = vunpack.c.l.b16 %v5483
        %v5490 = vpack.c.b16 %v5489, %v5488
        %v5492 = vsel %vm768, %v5490, 0
        %v5495 = vand.u32 %v5484, %v775
        %v5498 = vand.u32 %v5485, %v775
        %5500 = vmatprep.subr.bf16.mxu0 0
        %5501 = vmatpush1.bf16.msra.mxu0 0
        %5502 = vmatprep.subr.bf16.mxu0 0
        %5503 = vmatpush1.bf16.msra.mxu0 0
        %5504 = vmatprep.subr.bf16.mxu0 0
        %5505 = vmatpush1.bf16.msra.mxu0 0
        %5506 = vmatprep.subr.bf16.mxu0 0
        %5507 = vmatpush1.bf16.msra.mxu0 0
        %5508 = vmatprep.subr.bf16.mxu0 0
        %5509 = vmatpush1.bf16.msra.mxu0 0
        %5510 = vmatprep.subr.bf16.mxu0 0
        %5511 = vmatpush1.bf16.msra.mxu0 0
        %5512 = vmatprep.subr.bf16.mxu0 0
        %5513 = vmatpush1.bf16.msra.mxu0 0
        %5514 = vmatprep.subr.bf16.mxu0 %v5498
        %5515 = vmatpush1.bf16.msra.mxu0 %v5495
        %5516 = vmatprep.subr.bf16.mxu0 0
        %5517 = vmatpush2.bf16.msra.mxu0 0
        %5518 = vmatprep.subr.bf16.mxu0 0
        %5519 = vmatpush2.bf16.msra.mxu0 0
        %5520 = vmatprep.subr.bf16.mxu0 0
        %5521 = vmatpush2.bf16.msra.mxu0 0
        %5522 = vmatprep.subr.bf16.mxu0 0
        %5523 = vmatpush2.bf16.msra.mxu0 0
        %5524 = vmatprep.subr.bf16.mxu0 0
        %5525 = vmatpush2.bf16.msra.mxu0 0
        %5526 = vmatprep.subr.bf16.mxu0 0
        %5527 = vmatpush2.bf16.msra.mxu0 0
        %5528 = vmatprep.subr.bf16.mxu0 0
        %5529 = vmatpush2.bf16.msra.mxu0 0
        %5530 = vmatprep.subr.bf16.mxu0 0
        %5531 = vmatpush2.bf16.msra.mxu0 0
        %5532 = vmatprep.mubr.bf16.mxu0 0
        %5533 = vmatmul.mubr.bf16.gmra.mxu0 %v5492
        %v5534 = vpop.f32.mrf.mxu0
        %v5535 = vadd.f32 0.0, %v5534
        %v5536 = vpop.f32.mrf.mxu0
        %v5537 = vadd.f32 0.0, %v5536
        %v5538 = vpop.f32.mrf.mxu0
        %v5539 = vadd.f32 0.0, %v5538
        %v5540 = vpop.f32.mrf.mxu0
        %v5541 = vadd.f32 0.0, %v5540
        %5542 = vdwg.mxu0
        %v5543 = vadd.f32 %v5456, %v5535
        %v5544 = vadd.f32 %v5457, %v5537
        %v5545 = vadd.f32 %v5458, %v5539
        %v5546 = vadd.f32 %v5459, %v5541
        %5547 = vrot.lane.b32.xlu0 %v668, 98
        %v5548 = vpop.permute.xlu0 %5547
        %5549 = vrot.lane.b32.xlu0 %v670, 98
        %v5550 = vpop.permute.xlu0 %5549
        %vm5551 = vcmp.lt.s32.totalorder %v677, 98
        %v5552 = vsel %vm5551, %v5548, %v5550
        %v5553 = vsel %vm5551, %v5550, %v5548
        %vm5554 = vcmp.lt.s32.totalorder %v649, 14
        %vm5555 = vmand %vm3980, %vm5554
        %v5556 = vsel %vm5555, 1, 0
        %v5557 = vlaneseq
        %v5558 = vshrl.u32 %v5557, 7
        %v5559 = vsub.s32 0, %v5558
        %v5560 = vrot.slane %v5556, %v5559
        %v5561 = vlaneseq
        %v5562 = vshrl.u32 %v5561, 7
        %v5563 = vsub.s32 1, %v5562
        %v5564 = vrot.slane %v5556, %v5563
        %vm5565 = vcmp.eq.s32.totalorder %v5560, 1
        %vm5566 = vcmp.eq.s32.totalorder %v5564, 1
        %v5567 = vsel %vm5565, %v5552, 0.0
        %v5568 = vsel %vm5566, %v5553, 0.0
        %s5569 = scalar_lea.vmem %s13, 160
        %v5570 = vld [vmem:[%s5569] sm:$0xf]
        %v5571 = vld [vmem:[%s5569 + $0x4] sm:$0x3]
        %v5572 = vpack.c.bf16 %v5567, %v5567
        %v5573 = vpack.c.bf16 %v5568, %v5568
        %v5576 = vunpack.c.l.b16 %v5570
        %v5577 = vunpack.c.l.b16 %v5571
        %v5578 = vpack.c.b16 %v5577, %v5576
        %v5580 = vsel %vm768, %v5578, 0
        %v5583 = vand.u32 %v5572, %v775
        %v5586 = vand.u32 %v5573, %v775
        %5588 = vmatprep.subr.bf16.mxu0 0
        %5589 = vmatpush1.bf16.msra.mxu0 0
        %5590 = vmatprep.subr.bf16.mxu0 0
        %5591 = vmatpush1.bf16.msra.mxu0 0
        %5592 = vmatprep.subr.bf16.mxu0 0
        %5593 = vmatpush1.bf16.msra.mxu0 0
        %5594 = vmatprep.subr.bf16.mxu0 0
        %5595 = vmatpush1.bf16.msra.mxu0 0
        %5596 = vmatprep.subr.bf16.mxu0 0
        %5597 = vmatpush1.bf16.msra.mxu0 0
        %5598 = vmatprep.subr.bf16.mxu0 0
        %5599 = vmatpush1.bf16.msra.mxu0 0
        %5600 = vmatprep.subr.bf16.mxu0 0
        %5601 = vmatpush1.bf16.msra.mxu0 0
        %5602 = vmatprep.subr.bf16.mxu0 %v5586
        %5603 = vmatpush1.bf16.msra.mxu0 %v5583
        %5604 = vmatprep.subr.bf16.mxu0 0
        %5605 = vmatpush2.bf16.msra.mxu0 0
        %5606 = vmatprep.subr.bf16.mxu0 0
        %5607 = vmatpush2.bf16.msra.mxu0 0
        %5608 = vmatprep.subr.bf16.mxu0 0
        %5609 = vmatpush2.bf16.msra.mxu0 0
        %5610 = vmatprep.subr.bf16.mxu0 0
        %5611 = vmatpush2.bf16.msra.mxu0 0
        %5612 = vmatprep.subr.bf16.mxu0 0
        %5613 = vmatpush2.bf16.msra.mxu0 0
        %5614 = vmatprep.subr.bf16.mxu0 0
        %5615 = vmatpush2.bf16.msra.mxu0 0
        %5616 = vmatprep.subr.bf16.mxu0 0
        %5617 = vmatpush2.bf16.msra.mxu0 0
        %5618 = vmatprep.subr.bf16.mxu0 0
        %5619 = vmatpush2.bf16.msra.mxu0 0
        %5620 = vmatprep.mubr.bf16.mxu0 0
        %5621 = vmatmul.mubr.bf16.gmra.mxu0 %v5580
        %v5622 = vpop.f32.mrf.mxu0
        %v5623 = vadd.f32 0.0, %v5622
        %v5624 = vpop.f32.mrf.mxu0
        %v5625 = vadd.f32 0.0, %v5624
        %v5626 = vpop.f32.mrf.mxu0
        %v5627 = vadd.f32 0.0, %v5626
        %v5628 = vpop.f32.mrf.mxu0
        %v5629 = vadd.f32 0.0, %v5628
        %5630 = vdwg.mxu0
        %v5631 = vadd.f32 %v5543, %v5623
        %v5632 = vadd.f32 %v5544, %v5625
        %v5633 = vadd.f32 %v5545, %v5627
        %v5634 = vadd.f32 %v5546, %v5629
        %5635 = vrot.lane.b32.xlu0 %v668, 97
        %v5636 = vpop.permute.xlu0 %5635
        %5637 = vrot.lane.b32.xlu0 %v670, 97
        %v5638 = vpop.permute.xlu0 %5637
        %vm5639 = vcmp.lt.s32.totalorder %v677, 97
        %v5640 = vsel %vm5639, %v5636, %v5638
        %v5641 = vsel %vm5639, %v5638, %v5636
        %vm5642 = vmand %vm3211, %vm5554
        %v5643 = vsel %vm5642, 1, 0
        %v5644 = vlaneseq
        %v5645 = vshrl.u32 %v5644, 7
        %v5646 = vsub.s32 0, %v5645
        %v5647 = vrot.slane %v5643, %v5646
        %v5648 = vlaneseq
        %v5649 = vshrl.u32 %v5648, 7
        %v5650 = vsub.s32 1, %v5649
        %v5651 = vrot.slane %v5643, %v5650
        %vm5652 = vcmp.eq.s32.totalorder %v5647, 1
        %vm5653 = vcmp.eq.s32.totalorder %v5651, 1
        %v5654 = vsel %vm5652, %v5640, 0.0
        %v5655 = vsel %vm5653, %v5641, 0.0
        %s5656 = scalar_lea.vmem %s13, 168
        %v5657 = vld [vmem:[%s5656] sm:$0xf]
        %v5658 = vld [vmem:[%s5656 + $0x4] sm:$0x3]
        %v5659 = vpack.c.bf16 %v5654, %v5654
        %v5660 = vpack.c.bf16 %v5655, %v5655
        %v5663 = vunpack.c.l.b16 %v5657
        %v5664 = vunpack.c.l.b16 %v5658
        %v5665 = vpack.c.b16 %v5664, %v5663
        %v5667 = vsel %vm768, %v5665, 0
        %v5670 = vand.u32 %v5659, %v775
        %v5673 = vand.u32 %v5660, %v775
        %5675 = vmatprep.subr.bf16.mxu0 0
        %5676 = vmatpush1.bf16.msra.mxu0 0
        %5677 = vmatprep.subr.bf16.mxu0 0
        %5678 = vmatpush1.bf16.msra.mxu0 0
        %5679 = vmatprep.subr.bf16.mxu0 0
        %5680 = vmatpush1.bf16.msra.mxu0 0
        %5681 = vmatprep.subr.bf16.mxu0 0
        %5682 = vmatpush1.bf16.msra.mxu0 0
        %5683 = vmatprep.subr.bf16.mxu0 0
        %5684 = vmatpush1.bf16.msra.mxu0 0
        %5685 = vmatprep.subr.bf16.mxu0 0
        %5686 = vmatpush1.bf16.msra.mxu0 0
        %5687 = vmatprep.subr.bf16.mxu0 0
        %5688 = vmatpush1.bf16.msra.mxu0 0
        %5689 = vmatprep.subr.bf16.mxu0 %v5673
        %5690 = vmatpush1.bf16.msra.mxu0 %v5670
        %5691 = vmatprep.subr.bf16.mxu0 0
        %5692 = vmatpush2.bf16.msra.mxu0 0
        %5693 = vmatprep.subr.bf16.mxu0 0
        %5694 = vmatpush2.bf16.msra.mxu0 0
        %5695 = vmatprep.subr.bf16.mxu0 0
        %5696 = vmatpush2.bf16.msra.mxu0 0
        %5697 = vmatprep.subr.bf16.mxu0 0
        %5698 = vmatpush2.bf16.msra.mxu0 0
        %5699 = vmatprep.subr.bf16.mxu0 0
        %5700 = vmatpush2.bf16.msra.mxu0 0
        %5701 = vmatprep.subr.bf16.mxu0 0
        %5702 = vmatpush2.bf16.msra.mxu0 0
        %5703 = vmatprep.subr.bf16.mxu0 0
        %5704 = vmatpush2.bf16.msra.mxu0 0
        %5705 = vmatprep.subr.bf16.mxu0 0
        %5706 = vmatpush2.bf16.msra.mxu0 0
        %5707 = vmatprep.mubr.bf16.mxu0 0
        %5708 = vmatmul.mubr.bf16.gmra.mxu0 %v5667
        %v5709 = vpop.f32.mrf.mxu0
        %v5710 = vadd.f32 0.0, %v5709
        %v5711 = vpop.f32.mrf.mxu0
        %v5712 = vadd.f32 0.0, %v5711
        %v5713 = vpop.f32.mrf.mxu0
        %v5714 = vadd.f32 0.0, %v5713
        %v5715 = vpop.f32.mrf.mxu0
        %v5716 = vadd.f32 0.0, %v5715
        %5717 = vdwg.mxu0
        %v5718 = vadd.f32 %v5631, %v5710
        %v5719 = vadd.f32 %v5632, %v5712
        %v5720 = vadd.f32 %v5633, %v5714
        %v5721 = vadd.f32 %v5634, %v5716
        %5722 = vrot.lane.b32.xlu0 %v668, 96
        %v5723 = vpop.permute.xlu0 %5722
        %5724 = vrot.lane.b32.xlu0 %v670, 96
        %v5725 = vpop.permute.xlu0 %5724
        %vm5726 = vcmp.lt.s32.totalorder %v677, 96
        %v5727 = vsel %vm5726, %v5723, %v5725
        %v5728 = vsel %vm5726, %v5725, %v5723
        %v5729 = vsel %vm5554, 1, 0
        %v5730 = vlaneseq
        %v5731 = vshrl.u32 %v5730, 7
        %v5732 = vsub.s32 0, %v5731
        %v5733 = vrot.slane %v5729, %v5732
        %v5734 = vlaneseq
        %v5735 = vshrl.u32 %v5734, 7
        %v5736 = vsub.s32 1, %v5735
        %v5737 = vrot.slane %v5729, %v5736
        %vm5738 = vcmp.eq.s32.totalorder %v5733, 1
        %vm5739 = vcmp.eq.s32.totalorder %v5737, 1
        %v5740 = vsel %vm5738, %v5727, 0.0
        %v5741 = vsel %vm5739, %v5728, 0.0
        %s5742 = scalar_lea.vmem %s13, 176
        %v5743 = vld [vmem:[%s5742] sm:$0xf]
        %v5744 = vld [vmem:[%s5742 + $0x4] sm:$0x3]
        %v5745 = vpack.c.bf16 %v5740, %v5740
        %v5746 = vpack.c.bf16 %v5741, %v5741
        %v5749 = vunpack.c.l.b16 %v5743
        %v5750 = vunpack.c.l.b16 %v5744
        %v5751 = vpack.c.b16 %v5750, %v5749
        %v5753 = vsel %vm768, %v5751, 0
        %v5756 = vand.u32 %v5745, %v775
        %v5759 = vand.u32 %v5746, %v775
        %5761 = vmatprep.subr.bf16.mxu0 0
        %5762 = vmatpush1.bf16.msra.mxu0 0
        %5763 = vmatprep.subr.bf16.mxu0 0
        %5764 = vmatpush1.bf16.msra.mxu0 0
        %5765 = vmatprep.subr.bf16.mxu0 0
        %5766 = vmatpush1.bf16.msra.mxu0 0
        %5767 = vmatprep.subr.bf16.mxu0 0
        %5768 = vmatpush1.bf16.msra.mxu0 0
        %5769 = vmatprep.subr.bf16.mxu0 0
        %5770 = vmatpush1.bf16.msra.mxu0 0
        %5771 = vmatprep.subr.bf16.mxu0 0
        %5772 = vmatpush1.bf16.msra.mxu0 0
        %5773 = vmatprep.subr.bf16.mxu0 0
        %5774 = vmatpush1.bf16.msra.mxu0 0
        %5775 = vmatprep.subr.bf16.mxu0 %v5759
        %5776 = vmatpush1.bf16.msra.mxu0 %v5756
        %5777 = vmatprep.subr.bf16.mxu0 0
        %5778 = vmatpush2.bf16.msra.mxu0 0
        %5779 = vmatprep.subr.bf16.mxu0 0
        %5780 = vmatpush2.bf16.msra.mxu0 0
        %5781 = vmatprep.subr.bf16.mxu0 0
        %5782 = vmatpush2.bf16.msra.mxu0 0
        %5783 = vmatprep.subr.bf16.mxu0 0
        %5784 = vmatpush2.bf16.msra.mxu0 0
        %5785 = vmatprep.subr.bf16.mxu0 0
        %5786 = vmatpush2.bf16.msra.mxu0 0
        %5787 = vmatprep.subr.bf16.mxu0 0
        %5788 = vmatpush2.bf16.msra.mxu0 0
        %5789 = vmatprep.subr.bf16.mxu0 0
        %5790 = vmatpush2.bf16.msra.mxu0 0
        %5791 = vmatprep.subr.bf16.mxu0 0
        %5792 = vmatpush2.bf16.msra.mxu0 0
        %5793 = vmatprep.mubr.bf16.mxu0 0
        %5794 = vmatmul.mubr.bf16.gmra.mxu0 %v5753
        %v5795 = vpop.f32.mrf.mxu0
        %v5796 = vadd.f32 0.0, %v5795
        %v5797 = vpop.f32.mrf.mxu0
        %v5798 = vadd.f32 0.0, %v5797
        %v5799 = vpop.f32.mrf.mxu0
        %v5800 = vadd.f32 0.0, %v5799
        %v5801 = vpop.f32.mrf.mxu0
        %v5802 = vadd.f32 0.0, %v5801
        %5803 = vdwg.mxu0
        %v5804 = vadd.f32 %v5718, %v5796
        %v5805 = vadd.f32 %v5719, %v5798
        %v5806 = vadd.f32 %v5720, %v5800
        %v5807 = vadd.f32 %v5721, %v5802
        %5808 = vrot.lane.b32.xlu0 %v668, 95
        %v5809 = vpop.permute.xlu0 %5808
        %5810 = vrot.lane.b32.xlu0 %v670, 95
        %v5811 = vpop.permute.xlu0 %5810
        %vm5812 = vcmp.lt.s32.totalorder %v677, 95
        %v5813 = vsel %vm5812, %v5809, %v5811
        %v5814 = vsel %vm5812, %v5811, %v5809
        %vm5815 = vmand %vm3380, %vm5554
        %v5816 = vsel %vm5815, 1, 0
        %v5817 = vlaneseq
        %v5818 = vshrl.u32 %v5817, 7
        %v5819 = vsub.s32 0, %v5818
        %v5820 = vrot.slane %v5816, %v5819
        %v5821 = vlaneseq
        %v5822 = vshrl.u32 %v5821, 7
        %v5823 = vsub.s32 1, %v5822
        %v5824 = vrot.slane %v5816, %v5823
        %vm5825 = vcmp.eq.s32.totalorder %v5820, 1
        %vm5826 = vcmp.eq.s32.totalorder %v5824, 1
        %v5827 = vsel %vm5825, %v5813, 0.0
        %v5828 = vsel %vm5826, %v5814, 0.0
        %s5829 = scalar_lea.vmem %s13, 184
        %v5830 = vld [vmem:[%s5829] sm:$0xf]
        %v5831 = vld [vmem:[%s5829 + $0x4] sm:$0x3]
        %v5832 = vpack.c.bf16 %v5827, %v5827
        %v5833 = vpack.c.bf16 %v5828, %v5828
        %v5836 = vunpack.c.l.b16 %v5830
        %v5837 = vunpack.c.l.b16 %v5831
        %v5838 = vpack.c.b16 %v5837, %v5836
        %v5840 = vsel %vm768, %v5838, 0
        %v5843 = vand.u32 %v5832, %v775
        %v5846 = vand.u32 %v5833, %v775
        %5848 = vmatprep.subr.bf16.mxu0 0
        %5849 = vmatpush1.bf16.msra.mxu0 0
        %5850 = vmatprep.subr.bf16.mxu0 0
        %5851 = vmatpush1.bf16.msra.mxu0 0
        %5852 = vmatprep.subr.bf16.mxu0 0
        %5853 = vmatpush1.bf16.msra.mxu0 0
        %5854 = vmatprep.subr.bf16.mxu0 0
        %5855 = vmatpush1.bf16.msra.mxu0 0
        %5856 = vmatprep.subr.bf16.mxu0 0
        %5857 = vmatpush1.bf16.msra.mxu0 0
        %5858 = vmatprep.subr.bf16.mxu0 0
        %5859 = vmatpush1.bf16.msra.mxu0 0
        %5860 = vmatprep.subr.bf16.mxu0 0
        %5861 = vmatpush1.bf16.msra.mxu0 0
        %5862 = vmatprep.subr.bf16.mxu0 %v5846
        %5863 = vmatpush1.bf16.msra.mxu0 %v5843
        %5864 = vmatprep.subr.bf16.mxu0 0
        %5865 = vmatpush2.bf16.msra.mxu0 0
        %5866 = vmatprep.subr.bf16.mxu0 0
        %5867 = vmatpush2.bf16.msra.mxu0 0
        %5868 = vmatprep.subr.bf16.mxu0 0
        %5869 = vmatpush2.bf16.msra.mxu0 0
        %5870 = vmatprep.subr.bf16.mxu0 0
        %5871 = vmatpush2.bf16.msra.mxu0 0
        %5872 = vmatprep.subr.bf16.mxu0 0
        %5873 = vmatpush2.bf16.msra.mxu0 0
        %5874 = vmatprep.subr.bf16.mxu0 0
        %5875 = vmatpush2.bf16.msra.mxu0 0
        %5876 = vmatprep.subr.bf16.mxu0 0
        %5877 = vmatpush2.bf16.msra.mxu0 0
        %5878 = vmatprep.subr.bf16.mxu0 0
        %5879 = vmatpush2.bf16.msra.mxu0 0
        %5880 = vmatprep.mubr.bf16.mxu0 0
        %5881 = vmatmul.mubr.bf16.gmra.mxu0 %v5840
        %v5882 = vpop.f32.mrf.mxu0
        %v5883 = vadd.f32 0.0, %v5882
        %v5884 = vpop.f32.mrf.mxu0
        %v5885 = vadd.f32 0.0, %v5884
        %v5886 = vpop.f32.mrf.mxu0
        %v5887 = vadd.f32 0.0, %v5886
        %v5888 = vpop.f32.mrf.mxu0
        %v5889 = vadd.f32 0.0, %v5888
        %5890 = vdwg.mxu0
        %v5891 = vadd.f32 %v5804, %v5883
        %v5892 = vadd.f32 %v5805, %v5885
        %v5893 = vadd.f32 %v5806, %v5887
        %v5894 = vadd.f32 %v5807, %v5889
        %5895 = vrot.lane.b32.xlu0 %v668, 94
        %v5896 = vpop.permute.xlu0 %5895
        %5897 = vrot.lane.b32.xlu0 %v670, 94
        %v5898 = vpop.permute.xlu0 %5897
        %vm5899 = vcmp.lt.s32.totalorder %v677, 94
        %v5900 = vsel %vm5899, %v5896, %v5898
        %v5901 = vsel %vm5899, %v5898, %v5896
        %vm5902 = vmand %vm4320, %vm5554
        %v5903 = vsel %vm5902, 1, 0
        %v5904 = vlaneseq
        %v5905 = vshrl.u32 %v5904, 7
        %v5906 = vsub.s32 0, %v5905
        %v5907 = vrot.slane %v5903, %v5906
        %v5908 = vlaneseq
        %v5909 = vshrl.u32 %v5908, 7
        %v5910 = vsub.s32 1, %v5909
        %v5911 = vrot.slane %v5903, %v5910
        %vm5912 = vcmp.eq.s32.totalorder %v5907, 1
        %vm5913 = vcmp.eq.s32.totalorder %v5911, 1
        %v5914 = vsel %vm5912, %v5900, 0.0
        %v5915 = vsel %vm5913, %v5901, 0.0
        %s5916 = scalar_lea.vmem %s13, 192
        %v5917 = vld [vmem:[%s5916] sm:$0xf]
        %v5918 = vld [vmem:[%s5916 + $0x4] sm:$0x3]
        %v5919 = vpack.c.bf16 %v5914, %v5914
        %v5920 = vpack.c.bf16 %v5915, %v5915
        %v5923 = vunpack.c.l.b16 %v5917
        %v5924 = vunpack.c.l.b16 %v5918
        %v5925 = vpack.c.b16 %v5924, %v5923
        %v5927 = vsel %vm768, %v5925, 0
        %v5930 = vand.u32 %v5919, %v775
        %v5933 = vand.u32 %v5920, %v775
        %5935 = vmatprep.subr.bf16.mxu0 0
        %5936 = vmatpush1.bf16.msra.mxu0 0
        %5937 = vmatprep.subr.bf16.mxu0 0
        %5938 = vmatpush1.bf16.msra.mxu0 0
        %5939 = vmatprep.subr.bf16.mxu0 0
        %5940 = vmatpush1.bf16.msra.mxu0 0
        %5941 = vmatprep.subr.bf16.mxu0 0
        %5942 = vmatpush1.bf16.msra.mxu0 0
        %5943 = vmatprep.subr.bf16.mxu0 0
        %5944 = vmatpush1.bf16.msra.mxu0 0
        %5945 = vmatprep.subr.bf16.mxu0 0
        %5946 = vmatpush1.bf16.msra.mxu0 0
        %5947 = vmatprep.subr.bf16.mxu0 0
        %5948 = vmatpush1.bf16.msra.mxu0 0
        %5949 = vmatprep.subr.bf16.mxu0 %v5933
        %5950 = vmatpush1.bf16.msra.mxu0 %v5930
        %5951 = vmatprep.subr.bf16.mxu0 0
        %5952 = vmatpush2.bf16.msra.mxu0 0
        %5953 = vmatprep.subr.bf16.mxu0 0
        %5954 = vmatpush2.bf16.msra.mxu0 0
        %5955 = vmatprep.subr.bf16.mxu0 0
        %5956 = vmatpush2.bf16.msra.mxu0 0
        %5957 = vmatprep.subr.bf16.mxu0 0
        %5958 = vmatpush2.bf16.msra.mxu0 0
        %5959 = vmatprep.subr.bf16.mxu0 0
        %5960 = vmatpush2.bf16.msra.mxu0 0
        %5961 = vmatprep.subr.bf16.mxu0 0
        %5962 = vmatpush2.bf16.msra.mxu0 0
        %5963 = vmatprep.subr.bf16.mxu0 0
        %5964 = vmatpush2.bf16.msra.mxu0 0
        %5965 = vmatprep.subr.bf16.mxu0 0
        %5966 = vmatpush2.bf16.msra.mxu0 0
        %5967 = vmatprep.mubr.bf16.mxu0 0
        %5968 = vmatmul.mubr.bf16.gmra.mxu0 %v5927
        %v5969 = vpop.f32.mrf.mxu0
        %v5970 = vadd.f32 0.0, %v5969
        %v5971 = vpop.f32.mrf.mxu0
        %v5972 = vadd.f32 0.0, %v5971
        %v5973 = vpop.f32.mrf.mxu0
        %v5974 = vadd.f32 0.0, %v5973
        %v5975 = vpop.f32.mrf.mxu0
        %v5976 = vadd.f32 0.0, %v5975
        %5977 = vdwg.mxu0
        %v5978 = vadd.f32 %v5891, %v5970
        %v5979 = vadd.f32 %v5892, %v5972
        %v5980 = vadd.f32 %v5893, %v5974
        %v5981 = vadd.f32 %v5894, %v5976
        %v5982 = vld [vmem:[%s14] sm:$0xff]
        %v5983 = vld [vmem:[%s14 + $0x8] sm:$0xf]
        %5985 = vset.pattern.permute.xlu0 0
        %5986 = vperm.xlu0 %5985, %v5982
        %v5987 = vpop.permute.xlu0 %5986
        %5990 = vset.pattern.permute.xlu0 0
        %5991 = vperm.xlu0 %5990, %v5983
        %v5992 = vpop.permute.xlu0 %5991
        %v5994 = vadd.f32 %v5978, %v5987
        %v5995 = vadd.f32 %v5979, %v5987
        %v5996 = vadd.f32 %v5980, %v5992
        %v5997 = vadd.f32 %v5981, %v5992
        %v5998 = vadd.f32 %v3969, %v5994
        %v5999 = vadd.f32 %v3970, %v5995
        %v6000 = vadd.f32 %v3971, %v5996
        %v6001 = vadd.f32 %v3972, %v5997
        %v6002 = vld [vmem:[%s15] sm:$0xff]
        %v6003 = vld [vmem:[%s15 + $0x8] sm:$0xf]
        %6005 = vset.pattern.permute.xlu0 0
        %6006 = vperm.xlu0 %6005, %v6002
        %v6007 = vpop.permute.xlu0 %6006
        %6010 = vset.pattern.permute.xlu0 0
        %6011 = vperm.xlu0 %6010, %v6003
        %v6012 = vpop.permute.xlu0 %6011
        %v6014 = vadd.f32 %v5998, %v6007
        %v6015 = vadd.f32 %v5999, %v6007
        %v6016 = vadd.f32 %v6000, %v6012
        %v6017 = vadd.f32 %v6001, %v6012
        %v6018 = vxor.u32 %v6014, 2147483648
        %v6019 = vxor.u32 %v6015, 2147483648
        %v6020 = vxor.u32 %v6016, 2147483648
        %v6021 = vxor.u32 %v6017, 2147483648
        %v6022 = vmul.f32 %v6018, 1.442695
        %v6023 = vpow.pop %v6022
        %v6024 = vmul.f32 %v6019, 1.442695
        %v6025 = vpow.pop %v6024
        %v6026 = vmul.f32 %v6020, 1.442695
        %v6027 = vpow.pop %v6026
        %v6028 = vmul.f32 %v6021, 1.442695
        %v6029 = vpow.pop %v6028
        %v6030 = vadd.f32 %v6023, 1.0
        %v6031 = vadd.f32 %v6025, 1.0
        %v6032 = vadd.f32 %v6027, 1.0
        %v6033 = vadd.f32 %v6029, 1.0
        %v6034 = vrcp.pop %v6030
        %v6035 = vmul.f32 1.0, %v6034
        %v6036 = vrcp.pop %v6031
        %v6037 = vmul.f32 1.0, %v6036
        %v6038 = vrcp.pop %v6032
        %v6039 = vmul.f32 1.0, %v6038
        %v6040 = vrcp.pop %v6033
        %v6041 = vmul.f32 1.0, %v6040
        %6042 = vst [vmem:[%s646] sm:$0xff] %v6035
        %6043 = vst [vmem:[%s646 + $0x8] sm:$0xff] %v6037
        %6044 = vst [vmem:[%s646 + $0x10] sm:$0xf] %v6039
        %6045 = vst [vmem:[%s646 + $0x18] sm:$0xf] %v6041
        %p6046 = scmp.lt.s32.totalorder %s33, 1
        %s6047 = scalar_select %p6046, %s33, 1
        %s6048 = smul.addr %s6047, 4
        %s6049 = smul.addr %s6048, 8
        %s6050 = scalar_lea.vmem %s17, %s6049
        // Predicated region
        $region117: #{wdsr_forward.1} parent=87 // pred_check
          %p6051 = pneg %p413
        $region118: #{wdsr_forward.1} parent=87 // pred_check_branch
          %6053 = sbr.rel (%p6051) target = $region120
        $region119: #{wdsr_forward.1} parent=87 // pred_region
          _
        $region120: #{wdsr_forward.1} parent=87 // pred_fallthru
          _
      $region88: #{wdsr_forward.1} parent=5 // pred_fallthru
        _
      %p6054 = scmp.le.s32.totalorder 2, %s28
      // Predicated region
      $region121: #{wdsr_forward.1} parent=5 // pred_check
        %p6055 = pneg %p6054
      $region122: #{wdsr_forward.1} parent=5 // pred_check_branch
        %6057 = sbr.rel (%p6055) target = $region124
      $region123: #{wdsr_forward.1} parent=5 // pred_region
        %s6058 = ssub.s32 %s28, 2
        // Predicated region
        $region125: #{wdsr_forward.1} parent=123 // pred_check
          %p6059 = pneg %p419
        $region126: #{wdsr_forward.1} parent=123 // pred_check_branch
          %6061 = sbr.rel (%p6059) target = $region128
        $region127: #{wdsr_forward.1} parent=123 // pred_region
          %p6062 = scmp.lt.s32.totalorder %s34, 1
          %s6063 = scalar_select %p6062, %s34, 1
          %s6064 = smul.addr %s6063, 4
          %s6065 = smul.addr %s6064, 8
          %s6066 = scalar_lea.vmem %s17, %s6065
        $region128: #{wdsr_forward.1} parent=123 // pred_fallthru
          _
      $region124: #{wdsr_forward.1} parent=5 // pred_fallthru
        _
    $region6: #{wdsr_forward.1} parent=1 // loop_footer
      %s32 = sadd.s32 1, %s28
    $region7: #{wdsr_forward.1} parent=1 // loop_footer_branch
      %27 = sbr.rel target = $region3
    $region8: #{wdsr_forward.1} parent=1 // loop_exit
      _
    %6067 = vsyncpa [#allocation3], 1
    %s6068 = scalar_lea.sflag [#allocation3], 1
    %6069 = vsyncpa %s6068, 1
    %6070 = vsyncpa [#allocation6], 1
    %6071 = vsyncpa [#allocation9], 1
    %6072 = vsyncpa [#allocation12], 1
    %6073 = vsyncpa [#allocation4], 1
    %s6074 = scalar_lea.sflag [#allocation4], 1
    %6075 = vsyncpa %s6074, 1

</llo_original>
